<compile_context>
chip_gen: v7x
topology: tpu7x:2x2x1
jax: 0.10.0
libtpu: 0.0.40
codegen_flags: <defaults>
</compile_context>

<pallas_src>
import jax
import jax.numpy as jnp
from jax.experimental import pallas as pl
from jax.experimental.pallas import tpu as pltpu

HIDDEN = 50
MAX_TM = 4096          # batch tile upper bound (multiple of 128)


def _round_up(v, m):
    return ((v + m - 1) // m) * m


def _choose_tile(n):
    """Lane-dense batch tile; prefer >= 2 grid steps so both v7x cores work."""
    half = _round_up(max(1, -(-n // 2)), 128)   # ceil(n/2) rounded to 128
    tm = min(MAX_TM, half)
    n_pad = _round_up(n, tm)
    return tm, n_pad


def _pinn_kernel(xy_ref, w1x_ref, w1y_ref, b1_ref,
                 w2t_ref, b2_ref, w3t_ref, b3_ref, out_ref):
    """One lane-dense batch tile of the 2-50-50-1 tanh MLP (transposed layout)."""
    xy = xy_ref[...]                                             # (2, TM)
    x = xy[0:1, :]                                               # (1, TM)
    y = xy[1:2, :]                                               # (1, TM)

    # Layer 1 (in_features = 2): pure VPU broadcast FMAs, no MXU, no concat.
    z1 = w1x_ref[...] * x + w1y_ref[...] * y + b1_ref[...]       # (50, TM)
    h1 = jnp.tanh(z1)

    # Layer 2: (50, 50) @ (50, TM) on the MXU at full f32 precision
    # (MXU is nearly idle -> HIGHEST precision costs no wall clock).
    z2 = jnp.dot(w2t_ref[...], h1,
                 preferred_element_type=jnp.float32,
                 precision=jax.lax.Precision.HIGHEST) + b2_ref[...]
    h2 = jnp.tanh(z2)                                            # (50, TM)

    # Layer 3: (1, 50) @ (50, TM) -> (1, TM); lane-dense store.
    out_ref[...] = (
        jnp.dot(w3t_ref[...], h2,
                preferred_element_type=jnp.float32,
                precision=jax.lax.Precision.HIGHEST)
        + b3_ref[0])


@jax.jit
def helmholtz_pinn_forward(x, y, params):
    """x, y: (N, 1) float32.  Returns (N, 1) float32."""
    w1, b1, w2, b2, w3, b3 = params
    n = x.shape[0]

    tm, n_pad = _choose_tile(n)
    g = n_pad // tm

    # Pack x and y into a single (2, N_pad) lane-dense input.
    xr = x.reshape(-1).astype(jnp.float32)
    yr = y.reshape(-1).astype(jnp.float32)
    xy = jnp.stack([xr, yr], axis=0)                 # (2, N)
    if n_pad != n:
        xy = jnp.pad(xy, ((0, 0), (0, n_pad - n)))   # (2, N_pad)

    # Weights reshaped once (outside the kernel) into the transposed layout.
    w1x = w1[0].reshape(HIDDEN, 1)          # (50, 1) weights multiplying x
    w1y = w1[1].reshape(HIDDEN, 1)          # (50, 1) weights multiplying y
    b1c = b1.reshape(HIDDEN, 1)             # (50, 1)
    w2t = w2.T                              # (50, 50): layer 2 is W2^T @ h1
    b2c = b2.reshape(HIDDEN, 1)             # (50, 1)
    w3t = w3.reshape(1, HIDDEN)             # (1, 50)
    b3s = b3.reshape(1)                     # scalar bias -> SMEM

    full = lambda i: (0, 0)

    out_row = pl.pallas_call(
        _pinn_kernel,
        out_shape=jax.ShapeDtypeStruct((1, n_pad), jnp.float32),
        grid_spec=pltpu.PrefetchScalarGridSpec(
            num_scalar_prefetch=0,
            grid=(g,),
            in_specs=[
                pl.BlockSpec((2, tm), lambda i: (0, i)),            # packed x/y
                pl.BlockSpec((HIDDEN, 1), full),                    # W1 col (x)
                pl.BlockSpec((HIDDEN, 1), full),                    # W1 col (y)
                pl.BlockSpec((HIDDEN, 1), full),                    # b1
                pl.BlockSpec((HIDDEN, HIDDEN), full),               # W2^T
                pl.BlockSpec((HIDDEN, 1), full),                    # b2
                pl.BlockSpec((1, HIDDEN), full),                    # W3^T
                pl.BlockSpec(memory_space=pltpu.MemorySpace.SMEM),  # b3 scalar
            ],
            out_specs=pl.BlockSpec((1, tm), lambda i: (0, i)),
        ),
        compiler_params=pltpu.CompilerParams(
            dimension_semantics=("parallel",)),
    )(xy, w1x, w1y, b1c, w2t, b2c, w3t, b3s)

    return out_row[0, :n].reshape(n, 1)


def init_params(key):
    """Deterministic init mirroring nn.Linear default (U(-1/sqrt(fan_in), +))."""
    def linear(key, fan_in, fan_out):
        kw, kb = jax.random.split(key)
        bound = 1.0 / jnp.sqrt(jnp.float32(fan_in))
        # Stored as (in, out), i.e. PyTorch weight.T.
        w = jax.random.uniform(kw, (fan_in, fan_out), jnp.float32,
                               minval=-bound, maxval=bound)
        b = jax.random.uniform(kb, (1, fan_out), jnp.float32,
                               minval=-bound, maxval=bound)
        return w, b

    k1, k2, k3 = jax.random.split(key, 3)
    w1, b1 = linear(k1, 2, HIDDEN)
    w2, b2 = linear(k2, HIDDEN, HIDDEN)
    w3, b3 = linear(k3, HIDDEN, 1)
    return (w1, b1, w2, b2, w3, b3)


def _reference_forward(x, y, params):
    """Pure-JAX reference (same math as the PyTorch module, true f32 matmuls)."""
    w1, b1, w2, b2, w3, b3 = params
    # Layer 1 written elementwise -- identical math to cat([x, y], 1) @ W1 + b1.
    h = jnp.tanh(x * w1[0:1, :] + y * w1[1:2, :] + b1)
    h = jnp.tanh(jnp.dot(h, w2, precision=jax.lax.Precision.HIGHEST) + b2)
    return jnp.dot(h, w3, precision=jax.lax.Precision.HIGHEST) + b3


if __name__ == "__main__":
    key = jax.random.PRNGKey(0)
    kp, kx, ky = jax.random.split(key, 3)

    params = init_params(kp)

    N = 2000  # collocation points -> tm=1024, 2 grid steps (both v7x cores busy)
    x = jax.random.uniform(kx, (N, 1), jnp.float32)
    y = jax.random.uniform(ky, (N, 1), jnp.float32)

    out = helmholtz_pinn_forward(x, y, params)
    out = jax.block_until_ready(out)

    ref = _reference_forward(x, y, params)
    assert out.shape == (N, 1), out.shape
    max_err = float(jnp.max(jnp.abs(out - ref)))
    assert jnp.allclose(out, ref, atol=5e-4, rtol=5e-4), max_err

    print("KERNEL_OK")
</pallas_src>

<mosaic_0001>
module attributes {stable_mosaic.version = 11 : i64} {
  func.func @_pinn_kernel(%arg0: i32, %arg1: memref<2x1024xf32, #tpu.memory_space<vmem>>, %arg2: memref<50x1xf32, #tpu.memory_space<vmem>>, %arg3: memref<50x1xf32, #tpu.memory_space<vmem>>, %arg4: memref<50x1xf32, #tpu.memory_space<vmem>>, %arg5: memref<50x50xf32, #tpu.memory_space<vmem>>, %arg6: memref<50x1xf32, #tpu.memory_space<vmem>>, %arg7: memref<1x50xf32, #tpu.memory_space<vmem>>, %arg8: memref<1xf32, #tpu.memory_space<smem>>, %arg9: memref<1x1024xf32, #tpu.memory_space<vmem>>) attributes {dimension_semantics = [#tpu.dimension_semantics<parallel>], iteration_bounds = array<i64: 2>, scalar_prefetch = 0 : i64, scratch_operands = 0 : i64, tpu.core_type = #tpu.core_type<tc>, window_params = [{transform_indices = @transform_0, window_bounds = array<i64: 2, 1024>}, {pipeline_mode = #tpu.pipeline_mode<synchronous>, transform_indices = @transform_1, window_bounds = array<i64: 50, 1>}, {pipeline_mode = #tpu.pipeline_mode<synchronous>, transform_indices = @transform_2, window_bounds = array<i64: 50, 1>}, {pipeline_mode = #tpu.pipeline_mode<synchronous>, transform_indices = @transform_3, window_bounds = array<i64: 50, 1>}, {pipeline_mode = #tpu.pipeline_mode<synchronous>, transform_indices = @transform_4, window_bounds = array<i64: 50, 50>}, {pipeline_mode = #tpu.pipeline_mode<synchronous>, transform_indices = @transform_5, window_bounds = array<i64: 50, 1>}, {pipeline_mode = #tpu.pipeline_mode<synchronous>, transform_indices = @transform_6, window_bounds = array<i64: 1, 50>}, {transform_indices = @transform_7, window_bounds = array<i64: 1>}, {transform_indices = @transform_8, window_bounds = array<i64: 1, 1024>}]} {
    %c0 = arith.constant 0 : index
    %c0_0 = arith.constant 0 : index
    %0 = vector.load %arg1[%c0, %c0_0] : memref<2x1024xf32, #tpu.memory_space<vmem>>, vector<2x1024xf32>
    %1 = vector.extract_strided_slice %0 {offsets = [0, 0], sizes = [1, 1024], strides = [1, 1]} : vector<2x1024xf32> to vector<1x1024xf32>
    %2 = vector.extract_strided_slice %0 {offsets = [1, 0], sizes = [1, 1024], strides = [1, 1]} : vector<2x1024xf32> to vector<1x1024xf32>
    %c0_1 = arith.constant 0 : index
    %c0_2 = arith.constant 0 : index
    %3 = vector.load %arg2[%c0_1, %c0_2] : memref<50x1xf32, #tpu.memory_space<vmem>>, vector<50x1xf32>
    %4 = vector.broadcast %3 : vector<50x1xf32> to vector<50x1024xf32>
    %5 = vector.broadcast %1 : vector<1x1024xf32> to vector<50x1024xf32>
    %6 = arith.mulf %4, %5 : vector<50x1024xf32>
    %c0_3 = arith.constant 0 : index
    %c0_4 = arith.constant 0 : index
    %7 = vector.load %arg3[%c0_3, %c0_4] : memref<50x1xf32, #tpu.memory_space<vmem>>, vector<50x1xf32>
    %8 = vector.broadcast %7 : vector<50x1xf32> to vector<50x1024xf32>
    %9 = vector.broadcast %2 : vector<1x1024xf32> to vector<50x1024xf32>
    %10 = arith.mulf %8, %9 : vector<50x1024xf32>
    %11 = arith.addf %6, %10 : vector<50x1024xf32>
    %c0_5 = arith.constant 0 : index
    %c0_6 = arith.constant 0 : index
    %12 = vector.load %arg4[%c0_5, %c0_6] : memref<50x1xf32, #tpu.memory_space<vmem>>, vector<50x1xf32>
    %13 = vector.broadcast %12 : vector<50x1xf32> to vector<50x1024xf32>
    %14 = arith.addf %11, %13 : vector<50x1024xf32>
    %15 = math.tanh %14 : vector<50x1024xf32>
    %c0_7 = arith.constant 0 : index
    %c0_8 = arith.constant 0 : index
    %16 = vector.load %arg5[%c0_7, %c0_8] : memref<50x50xf32, #tpu.memory_space<vmem>>, vector<50x50xf32>
    %cst = arith.constant dense<0.000000e+00> : vector<50x1024xf32>
    %17 = tpu.matmul %16, %15, %cst {dimension_numbers = #tpu.dot_dimension_numbers<[1], [0], [0], [1], [0, 0, 1, 1], [], []>, precision = #tpu.contract_precision<fp32>} : vector<50x50xf32>, vector<50x1024xf32>, vector<50x1024xf32> -> vector<50x1024xf32>
    %c0_9 = arith.constant 0 : index
    %c0_10 = arith.constant 0 : index
    %18 = vector.load %arg6[%c0_9, %c0_10] : memref<50x1xf32, #tpu.memory_space<vmem>>, vector<50x1xf32>
    %19 = vector.broadcast %18 : vector<50x1xf32> to vector<50x1024xf32>
    %20 = arith.addf %17, %19 : vector<50x1024xf32>
    %21 = math.tanh %20 : vector<50x1024xf32>
    %c0_11 = arith.constant 0 : index
    %c0_12 = arith.constant 0 : index
    %22 = vector.load %arg7[%c0_11, %c0_12] : memref<1x50xf32, #tpu.memory_space<vmem>>, vector<1x50xf32>
    %cst_13 = arith.constant dense<0.000000e+00> : vector<1x1024xf32>
    %23 = tpu.matmul %22, %21, %cst_13 {dimension_numbers = #tpu.dot_dimension_numbers<[1], [0], [0], [1], [0, 0, 1, 1], [], []>, precision = #tpu.contract_precision<fp32>} : vector<1x50xf32>, vector<50x1024xf32>, vector<1x1024xf32> -> vector<1x1024xf32>
    %c0_14 = arith.constant 0 : index
    %24 = memref.load %arg8[%c0_14] : memref<1xf32, #tpu.memory_space<smem>>
    %25 = vector.broadcast %24 : f32 to vector<1x1024xf32>
    %26 = arith.addf %23, %25 : vector<1x1024xf32>
    %c0_15 = arith.constant 0 : index
    %c0_16 = arith.constant 0 : index
    %27 = vector.load %arg9[%c0_15, %c0_16] : memref<1x1024xf32, #tpu.memory_space<vmem>>, vector<1x1024xf32>
    tpu.vector_store %arg9[%c0_15, %c0_16], %26 {strides = array<i32>} : memref<1x1024xf32, #tpu.memory_space<vmem>>, vector<1x1024xf32>,
    return
  }
  func.func @transform_0(%arg0: i32) -> (i32, i32) {
    %c0_i32 = arith.constant 0 : i32
    %c0_i32_0 = arith.constant 0 : i32
    return %c0_i32, %arg0 : i32, i32
  }
  func.func @transform_1(%arg0: i32) -> (i32, i32) {
    %c0_i32 = arith.constant 0 : i32
    %c0_i32_0 = arith.constant 0 : i32
    %c0_i32_1 = arith.constant 0 : i32
    return %c0_i32, %c0_i32_0 : i32, i32
  }
  func.func @transform_2(%arg0: i32) -> (i32, i32) {
    %c0_i32 = arith.constant 0 : i32
    %c0_i32_0 = arith.constant 0 : i32
    %c0_i32_1 = arith.constant 0 : i32
    return %c0_i32, %c0_i32_0 : i32, i32
  }
  func.func @transform_3(%arg0: i32) -> (i32, i32) {
    %c0_i32 = arith.constant 0 : i32
    %c0_i32_0 = arith.constant 0 : i32
    %c0_i32_1 = arith.constant 0 : i32
    return %c0_i32, %c0_i32_0 : i32, i32
  }
  func.func @transform_4(%arg0: i32) -> (i32, i32) {
    %c0_i32 = arith.constant 0 : i32
    %c0_i32_0 = arith.constant 0 : i32
    %c0_i32_1 = arith.constant 0 : i32
    return %c0_i32, %c0_i32_0 : i32, i32
  }
  func.func @transform_5(%arg0: i32) -> (i32, i32) {
    %c0_i32 = arith.constant 0 : i32
    %c0_i32_0 = arith.constant 0 : i32
    %c0_i32_1 = arith.constant 0 : i32
    return %c0_i32, %c0_i32_0 : i32, i32
  }
  func.func @transform_6(%arg0: i32) -> (i32, i32) {
    %c0_i32 = arith.constant 0 : i32
    %c0_i32_0 = arith.constant 0 : i32
    %c0_i32_1 = arith.constant 0 : i32
    return %c0_i32, %c0_i32_0 : i32, i32
  }
  func.func @transform_7(%arg0: i32) -> i32 {
    %c0_i32 = arith.constant 0 : i32
    %c0_i32_0 = arith.constant 0 : i32
    return %c0_i32 : i32
  }
  func.func @transform_8(%arg0: i32) -> (i32, i32) {
    %c0_i32 = arith.constant 0 : i32
    %c0_i32_0 = arith.constant 0 : i32
    return %c0_i32, %arg0 : i32, i32
  }
}

</mosaic_0001>

<llo_original>
// kernel: helmholtz_pinn_forward.1
$region0: #{helmholtz_pinn_forward.1}
  #allocation0 [shape = 'u32[]', space=smem, size = 0x4, offset = 0x4, fixed_abs, tag = 'smem constant byte address 0x4 - core index']
  #allocation1 [shape = 'u32[144,128]{1,0:T(1,128)}', space=vmem, size = 0x12000, scoped, tag = 'internal scratch']
  #allocation2 [shape = 'f32[1]{0:T(128)S(6)}', space=smem, size = 0x200, scoped, tag = 'scoped memory for helmholtz_pinn_forward.1']
  %s0 = inlined_call_operand.vmem [shape: f32[2,2048], index: 0, kind: input, shape index: {}]
  %s1 = inlined_call_operand.vmem [shape: f32[50,1], index: 1, kind: input, shape index: {}]
  %s2 = inlined_call_operand.vmem [shape: f32[50,1], index: 2, kind: input, shape index: {}]
  %s3 = inlined_call_operand.vmem [shape: f32[50,1], index: 3, kind: input, shape index: {}]
  %s4 = inlined_call_operand.vmem [shape: f32[50,50], index: 4, kind: input, shape index: {}]
  %s5 = inlined_call_operand.vmem [shape: f32[50,1], index: 5, kind: input, shape index: {}]
  %s6 = inlined_call_operand.vmem [shape: f32[1,50], index: 6, kind: input, shape index: {}]
  %s7 = inlined_call_operand.<no memory space> [shape: f32[1], index: 7, kind: input, shape index: {}]
  %s8 = inlined_call_operand.vmem [shape: f32[1,2048], index: 8, kind: output, shape index: {}]
  %s9 = sld [smem:[#allocation0]]
  $region65: #{helmholtz_pinn_forward.1} parent=0
    _
  %s11 = ssub.s32 1, %s9
  %s12 = scalar_select 0, %s11, %s9
  %13 = sst [smem:[#allocation2]] %s7
  loop: start=0, step=1, limit=4
  $region2: #{helmholtz_pinn_forward.1} parent=0 // loop_pre_header
    _
  $region3: #{helmholtz_pinn_forward.1} parent=0 // loop_header
    %s15 = sphi 0, %s19
    %p16 = scmp.ge.s32.totalorder %s15, 4
    %s25 = sphi 0, %s27
    %s28 = sphi 0, %s25
    %s29 = sphi 0, %s28
    %s45 = sphi 0, %s29
    %s49 = sphi 0, %s49
    %s51 = sphi 0, %s49
    %s52 = sphi 0, %s51
    %s66 = sphi 0, %s52
    %s70 = sphi 0, %s70
    %s72 = sphi 0, %s70
    %s73 = sphi 0, %s72
    %s87 = sphi 0, %s73
    %s91 = sphi 0, %s91
    %s93 = sphi 0, %s91
    %s94 = sphi 0, %s93
    %s108 = sphi 0, %s94
    %s112 = sphi 0, %s112
    %s114 = sphi 0, %s112
    %s115 = sphi 0, %s114
    %s129 = sphi 0, %s115
    %s133 = sphi 0, %s133
    %s135 = sphi 0, %s133
    %s136 = sphi 0, %s135
    %s150 = sphi 0, %s136
    %s154 = sphi 0, %s154
    %s156 = sphi 0, %s154
    %s157 = sphi 0, %s156
    %s171 = sphi 0, %s157
    %s175 = sphi 0, %s175
    %s177 = sphi 0, %s175
    %s178 = sphi 0, %s177
    %s192 = sphi 0, %s178
    %s198 = sphi 0, %s200
    %s201 = sphi 0, %s198
    %s202 = sphi 0, %s201
    %s218 = sphi 0, %s202
  $region4: #{helmholtz_pinn_forward.1} parent=0 // loop_header_branch
    %18 = sbr.rel (%p16) target = $region8
  $region5: #{helmholtz_pinn_forward.1} parent=0 // loop_body
    %s20 = ssub.s32 %s15, 1
    %s21 = ssub.s32 %s15, 2
    %s22 = sadd.s32 %s15, 1
    %s23 = ssub.s32 %s15, %s22
    %p24 = scmp.eq.s32.totalorder %s23, 0
    %s26 = sadd.s32 %s25, 1
    %s27 = scalar_select %p24, %s25, %s26
    %p30 = pneg %p24
    %p31 = scmp.eq.s32.totalorder %s15, 1
    %p32 = por %p30, %p31
    %p33 = scmp.ne.s32.totalorder %s25, %s28
    %p34 = scmp.eq.s32.totalorder %s15, 0
    %p35 = por %p33, %p34
    %p36 = scmp.ne.s32.totalorder %s25, %s28
    %p37 = scmp.eq.s32.totalorder %s20, 1
    %p38 = por %p36, %p37
    %p39 = scmp.ne.s32.totalorder %s28, %s29
    %p40 = scmp.eq.s32.totalorder %s20, 0
    %p41 = por %p39, %p40
    %p42 = scmp.ne.s32.totalorder %s28, %s29
    %p43 = scmp.eq.s32.totalorder %s21, 1
    %p44 = por %p42, %p43
    %p46 = scmp.ne.s32.totalorder %s29, %s45
    %p47 = scmp.eq.s32.totalorder %s21, 0
    %p48 = por %p46, %p47
    %s50 = sadd.s32 %s49, 1
    %p53 = scmp.eq.s32.totalorder %s15, 1
    %p54 = scmp.ne.s32.totalorder %s49, %s51
    %p55 = scmp.eq.s32.totalorder %s15, 0
    %p56 = por %p54, %p55
    %p57 = scmp.ne.s32.totalorder %s49, %s51
    %p58 = scmp.eq.s32.totalorder %s20, 1
    %p59 = por %p57, %p58
    %p60 = scmp.ne.s32.totalorder %s51, %s52
    %p61 = scmp.eq.s32.totalorder %s20, 0
    %p62 = por %p60, %p61
    %p63 = scmp.ne.s32.totalorder %s51, %s52
    %p64 = scmp.eq.s32.totalorder %s21, 1
    %p65 = por %p63, %p64
    %p67 = scmp.ne.s32.totalorder %s52, %s66
    %p68 = scmp.eq.s32.totalorder %s21, 0
    %p69 = por %p67, %p68
    %s71 = sadd.s32 %s70, 1
    %p74 = scmp.eq.s32.totalorder %s15, 1
    %p75 = scmp.ne.s32.totalorder %s70, %s72
    %p76 = scmp.eq.s32.totalorder %s15, 0
    %p77 = por %p75, %p76
    %p78 = scmp.ne.s32.totalorder %s70, %s72
    %p79 = scmp.eq.s32.totalorder %s20, 1
    %p80 = por %p78, %p79
    %p81 = scmp.ne.s32.totalorder %s72, %s73
    %p82 = scmp.eq.s32.totalorder %s20, 0
    %p83 = por %p81, %p82
    %p84 = scmp.ne.s32.totalorder %s72, %s73
    %p85 = scmp.eq.s32.totalorder %s21, 1
    %p86 = por %p84, %p85
    %p88 = scmp.ne.s32.totalorder %s73, %s87
    %p89 = scmp.eq.s32.totalorder %s21, 0
    %p90 = por %p88, %p89
    %s92 = sadd.s32 %s91, 1
    %p95 = scmp.eq.s32.totalorder %s15, 1
    %p96 = scmp.ne.s32.totalorder %s91, %s93
    %p97 = scmp.eq.s32.totalorder %s15, 0
    %p98 = por %p96, %p97
    %p99 = scmp.ne.s32.totalorder %s91, %s93
    %p100 = scmp.eq.s32.totalorder %s20, 1
    %p101 = por %p99, %p100
    %p102 = scmp.ne.s32.totalorder %s93, %s94
    %p103 = scmp.eq.s32.totalorder %s20, 0
    %p104 = por %p102, %p103
    %p105 = scmp.ne.s32.totalorder %s93, %s94
    %p106 = scmp.eq.s32.totalorder %s21, 1
    %p107 = por %p105, %p106
    %p109 = scmp.ne.s32.totalorder %s94, %s108
    %p110 = scmp.eq.s32.totalorder %s21, 0
    %p111 = por %p109, %p110
    %s113 = sadd.s32 %s112, 1
    %p116 = scmp.eq.s32.totalorder %s15, 1
    %p117 = scmp.ne.s32.totalorder %s112, %s114
    %p118 = scmp.eq.s32.totalorder %s15, 0
    %p119 = por %p117, %p118
    %p120 = scmp.ne.s32.totalorder %s112, %s114
    %p121 = scmp.eq.s32.totalorder %s20, 1
    %p122 = por %p120, %p121
    %p123 = scmp.ne.s32.totalorder %s114, %s115
    %p124 = scmp.eq.s32.totalorder %s20, 0
    %p125 = por %p123, %p124
    %p126 = scmp.ne.s32.totalorder %s114, %s115
    %p127 = scmp.eq.s32.totalorder %s21, 1
    %p128 = por %p126, %p127
    %p130 = scmp.ne.s32.totalorder %s115, %s129
    %p131 = scmp.eq.s32.totalorder %s21, 0
    %p132 = por %p130, %p131
    %s134 = sadd.s32 %s133, 1
    %p137 = scmp.eq.s32.totalorder %s15, 1
    %p138 = scmp.ne.s32.totalorder %s133, %s135
    %p139 = scmp.eq.s32.totalorder %s15, 0
    %p140 = por %p138, %p139
    %p141 = scmp.ne.s32.totalorder %s133, %s135
    %p142 = scmp.eq.s32.totalorder %s20, 1
    %p143 = por %p141, %p142
    %p144 = scmp.ne.s32.totalorder %s135, %s136
    %p145 = scmp.eq.s32.totalorder %s20, 0
    %p146 = por %p144, %p145
    %p147 = scmp.ne.s32.totalorder %s135, %s136
    %p148 = scmp.eq.s32.totalorder %s21, 1
    %p149 = por %p147, %p148
    %p151 = scmp.ne.s32.totalorder %s136, %s150
    %p152 = scmp.eq.s32.totalorder %s21, 0
    %p153 = por %p151, %p152
    %s155 = sadd.s32 %s154, 1
    %p158 = scmp.eq.s32.totalorder %s15, 1
    %p159 = scmp.ne.s32.totalorder %s154, %s156
    %p160 = scmp.eq.s32.totalorder %s15, 0
    %p161 = por %p159, %p160
    %p162 = scmp.ne.s32.totalorder %s154, %s156
    %p163 = scmp.eq.s32.totalorder %s20, 1
    %p164 = por %p162, %p163
    %p165 = scmp.ne.s32.totalorder %s156, %s157
    %p166 = scmp.eq.s32.totalorder %s20, 0
    %p167 = por %p165, %p166
    %p168 = scmp.ne.s32.totalorder %s156, %s157
    %p169 = scmp.eq.s32.totalorder %s21, 1
    %p170 = por %p168, %p169
    %p172 = scmp.ne.s32.totalorder %s157, %s171
    %p173 = scmp.eq.s32.totalorder %s21, 0
    %p174 = por %p172, %p173
    %s176 = sadd.s32 %s175, 1
    %p179 = scmp.eq.s32.totalorder %s15, 1
    %p180 = scmp.ne.s32.totalorder %s175, %s177
    %p181 = scmp.eq.s32.totalorder %s15, 0
    %p182 = por %p180, %p181
    %p183 = scmp.ne.s32.totalorder %s175, %s177
    %p184 = scmp.eq.s32.totalorder %s20, 1
    %p185 = por %p183, %p184
    %p186 = scmp.ne.s32.totalorder %s177, %s178
    %p187 = scmp.eq.s32.totalorder %s20, 0
    %p188 = por %p186, %p187
    %p189 = scmp.ne.s32.totalorder %s177, %s178
    %p190 = scmp.eq.s32.totalorder %s21, 1
    %p191 = por %p189, %p190
    %p193 = scmp.ne.s32.totalorder %s178, %s192
    %p194 = scmp.eq.s32.totalorder %s21, 0
    %p195 = por %p193, %p194
    %s196 = ssub.s32 %s15, %s22
    %p197 = scmp.eq.s32.totalorder %s196, 0
    %s199 = sadd.s32 %s198, 1
    %s200 = scalar_select %p197, %s198, %s199
    %p203 = pneg %p197
    %p204 = scmp.eq.s32.totalorder %s15, 1
    %p205 = por %p203, %p204
    %p206 = scmp.ne.s32.totalorder %s198, %s201
    %p207 = scmp.eq.s32.totalorder %s15, 0
    %p208 = por %p206, %p207
    %p209 = scmp.ne.s32.totalorder %s198, %s201
    %p210 = scmp.eq.s32.totalorder %s20, 1
    %p211 = por %p209, %p210
    %p212 = scmp.ne.s32.totalorder %s201, %s202
    %p213 = scmp.eq.s32.totalorder %s20, 0
    %p214 = por %p212, %p213
    %p215 = scmp.ne.s32.totalorder %s201, %s202
    %p216 = scmp.eq.s32.totalorder %s21, 1
    %p217 = por %p215, %p216
    %p219 = scmp.ne.s32.totalorder %s202, %s218
    %p220 = scmp.eq.s32.totalorder %s21, 0
    %p221 = por %p219, %p220
    %p222 = scmp.le.s32.totalorder 1, %s15
    %p223 = scmp.lt.s32.totalorder %s15, 3
    %p224 = pnand %p222, %p223
    %p225 = pneg %p224
    // Predicated region
    $region9: #{helmholtz_pinn_forward.1} parent=5 // pred_check
      _
    $region10: #{helmholtz_pinn_forward.1} parent=5 // pred_check_branch
      %227 = sbr.rel (%p224) target = $region12
    $region11: #{helmholtz_pinn_forward.1} parent=5 // pred_region
      %s228 = ssub.s32 %s15, 1
      // Predicated region
      $region13: #{helmholtz_pinn_forward.1} parent=11 // pred_check
        %p229 = pneg %p62
      $region14: #{helmholtz_pinn_forward.1} parent=11 // pred_check_branch
        %231 = sbr.rel (%p229) target = $region16
      $region15: #{helmholtz_pinn_forward.1} parent=11 // pred_region
        _
      $region16: #{helmholtz_pinn_forward.1} parent=11 // pred_fallthru
        _
      // Predicated region
      $region17: #{helmholtz_pinn_forward.1} parent=11 // pred_check
        %p232 = pneg %p83
      $region18: #{helmholtz_pinn_forward.1} parent=11 // pred_check_branch
        %234 = sbr.rel (%p232) target = $region20
      $region19: #{helmholtz_pinn_forward.1} parent=11 // pred_region
        _
      $region20: #{helmholtz_pinn_forward.1} parent=11 // pred_fallthru
        _
      // Predicated region
      $region21: #{helmholtz_pinn_forward.1} parent=11 // pred_check
        %p235 = pneg %p104
      $region22: #{helmholtz_pinn_forward.1} parent=11 // pred_check_branch
        %237 = sbr.rel (%p235) target = $region24
      $region23: #{helmholtz_pinn_forward.1} parent=11 // pred_region
        _
      $region24: #{helmholtz_pinn_forward.1} parent=11 // pred_fallthru
        _
      // Predicated region
      $region25: #{helmholtz_pinn_forward.1} parent=11 // pred_check
        %p238 = pneg %p125
      $region26: #{helmholtz_pinn_forward.1} parent=11 // pred_check_branch
        %240 = sbr.rel (%p238) target = $region28
      $region27: #{helmholtz_pinn_forward.1} parent=11 // pred_region
        _
      $region28: #{helmholtz_pinn_forward.1} parent=11 // pred_fallthru
        _
      // Predicated region
      $region29: #{helmholtz_pinn_forward.1} parent=11 // pred_check
        %p241 = pneg %p146
      $region30: #{helmholtz_pinn_forward.1} parent=11 // pred_check_branch
        %243 = sbr.rel (%p241) target = $region32
      $region31: #{helmholtz_pinn_forward.1} parent=11 // pred_region
        _
      $region32: #{helmholtz_pinn_forward.1} parent=11 // pred_fallthru
        _
      // Predicated region
      $region33: #{helmholtz_pinn_forward.1} parent=11 // pred_check
        %p244 = pneg %p167
      $region34: #{helmholtz_pinn_forward.1} parent=11 // pred_check_branch
        %246 = sbr.rel (%p244) target = $region36
      $region35: #{helmholtz_pinn_forward.1} parent=11 // pred_region
        _
      $region36: #{helmholtz_pinn_forward.1} parent=11 // pred_fallthru
        _
      // Predicated region
      $region37: #{helmholtz_pinn_forward.1} parent=11 // pred_check
        %p247 = pneg %p188
      $region38: #{helmholtz_pinn_forward.1} parent=11 // pred_check_branch
        %249 = sbr.rel (%p247) target = $region40
      $region39: #{helmholtz_pinn_forward.1} parent=11 // pred_region
        _
      $region40: #{helmholtz_pinn_forward.1} parent=11 // pred_fallthru
        _
    $region12: #{helmholtz_pinn_forward.1} parent=5 // pred_fallthru
      _
    %p250 = scmp.lt.s32.totalorder %s15, 2
    // Predicated region
    $region41: #{helmholtz_pinn_forward.1} parent=5 // pred_check
      %p251 = pneg %p250
    $region42: #{helmholtz_pinn_forward.1} parent=5 // pred_check_branch
      %253 = sbr.rel (%p251) target = $region44
    $region43: #{helmholtz_pinn_forward.1} parent=5 // pred_region
      // Predicated region
      $region45: #{helmholtz_pinn_forward.1} parent=43 // pred_check
        %p254 = pneg %p35
      $region46: #{helmholtz_pinn_forward.1} parent=43 // pred_check_branch
        %256 = sbr.rel (%p254) target = $region48
      $region47: #{helmholtz_pinn_forward.1} parent=43 // pred_region
        %s257 = smul.u32 8, %s15
        %p258 = scmp.lt.s32.totalorder %s257, 15
        %s259 = scalar_select %p258, %s257, 15
        %s260 = smul.addr %s259, 2
        %s261 = scalar_lea.vmem %s0, %s260
        %s262 = smul.u32 8, %s15
      $region48: #{helmholtz_pinn_forward.1} parent=43 // pred_fallthru
        _
    $region44: #{helmholtz_pinn_forward.1} parent=5 // pred_fallthru
      _
    %p263 = scmp.le.s32.totalorder 1, %s15
    %p264 = scmp.lt.s32.totalorder %s15, 3
    %p265 = pnand %p263, %p264
    %p266 = pneg %p265
    // Predicated region
    $region49: #{helmholtz_pinn_forward.1} parent=5 // pred_check
      _
    $region50: #{helmholtz_pinn_forward.1} parent=5 // pred_check_branch
      %268 = sbr.rel (%p265) target = $region52
    $region51: #{helmholtz_pinn_forward.1} parent=5 // pred_region
      %s269 = ssub.s32 %s15, 1
      %s270 = smul.u32 8, %s20
      %p271 = scmp.lt.s32.totalorder %s270, 15
      %s272 = scalar_select %p271, %s270, 15
      %s273 = smul.addr %s272, 2
      %s274 = scalar_lea.vmem %s0, %s273
      %p275 = pneg %p41
      %p276 = pneg %p38
      %p277 = pneg %p62
      %p278 = pneg %p59
      %p279 = pneg %p83
      %p280 = pneg %p80
      %p281 = pneg %p104
      %p282 = pneg %p101
      %p283 = pneg %p125
      %p284 = pneg %p122
      %p285 = pneg %p146
      %p286 = pneg %p143
      %p287 = pneg %p167
      %p288 = pneg %p164
      %p289 = pneg %p188
      %p290 = pneg %p185
      %p291 = pneg %p214
      %p292 = pneg %p211
      %s293 = smul.u32 8, %s20
      %p294 = scmp.lt.s32.totalorder %s293, 15
      %s295 = scalar_select %p294, %s293, 15
      %s296 = scalar_lea.vmem %s8, %s295
      %s297 = smul.u32 8, %s20
      %p298 = scmp.lt.s32.totalorder %s297, 15
      %s299 = scalar_select %p298, %s297, 15
      %s300 = smul.addr %s299, 2
      %s301 = scalar_lea.vmem %s0, %s300
      %s302 = smul.u32 8, %s20
      %s303 = smul.u32 8, %s20
      %p304 = scmp.lt.s32.totalorder %s303, 15
      %s305 = scalar_select %p304, %s303, 15
      %s306 = scalar_lea.vmem %s8, %s305
      %s307 = smul.u32 8, %s20
      %v308 = vld [vmem:[%s301] sm:$0xff]
      %v309 = vld [vmem:[%s301 + $0x8] sm:$0xff]
      %v310 = vld [vmem:[%s1] sm:$0xff]
      %v311 = vld [vmem:[%s1 + $0x8] sm:$0xff]
      %v312 = vld [vmem:[%s1 + $0x10] sm:$0xff]
      %v313 = vld [vmem:[%s1 + $0x18] sm:$0xff]
      %v314 = vld [vmem:[%s1 + $0x20] sm:$0xff]
      %v315 = vld [vmem:[%s1 + $0x28] sm:$0xff]
      %v316 = vld [vmem:[%s1 + $0x30] sm:$0x3]
      %318 = vset.pattern.permute.xlu0 0
      %319 = vperm.xlu0 %318, %v310
      %v320 = vpop.permute.xlu0 %319
      %323 = vset.pattern.permute.xlu0 0
      %324 = vperm.xlu0 %323, %v311
      %v325 = vpop.permute.xlu0 %324
      %328 = vset.pattern.permute.xlu0 0
      %329 = vperm.xlu0 %328, %v312
      %v330 = vpop.permute.xlu0 %329
      %333 = vset.pattern.permute.xlu0 0
      %334 = vperm.xlu0 %333, %v313
      %v335 = vpop.permute.xlu0 %334
      %338 = vset.pattern.permute.xlu0 0
      %339 = vperm.xlu0 %338, %v314
      %v340 = vpop.permute.xlu0 %339
      %343 = vset.pattern.permute.xlu0 0
      %344 = vperm.xlu0 %343, %v315
      %v345 = vpop.permute.xlu0 %344
      %348 = vset.pattern.permute.xlu0 0
      %349 = vperm.xlu0 %348, %v316
      %v350 = vpop.permute.xlu0 %349
      %v354 = vlaneseq
      %v355 = vshrl.u32 %v354, 7
      %v356 = vsub.s32 0, %v355
      %v357 = vrot.slane %v308, %v356
      %v358 = vlaneseq
      %v359 = vshrl.u32 %v358, 7
      %v360 = vsub.s32 2, %v359
      %v361 = vrot.slane %v308, %v360
      %v362 = vlaneseq
      %v363 = vshrl.u32 %v362, 7
      %v364 = vsub.s32 4, %v363
      %v365 = vrot.slane %v308, %v364
      %v366 = vlaneseq
      %v367 = vshrl.u32 %v366, 7
      %v368 = vsub.s32 6, %v367
      %v369 = vrot.slane %v308, %v368
      %v370 = vlaneseq
      %v371 = vshrl.u32 %v370, 7
      %v372 = vsub.s32 0, %v371
      %v373 = vrot.slane %v309, %v372
      %v374 = vlaneseq
      %v375 = vshrl.u32 %v374, 7
      %v376 = vsub.s32 2, %v375
      %v377 = vrot.slane %v309, %v376
      %v378 = vlaneseq
      %v379 = vshrl.u32 %v378, 7
      %v380 = vsub.s32 4, %v379
      %v381 = vrot.slane %v309, %v380
      %v382 = vlaneseq
      %v383 = vshrl.u32 %v382, 7
      %v384 = vsub.s32 6, %v383
      %v385 = vrot.slane %v309, %v384
      %v394 = vlaneseq
      %v395 = vshrl.u32 %v394, 7
      %v396 = vsub.s32 0, %v395
      %v397 = vrot.slane %v357, %v396
      %v398 = vlaneseq
      %v399 = vshrl.u32 %v398, 7
      %v400 = vsub.s32 0, %v399
      %v401 = vrot.slane %v361, %v400
      %v402 = vlaneseq
      %v403 = vshrl.u32 %v402, 7
      %v404 = vsub.s32 0, %v403
      %v405 = vrot.slane %v365, %v404
      %v406 = vlaneseq
      %v407 = vshrl.u32 %v406, 7
      %v408 = vsub.s32 0, %v407
      %v409 = vrot.slane %v369, %v408
      %v410 = vlaneseq
      %v411 = vshrl.u32 %v410, 7
      %v412 = vsub.s32 0, %v411
      %v413 = vrot.slane %v373, %v412
      %v414 = vlaneseq
      %v415 = vshrl.u32 %v414, 7
      %v416 = vsub.s32 0, %v415
      %v417 = vrot.slane %v377, %v416
      %v418 = vlaneseq
      %v419 = vshrl.u32 %v418, 7
      %v420 = vsub.s32 0, %v419
      %v421 = vrot.slane %v381, %v420
      %v422 = vlaneseq
      %v423 = vshrl.u32 %v422, 7
      %v424 = vsub.s32 0, %v423
      %v425 = vrot.slane %v385, %v424
      %v426 = vmul.f32 %v320, %v397
      %v427 = vmul.f32 %v320, %v401
      %v428 = vmul.f32 %v320, %v405
      %v429 = vmul.f32 %v320, %v409
      %v430 = vmul.f32 %v320, %v413
      %v431 = vmul.f32 %v320, %v417
      %v432 = vmul.f32 %v320, %v421
      %v433 = vmul.f32 %v320, %v425
      %v434 = vmul.f32 %v325, %v397
      %v435 = vmul.f32 %v325, %v401
      %v436 = vmul.f32 %v325, %v405
      %v437 = vmul.f32 %v325, %v409
      %v438 = vmul.f32 %v325, %v413
      %v439 = vmul.f32 %v325, %v417
      %v440 = vmul.f32 %v325, %v421
      %v441 = vmul.f32 %v325, %v425
      %v442 = vmul.f32 %v330, %v397
      %v443 = vmul.f32 %v330, %v401
      %v444 = vmul.f32 %v330, %v405
      %v445 = vmul.f32 %v330, %v409
      %v446 = vmul.f32 %v330, %v413
      %v447 = vmul.f32 %v330, %v417
      %v448 = vmul.f32 %v330, %v421
      %v449 = vmul.f32 %v330, %v425
      %v450 = vmul.f32 %v335, %v397
      %v451 = vmul.f32 %v335, %v401
      %v452 = vmul.f32 %v335, %v405
      %v453 = vmul.f32 %v335, %v409
      %v454 = vmul.f32 %v335, %v413
      %v455 = vmul.f32 %v335, %v417
      %v456 = vmul.f32 %v335, %v421
      %v457 = vmul.f32 %v335, %v425
      %v458 = vmul.f32 %v340, %v397
      %v459 = vmul.f32 %v340, %v401
      %v460 = vmul.f32 %v340, %v405
      %v461 = vmul.f32 %v340, %v409
      %v462 = vmul.f32 %v340, %v413
      %v463 = vmul.f32 %v340, %v417
      %v464 = vmul.f32 %v340, %v421
      %v465 = vmul.f32 %v340, %v425
      %v466 = vmul.f32 %v345, %v397
      %v467 = vmul.f32 %v345, %v401
      %v468 = vmul.f32 %v345, %v405
      %v469 = vmul.f32 %v345, %v409
      %v470 = vmul.f32 %v345, %v413
      %v471 = vmul.f32 %v345, %v417
      %v472 = vmul.f32 %v345, %v421
      %v473 = vmul.f32 %v345, %v425
      %v474 = vmul.f32 %v350, %v397
      %v475 = vmul.f32 %v350, %v401
      %v476 = vmul.f32 %v350, %v405
      %v477 = vmul.f32 %v350, %v409
      %v478 = vmul.f32 %v350, %v413
      %v479 = vmul.f32 %v350, %v417
      %v480 = vmul.f32 %v350, %v421
      %v481 = vmul.f32 %v350, %v425
      %v482 = vld [vmem:[%s2] sm:$0xff]
      %v483 = vld [vmem:[%s2 + $0x8] sm:$0xff]
      %v484 = vld [vmem:[%s2 + $0x10] sm:$0xff]
      %v485 = vld [vmem:[%s2 + $0x18] sm:$0xff]
      %v486 = vld [vmem:[%s2 + $0x20] sm:$0xff]
      %v487 = vld [vmem:[%s2 + $0x28] sm:$0xff]
      %v488 = vld [vmem:[%s2 + $0x30] sm:$0x3]
      %490 = vset.pattern.permute.xlu0 0
      %491 = vperm.xlu0 %490, %v482
      %v492 = vpop.permute.xlu0 %491
      %495 = vset.pattern.permute.xlu0 0
      %496 = vperm.xlu0 %495, %v483
      %v497 = vpop.permute.xlu0 %496
      %500 = vset.pattern.permute.xlu0 0
      %501 = vperm.xlu0 %500, %v484
      %v502 = vpop.permute.xlu0 %501
      %505 = vset.pattern.permute.xlu0 0
      %506 = vperm.xlu0 %505, %v485
      %v507 = vpop.permute.xlu0 %506
      %510 = vset.pattern.permute.xlu0 0
      %511 = vperm.xlu0 %510, %v486
      %v512 = vpop.permute.xlu0 %511
      %515 = vset.pattern.permute.xlu0 0
      %516 = vperm.xlu0 %515, %v487
      %v517 = vpop.permute.xlu0 %516
      %520 = vset.pattern.permute.xlu0 0
      %521 = vperm.xlu0 %520, %v488
      %v522 = vpop.permute.xlu0 %521
      %v524 = vlaneseq
      %v525 = vshrl.u32 %v524, 7
      %v526 = vsub.s32 1, %v525
      %v527 = vrot.slane %v308, %v526
      %v528 = vlaneseq
      %v529 = vshrl.u32 %v528, 7
      %v530 = vsub.s32 3, %v529
      %v531 = vrot.slane %v308, %v530
      %v532 = vlaneseq
      %v533 = vshrl.u32 %v532, 7
      %v534 = vsub.s32 5, %v533
      %v535 = vrot.slane %v308, %v534
      %v536 = vlaneseq
      %v537 = vshrl.u32 %v536, 7
      %v538 = vsub.s32 7, %v537
      %v539 = vrot.slane %v308, %v538
      %v540 = vlaneseq
      %v541 = vshrl.u32 %v540, 7
      %v542 = vsub.s32 1, %v541
      %v543 = vrot.slane %v309, %v542
      %v544 = vlaneseq
      %v545 = vshrl.u32 %v544, 7
      %v546 = vsub.s32 3, %v545
      %v547 = vrot.slane %v309, %v546
      %v548 = vlaneseq
      %v549 = vshrl.u32 %v548, 7
      %v550 = vsub.s32 5, %v549
      %v551 = vrot.slane %v309, %v550
      %v552 = vlaneseq
      %v553 = vshrl.u32 %v552, 7
      %v554 = vsub.s32 7, %v553
      %v555 = vrot.slane %v309, %v554
      %v564 = vlaneseq
      %v565 = vshrl.u32 %v564, 7
      %v566 = vsub.s32 1, %v565
      %v567 = vrot.slane %v527, %v566
      %v568 = vlaneseq
      %v569 = vshrl.u32 %v568, 7
      %v570 = vsub.s32 1, %v569
      %v571 = vrot.slane %v531, %v570
      %v572 = vlaneseq
      %v573 = vshrl.u32 %v572, 7
      %v574 = vsub.s32 1, %v573
      %v575 = vrot.slane %v535, %v574
      %v576 = vlaneseq
      %v577 = vshrl.u32 %v576, 7
      %v578 = vsub.s32 1, %v577
      %v579 = vrot.slane %v539, %v578
      %v580 = vlaneseq
      %v581 = vshrl.u32 %v580, 7
      %v582 = vsub.s32 1, %v581
      %v583 = vrot.slane %v543, %v582
      %v584 = vlaneseq
      %v585 = vshrl.u32 %v584, 7
      %v586 = vsub.s32 1, %v585
      %v587 = vrot.slane %v547, %v586
      %v588 = vlaneseq
      %v589 = vshrl.u32 %v588, 7
      %v590 = vsub.s32 1, %v589
      %v591 = vrot.slane %v551, %v590
      %v592 = vlaneseq
      %v593 = vshrl.u32 %v592, 7
      %v594 = vsub.s32 1, %v593
      %v595 = vrot.slane %v555, %v594
      %v596 = vmul.f32 %v492, %v567
      %v597 = vmul.f32 %v492, %v571
      %v598 = vmul.f32 %v492, %v575
      %v599 = vmul.f32 %v492, %v579
      %v600 = vmul.f32 %v492, %v583
      %v601 = vmul.f32 %v492, %v587
      %v602 = vmul.f32 %v492, %v591
      %v603 = vmul.f32 %v492, %v595
      %v604 = vmul.f32 %v497, %v567
      %v605 = vmul.f32 %v497, %v571
      %v606 = vmul.f32 %v497, %v575
      %v607 = vmul.f32 %v497, %v579
      %v608 = vmul.f32 %v497, %v583
      %v609 = vmul.f32 %v497, %v587
      %v610 = vmul.f32 %v497, %v591
      %v611 = vmul.f32 %v497, %v595
      %v612 = vmul.f32 %v502, %v567
      %v613 = vmul.f32 %v502, %v571
      %v614 = vmul.f32 %v502, %v575
      %v615 = vmul.f32 %v502, %v579
      %v616 = vmul.f32 %v502, %v583
      %v617 = vmul.f32 %v502, %v587
      %v618 = vmul.f32 %v502, %v591
      %v619 = vmul.f32 %v502, %v595
      %v620 = vmul.f32 %v507, %v567
      %v621 = vmul.f32 %v507, %v571
      %v622 = vmul.f32 %v507, %v575
      %v623 = vmul.f32 %v507, %v579
      %v624 = vmul.f32 %v507, %v583
      %v625 = vmul.f32 %v507, %v587
      %v626 = vmul.f32 %v507, %v591
      %v627 = vmul.f32 %v507, %v595
      %v628 = vmul.f32 %v512, %v567
      %v629 = vmul.f32 %v512, %v571
      %v630 = vmul.f32 %v512, %v575
      %v631 = vmul.f32 %v512, %v579
      %v632 = vmul.f32 %v512, %v583
      %v633 = vmul.f32 %v512, %v587
      %v634 = vmul.f32 %v512, %v591
      %v635 = vmul.f32 %v512, %v595
      %v636 = vmul.f32 %v517, %v567
      %v637 = vmul.f32 %v517, %v571
      %v638 = vmul.f32 %v517, %v575
      %v639 = vmul.f32 %v517, %v579
      %v640 = vmul.f32 %v517, %v583
      %v641 = vmul.f32 %v517, %v587
      %v642 = vmul.f32 %v517, %v591
      %v643 = vmul.f32 %v517, %v595
      %v644 = vmul.f32 %v522, %v567
      %v645 = vmul.f32 %v522, %v571
      %v646 = vmul.f32 %v522, %v575
      %v647 = vmul.f32 %v522, %v579
      %v648 = vmul.f32 %v522, %v583
      %v649 = vmul.f32 %v522, %v587
      %v650 = vmul.f32 %v522, %v591
      %v651 = vmul.f32 %v522, %v595
      %v652 = vadd.f32 %v426, %v596
      %v653 = vadd.f32 %v427, %v597
      %v654 = vadd.f32 %v428, %v598
      %v655 = vadd.f32 %v429, %v599
      %v656 = vadd.f32 %v430, %v600
      %v657 = vadd.f32 %v431, %v601
      %v658 = vadd.f32 %v432, %v602
      %v659 = vadd.f32 %v433, %v603
      %v660 = vadd.f32 %v434, %v604
      %v661 = vadd.f32 %v435, %v605
      %v662 = vadd.f32 %v436, %v606
      %v663 = vadd.f32 %v437, %v607
      %v664 = vadd.f32 %v438, %v608
      %v665 = vadd.f32 %v439, %v609
      %v666 = vadd.f32 %v440, %v610
      %v667 = vadd.f32 %v441, %v611
      %v668 = vadd.f32 %v442, %v612
      %v669 = vadd.f32 %v443, %v613
      %v670 = vadd.f32 %v444, %v614
      %v671 = vadd.f32 %v445, %v615
      %v672 = vadd.f32 %v446, %v616
      %v673 = vadd.f32 %v447, %v617
      %v674 = vadd.f32 %v448, %v618
      %v675 = vadd.f32 %v449, %v619
      %v676 = vadd.f32 %v450, %v620
      %v677 = vadd.f32 %v451, %v621
      %v678 = vadd.f32 %v452, %v622
      %v679 = vadd.f32 %v453, %v623
      %v680 = vadd.f32 %v454, %v624
      %v681 = vadd.f32 %v455, %v625
      %v682 = vadd.f32 %v456, %v626
      %v683 = vadd.f32 %v457, %v627
      %v684 = vadd.f32 %v458, %v628
      %v685 = vadd.f32 %v459, %v629
      %v686 = vadd.f32 %v460, %v630
      %v687 = vadd.f32 %v461, %v631
      %v688 = vadd.f32 %v462, %v632
      %v689 = vadd.f32 %v463, %v633
      %v690 = vadd.f32 %v464, %v634
      %v691 = vadd.f32 %v465, %v635
      %v692 = vadd.f32 %v466, %v636
      %v693 = vadd.f32 %v467, %v637
      %v694 = vadd.f32 %v468, %v638
      %v695 = vadd.f32 %v469, %v639
      %v696 = vadd.f32 %v470, %v640
      %v697 = vadd.f32 %v471, %v641
      %v698 = vadd.f32 %v472, %v642
      %v699 = vadd.f32 %v473, %v643
      %v700 = vadd.f32 %v474, %v644
      %v701 = vadd.f32 %v475, %v645
      %v702 = vadd.f32 %v476, %v646
      %v703 = vadd.f32 %v477, %v647
      %v704 = vadd.f32 %v478, %v648
      %v705 = vadd.f32 %v479, %v649
      %v706 = vadd.f32 %v480, %v650
      %v707 = vadd.f32 %v481, %v651
      %v708 = vld [vmem:[%s3] sm:$0xff]
      %v709 = vld [vmem:[%s3 + $0x8] sm:$0xff]
      %v710 = vld [vmem:[%s3 + $0x10] sm:$0xff]
      %v711 = vld [vmem:[%s3 + $0x18] sm:$0xff]
      %v712 = vld [vmem:[%s3 + $0x20] sm:$0xff]
      %v713 = vld [vmem:[%s3 + $0x28] sm:$0xff]
      %v714 = vld [vmem:[%s3 + $0x30] sm:$0x3]
      %716 = vset.pattern.permute.xlu0 0
      %717 = vperm.xlu0 %716, %v708
      %v718 = vpop.permute.xlu0 %717
      %721 = vset.pattern.permute.xlu0 0
      %722 = vperm.xlu0 %721, %v709
      %v723 = vpop.permute.xlu0 %722
      %726 = vset.pattern.permute.xlu0 0
      %727 = vperm.xlu0 %726, %v710
      %v728 = vpop.permute.xlu0 %727
      %731 = vset.pattern.permute.xlu0 0
      %732 = vperm.xlu0 %731, %v711
      %v733 = vpop.permute.xlu0 %732
      %736 = vset.pattern.permute.xlu0 0
      %737 = vperm.xlu0 %736, %v712
      %v738 = vpop.permute.xlu0 %737
      %741 = vset.pattern.permute.xlu0 0
      %742 = vperm.xlu0 %741, %v713
      %v743 = vpop.permute.xlu0 %742
      %746 = vset.pattern.permute.xlu0 0
      %747 = vperm.xlu0 %746, %v714
      %v748 = vpop.permute.xlu0 %747
      %v750 = vadd.f32 %v652, %v718
      %v751 = vadd.f32 %v653, %v718
      %v752 = vadd.f32 %v654, %v718
      %v753 = vadd.f32 %v655, %v718
      %v754 = vadd.f32 %v656, %v718
      %v755 = vadd.f32 %v657, %v718
      %v756 = vadd.f32 %v658, %v718
      %v757 = vadd.f32 %v659, %v718
      %v758 = vadd.f32 %v660, %v723
      %v759 = vadd.f32 %v661, %v723
      %v760 = vadd.f32 %v662, %v723
      %v761 = vadd.f32 %v663, %v723
      %v762 = vadd.f32 %v664, %v723
      %v763 = vadd.f32 %v665, %v723
      %v764 = vadd.f32 %v666, %v723
      %v765 = vadd.f32 %v667, %v723
      %v766 = vadd.f32 %v668, %v728
      %v767 = vadd.f32 %v669, %v728
      %v768 = vadd.f32 %v670, %v728
      %v769 = vadd.f32 %v671, %v728
      %v770 = vadd.f32 %v672, %v728
      %v771 = vadd.f32 %v673, %v728
      %v772 = vadd.f32 %v674, %v728
      %v773 = vadd.f32 %v675, %v728
      %v774 = vadd.f32 %v676, %v733
      %v775 = vadd.f32 %v677, %v733
      %v776 = vadd.f32 %v678, %v733
      %v777 = vadd.f32 %v679, %v733
      %v778 = vadd.f32 %v680, %v733
      %v779 = vadd.f32 %v681, %v733
      %v780 = vadd.f32 %v682, %v733
      %v781 = vadd.f32 %v683, %v733
      %v782 = vadd.f32 %v684, %v738
      %v783 = vadd.f32 %v685, %v738
      %v784 = vadd.f32 %v686, %v738
      %v785 = vadd.f32 %v687, %v738
      %v786 = vadd.f32 %v688, %v738
      %v787 = vadd.f32 %v689, %v738
      %v788 = vadd.f32 %v690, %v738
      %v789 = vadd.f32 %v691, %v738
      %v790 = vadd.f32 %v692, %v743
      %v791 = vadd.f32 %v693, %v743
      %v792 = vadd.f32 %v694, %v743
      %v793 = vadd.f32 %v695, %v743
      %v794 = vadd.f32 %v696, %v743
      %v795 = vadd.f32 %v697, %v743
      %v796 = vadd.f32 %v698, %v743
      %v797 = vadd.f32 %v699, %v743
      %v798 = vadd.f32 %v700, %v748
      %v799 = vadd.f32 %v701, %v748
      %v800 = vadd.f32 %v702, %v748
      %v801 = vadd.f32 %v703, %v748
      %v802 = vadd.f32 %v704, %v748
      %v803 = vadd.f32 %v705, %v748
      %v804 = vadd.f32 %v706, %v748
      %v805 = vadd.f32 %v707, %v748
      %v806 = vtanh.pop %v750
      %v807 = vtanh.pop %v751
      %v808 = vtanh.pop %v752
      %v809 = vtanh.pop %v753
      %v810 = vtanh.pop %v754
      %v811 = vtanh.pop %v755
      %v812 = vtanh.pop %v756
      %v813 = vtanh.pop %v757
      %v814 = vtanh.pop %v758
      %v815 = vtanh.pop %v759
      %v816 = vtanh.pop %v760
      %v817 = vtanh.pop %v761
      %v818 = vtanh.pop %v762
      %v819 = vtanh.pop %v763
      %v820 = vtanh.pop %v764
      %v821 = vtanh.pop %v765
      %v822 = vtanh.pop %v766
      %v823 = vtanh.pop %v767
      %v824 = vtanh.pop %v768
      %v825 = vtanh.pop %v769
      %v826 = vtanh.pop %v770
      %v827 = vtanh.pop %v771
      %v828 = vtanh.pop %v772
      %v829 = vtanh.pop %v773
      %v830 = vtanh.pop %v774
      %v831 = vtanh.pop %v775
      %v832 = vtanh.pop %v776
      %v833 = vtanh.pop %v777
      %v834 = vtanh.pop %v778
      %v835 = vtanh.pop %v779
      %v836 = vtanh.pop %v780
      %v837 = vtanh.pop %v781
      %v838 = vtanh.pop %v782
      %v839 = vtanh.pop %v783
      %v840 = vtanh.pop %v784
      %v841 = vtanh.pop %v785
      %v842 = vtanh.pop %v786
      %v843 = vtanh.pop %v787
      %v844 = vtanh.pop %v788
      %v845 = vtanh.pop %v789
      %v846 = vtanh.pop %v790
      %v847 = vtanh.pop %v791
      %v848 = vtanh.pop %v792
      %v849 = vtanh.pop %v793
      %v850 = vtanh.pop %v794
      %v851 = vtanh.pop %v795
      %v852 = vtanh.pop %v796
      %v853 = vtanh.pop %v797
      %v854 = vtanh.pop %v798
      %v855 = vtanh.pop %v799
      %v856 = vtanh.pop %v800
      %v857 = vtanh.pop %v801
      %v858 = vtanh.pop %v802
      %v859 = vtanh.pop %v803
      %v860 = vtanh.pop %v804
      %v861 = vtanh.pop %v805
      %v862 = vld [vmem:[%s4] sm:$0xff]
      %v863 = vld [vmem:[%s4 + $0x8] sm:$0xff]
      %v864 = vld [vmem:[%s4 + $0x10] sm:$0xff]
      %v865 = vld [vmem:[%s4 + $0x18] sm:$0xff]
      %v866 = vld [vmem:[%s4 + $0x20] sm:$0xff]
      %v867 = vld [vmem:[%s4 + $0x28] sm:$0xff]
      %v868 = vld [vmem:[%s4 + $0x30] sm:$0x3]
      %v869 = vld [vmem:[%s5] sm:$0xff]
      %v870 = vld [vmem:[%s5 + $0x8] sm:$0xff]
      %v871 = vld [vmem:[%s5 + $0x10] sm:$0xff]
      %v872 = vld [vmem:[%s5 + $0x18] sm:$0xff]
      %v873 = vld [vmem:[%s5 + $0x20] sm:$0xff]
      %v874 = vld [vmem:[%s5 + $0x28] sm:$0xff]
      %v875 = vld [vmem:[%s5 + $0x30] sm:$0x3]
      %877 = vset.pattern.permute.xlu0 0
      %878 = vperm.xlu0 %877, %v869
      %v879 = vpop.permute.xlu0 %878
      %882 = vset.pattern.permute.xlu0 0
      %883 = vperm.xlu0 %882, %v870
      %v884 = vpop.permute.xlu0 %883
      %887 = vset.pattern.permute.xlu0 0
      %888 = vperm.xlu0 %887, %v871
      %v889 = vpop.permute.xlu0 %888
      %892 = vset.pattern.permute.xlu0 0
      %893 = vperm.xlu0 %892, %v872
      %v894 = vpop.permute.xlu0 %893
      %897 = vset.pattern.permute.xlu0 0
      %898 = vperm.xlu0 %897, %v873
      %v899 = vpop.permute.xlu0 %898
      %902 = vset.pattern.permute.xlu0 0
      %903 = vperm.xlu0 %902, %v874
      %v904 = vpop.permute.xlu0 %903
      %907 = vset.pattern.permute.xlu0 0
      %908 = vperm.xlu0 %907, %v875
      %v909 = vpop.permute.xlu0 %908
      %vm911 = vcmask 408576
      %v913 = vsel %vm911, %v862, 0
      %v916 = vsel %vm911, %v863, 0
      %v919 = vsel %vm911, %v864, 0
      %v922 = vsel %vm911, %v865, 0
      %v925 = vsel %vm911, %v866, 0
      %v928 = vsel %vm911, %v867, 0
      %v931 = vsel %vm911, %v868, 0
      %vm933 = vcmask 1041408
      %v935 = vsel %vm933, %v854, 0
      %v938 = vsel %vm933, %v855, 0
      %v941 = vsel %vm933, %v856, 0
      %v944 = vsel %vm933, %v857, 0
      %v947 = vsel %vm933, %v858, 0
      %v950 = vsel %vm933, %v859, 0
      %v953 = vsel %vm933, %v860, 0
      %v956 = vsel %vm933, %v861, 0
      %v958 = vand.u32 %v807, 4294901760
      %959 = vmatprep.subr.mxu0 %v958
      %v960 = vand.u32 %v806, 4294901760
      %961 = vmatpush1.msra.mxu0 %v960
      %v962 = vand.u32 %v815, 4294901760
      %963 = vmatprep.subr.mxu0 %v962
      %v964 = vand.u32 %v814, 4294901760
      %965 = vmatpush1.msra.mxu0 %v964
      %v966 = vand.u32 %v823, 4294901760
      %967 = vmatprep.subr.mxu0 %v966
      %v968 = vand.u32 %v822, 4294901760
      %969 = vmatpush1.msra.mxu0 %v968
      %v970 = vand.u32 %v831, 4294901760
      %971 = vmatprep.subr.mxu0 %v970
      %v972 = vand.u32 %v830, 4294901760
      %973 = vmatpush1.msra.mxu0 %v972
      %v974 = vand.u32 %v839, 4294901760
      %975 = vmatprep.subr.mxu0 %v974
      %v976 = vand.u32 %v838, 4294901760
      %977 = vmatpush1.msra.mxu0 %v976
      %v978 = vand.u32 %v847, 4294901760
      %979 = vmatprep.subr.mxu0 %v978
      %v980 = vand.u32 %v846, 4294901760
      %981 = vmatpush1.msra.mxu0 %v980
      %v982 = vand.u32 %v938, 4294901760
      %983 = vmatprep.subr.mxu0 %v982
      %v984 = vand.u32 %v935, 4294901760
      %985 = vmatpush1.msra.mxu0 %v984
      %986 = vmatprep.subr.mxu0 0.0
      %987 = vmatpush1.msra.mxu0 0.0
      %988 = vmatprep.subr.mxu0 0.0
      %989 = vmatpush1.msra.mxu0 0.0
      %990 = vmatprep.subr.mxu0 0.0
      %991 = vmatpush1.msra.mxu0 0.0
      %992 = vmatprep.subr.mxu0 0.0
      %993 = vmatpush1.msra.mxu0 0.0
      %994 = vmatprep.subr.mxu0 0.0
      %995 = vmatpush1.msra.mxu0 0.0
      %996 = vmatprep.subr.mxu0 0.0
      %997 = vmatpush1.msra.mxu0 0.0
      %998 = vmatprep.subr.mxu0 0.0
      %999 = vmatpush1.msra.mxu0 0.0
      %1000 = vmatprep.subr.mxu0 0.0
      %1001 = vmatpush1.msra.mxu0 0.0
      %1002 = vmatprep.subr.mxu0 0.0
      %1003 = vmatpush1.msra.mxu0 0.0
      %1004 = vmatprep.subr.mxu0 0.0
      %1005 = vmatpush1.msra.mxu0 0.0
      %1006 = vmatprep.subr.mxu0 0.0
      %1007 = vmatpush1.msra.mxu0 0.0
      %1008 = vmatprep.subr.mxu0 0.0
      %1009 = vmatpush1.msra.mxu0 0.0
      %1010 = vmatprep.subr.mxu0 0.0
      %1011 = vmatpush1.msra.mxu0 0.0
      %1012 = vmatprep.subr.mxu0 0.0
      %1013 = vmatpush1.msra.mxu0 0.0
      %1014 = vmatprep.subr.mxu0 0.0
      %1015 = vmatpush1.msra.mxu0 0.0
      %1016 = vmatprep.subr.mxu0 0.0
      %1017 = vmatpush1.msra.mxu0 0.0
      %1018 = vmatprep.subr.mxu0 0.0
      %1019 = vmatpush1.msra.mxu0 0.0
      %1020 = vmatprep.subr.mxu0 0.0
      %1021 = vmatpush1.msra.mxu0 0.0
      %1022 = vmatprep.subr.mxu0 0.0
      %1023 = vmatpush1.msra.mxu0 0.0
      %1024 = vmatprep.subr.mxu0 0.0
      %1025 = vmatpush1.msra.mxu0 0.0
      %1026 = vmatprep.subr.mxu0 0.0
      %1027 = vmatpush1.msra.mxu0 0.0
      %1028 = vmatprep.subr.mxu0 0.0
      %1029 = vmatpush1.msra.mxu0 0.0
      %1030 = vmatprep.subr.mxu0 0.0
      %1031 = vmatpush1.msra.mxu0 0.0
      %1032 = vmatprep.subr.mxu0 0.0
      %1033 = vmatpush1.msra.mxu0 0.0
      %1034 = vmatprep.subr.mxu0 0.0
      %1035 = vmatpush1.msra.mxu0 0.0
      %1036 = vmatprep.mubr.f32.mxu0 0.0
      %v1037 = vand.u32 %v913, 4294901760
      %v1038 = vsub.f32 %v913, %v1037
      %v1039 = vand.u32 %v1038, 4294901760
      %v1040 = vsub.f32 %v1038, %v1039
      %v1041 = vand.u32 %v1040, 4294901760
      %1042 = vmatmul.mubr.f32.gmra.mrb[0].mxu0 %v1041
      %v1043 = vpop.f32.mrb[0].mxu0
      %v1044 = vadd.f32 %v879, %v1043
      %v1045 = vpop.f32.mrb[0].mxu0
      %v1046 = vadd.f32 %v879, %v1045
      %1047 = vmatprep.mubr.f32.mxu0 0.0
      %v1048 = vand.u32 %v916, 4294901760
      %v1049 = vsub.f32 %v916, %v1048
      %v1050 = vand.u32 %v1049, 4294901760
      %v1051 = vsub.f32 %v1049, %v1050
      %v1052 = vand.u32 %v1051, 4294901760
      %1053 = vmatmul.mubr.f32.gmra.mrb[0].mxu0 %v1052
      %v1054 = vpop.f32.mrb[0].mxu0
      %v1055 = vadd.f32 %v884, %v1054
      %v1056 = vpop.f32.mrb[0].mxu0
      %v1057 = vadd.f32 %v884, %v1056
      %1058 = vmatprep.mubr.f32.mxu0 0.0
      %v1059 = vand.u32 %v919, 4294901760
      %v1060 = vsub.f32 %v919, %v1059
      %v1061 = vand.u32 %v1060, 4294901760
      %v1062 = vsub.f32 %v1060, %v1061
      %v1063 = vand.u32 %v1062, 4294901760
      %1064 = vmatmul.mubr.f32.gmra.mrb[0].mxu0 %v1063
      %v1065 = vpop.f32.mrb[0].mxu0
      %v1066 = vadd.f32 %v889, %v1065
      %v1067 = vpop.f32.mrb[0].mxu0
      %v1068 = vadd.f32 %v889, %v1067
      %1069 = vmatprep.mubr.f32.mxu0 0.0
      %v1070 = vand.u32 %v922, 4294901760
      %v1071 = vsub.f32 %v922, %v1070
      %v1072 = vand.u32 %v1071, 4294901760
      %v1073 = vsub.f32 %v1071, %v1072
      %v1074 = vand.u32 %v1073, 4294901760
      %1075 = vmatmul.mubr.f32.gmra.mrb[0].mxu0 %v1074
      %v1076 = vpop.f32.mrb[0].mxu0
      %v1077 = vadd.f32 %v894, %v1076
      %v1078 = vpop.f32.mrb[0].mxu0
      %v1079 = vadd.f32 %v894, %v1078
      %1080 = vmatprep.mubr.f32.mxu0 0.0
      %v1081 = vand.u32 %v925, 4294901760
      %v1082 = vsub.f32 %v925, %v1081
      %v1083 = vand.u32 %v1082, 4294901760
      %v1084 = vsub.f32 %v1082, %v1083
      %v1085 = vand.u32 %v1084, 4294901760
      %1086 = vmatmul.mubr.f32.gmra.mrb[0].mxu0 %v1085
      %v1087 = vpop.f32.mrb[0].mxu0
      %v1088 = vadd.f32 %v899, %v1087
      %v1089 = vpop.f32.mrb[0].mxu0
      %v1090 = vadd.f32 %v899, %v1089
      %1091 = vmatprep.mubr.f32.mxu0 0.0
      %v1092 = vand.u32 %v928, 4294901760
      %v1093 = vsub.f32 %v928, %v1092
      %v1094 = vand.u32 %v1093, 4294901760
      %v1095 = vsub.f32 %v1093, %v1094
      %v1096 = vand.u32 %v1095, 4294901760
      %1097 = vmatmul.mubr.f32.gmra.mrb[0].mxu0 %v1096
      %v1098 = vpop.f32.mrb[0].mxu0
      %v1099 = vadd.f32 %v904, %v1098
      %v1100 = vpop.f32.mrb[0].mxu0
      %v1101 = vadd.f32 %v904, %v1100
      %1102 = vmatprep.mubr.f32.mxu0 0.0
      %v1103 = vand.u32 %v931, 4294901760
      %v1104 = vsub.f32 %v931, %v1103
      %v1105 = vand.u32 %v1104, 4294901760
      %v1106 = vsub.f32 %v1104, %v1105
      %v1107 = vand.u32 %v1106, 4294901760
      %1108 = vmatmul.mubr.f32.gmra.mrb[0].mxu0 %v1107
      %v1109 = vpop.f32.mrb[0].mxu0
      %v1110 = vadd.f32 %v909, %v1109
      %v1111 = vpop.f32.mrb[0].mxu0
      %v1112 = vadd.f32 %v909, %v1111
      %1113 = vdwg.mxu0
      %v1114 = vand.u32 %v807, 4294901760
      %v1115 = vsub.f32 %v807, %v1114
      %v1116 = vand.u32 %v1115, 4294901760
      %v1117 = vsub.f32 %v1115, %v1116
      %v1118 = vand.u32 %v1117, 4294901760
      %1119 = vmatprep.subr.mxu0 %v1118
      %v1120 = vand.u32 %v806, 4294901760
      %v1121 = vsub.f32 %v806, %v1120
      %v1122 = vand.u32 %v1121, 4294901760
      %v1123 = vsub.f32 %v1121, %v1122
      %v1124 = vand.u32 %v1123, 4294901760
      %1125 = vmatpush1.msra.mxu0 %v1124
      %v1126 = vand.u32 %v815, 4294901760
      %v1127 = vsub.f32 %v815, %v1126
      %v1128 = vand.u32 %v1127, 4294901760
      %v1129 = vsub.f32 %v1127, %v1128
      %v1130 = vand.u32 %v1129, 4294901760
      %1131 = vmatprep.subr.mxu0 %v1130
      %v1132 = vand.u32 %v814, 4294901760
      %v1133 = vsub.f32 %v814, %v1132
      %v1134 = vand.u32 %v1133, 4294901760
      %v1135 = vsub.f32 %v1133, %v1134
      %v1136 = vand.u32 %v1135, 4294901760
      %1137 = vmatpush1.msra.mxu0 %v1136
      %v1138 = vand.u32 %v823, 4294901760
      %v1139 = vsub.f32 %v823, %v1138
      %v1140 = vand.u32 %v1139, 4294901760
      %v1141 = vsub.f32 %v1139, %v1140
      %v1142 = vand.u32 %v1141, 4294901760
      %1143 = vmatprep.subr.mxu0 %v1142
      %v1144 = vand.u32 %v822, 4294901760
      %v1145 = vsub.f32 %v822, %v1144
      %v1146 = vand.u32 %v1145, 4294901760
      %v1147 = vsub.f32 %v1145, %v1146
      %v1148 = vand.u32 %v1147, 4294901760
      %1149 = vmatpush1.msra.mxu0 %v1148
      %v1150 = vand.u32 %v831, 4294901760
      %v1151 = vsub.f32 %v831, %v1150
      %v1152 = vand.u32 %v1151, 4294901760
      %v1153 = vsub.f32 %v1151, %v1152
      %v1154 = vand.u32 %v1153, 4294901760
      %1155 = vmatprep.subr.mxu0 %v1154
      %v1156 = vand.u32 %v830, 4294901760
      %v1157 = vsub.f32 %v830, %v1156
      %v1158 = vand.u32 %v1157, 4294901760
      %v1159 = vsub.f32 %v1157, %v1158
      %v1160 = vand.u32 %v1159, 4294901760
      %1161 = vmatpush1.msra.mxu0 %v1160
      %v1162 = vand.u32 %v839, 4294901760
      %v1163 = vsub.f32 %v839, %v1162
      %v1164 = vand.u32 %v1163, 4294901760
      %v1165 = vsub.f32 %v1163, %v1164
      %v1166 = vand.u32 %v1165, 4294901760
      %1167 = vmatprep.subr.mxu0 %v1166
      %v1168 = vand.u32 %v838, 4294901760
      %v1169 = vsub.f32 %v838, %v1168
      %v1170 = vand.u32 %v1169, 4294901760
      %v1171 = vsub.f32 %v1169, %v1170
      %v1172 = vand.u32 %v1171, 4294901760
      %1173 = vmatpush1.msra.mxu0 %v1172
      %v1174 = vand.u32 %v847, 4294901760
      %v1175 = vsub.f32 %v847, %v1174
      %v1176 = vand.u32 %v1175, 4294901760
      %v1177 = vsub.f32 %v1175, %v1176
      %v1178 = vand.u32 %v1177, 4294901760
      %1179 = vmatprep.subr.mxu0 %v1178
      %v1180 = vand.u32 %v846, 4294901760
      %v1181 = vsub.f32 %v846, %v1180
      %v1182 = vand.u32 %v1181, 4294901760
      %v1183 = vsub.f32 %v1181, %v1182
      %v1184 = vand.u32 %v1183, 4294901760
      %1185 = vmatpush1.msra.mxu0 %v1184
      %v1186 = vand.u32 %v938, 4294901760
      %v1187 = vsub.f32 %v938, %v1186
      %v1188 = vand.u32 %v1187, 4294901760
      %v1189 = vsub.f32 %v1187, %v1188
      %v1190 = vand.u32 %v1189, 4294901760
      %1191 = vmatprep.subr.mxu0 %v1190
      %v1192 = vand.u32 %v935, 4294901760
      %v1193 = vsub.f32 %v935, %v1192
      %v1194 = vand.u32 %v1193, 4294901760
      %v1195 = vsub.f32 %v1193, %v1194
      %v1196 = vand.u32 %v1195, 4294901760
      %1197 = vmatpush1.msra.mxu0 %v1196
      %1198 = vmatprep.subr.mxu0 0.0
      %1199 = vmatpush1.msra.mxu0 0.0
      %1200 = vmatprep.subr.mxu0 0.0
      %1201 = vmatpush1.msra.mxu0 0.0
      %1202 = vmatprep.subr.mxu0 0.0
      %1203 = vmatpush1.msra.mxu0 0.0
      %1204 = vmatprep.subr.mxu0 0.0
      %1205 = vmatpush1.msra.mxu0 0.0
      %1206 = vmatprep.subr.mxu0 0.0
      %1207 = vmatpush1.msra.mxu0 0.0
      %1208 = vmatprep.subr.mxu0 0.0
      %1209 = vmatpush1.msra.mxu0 0.0
      %1210 = vmatprep.subr.mxu0 0.0
      %1211 = vmatpush1.msra.mxu0 0.0
      %1212 = vmatprep.subr.mxu0 0.0
      %1213 = vmatpush1.msra.mxu0 0.0
      %1214 = vmatprep.subr.mxu0 0.0
      %1215 = vmatpush1.msra.mxu0 0.0
      %1216 = vmatprep.subr.mxu0 0.0
      %1217 = vmatpush1.msra.mxu0 0.0
      %1218 = vmatprep.subr.mxu0 0.0
      %1219 = vmatpush1.msra.mxu0 0.0
      %1220 = vmatprep.subr.mxu0 0.0
      %1221 = vmatpush1.msra.mxu0 0.0
      %1222 = vmatprep.subr.mxu0 0.0
      %1223 = vmatpush1.msra.mxu0 0.0
      %1224 = vmatprep.subr.mxu0 0.0
      %1225 = vmatpush1.msra.mxu0 0.0
      %1226 = vmatprep.subr.mxu0 0.0
      %1227 = vmatpush1.msra.mxu0 0.0
      %1228 = vmatprep.subr.mxu0 0.0
      %1229 = vmatpush1.msra.mxu0 0.0
      %1230 = vmatprep.subr.mxu0 0.0
      %1231 = vmatpush1.msra.mxu0 0.0
      %1232 = vmatprep.subr.mxu0 0.0
      %1233 = vmatpush1.msra.mxu0 0.0
      %1234 = vmatprep.subr.mxu0 0.0
      %1235 = vmatpush1.msra.mxu0 0.0
      %1236 = vmatprep.subr.mxu0 0.0
      %1237 = vmatpush1.msra.mxu0 0.0
      %1238 = vmatprep.subr.mxu0 0.0
      %1239 = vmatpush1.msra.mxu0 0.0
      %1240 = vmatprep.subr.mxu0 0.0
      %1241 = vmatpush1.msra.mxu0 0.0
      %1242 = vmatprep.subr.mxu0 0.0
      %1243 = vmatpush1.msra.mxu0 0.0
      %1244 = vmatprep.subr.mxu0 0.0
      %1245 = vmatpush1.msra.mxu0 0.0
      %1246 = vmatprep.subr.mxu0 0.0
      %1247 = vmatpush1.msra.mxu0 0.0
      %1248 = vmatprep.mubr.f32.mxu0 0.0
      %v1249 = vand.u32 %v913, 4294901760
      %1250 = vmatmul.mubr.f32.gmra.mrb[0].mxu0 %v1249
      %v1251 = vpop.f32.mrb[0].mxu0
      %v1252 = vadd.f32 %v1044, %v1251
      %v1253 = vpop.f32.mrb[0].mxu0
      %v1254 = vadd.f32 %v1046, %v1253
      %1255 = vmatprep.mubr.f32.mxu0 0.0
      %v1256 = vand.u32 %v916, 4294901760
      %1257 = vmatmul.mubr.f32.gmra.mrb[0].mxu0 %v1256
      %v1258 = vpop.f32.mrb[0].mxu0
      %v1259 = vadd.f32 %v1055, %v1258
      %v1260 = vpop.f32.mrb[0].mxu0
      %v1261 = vadd.f32 %v1057, %v1260
      %1262 = vmatprep.mubr.f32.mxu0 0.0
      %v1263 = vand.u32 %v919, 4294901760
      %1264 = vmatmul.mubr.f32.gmra.mrb[0].mxu0 %v1263
      %v1265 = vpop.f32.mrb[0].mxu0
      %v1266 = vadd.f32 %v1066, %v1265
      %v1267 = vpop.f32.mrb[0].mxu0
      %v1268 = vadd.f32 %v1068, %v1267
      %1269 = vmatprep.mubr.f32.mxu0 0.0
      %v1270 = vand.u32 %v922, 4294901760
      %1271 = vmatmul.mubr.f32.gmra.mrb[0].mxu0 %v1270
      %v1272 = vpop.f32.mrb[0].mxu0
      %v1273 = vadd.f32 %v1077, %v1272
      %v1274 = vpop.f32.mrb[0].mxu0
      %v1275 = vadd.f32 %v1079, %v1274
      %1276 = vmatprep.mubr.f32.mxu0 0.0
      %v1277 = vand.u32 %v925, 4294901760
      %1278 = vmatmul.mubr.f32.gmra.mrb[0].mxu0 %v1277
      %v1279 = vpop.f32.mrb[0].mxu0
      %v1280 = vadd.f32 %v1088, %v1279
      %v1281 = vpop.f32.mrb[0].mxu0
      %v1282 = vadd.f32 %v1090, %v1281
      %1283 = vmatprep.mubr.f32.mxu0 0.0
      %v1284 = vand.u32 %v928, 4294901760
      %1285 = vmatmul.mubr.f32.gmra.mrb[0].mxu0 %v1284
      %v1286 = vpop.f32.mrb[0].mxu0
      %v1287 = vadd.f32 %v1099, %v1286
      %v1288 = vpop.f32.mrb[0].mxu0
      %v1289 = vadd.f32 %v1101, %v1288
      %1290 = vmatprep.mubr.f32.mxu0 0.0
      %v1291 = vand.u32 %v931, 4294901760
      %1292 = vmatmul.mubr.f32.gmra.mrb[0].mxu0 %v1291
      %v1293 = vpop.f32.mrb[0].mxu0
      %v1294 = vadd.f32 %v1110, %v1293
      %v1295 = vpop.f32.mrb[0].mxu0
      %v1296 = vadd.f32 %v1112, %v1295
      %1297 = vdwg.mxu0
      %v1298 = vand.u32 %v807, 4294901760
      %v1299 = vsub.f32 %v807, %v1298
      %1300 = vmatprep.subr.mxu0 %v1299
      %v1301 = vand.u32 %v806, 4294901760
      %v1302 = vsub.f32 %v806, %v1301
      %1303 = vmatpush1.msra.mxu0 %v1302
      %v1304 = vand.u32 %v815, 4294901760
      %v1305 = vsub.f32 %v815, %v1304
      %1306 = vmatprep.subr.mxu0 %v1305
      %v1307 = vand.u32 %v814, 4294901760
      %v1308 = vsub.f32 %v814, %v1307
      %1309 = vmatpush1.msra.mxu0 %v1308
      %v1310 = vand.u32 %v823, 4294901760
      %v1311 = vsub.f32 %v823, %v1310
      %1312 = vmatprep.subr.mxu0 %v1311
      %v1313 = vand.u32 %v822, 4294901760
      %v1314 = vsub.f32 %v822, %v1313
      %1315 = vmatpush1.msra.mxu0 %v1314
      %v1316 = vand.u32 %v831, 4294901760
      %v1317 = vsub.f32 %v831, %v1316
      %1318 = vmatprep.subr.mxu0 %v1317
      %v1319 = vand.u32 %v830, 4294901760
      %v1320 = vsub.f32 %v830, %v1319
      %1321 = vmatpush1.msra.mxu0 %v1320
      %v1322 = vand.u32 %v839, 4294901760
      %v1323 = vsub.f32 %v839, %v1322
      %1324 = vmatprep.subr.mxu0 %v1323
      %v1325 = vand.u32 %v838, 4294901760
      %v1326 = vsub.f32 %v838, %v1325
      %1327 = vmatpush1.msra.mxu0 %v1326
      %v1328 = vand.u32 %v847, 4294901760
      %v1329 = vsub.f32 %v847, %v1328
      %1330 = vmatprep.subr.mxu0 %v1329
      %v1331 = vand.u32 %v846, 4294901760
      %v1332 = vsub.f32 %v846, %v1331
      %1333 = vmatpush1.msra.mxu0 %v1332
      %v1334 = vand.u32 %v938, 4294901760
      %v1335 = vsub.f32 %v938, %v1334
      %1336 = vmatprep.subr.mxu0 %v1335
      %v1337 = vand.u32 %v935, 4294901760
      %v1338 = vsub.f32 %v935, %v1337
      %1339 = vmatpush1.msra.mxu0 %v1338
      %1340 = vmatprep.subr.mxu0 0.0
      %1341 = vmatpush1.msra.mxu0 0.0
      %1342 = vmatprep.subr.mxu0 0.0
      %1343 = vmatpush1.msra.mxu0 0.0
      %1344 = vmatprep.subr.mxu0 0.0
      %1345 = vmatpush1.msra.mxu0 0.0
      %1346 = vmatprep.subr.mxu0 0.0
      %1347 = vmatpush1.msra.mxu0 0.0
      %1348 = vmatprep.subr.mxu0 0.0
      %1349 = vmatpush1.msra.mxu0 0.0
      %1350 = vmatprep.subr.mxu0 0.0
      %1351 = vmatpush1.msra.mxu0 0.0
      %1352 = vmatprep.subr.mxu0 0.0
      %1353 = vmatpush1.msra.mxu0 0.0
      %1354 = vmatprep.subr.mxu0 0.0
      %1355 = vmatpush1.msra.mxu0 0.0
      %1356 = vmatprep.subr.mxu0 0.0
      %1357 = vmatpush1.msra.mxu0 0.0
      %1358 = vmatprep.subr.mxu0 0.0
      %1359 = vmatpush1.msra.mxu0 0.0
      %1360 = vmatprep.subr.mxu0 0.0
      %1361 = vmatpush1.msra.mxu0 0.0
      %1362 = vmatprep.subr.mxu0 0.0
      %1363 = vmatpush1.msra.mxu0 0.0
      %1364 = vmatprep.subr.mxu0 0.0
      %1365 = vmatpush1.msra.mxu0 0.0
      %1366 = vmatprep.subr.mxu0 0.0
      %1367 = vmatpush1.msra.mxu0 0.0
      %1368 = vmatprep.subr.mxu0 0.0
      %1369 = vmatpush1.msra.mxu0 0.0
      %1370 = vmatprep.subr.mxu0 0.0
      %1371 = vmatpush1.msra.mxu0 0.0
      %1372 = vmatprep.subr.mxu0 0.0
      %1373 = vmatpush1.msra.mxu0 0.0
      %1374 = vmatprep.subr.mxu0 0.0
      %1375 = vmatpush1.msra.mxu0 0.0
      %1376 = vmatprep.subr.mxu0 0.0
      %1377 = vmatpush1.msra.mxu0 0.0
      %1378 = vmatprep.subr.mxu0 0.0
      %1379 = vmatpush1.msra.mxu0 0.0
      %1380 = vmatprep.subr.mxu0 0.0
      %1381 = vmatpush1.msra.mxu0 0.0
      %1382 = vmatprep.subr.mxu0 0.0
      %1383 = vmatpush1.msra.mxu0 0.0
      %1384 = vmatprep.subr.mxu0 0.0
      %1385 = vmatpush1.msra.mxu0 0.0
      %1386 = vmatprep.subr.mxu0 0.0
      %1387 = vmatpush1.msra.mxu0 0.0
      %1388 = vmatprep.subr.mxu0 0.0
      %1389 = vmatpush1.msra.mxu0 0.0
      %1390 = vmatprep.mubr.f32.mxu0 0.0
      %v1391 = vand.u32 %v913, 4294901760
      %v1392 = vsub.f32 %v913, %v1391
      %1393 = vmatmul.mubr.f32.gmra.mrb[0].mxu0 %v1392
      %v1394 = vpop.f32.mrb[0].mxu0
      %v1395 = vadd.f32 %v1252, %v1394
      %v1396 = vpop.f32.mrb[0].mxu0
      %v1397 = vadd.f32 %v1254, %v1396
      %1398 = vmatprep.mubr.f32.mxu0 0.0
      %v1399 = vand.u32 %v916, 4294901760
      %v1400 = vsub.f32 %v916, %v1399
      %1401 = vmatmul.mubr.f32.gmra.mrb[0].mxu0 %v1400
      %v1402 = vpop.f32.mrb[0].mxu0
      %v1403 = vadd.f32 %v1259, %v1402
      %v1404 = vpop.f32.mrb[0].mxu0
      %v1405 = vadd.f32 %v1261, %v1404
      %1406 = vmatprep.mubr.f32.mxu0 0.0
      %v1407 = vand.u32 %v919, 4294901760
      %v1408 = vsub.f32 %v919, %v1407
      %1409 = vmatmul.mubr.f32.gmra.mrb[0].mxu0 %v1408
      %v1410 = vpop.f32.mrb[0].mxu0
      %v1411 = vadd.f32 %v1266, %v1410
      %v1412 = vpop.f32.mrb[0].mxu0
      %v1413 = vadd.f32 %v1268, %v1412
      %1414 = vmatprep.mubr.f32.mxu0 0.0
      %v1415 = vand.u32 %v922, 4294901760
      %v1416 = vsub.f32 %v922, %v1415
      %1417 = vmatmul.mubr.f32.gmra.mrb[0].mxu0 %v1416
      %v1418 = vpop.f32.mrb[0].mxu0
      %v1419 = vadd.f32 %v1273, %v1418
      %v1420 = vpop.f32.mrb[0].mxu0
      %v1421 = vadd.f32 %v1275, %v1420
      %1422 = vmatprep.mubr.f32.mxu0 0.0
      %v1423 = vand.u32 %v925, 4294901760
      %v1424 = vsub.f32 %v925, %v1423
      %1425 = vmatmul.mubr.f32.gmra.mrb[0].mxu0 %v1424
      %v1426 = vpop.f32.mrb[0].mxu0
      %v1427 = vadd.f32 %v1280, %v1426
      %v1428 = vpop.f32.mrb[0].mxu0
      %v1429 = vadd.f32 %v1282, %v1428
      %1430 = vmatprep.mubr.f32.mxu0 0.0
      %v1431 = vand.u32 %v928, 4294901760
      %v1432 = vsub.f32 %v928, %v1431
      %1433 = vmatmul.mubr.f32.gmra.mrb[0].mxu0 %v1432
      %v1434 = vpop.f32.mrb[0].mxu0
      %v1435 = vadd.f32 %v1287, %v1434
      %v1436 = vpop.f32.mrb[0].mxu0
      %v1437 = vadd.f32 %v1289, %v1436
      %1438 = vmatprep.mubr.f32.mxu0 0.0
      %v1439 = vand.u32 %v931, 4294901760
      %v1440 = vsub.f32 %v931, %v1439
      %1441 = vmatmul.mubr.f32.gmra.mrb[0].mxu0 %v1440
      %v1442 = vpop.f32.mrb[0].mxu0
      %v1443 = vadd.f32 %v1294, %v1442
      %v1444 = vpop.f32.mrb[0].mxu0
      %v1445 = vadd.f32 %v1296, %v1444
      %1446 = vdwg.mxu0
      %v1447 = vand.u32 %v807, 4294901760
      %1448 = vmatprep.subr.mxu0 %v1447
      %v1449 = vand.u32 %v806, 4294901760
      %1450 = vmatpush1.msra.mxu0 %v1449
      %v1451 = vand.u32 %v815, 4294901760
      %1452 = vmatprep.subr.mxu0 %v1451
      %v1453 = vand.u32 %v814, 4294901760
      %1454 = vmatpush1.msra.mxu0 %v1453
      %v1455 = vand.u32 %v823, 4294901760
      %1456 = vmatprep.subr.mxu0 %v1455
      %v1457 = vand.u32 %v822, 4294901760
      %1458 = vmatpush1.msra.mxu0 %v1457
      %v1459 = vand.u32 %v831, 4294901760
      %1460 = vmatprep.subr.mxu0 %v1459
      %v1461 = vand.u32 %v830, 4294901760
      %1462 = vmatpush1.msra.mxu0 %v1461
      %v1463 = vand.u32 %v839, 4294901760
      %1464 = vmatprep.subr.mxu0 %v1463
      %v1465 = vand.u32 %v838, 4294901760
      %1466 = vmatpush1.msra.mxu0 %v1465
      %v1467 = vand.u32 %v847, 4294901760
      %1468 = vmatprep.subr.mxu0 %v1467
      %v1469 = vand.u32 %v846, 4294901760
      %1470 = vmatpush1.msra.mxu0 %v1469
      %v1471 = vand.u32 %v938, 4294901760
      %1472 = vmatprep.subr.mxu0 %v1471
      %v1473 = vand.u32 %v935, 4294901760
      %1474 = vmatpush1.msra.mxu0 %v1473
      %1475 = vmatprep.subr.mxu0 0.0
      %1476 = vmatpush1.msra.mxu0 0.0
      %1477 = vmatprep.subr.mxu0 0.0
      %1478 = vmatpush1.msra.mxu0 0.0
      %1479 = vmatprep.subr.mxu0 0.0
      %1480 = vmatpush1.msra.mxu0 0.0
      %1481 = vmatprep.subr.mxu0 0.0
      %1482 = vmatpush1.msra.mxu0 0.0
      %1483 = vmatprep.subr.mxu0 0.0
      %1484 = vmatpush1.msra.mxu0 0.0
      %1485 = vmatprep.subr.mxu0 0.0
      %1486 = vmatpush1.msra.mxu0 0.0
      %1487 = vmatprep.subr.mxu0 0.0
      %1488 = vmatpush1.msra.mxu0 0.0
      %1489 = vmatprep.subr.mxu0 0.0
      %1490 = vmatpush1.msra.mxu0 0.0
      %1491 = vmatprep.subr.mxu0 0.0
      %1492 = vmatpush1.msra.mxu0 0.0
      %1493 = vmatprep.subr.mxu0 0.0
      %1494 = vmatpush1.msra.mxu0 0.0
      %1495 = vmatprep.subr.mxu0 0.0
      %1496 = vmatpush1.msra.mxu0 0.0
      %1497 = vmatprep.subr.mxu0 0.0
      %1498 = vmatpush1.msra.mxu0 0.0
      %1499 = vmatprep.subr.mxu0 0.0
      %1500 = vmatpush1.msra.mxu0 0.0
      %1501 = vmatprep.subr.mxu0 0.0
      %1502 = vmatpush1.msra.mxu0 0.0
      %1503 = vmatprep.subr.mxu0 0.0
      %1504 = vmatpush1.msra.mxu0 0.0
      %1505 = vmatprep.subr.mxu0 0.0
      %1506 = vmatpush1.msra.mxu0 0.0
      %1507 = vmatprep.subr.mxu0 0.0
      %1508 = vmatpush1.msra.mxu0 0.0
      %1509 = vmatprep.subr.mxu0 0.0
      %1510 = vmatpush1.msra.mxu0 0.0
      %1511 = vmatprep.subr.mxu0 0.0
      %1512 = vmatpush1.msra.mxu0 0.0
      %1513 = vmatprep.subr.mxu0 0.0
      %1514 = vmatpush1.msra.mxu0 0.0
      %1515 = vmatprep.subr.mxu0 0.0
      %1516 = vmatpush1.msra.mxu0 0.0
      %1517 = vmatprep.subr.mxu0 0.0
      %1518 = vmatpush1.msra.mxu0 0.0
      %1519 = vmatprep.subr.mxu0 0.0
      %1520 = vmatpush1.msra.mxu0 0.0
      %1521 = vmatprep.subr.mxu0 0.0
      %1522 = vmatpush1.msra.mxu0 0.0
      %1523 = vmatprep.subr.mxu0 0.0
      %1524 = vmatpush1.msra.mxu0 0.0
      %1525 = vmatprep.mubr.f32.mxu0 0.0
      %v1526 = vand.u32 %v913, 4294901760
      %v1527 = vsub.f32 %v913, %v1526
      %v1528 = vand.u32 %v1527, 4294901760
      %1529 = vmatmul.mubr.f32.gmra.mrb[0].mxu0 %v1528
      %v1530 = vpop.f32.mrb[0].mxu0
      %v1531 = vadd.f32 %v1395, %v1530
      %v1532 = vpop.f32.mrb[0].mxu0
      %v1533 = vadd.f32 %v1397, %v1532
      %1534 = vmatprep.mubr.f32.mxu0 0.0
      %v1535 = vand.u32 %v916, 4294901760
      %v1536 = vsub.f32 %v916, %v1535
      %v1537 = vand.u32 %v1536, 4294901760
      %1538 = vmatmul.mubr.f32.gmra.mrb[0].mxu0 %v1537
      %v1539 = vpop.f32.mrb[0].mxu0
      %v1540 = vadd.f32 %v1403, %v1539
      %v1541 = vpop.f32.mrb[0].mxu0
      %v1542 = vadd.f32 %v1405, %v1541
      %1543 = vmatprep.mubr.f32.mxu0 0.0
      %v1544 = vand.u32 %v919, 4294901760
      %v1545 = vsub.f32 %v919, %v1544
      %v1546 = vand.u32 %v1545, 4294901760
      %1547 = vmatmul.mubr.f32.gmra.mrb[0].mxu0 %v1546
      %v1548 = vpop.f32.mrb[0].mxu0
      %v1549 = vadd.f32 %v1411, %v1548
      %v1550 = vpop.f32.mrb[0].mxu0
      %v1551 = vadd.f32 %v1413, %v1550
      %1552 = vmatprep.mubr.f32.mxu0 0.0
      %v1553 = vand.u32 %v922, 4294901760
      %v1554 = vsub.f32 %v922, %v1553
      %v1555 = vand.u32 %v1554, 4294901760
      %1556 = vmatmul.mubr.f32.gmra.mrb[0].mxu0 %v1555
      %v1557 = vpop.f32.mrb[0].mxu0
      %v1558 = vadd.f32 %v1419, %v1557
      %v1559 = vpop.f32.mrb[0].mxu0
      %v1560 = vadd.f32 %v1421, %v1559
      %1561 = vmatprep.mubr.f32.mxu0 0.0
      %v1562 = vand.u32 %v925, 4294901760
      %v1563 = vsub.f32 %v925, %v1562
      %v1564 = vand.u32 %v1563, 4294901760
      %1565 = vmatmul.mubr.f32.gmra.mrb[0].mxu0 %v1564
      %v1566 = vpop.f32.mrb[0].mxu0
      %v1567 = vadd.f32 %v1427, %v1566
      %v1568 = vpop.f32.mrb[0].mxu0
      %v1569 = vadd.f32 %v1429, %v1568
      %1570 = vmatprep.mubr.f32.mxu0 0.0
      %v1571 = vand.u32 %v928, 4294901760
      %v1572 = vsub.f32 %v928, %v1571
      %v1573 = vand.u32 %v1572, 4294901760
      %1574 = vmatmul.mubr.f32.gmra.mrb[0].mxu0 %v1573
      %v1575 = vpop.f32.mrb[0].mxu0
      %v1576 = vadd.f32 %v1435, %v1575
      %v1577 = vpop.f32.mrb[0].mxu0
      %v1578 = vadd.f32 %v1437, %v1577
      %1579 = vmatprep.mubr.f32.mxu0 0.0
      %v1580 = vand.u32 %v931, 4294901760
      %v1581 = vsub.f32 %v931, %v1580
      %v1582 = vand.u32 %v1581, 4294901760
      %1583 = vmatmul.mubr.f32.gmra.mrb[0].mxu0 %v1582
      %v1584 = vpop.f32.mrb[0].mxu0
      %v1585 = vadd.f32 %v1443, %v1584
      %v1586 = vpop.f32.mrb[0].mxu0
      %v1587 = vadd.f32 %v1445, %v1586
      %1588 = vdwg.mxu0
      %v1589 = vand.u32 %v807, 4294901760
      %v1590 = vsub.f32 %v807, %v1589
      %v1591 = vand.u32 %v1590, 4294901760
      %1592 = vmatprep.subr.mxu0 %v1591
      %v1593 = vand.u32 %v806, 4294901760
      %v1594 = vsub.f32 %v806, %v1593
      %v1595 = vand.u32 %v1594, 4294901760
      %1596 = vmatpush1.msra.mxu0 %v1595
      %v1597 = vand.u32 %v815, 4294901760
      %v1598 = vsub.f32 %v815, %v1597
      %v1599 = vand.u32 %v1598, 4294901760
      %1600 = vmatprep.subr.mxu0 %v1599
      %v1601 = vand.u32 %v814, 4294901760
      %v1602 = vsub.f32 %v814, %v1601
      %v1603 = vand.u32 %v1602, 4294901760
      %1604 = vmatpush1.msra.mxu0 %v1603
      %v1605 = vand.u32 %v823, 4294901760
      %v1606 = vsub.f32 %v823, %v1605
      %v1607 = vand.u32 %v1606, 4294901760
      %1608 = vmatprep.subr.mxu0 %v1607
      %v1609 = vand.u32 %v822, 4294901760
      %v1610 = vsub.f32 %v822, %v1609
      %v1611 = vand.u32 %v1610, 4294901760
      %1612 = vmatpush1.msra.mxu0 %v1611
      %v1613 = vand.u32 %v831, 4294901760
      %v1614 = vsub.f32 %v831, %v1613
      %v1615 = vand.u32 %v1614, 4294901760
      %1616 = vmatprep.subr.mxu0 %v1615
      %v1617 = vand.u32 %v830, 4294901760
      %v1618 = vsub.f32 %v830, %v1617
      %v1619 = vand.u32 %v1618, 4294901760
      %1620 = vmatpush1.msra.mxu0 %v1619
      %v1621 = vand.u32 %v839, 4294901760
      %v1622 = vsub.f32 %v839, %v1621
      %v1623 = vand.u32 %v1622, 4294901760
      %1624 = vmatprep.subr.mxu0 %v1623
      %v1625 = vand.u32 %v838, 4294901760
      %v1626 = vsub.f32 %v838, %v1625
      %v1627 = vand.u32 %v1626, 4294901760
      %1628 = vmatpush1.msra.mxu0 %v1627
      %v1629 = vand.u32 %v847, 4294901760
      %v1630 = vsub.f32 %v847, %v1629
      %v1631 = vand.u32 %v1630, 4294901760
      %1632 = vmatprep.subr.mxu0 %v1631
      %v1633 = vand.u32 %v846, 4294901760
      %v1634 = vsub.f32 %v846, %v1633
      %v1635 = vand.u32 %v1634, 4294901760
      %1636 = vmatpush1.msra.mxu0 %v1635
      %v1637 = vand.u32 %v938, 4294901760
      %v1638 = vsub.f32 %v938, %v1637
      %v1639 = vand.u32 %v1638, 4294901760
      %1640 = vmatprep.subr.mxu0 %v1639
      %v1641 = vand.u32 %v935, 4294901760
      %v1642 = vsub.f32 %v935, %v1641
      %v1643 = vand.u32 %v1642, 4294901760
      %1644 = vmatpush1.msra.mxu0 %v1643
      %1645 = vmatprep.subr.mxu0 0.0
      %1646 = vmatpush1.msra.mxu0 0.0
      %1647 = vmatprep.subr.mxu0 0.0
      %1648 = vmatpush1.msra.mxu0 0.0
      %1649 = vmatprep.subr.mxu0 0.0
      %1650 = vmatpush1.msra.mxu0 0.0
      %1651 = vmatprep.subr.mxu0 0.0
      %1652 = vmatpush1.msra.mxu0 0.0
      %1653 = vmatprep.subr.mxu0 0.0
      %1654 = vmatpush1.msra.mxu0 0.0
      %1655 = vmatprep.subr.mxu0 0.0
      %1656 = vmatpush1.msra.mxu0 0.0
      %1657 = vmatprep.subr.mxu0 0.0
      %1658 = vmatpush1.msra.mxu0 0.0
      %1659 = vmatprep.subr.mxu0 0.0
      %1660 = vmatpush1.msra.mxu0 0.0
      %1661 = vmatprep.subr.mxu0 0.0
      %1662 = vmatpush1.msra.mxu0 0.0
      %1663 = vmatprep.subr.mxu0 0.0
      %1664 = vmatpush1.msra.mxu0 0.0
      %1665 = vmatprep.subr.mxu0 0.0
      %1666 = vmatpush1.msra.mxu0 0.0
      %1667 = vmatprep.subr.mxu0 0.0
      %1668 = vmatpush1.msra.mxu0 0.0
      %1669 = vmatprep.subr.mxu0 0.0
      %1670 = vmatpush1.msra.mxu0 0.0
      %1671 = vmatprep.subr.mxu0 0.0
      %1672 = vmatpush1.msra.mxu0 0.0
      %1673 = vmatprep.subr.mxu0 0.0
      %1674 = vmatpush1.msra.mxu0 0.0
      %1675 = vmatprep.subr.mxu0 0.0
      %1676 = vmatpush1.msra.mxu0 0.0
      %1677 = vmatprep.subr.mxu0 0.0
      %1678 = vmatpush1.msra.mxu0 0.0
      %1679 = vmatprep.subr.mxu0 0.0
      %1680 = vmatpush1.msra.mxu0 0.0
      %1681 = vmatprep.subr.mxu0 0.0
      %1682 = vmatpush1.msra.mxu0 0.0
      %1683 = vmatprep.subr.mxu0 0.0
      %1684 = vmatpush1.msra.mxu0 0.0
      %1685 = vmatprep.subr.mxu0 0.0
      %1686 = vmatpush1.msra.mxu0 0.0
      %1687 = vmatprep.subr.mxu0 0.0
      %1688 = vmatpush1.msra.mxu0 0.0
      %1689 = vmatprep.subr.mxu0 0.0
      %1690 = vmatpush1.msra.mxu0 0.0
      %1691 = vmatprep.subr.mxu0 0.0
      %1692 = vmatpush1.msra.mxu0 0.0
      %1693 = vmatprep.subr.mxu0 0.0
      %1694 = vmatpush1.msra.mxu0 0.0
      %1695 = vmatprep.mubr.f32.mxu0 0.0
      %v1696 = vand.u32 %v913, 4294901760
      %1697 = vmatmul.mubr.f32.gmra.mrb[0].mxu0 %v1696
      %v1698 = vpop.f32.mrb[0].mxu0
      %v1699 = vadd.f32 %v1531, %v1698
      %v1700 = vpop.f32.mrb[0].mxu0
      %v1701 = vadd.f32 %v1533, %v1700
      %1702 = vmatprep.mubr.f32.mxu0 0.0
      %v1703 = vand.u32 %v916, 4294901760
      %1704 = vmatmul.mubr.f32.gmra.mrb[0].mxu0 %v1703
      %v1705 = vpop.f32.mrb[0].mxu0
      %v1706 = vadd.f32 %v1540, %v1705
      %v1707 = vpop.f32.mrb[0].mxu0
      %v1708 = vadd.f32 %v1542, %v1707
      %1709 = vmatprep.mubr.f32.mxu0 0.0
      %v1710 = vand.u32 %v919, 4294901760
      %1711 = vmatmul.mubr.f32.gmra.mrb[0].mxu0 %v1710
      %v1712 = vpop.f32.mrb[0].mxu0
      %v1713 = vadd.f32 %v1549, %v1712
      %v1714 = vpop.f32.mrb[0].mxu0
      %v1715 = vadd.f32 %v1551, %v1714
      %1716 = vmatprep.mubr.f32.mxu0 0.0
      %v1717 = vand.u32 %v922, 4294901760
      %1718 = vmatmul.mubr.f32.gmra.mrb[0].mxu0 %v1717
      %v1719 = vpop.f32.mrb[0].mxu0
      %v1720 = vadd.f32 %v1558, %v1719
      %v1721 = vpop.f32.mrb[0].mxu0
      %v1722 = vadd.f32 %v1560, %v1721
      %1723 = vmatprep.mubr.f32.mxu0 0.0
      %v1724 = vand.u32 %v925, 4294901760
      %1725 = vmatmul.mubr.f32.gmra.mrb[0].mxu0 %v1724
      %v1726 = vpop.f32.mrb[0].mxu0
      %v1727 = vadd.f32 %v1567, %v1726
      %v1728 = vpop.f32.mrb[0].mxu0
      %v1729 = vadd.f32 %v1569, %v1728
      %1730 = vmatprep.mubr.f32.mxu0 0.0
      %v1731 = vand.u32 %v928, 4294901760
      %1732 = vmatmul.mubr.f32.gmra.mrb[0].mxu0 %v1731
      %v1733 = vpop.f32.mrb[0].mxu0
      %v1734 = vadd.f32 %v1576, %v1733
      %v1735 = vpop.f32.mrb[0].mxu0
      %v1736 = vadd.f32 %v1578, %v1735
      %1737 = vmatprep.mubr.f32.mxu0 0.0
      %v1738 = vand.u32 %v931, 4294901760
      %1739 = vmatmul.mubr.f32.gmra.mrb[0].mxu0 %v1738
      %v1740 = vpop.f32.mrb[0].mxu0
      %v1741 = vadd.f32 %v1585, %v1740
      %v1742 = vpop.f32.mrb[0].mxu0
      %v1743 = vadd.f32 %v1587, %v1742
      %1744 = vdwg.mxu0
      %v1745 = vand.u32 %v807, 4294901760
      %1746 = vmatprep.subr.mxu0 %v1745
      %v1747 = vand.u32 %v806, 4294901760
      %1748 = vmatpush1.msra.mxu0 %v1747
      %v1749 = vand.u32 %v815, 4294901760
      %1750 = vmatprep.subr.mxu0 %v1749
      %v1751 = vand.u32 %v814, 4294901760
      %1752 = vmatpush1.msra.mxu0 %v1751
      %v1753 = vand.u32 %v823, 4294901760
      %1754 = vmatprep.subr.mxu0 %v1753
      %v1755 = vand.u32 %v822, 4294901760
      %1756 = vmatpush1.msra.mxu0 %v1755
      %v1757 = vand.u32 %v831, 4294901760
      %1758 = vmatprep.subr.mxu0 %v1757
      %v1759 = vand.u32 %v830, 4294901760
      %1760 = vmatpush1.msra.mxu0 %v1759
      %v1761 = vand.u32 %v839, 4294901760
      %1762 = vmatprep.subr.mxu0 %v1761
      %v1763 = vand.u32 %v838, 4294901760
      %1764 = vmatpush1.msra.mxu0 %v1763
      %v1765 = vand.u32 %v847, 4294901760
      %1766 = vmatprep.subr.mxu0 %v1765
      %v1767 = vand.u32 %v846, 4294901760
      %1768 = vmatpush1.msra.mxu0 %v1767
      %v1769 = vand.u32 %v938, 4294901760
      %1770 = vmatprep.subr.mxu0 %v1769
      %v1771 = vand.u32 %v935, 4294901760
      %1772 = vmatpush1.msra.mxu0 %v1771
      %1773 = vmatprep.subr.mxu0 0.0
      %1774 = vmatpush1.msra.mxu0 0.0
      %1775 = vmatprep.subr.mxu0 0.0
      %1776 = vmatpush1.msra.mxu0 0.0
      %1777 = vmatprep.subr.mxu0 0.0
      %1778 = vmatpush1.msra.mxu0 0.0
      %1779 = vmatprep.subr.mxu0 0.0
      %1780 = vmatpush1.msra.mxu0 0.0
      %1781 = vmatprep.subr.mxu0 0.0
      %1782 = vmatpush1.msra.mxu0 0.0
      %1783 = vmatprep.subr.mxu0 0.0
      %1784 = vmatpush1.msra.mxu0 0.0
      %1785 = vmatprep.subr.mxu0 0.0
      %1786 = vmatpush1.msra.mxu0 0.0
      %1787 = vmatprep.subr.mxu0 0.0
      %1788 = vmatpush1.msra.mxu0 0.0
      %1789 = vmatprep.subr.mxu0 0.0
      %1790 = vmatpush1.msra.mxu0 0.0
      %1791 = vmatprep.subr.mxu0 0.0
      %1792 = vmatpush1.msra.mxu0 0.0
      %1793 = vmatprep.subr.mxu0 0.0
      %1794 = vmatpush1.msra.mxu0 0.0
      %1795 = vmatprep.subr.mxu0 0.0
      %1796 = vmatpush1.msra.mxu0 0.0
      %1797 = vmatprep.subr.mxu0 0.0
      %1798 = vmatpush1.msra.mxu0 0.0
      %1799 = vmatprep.subr.mxu0 0.0
      %1800 = vmatpush1.msra.mxu0 0.0
      %1801 = vmatprep.subr.mxu0 0.0
      %1802 = vmatpush1.msra.mxu0 0.0
      %1803 = vmatprep.subr.mxu0 0.0
      %1804 = vmatpush1.msra.mxu0 0.0
      %1805 = vmatprep.subr.mxu0 0.0
      %1806 = vmatpush1.msra.mxu0 0.0
      %1807 = vmatprep.subr.mxu0 0.0
      %1808 = vmatpush1.msra.mxu0 0.0
      %1809 = vmatprep.subr.mxu0 0.0
      %1810 = vmatpush1.msra.mxu0 0.0
      %1811 = vmatprep.subr.mxu0 0.0
      %1812 = vmatpush1.msra.mxu0 0.0
      %1813 = vmatprep.subr.mxu0 0.0
      %1814 = vmatpush1.msra.mxu0 0.0
      %1815 = vmatprep.subr.mxu0 0.0
      %1816 = vmatpush1.msra.mxu0 0.0
      %1817 = vmatprep.subr.mxu0 0.0
      %1818 = vmatpush1.msra.mxu0 0.0
      %1819 = vmatprep.subr.mxu0 0.0
      %1820 = vmatpush1.msra.mxu0 0.0
      %1821 = vmatprep.subr.mxu0 0.0
      %1822 = vmatpush1.msra.mxu0 0.0
      %1823 = vmatprep.mubr.f32.mxu0 0.0
      %v1824 = vand.u32 %v913, 4294901760
      %1825 = vmatmul.mubr.f32.gmra.mrb[0].mxu0 %v1824
      %v1826 = vpop.f32.mrb[0].mxu0
      %v1827 = vadd.f32 %v1699, %v1826
      %v1828 = vpop.f32.mrb[0].mxu0
      %v1829 = vadd.f32 %v1701, %v1828
      %1830 = vmatprep.mubr.f32.mxu0 0.0
      %v1831 = vand.u32 %v916, 4294901760
      %1832 = vmatmul.mubr.f32.gmra.mrb[0].mxu0 %v1831
      %v1833 = vpop.f32.mrb[0].mxu0
      %v1834 = vadd.f32 %v1706, %v1833
      %v1835 = vpop.f32.mrb[0].mxu0
      %v1836 = vadd.f32 %v1708, %v1835
      %1837 = vmatprep.mubr.f32.mxu0 0.0
      %v1838 = vand.u32 %v919, 4294901760
      %1839 = vmatmul.mubr.f32.gmra.mrb[0].mxu0 %v1838
      %v1840 = vpop.f32.mrb[0].mxu0
      %v1841 = vadd.f32 %v1713, %v1840
      %v1842 = vpop.f32.mrb[0].mxu0
      %v1843 = vadd.f32 %v1715, %v1842
      %1844 = vmatprep.mubr.f32.mxu0 0.0
      %v1845 = vand.u32 %v922, 4294901760
      %1846 = vmatmul.mubr.f32.gmra.mrb[0].mxu0 %v1845
      %v1847 = vpop.f32.mrb[0].mxu0
      %v1848 = vadd.f32 %v1720, %v1847
      %v1849 = vpop.f32.mrb[0].mxu0
      %v1850 = vadd.f32 %v1722, %v1849
      %1851 = vmatprep.mubr.f32.mxu0 0.0
      %v1852 = vand.u32 %v925, 4294901760
      %1853 = vmatmul.mubr.f32.gmra.mrb[0].mxu0 %v1852
      %v1854 = vpop.f32.mrb[0].mxu0
      %v1855 = vadd.f32 %v1727, %v1854
      %v1856 = vpop.f32.mrb[0].mxu0
      %v1857 = vadd.f32 %v1729, %v1856
      %1858 = vmatprep.mubr.f32.mxu0 0.0
      %v1859 = vand.u32 %v928, 4294901760
      %1860 = vmatmul.mubr.f32.gmra.mrb[0].mxu0 %v1859
      %v1861 = vpop.f32.mrb[0].mxu0
      %v1862 = vadd.f32 %v1734, %v1861
      %v1863 = vpop.f32.mrb[0].mxu0
      %v1864 = vadd.f32 %v1736, %v1863
      %1865 = vmatprep.mubr.f32.mxu0 0.0
      %v1866 = vand.u32 %v931, 4294901760
      %1867 = vmatmul.mubr.f32.gmra.mrb[0].mxu0 %v1866
      %v1868 = vpop.f32.mrb[0].mxu0
      %v1869 = vadd.f32 %v1741, %v1868
      %v1870 = vpop.f32.mrb[0].mxu0
      %v1871 = vadd.f32 %v1743, %v1870
      %1872 = vdwg.mxu0
      %v1873 = vand.u32 %v809, 4294901760
      %1874 = vmatprep.subr.mxu0 %v1873
      %v1875 = vand.u32 %v808, 4294901760
      %1876 = vmatpush1.msra.mxu0 %v1875
      %v1877 = vand.u32 %v817, 4294901760
      %1878 = vmatprep.subr.mxu0 %v1877
      %v1879 = vand.u32 %v816, 4294901760
      %1880 = vmatpush1.msra.mxu0 %v1879
      %v1881 = vand.u32 %v825, 4294901760
      %1882 = vmatprep.subr.mxu0 %v1881
      %v1883 = vand.u32 %v824, 4294901760
      %1884 = vmatpush1.msra.mxu0 %v1883
      %v1885 = vand.u32 %v833, 4294901760
      %1886 = vmatprep.subr.mxu0 %v1885
      %v1887 = vand.u32 %v832, 4294901760
      %1888 = vmatpush1.msra.mxu0 %v1887
      %v1889 = vand.u32 %v841, 4294901760
      %1890 = vmatprep.subr.mxu0 %v1889
      %v1891 = vand.u32 %v840, 4294901760
      %1892 = vmatpush1.msra.mxu0 %v1891
      %v1893 = vand.u32 %v849, 4294901760
      %1894 = vmatprep.subr.mxu0 %v1893
      %v1895 = vand.u32 %v848, 4294901760
      %1896 = vmatpush1.msra.mxu0 %v1895
      %v1897 = vand.u32 %v944, 4294901760
      %1898 = vmatprep.subr.mxu0 %v1897
      %v1899 = vand.u32 %v941, 4294901760
      %1900 = vmatpush1.msra.mxu0 %v1899
      %1901 = vmatprep.subr.mxu0 0.0
      %1902 = vmatpush1.msra.mxu0 0.0
      %1903 = vmatprep.subr.mxu0 0.0
      %1904 = vmatpush1.msra.mxu0 0.0
      %1905 = vmatprep.subr.mxu0 0.0
      %1906 = vmatpush1.msra.mxu0 0.0
      %1907 = vmatprep.subr.mxu0 0.0
      %1908 = vmatpush1.msra.mxu0 0.0
      %1909 = vmatprep.subr.mxu0 0.0
      %1910 = vmatpush1.msra.mxu0 0.0
      %1911 = vmatprep.subr.mxu0 0.0
      %1912 = vmatpush1.msra.mxu0 0.0
      %1913 = vmatprep.subr.mxu0 0.0
      %1914 = vmatpush1.msra.mxu0 0.0
      %1915 = vmatprep.subr.mxu0 0.0
      %1916 = vmatpush1.msra.mxu0 0.0
      %1917 = vmatprep.subr.mxu0 0.0
      %1918 = vmatpush1.msra.mxu0 0.0
      %1919 = vmatprep.subr.mxu0 0.0
      %1920 = vmatpush1.msra.mxu0 0.0
      %1921 = vmatprep.subr.mxu0 0.0
      %1922 = vmatpush1.msra.mxu0 0.0
      %1923 = vmatprep.subr.mxu0 0.0
      %1924 = vmatpush1.msra.mxu0 0.0
      %1925 = vmatprep.subr.mxu0 0.0
      %1926 = vmatpush1.msra.mxu0 0.0
      %1927 = vmatprep.subr.mxu0 0.0
      %1928 = vmatpush1.msra.mxu0 0.0
      %1929 = vmatprep.subr.mxu0 0.0
      %1930 = vmatpush1.msra.mxu0 0.0
      %1931 = vmatprep.subr.mxu0 0.0
      %1932 = vmatpush1.msra.mxu0 0.0
      %1933 = vmatprep.subr.mxu0 0.0
      %1934 = vmatpush1.msra.mxu0 0.0
      %1935 = vmatprep.subr.mxu0 0.0
      %1936 = vmatpush1.msra.mxu0 0.0
      %1937 = vmatprep.subr.mxu0 0.0
      %1938 = vmatpush1.msra.mxu0 0.0
      %1939 = vmatprep.subr.mxu0 0.0
      %1940 = vmatpush1.msra.mxu0 0.0
      %1941 = vmatprep.subr.mxu0 0.0
      %1942 = vmatpush1.msra.mxu0 0.0
      %1943 = vmatprep.subr.mxu0 0.0
      %1944 = vmatpush1.msra.mxu0 0.0
      %1945 = vmatprep.subr.mxu0 0.0
      %1946 = vmatpush1.msra.mxu0 0.0
      %1947 = vmatprep.subr.mxu0 0.0
      %1948 = vmatpush1.msra.mxu0 0.0
      %1949 = vmatprep.subr.mxu0 0.0
      %1950 = vmatpush1.msra.mxu0 0.0
      %1951 = vmatprep.mubr.f32.mxu0 0.0
      %v1952 = vand.u32 %v913, 4294901760
      %v1953 = vsub.f32 %v913, %v1952
      %v1954 = vand.u32 %v1953, 4294901760
      %v1955 = vsub.f32 %v1953, %v1954
      %v1956 = vand.u32 %v1955, 4294901760
      %1957 = vmatmul.mubr.f32.gmra.mrb[0].mxu0 %v1956
      %v1958 = vpop.f32.mrb[0].mxu0
      %v1959 = vadd.f32 %v879, %v1958
      %v1960 = vpop.f32.mrb[0].mxu0
      %v1961 = vadd.f32 %v879, %v1960
      %1962 = vmatprep.mubr.f32.mxu0 0.0
      %v1963 = vand.u32 %v916, 4294901760
      %v1964 = vsub.f32 %v916, %v1963
      %v1965 = vand.u32 %v1964, 4294901760
      %v1966 = vsub.f32 %v1964, %v1965
      %v1967 = vand.u32 %v1966, 4294901760
      %1968 = vmatmul.mubr.f32.gmra.mrb[0].mxu0 %v1967
      %v1969 = vpop.f32.mrb[0].mxu0
      %v1970 = vadd.f32 %v884, %v1969
      %v1971 = vpop.f32.mrb[0].mxu0
      %v1972 = vadd.f32 %v884, %v1971
      %1973 = vmatprep.mubr.f32.mxu0 0.0
      %v1974 = vand.u32 %v919, 4294901760
      %v1975 = vsub.f32 %v919, %v1974
      %v1976 = vand.u32 %v1975, 4294901760
      %v1977 = vsub.f32 %v1975, %v1976
      %v1978 = vand.u32 %v1977, 4294901760
      %1979 = vmatmul.mubr.f32.gmra.mrb[0].mxu0 %v1978
      %v1980 = vpop.f32.mrb[0].mxu0
      %v1981 = vadd.f32 %v889, %v1980
      %v1982 = vpop.f32.mrb[0].mxu0
      %v1983 = vadd.f32 %v889, %v1982
      %1984 = vmatprep.mubr.f32.mxu0 0.0
      %v1985 = vand.u32 %v922, 4294901760
      %v1986 = vsub.f32 %v922, %v1985
      %v1987 = vand.u32 %v1986, 4294901760
      %v1988 = vsub.f32 %v1986, %v1987
      %v1989 = vand.u32 %v1988, 4294901760
      %1990 = vmatmul.mubr.f32.gmra.mrb[0].mxu0 %v1989
      %v1991 = vpop.f32.mrb[0].mxu0
      %v1992 = vadd.f32 %v894, %v1991
      %v1993 = vpop.f32.mrb[0].mxu0
      %v1994 = vadd.f32 %v894, %v1993
      %1995 = vmatprep.mubr.f32.mxu0 0.0
      %v1996 = vand.u32 %v925, 4294901760
      %v1997 = vsub.f32 %v925, %v1996
      %v1998 = vand.u32 %v1997, 4294901760
      %v1999 = vsub.f32 %v1997, %v1998
      %v2000 = vand.u32 %v1999, 4294901760
      %2001 = vmatmul.mubr.f32.gmra.mrb[0].mxu0 %v2000
      %v2002 = vpop.f32.mrb[0].mxu0
      %v2003 = vadd.f32 %v899, %v2002
      %v2004 = vpop.f32.mrb[0].mxu0
      %v2005 = vadd.f32 %v899, %v2004
      %2006 = vmatprep.mubr.f32.mxu0 0.0
      %v2007 = vand.u32 %v928, 4294901760
      %v2008 = vsub.f32 %v928, %v2007
      %v2009 = vand.u32 %v2008, 4294901760
      %v2010 = vsub.f32 %v2008, %v2009
      %v2011 = vand.u32 %v2010, 4294901760
      %2012 = vmatmul.mubr.f32.gmra.mrb[0].mxu0 %v2011
      %v2013 = vpop.f32.mrb[0].mxu0
      %v2014 = vadd.f32 %v904, %v2013
      %v2015 = vpop.f32.mrb[0].mxu0
      %v2016 = vadd.f32 %v904, %v2015
      %2017 = vmatprep.mubr.f32.mxu0 0.0
      %v2018 = vand.u32 %v931, 4294901760
      %v2019 = vsub.f32 %v931, %v2018
      %v2020 = vand.u32 %v2019, 4294901760
      %v2021 = vsub.f32 %v2019, %v2020
      %v2022 = vand.u32 %v2021, 4294901760
      %2023 = vmatmul.mubr.f32.gmra.mrb[0].mxu0 %v2022
      %v2024 = vpop.f32.mrb[0].mxu0
      %v2025 = vadd.f32 %v909, %v2024
      %v2026 = vpop.f32.mrb[0].mxu0
      %v2027 = vadd.f32 %v909, %v2026
      %2028 = vdwg.mxu0
      %v2029 = vand.u32 %v809, 4294901760
      %v2030 = vsub.f32 %v809, %v2029
      %v2031 = vand.u32 %v2030, 4294901760
      %v2032 = vsub.f32 %v2030, %v2031
      %v2033 = vand.u32 %v2032, 4294901760
      %2034 = vmatprep.subr.mxu0 %v2033
      %v2035 = vand.u32 %v808, 4294901760
      %v2036 = vsub.f32 %v808, %v2035
      %v2037 = vand.u32 %v2036, 4294901760
      %v2038 = vsub.f32 %v2036, %v2037
      %v2039 = vand.u32 %v2038, 4294901760
      %2040 = vmatpush1.msra.mxu0 %v2039
      %v2041 = vand.u32 %v817, 4294901760
      %v2042 = vsub.f32 %v817, %v2041
      %v2043 = vand.u32 %v2042, 4294901760
      %v2044 = vsub.f32 %v2042, %v2043
      %v2045 = vand.u32 %v2044, 4294901760
      %2046 = vmatprep.subr.mxu0 %v2045
      %v2047 = vand.u32 %v816, 4294901760
      %v2048 = vsub.f32 %v816, %v2047
      %v2049 = vand.u32 %v2048, 4294901760
      %v2050 = vsub.f32 %v2048, %v2049
      %v2051 = vand.u32 %v2050, 4294901760
      %2052 = vmatpush1.msra.mxu0 %v2051
      %v2053 = vand.u32 %v825, 4294901760
      %v2054 = vsub.f32 %v825, %v2053
      %v2055 = vand.u32 %v2054, 4294901760
      %v2056 = vsub.f32 %v2054, %v2055
      %v2057 = vand.u32 %v2056, 4294901760
      %2058 = vmatprep.subr.mxu0 %v2057
      %v2059 = vand.u32 %v824, 4294901760
      %v2060 = vsub.f32 %v824, %v2059
      %v2061 = vand.u32 %v2060, 4294901760
      %v2062 = vsub.f32 %v2060, %v2061
      %v2063 = vand.u32 %v2062, 4294901760
      %2064 = vmatpush1.msra.mxu0 %v2063
      %v2065 = vand.u32 %v833, 4294901760
      %v2066 = vsub.f32 %v833, %v2065
      %v2067 = vand.u32 %v2066, 4294901760
      %v2068 = vsub.f32 %v2066, %v2067
      %v2069 = vand.u32 %v2068, 4294901760
      %2070 = vmatprep.subr.mxu0 %v2069
      %v2071 = vand.u32 %v832, 4294901760
      %v2072 = vsub.f32 %v832, %v2071
      %v2073 = vand.u32 %v2072, 4294901760
      %v2074 = vsub.f32 %v2072, %v2073
      %v2075 = vand.u32 %v2074, 4294901760
      %2076 = vmatpush1.msra.mxu0 %v2075
      %v2077 = vand.u32 %v841, 4294901760
      %v2078 = vsub.f32 %v841, %v2077
      %v2079 = vand.u32 %v2078, 4294901760
      %v2080 = vsub.f32 %v2078, %v2079
      %v2081 = vand.u32 %v2080, 4294901760
      %2082 = vmatprep.subr.mxu0 %v2081
      %v2083 = vand.u32 %v840, 4294901760
      %v2084 = vsub.f32 %v840, %v2083
      %v2085 = vand.u32 %v2084, 4294901760
      %v2086 = vsub.f32 %v2084, %v2085
      %v2087 = vand.u32 %v2086, 4294901760
      %2088 = vmatpush1.msra.mxu0 %v2087
      %v2089 = vand.u32 %v849, 4294901760
      %v2090 = vsub.f32 %v849, %v2089
      %v2091 = vand.u32 %v2090, 4294901760
      %v2092 = vsub.f32 %v2090, %v2091
      %v2093 = vand.u32 %v2092, 4294901760
      %2094 = vmatprep.subr.mxu0 %v2093
      %v2095 = vand.u32 %v848, 4294901760
      %v2096 = vsub.f32 %v848, %v2095
      %v2097 = vand.u32 %v2096, 4294901760
      %v2098 = vsub.f32 %v2096, %v2097
      %v2099 = vand.u32 %v2098, 4294901760
      %2100 = vmatpush1.msra.mxu0 %v2099
      %v2101 = vand.u32 %v944, 4294901760
      %v2102 = vsub.f32 %v944, %v2101
      %v2103 = vand.u32 %v2102, 4294901760
      %v2104 = vsub.f32 %v2102, %v2103
      %v2105 = vand.u32 %v2104, 4294901760
      %2106 = vmatprep.subr.mxu0 %v2105
      %v2107 = vand.u32 %v941, 4294901760
      %v2108 = vsub.f32 %v941, %v2107
      %v2109 = vand.u32 %v2108, 4294901760
      %v2110 = vsub.f32 %v2108, %v2109
      %v2111 = vand.u32 %v2110, 4294901760
      %2112 = vmatpush1.msra.mxu0 %v2111
      %2113 = vmatprep.subr.mxu0 0.0
      %2114 = vmatpush1.msra.mxu0 0.0
      %2115 = vmatprep.subr.mxu0 0.0
      %2116 = vmatpush1.msra.mxu0 0.0
      %2117 = vmatprep.subr.mxu0 0.0
      %2118 = vmatpush1.msra.mxu0 0.0
      %2119 = vmatprep.subr.mxu0 0.0
      %2120 = vmatpush1.msra.mxu0 0.0
      %2121 = vmatprep.subr.mxu0 0.0
      %2122 = vmatpush1.msra.mxu0 0.0
      %2123 = vmatprep.subr.mxu0 0.0
      %2124 = vmatpush1.msra.mxu0 0.0
      %2125 = vmatprep.subr.mxu0 0.0
      %2126 = vmatpush1.msra.mxu0 0.0
      %2127 = vmatprep.subr.mxu0 0.0
      %2128 = vmatpush1.msra.mxu0 0.0
      %2129 = vmatprep.subr.mxu0 0.0
      %2130 = vmatpush1.msra.mxu0 0.0
      %2131 = vmatprep.subr.mxu0 0.0
      %2132 = vmatpush1.msra.mxu0 0.0
      %2133 = vmatprep.subr.mxu0 0.0
      %2134 = vmatpush1.msra.mxu0 0.0
      %2135 = vmatprep.subr.mxu0 0.0
      %2136 = vmatpush1.msra.mxu0 0.0
      %2137 = vmatprep.subr.mxu0 0.0
      %2138 = vmatpush1.msra.mxu0 0.0
      %2139 = vmatprep.subr.mxu0 0.0
      %2140 = vmatpush1.msra.mxu0 0.0
      %2141 = vmatprep.subr.mxu0 0.0
      %2142 = vmatpush1.msra.mxu0 0.0
      %2143 = vmatprep.subr.mxu0 0.0
      %2144 = vmatpush1.msra.mxu0 0.0
      %2145 = vmatprep.subr.mxu0 0.0
      %2146 = vmatpush1.msra.mxu0 0.0
      %2147 = vmatprep.subr.mxu0 0.0
      %2148 = vmatpush1.msra.mxu0 0.0
      %2149 = vmatprep.subr.mxu0 0.0
      %2150 = vmatpush1.msra.mxu0 0.0
      %2151 = vmatprep.subr.mxu0 0.0
      %2152 = vmatpush1.msra.mxu0 0.0
      %2153 = vmatprep.subr.mxu0 0.0
      %2154 = vmatpush1.msra.mxu0 0.0
      %2155 = vmatprep.subr.mxu0 0.0
      %2156 = vmatpush1.msra.mxu0 0.0
      %2157 = vmatprep.subr.mxu0 0.0
      %2158 = vmatpush1.msra.mxu0 0.0
      %2159 = vmatprep.subr.mxu0 0.0
      %2160 = vmatpush1.msra.mxu0 0.0
      %2161 = vmatprep.subr.mxu0 0.0
      %2162 = vmatpush1.msra.mxu0 0.0
      %2163 = vmatprep.mubr.f32.mxu0 0.0
      %v2164 = vand.u32 %v913, 4294901760
      %2165 = vmatmul.mubr.f32.gmra.mrb[0].mxu0 %v2164
      %v2166 = vpop.f32.mrb[0].mxu0
      %v2167 = vadd.f32 %v1959, %v2166
      %v2168 = vpop.f32.mrb[0].mxu0
      %v2169 = vadd.f32 %v1961, %v2168
      %2170 = vmatprep.mubr.f32.mxu0 0.0
      %v2171 = vand.u32 %v916, 4294901760
      %2172 = vmatmul.mubr.f32.gmra.mrb[0].mxu0 %v2171
      %v2173 = vpop.f32.mrb[0].mxu0
      %v2174 = vadd.f32 %v1970, %v2173
      %v2175 = vpop.f32.mrb[0].mxu0
      %v2176 = vadd.f32 %v1972, %v2175
      %2177 = vmatprep.mubr.f32.mxu0 0.0
      %v2178 = vand.u32 %v919, 4294901760
      %2179 = vmatmul.mubr.f32.gmra.mrb[0].mxu0 %v2178
      %v2180 = vpop.f32.mrb[0].mxu0
      %v2181 = vadd.f32 %v1981, %v2180
      %v2182 = vpop.f32.mrb[0].mxu0
      %v2183 = vadd.f32 %v1983, %v2182
      %2184 = vmatprep.mubr.f32.mxu0 0.0
      %v2185 = vand.u32 %v922, 4294901760
      %2186 = vmatmul.mubr.f32.gmra.mrb[0].mxu0 %v2185
      %v2187 = vpop.f32.mrb[0].mxu0
      %v2188 = vadd.f32 %v1992, %v2187
      %v2189 = vpop.f32.mrb[0].mxu0
      %v2190 = vadd.f32 %v1994, %v2189
      %2191 = vmatprep.mubr.f32.mxu0 0.0
      %v2192 = vand.u32 %v925, 4294901760
      %2193 = vmatmul.mubr.f32.gmra.mrb[0].mxu0 %v2192
      %v2194 = vpop.f32.mrb[0].mxu0
      %v2195 = vadd.f32 %v2003, %v2194
      %v2196 = vpop.f32.mrb[0].mxu0
      %v2197 = vadd.f32 %v2005, %v2196
      %2198 = vmatprep.mubr.f32.mxu0 0.0
      %v2199 = vand.u32 %v928, 4294901760
      %2200 = vmatmul.mubr.f32.gmra.mrb[0].mxu0 %v2199
      %v2201 = vpop.f32.mrb[0].mxu0
      %v2202 = vadd.f32 %v2014, %v2201
      %v2203 = vpop.f32.mrb[0].mxu0
      %v2204 = vadd.f32 %v2016, %v2203
      %2205 = vmatprep.mubr.f32.mxu0 0.0
      %v2206 = vand.u32 %v931, 4294901760
      %2207 = vmatmul.mubr.f32.gmra.mrb[0].mxu0 %v2206
      %v2208 = vpop.f32.mrb[0].mxu0
      %v2209 = vadd.f32 %v2025, %v2208
      %v2210 = vpop.f32.mrb[0].mxu0
      %v2211 = vadd.f32 %v2027, %v2210
      %2212 = vdwg.mxu0
      %v2213 = vand.u32 %v809, 4294901760
      %v2214 = vsub.f32 %v809, %v2213
      %2215 = vmatprep.subr.mxu0 %v2214
      %v2216 = vand.u32 %v808, 4294901760
      %v2217 = vsub.f32 %v808, %v2216
      %2218 = vmatpush1.msra.mxu0 %v2217
      %v2219 = vand.u32 %v817, 4294901760
      %v2220 = vsub.f32 %v817, %v2219
      %2221 = vmatprep.subr.mxu0 %v2220
      %v2222 = vand.u32 %v816, 4294901760
      %v2223 = vsub.f32 %v816, %v2222
      %2224 = vmatpush1.msra.mxu0 %v2223
      %v2225 = vand.u32 %v825, 4294901760
      %v2226 = vsub.f32 %v825, %v2225
      %2227 = vmatprep.subr.mxu0 %v2226
      %v2228 = vand.u32 %v824, 4294901760
      %v2229 = vsub.f32 %v824, %v2228
      %2230 = vmatpush1.msra.mxu0 %v2229
      %v2231 = vand.u32 %v833, 4294901760
      %v2232 = vsub.f32 %v833, %v2231
      %2233 = vmatprep.subr.mxu0 %v2232
      %v2234 = vand.u32 %v832, 4294901760
      %v2235 = vsub.f32 %v832, %v2234
      %2236 = vmatpush1.msra.mxu0 %v2235
      %v2237 = vand.u32 %v841, 4294901760
      %v2238 = vsub.f32 %v841, %v2237
      %2239 = vmatprep.subr.mxu0 %v2238
      %v2240 = vand.u32 %v840, 4294901760
      %v2241 = vsub.f32 %v840, %v2240
      %2242 = vmatpush1.msra.mxu0 %v2241
      %v2243 = vand.u32 %v849, 4294901760
      %v2244 = vsub.f32 %v849, %v2243
      %2245 = vmatprep.subr.mxu0 %v2244
      %v2246 = vand.u32 %v848, 4294901760
      %v2247 = vsub.f32 %v848, %v2246
      %2248 = vmatpush1.msra.mxu0 %v2247
      %v2249 = vand.u32 %v944, 4294901760
      %v2250 = vsub.f32 %v944, %v2249
      %2251 = vmatprep.subr.mxu0 %v2250
      %v2252 = vand.u32 %v941, 4294901760
      %v2253 = vsub.f32 %v941, %v2252
      %2254 = vmatpush1.msra.mxu0 %v2253
      %2255 = vmatprep.subr.mxu0 0.0
      %2256 = vmatpush1.msra.mxu0 0.0
      %2257 = vmatprep.subr.mxu0 0.0
      %2258 = vmatpush1.msra.mxu0 0.0
      %2259 = vmatprep.subr.mxu0 0.0
      %2260 = vmatpush1.msra.mxu0 0.0
      %2261 = vmatprep.subr.mxu0 0.0
      %2262 = vmatpush1.msra.mxu0 0.0
      %2263 = vmatprep.subr.mxu0 0.0
      %2264 = vmatpush1.msra.mxu0 0.0
      %2265 = vmatprep.subr.mxu0 0.0
      %2266 = vmatpush1.msra.mxu0 0.0
      %2267 = vmatprep.subr.mxu0 0.0
      %2268 = vmatpush1.msra.mxu0 0.0
      %2269 = vmatprep.subr.mxu0 0.0
      %2270 = vmatpush1.msra.mxu0 0.0
      %2271 = vmatprep.subr.mxu0 0.0
      %2272 = vmatpush1.msra.mxu0 0.0
      %2273 = vmatprep.subr.mxu0 0.0
      %2274 = vmatpush1.msra.mxu0 0.0
      %2275 = vmatprep.subr.mxu0 0.0
      %2276 = vmatpush1.msra.mxu0 0.0
      %2277 = vmatprep.subr.mxu0 0.0
      %2278 = vmatpush1.msra.mxu0 0.0
      %2279 = vmatprep.subr.mxu0 0.0
      %2280 = vmatpush1.msra.mxu0 0.0
      %2281 = vmatprep.subr.mxu0 0.0
      %2282 = vmatpush1.msra.mxu0 0.0
      %2283 = vmatprep.subr.mxu0 0.0
      %2284 = vmatpush1.msra.mxu0 0.0
      %2285 = vmatprep.subr.mxu0 0.0
      %2286 = vmatpush1.msra.mxu0 0.0
      %2287 = vmatprep.subr.mxu0 0.0
      %2288 = vmatpush1.msra.mxu0 0.0
      %2289 = vmatprep.subr.mxu0 0.0
      %2290 = vmatpush1.msra.mxu0 0.0
      %2291 = vmatprep.subr.mxu0 0.0
      %2292 = vmatpush1.msra.mxu0 0.0
      %2293 = vmatprep.subr.mxu0 0.0
      %2294 = vmatpush1.msra.mxu0 0.0
      %2295 = vmatprep.subr.mxu0 0.0
      %2296 = vmatpush1.msra.mxu0 0.0
      %2297 = vmatprep.subr.mxu0 0.0
      %2298 = vmatpush1.msra.mxu0 0.0
      %2299 = vmatprep.subr.mxu0 0.0
      %2300 = vmatpush1.msra.mxu0 0.0
      %2301 = vmatprep.subr.mxu0 0.0
      %2302 = vmatpush1.msra.mxu0 0.0
      %2303 = vmatprep.subr.mxu0 0.0
      %2304 = vmatpush1.msra.mxu0 0.0
      %2305 = vmatprep.mubr.f32.mxu0 0.0
      %v2306 = vand.u32 %v913, 4294901760
      %v2307 = vsub.f32 %v913, %v2306
      %2308 = vmatmul.mubr.f32.gmra.mrb[0].mxu0 %v2307
      %v2309 = vpop.f32.mrb[0].mxu0
      %v2310 = vadd.f32 %v2167, %v2309
      %v2311 = vpop.f32.mrb[0].mxu0
      %v2312 = vadd.f32 %v2169, %v2311
      %2313 = vmatprep.mubr.f32.mxu0 0.0
      %v2314 = vand.u32 %v916, 4294901760
      %v2315 = vsub.f32 %v916, %v2314
      %2316 = vmatmul.mubr.f32.gmra.mrb[0].mxu0 %v2315
      %v2317 = vpop.f32.mrb[0].mxu0
      %v2318 = vadd.f32 %v2174, %v2317
      %v2319 = vpop.f32.mrb[0].mxu0
      %v2320 = vadd.f32 %v2176, %v2319
      %2321 = vmatprep.mubr.f32.mxu0 0.0
      %v2322 = vand.u32 %v919, 4294901760
      %v2323 = vsub.f32 %v919, %v2322
      %2324 = vmatmul.mubr.f32.gmra.mrb[0].mxu0 %v2323
      %v2325 = vpop.f32.mrb[0].mxu0
      %v2326 = vadd.f32 %v2181, %v2325
      %v2327 = vpop.f32.mrb[0].mxu0
      %v2328 = vadd.f32 %v2183, %v2327
      %2329 = vmatprep.mubr.f32.mxu0 0.0
      %v2330 = vand.u32 %v922, 4294901760
      %v2331 = vsub.f32 %v922, %v2330
      %2332 = vmatmul.mubr.f32.gmra.mrb[0].mxu0 %v2331
      %v2333 = vpop.f32.mrb[0].mxu0
      %v2334 = vadd.f32 %v2188, %v2333
      %v2335 = vpop.f32.mrb[0].mxu0
      %v2336 = vadd.f32 %v2190, %v2335
      %2337 = vmatprep.mubr.f32.mxu0 0.0
      %v2338 = vand.u32 %v925, 4294901760
      %v2339 = vsub.f32 %v925, %v2338
      %2340 = vmatmul.mubr.f32.gmra.mrb[0].mxu0 %v2339
      %v2341 = vpop.f32.mrb[0].mxu0
      %v2342 = vadd.f32 %v2195, %v2341
      %v2343 = vpop.f32.mrb[0].mxu0
      %v2344 = vadd.f32 %v2197, %v2343
      %2345 = vmatprep.mubr.f32.mxu0 0.0
      %v2346 = vand.u32 %v928, 4294901760
      %v2347 = vsub.f32 %v928, %v2346
      %2348 = vmatmul.mubr.f32.gmra.mrb[0].mxu0 %v2347
      %v2349 = vpop.f32.mrb[0].mxu0
      %v2350 = vadd.f32 %v2202, %v2349
      %v2351 = vpop.f32.mrb[0].mxu0
      %v2352 = vadd.f32 %v2204, %v2351
      %2353 = vmatprep.mubr.f32.mxu0 0.0
      %v2354 = vand.u32 %v931, 4294901760
      %v2355 = vsub.f32 %v931, %v2354
      %2356 = vmatmul.mubr.f32.gmra.mrb[0].mxu0 %v2355
      %v2357 = vpop.f32.mrb[0].mxu0
      %v2358 = vadd.f32 %v2209, %v2357
      %v2359 = vpop.f32.mrb[0].mxu0
      %v2360 = vadd.f32 %v2211, %v2359
      %2361 = vdwg.mxu0
      %v2362 = vand.u32 %v809, 4294901760
      %2363 = vmatprep.subr.mxu0 %v2362
      %v2364 = vand.u32 %v808, 4294901760
      %2365 = vmatpush1.msra.mxu0 %v2364
      %v2366 = vand.u32 %v817, 4294901760
      %2367 = vmatprep.subr.mxu0 %v2366
      %v2368 = vand.u32 %v816, 4294901760
      %2369 = vmatpush1.msra.mxu0 %v2368
      %v2370 = vand.u32 %v825, 4294901760
      %2371 = vmatprep.subr.mxu0 %v2370
      %v2372 = vand.u32 %v824, 4294901760
      %2373 = vmatpush1.msra.mxu0 %v2372
      %v2374 = vand.u32 %v833, 4294901760
      %2375 = vmatprep.subr.mxu0 %v2374
      %v2376 = vand.u32 %v832, 4294901760
      %2377 = vmatpush1.msra.mxu0 %v2376
      %v2378 = vand.u32 %v841, 4294901760
      %2379 = vmatprep.subr.mxu0 %v2378
      %v2380 = vand.u32 %v840, 4294901760
      %2381 = vmatpush1.msra.mxu0 %v2380
      %v2382 = vand.u32 %v849, 4294901760
      %2383 = vmatprep.subr.mxu0 %v2382
      %v2384 = vand.u32 %v848, 4294901760
      %2385 = vmatpush1.msra.mxu0 %v2384
      %v2386 = vand.u32 %v944, 4294901760
      %2387 = vmatprep.subr.mxu0 %v2386
      %v2388 = vand.u32 %v941, 4294901760
      %2389 = vmatpush1.msra.mxu0 %v2388
      %2390 = vmatprep.subr.mxu0 0.0
      %2391 = vmatpush1.msra.mxu0 0.0
      %2392 = vmatprep.subr.mxu0 0.0
      %2393 = vmatpush1.msra.mxu0 0.0
      %2394 = vmatprep.subr.mxu0 0.0
      %2395 = vmatpush1.msra.mxu0 0.0
      %2396 = vmatprep.subr.mxu0 0.0
      %2397 = vmatpush1.msra.mxu0 0.0
      %2398 = vmatprep.subr.mxu0 0.0
      %2399 = vmatpush1.msra.mxu0 0.0
      %2400 = vmatprep.subr.mxu0 0.0
      %2401 = vmatpush1.msra.mxu0 0.0
      %2402 = vmatprep.subr.mxu0 0.0
      %2403 = vmatpush1.msra.mxu0 0.0
      %2404 = vmatprep.subr.mxu0 0.0
      %2405 = vmatpush1.msra.mxu0 0.0
      %2406 = vmatprep.subr.mxu0 0.0
      %2407 = vmatpush1.msra.mxu0 0.0
      %2408 = vmatprep.subr.mxu0 0.0
      %2409 = vmatpush1.msra.mxu0 0.0
      %2410 = vmatprep.subr.mxu0 0.0
      %2411 = vmatpush1.msra.mxu0 0.0
      %2412 = vmatprep.subr.mxu0 0.0
      %2413 = vmatpush1.msra.mxu0 0.0
      %2414 = vmatprep.subr.mxu0 0.0
      %2415 = vmatpush1.msra.mxu0 0.0
      %2416 = vmatprep.subr.mxu0 0.0
      %2417 = vmatpush1.msra.mxu0 0.0
      %2418 = vmatprep.subr.mxu0 0.0
      %2419 = vmatpush1.msra.mxu0 0.0
      %2420 = vmatprep.subr.mxu0 0.0
      %2421 = vmatpush1.msra.mxu0 0.0
      %2422 = vmatprep.subr.mxu0 0.0
      %2423 = vmatpush1.msra.mxu0 0.0
      %2424 = vmatprep.subr.mxu0 0.0
      %2425 = vmatpush1.msra.mxu0 0.0
      %2426 = vmatprep.subr.mxu0 0.0
      %2427 = vmatpush1.msra.mxu0 0.0
      %2428 = vmatprep.subr.mxu0 0.0
      %2429 = vmatpush1.msra.mxu0 0.0
      %2430 = vmatprep.subr.mxu0 0.0
      %2431 = vmatpush1.msra.mxu0 0.0
      %2432 = vmatprep.subr.mxu0 0.0
      %2433 = vmatpush1.msra.mxu0 0.0
      %2434 = vmatprep.subr.mxu0 0.0
      %2435 = vmatpush1.msra.mxu0 0.0
      %2436 = vmatprep.subr.mxu0 0.0
      %2437 = vmatpush1.msra.mxu0 0.0
      %2438 = vmatprep.subr.mxu0 0.0
      %2439 = vmatpush1.msra.mxu0 0.0
      %2440 = vmatprep.mubr.f32.mxu0 0.0
      %v2441 = vand.u32 %v913, 4294901760
      %v2442 = vsub.f32 %v913, %v2441
      %v2443 = vand.u32 %v2442, 4294901760
      %2444 = vmatmul.mubr.f32.gmra.mrb[0].mxu0 %v2443
      %v2445 = vpop.f32.mrb[0].mxu0
      %v2446 = vadd.f32 %v2310, %v2445
      %v2447 = vpop.f32.mrb[0].mxu0
      %v2448 = vadd.f32 %v2312, %v2447
      %2449 = vmatprep.mubr.f32.mxu0 0.0
      %v2450 = vand.u32 %v916, 4294901760
      %v2451 = vsub.f32 %v916, %v2450
      %v2452 = vand.u32 %v2451, 4294901760
      %2453 = vmatmul.mubr.f32.gmra.mrb[0].mxu0 %v2452
      %v2454 = vpop.f32.mrb[0].mxu0
      %v2455 = vadd.f32 %v2318, %v2454
      %v2456 = vpop.f32.mrb[0].mxu0
      %v2457 = vadd.f32 %v2320, %v2456
      %2458 = vmatprep.mubr.f32.mxu0 0.0
      %v2459 = vand.u32 %v919, 4294901760
      %v2460 = vsub.f32 %v919, %v2459
      %v2461 = vand.u32 %v2460, 4294901760
      %2462 = vmatmul.mubr.f32.gmra.mrb[0].mxu0 %v2461
      %v2463 = vpop.f32.mrb[0].mxu0
      %v2464 = vadd.f32 %v2326, %v2463
      %v2465 = vpop.f32.mrb[0].mxu0
      %v2466 = vadd.f32 %v2328, %v2465
      %2467 = vmatprep.mubr.f32.mxu0 0.0
      %v2468 = vand.u32 %v922, 4294901760
      %v2469 = vsub.f32 %v922, %v2468
      %v2470 = vand.u32 %v2469, 4294901760
      %2471 = vmatmul.mubr.f32.gmra.mrb[0].mxu0 %v2470
      %v2472 = vpop.f32.mrb[0].mxu0
      %v2473 = vadd.f32 %v2334, %v2472
      %v2474 = vpop.f32.mrb[0].mxu0
      %v2475 = vadd.f32 %v2336, %v2474
      %2476 = vmatprep.mubr.f32.mxu0 0.0
      %v2477 = vand.u32 %v925, 4294901760
      %v2478 = vsub.f32 %v925, %v2477
      %v2479 = vand.u32 %v2478, 4294901760
      %2480 = vmatmul.mubr.f32.gmra.mrb[0].mxu0 %v2479
      %v2481 = vpop.f32.mrb[0].mxu0
      %v2482 = vadd.f32 %v2342, %v2481
      %v2483 = vpop.f32.mrb[0].mxu0
      %v2484 = vadd.f32 %v2344, %v2483
      %2485 = vmatprep.mubr.f32.mxu0 0.0
      %v2486 = vand.u32 %v928, 4294901760
      %v2487 = vsub.f32 %v928, %v2486
      %v2488 = vand.u32 %v2487, 4294901760
      %2489 = vmatmul.mubr.f32.gmra.mrb[0].mxu0 %v2488
      %v2490 = vpop.f32.mrb[0].mxu0
      %v2491 = vadd.f32 %v2350, %v2490
      %v2492 = vpop.f32.mrb[0].mxu0
      %v2493 = vadd.f32 %v2352, %v2492
      %2494 = vmatprep.mubr.f32.mxu0 0.0
      %v2495 = vand.u32 %v931, 4294901760
      %v2496 = vsub.f32 %v931, %v2495
      %v2497 = vand.u32 %v2496, 4294901760
      %2498 = vmatmul.mubr.f32.gmra.mrb[0].mxu0 %v2497
      %v2499 = vpop.f32.mrb[0].mxu0
      %v2500 = vadd.f32 %v2358, %v2499
      %v2501 = vpop.f32.mrb[0].mxu0
      %v2502 = vadd.f32 %v2360, %v2501
      %2503 = vdwg.mxu0
      %v2504 = vand.u32 %v809, 4294901760
      %v2505 = vsub.f32 %v809, %v2504
      %v2506 = vand.u32 %v2505, 4294901760
      %2507 = vmatprep.subr.mxu0 %v2506
      %v2508 = vand.u32 %v808, 4294901760
      %v2509 = vsub.f32 %v808, %v2508
      %v2510 = vand.u32 %v2509, 4294901760
      %2511 = vmatpush1.msra.mxu0 %v2510
      %v2512 = vand.u32 %v817, 4294901760
      %v2513 = vsub.f32 %v817, %v2512
      %v2514 = vand.u32 %v2513, 4294901760
      %2515 = vmatprep.subr.mxu0 %v2514
      %v2516 = vand.u32 %v816, 4294901760
      %v2517 = vsub.f32 %v816, %v2516
      %v2518 = vand.u32 %v2517, 4294901760
      %2519 = vmatpush1.msra.mxu0 %v2518
      %v2520 = vand.u32 %v825, 4294901760
      %v2521 = vsub.f32 %v825, %v2520
      %v2522 = vand.u32 %v2521, 4294901760
      %2523 = vmatprep.subr.mxu0 %v2522
      %v2524 = vand.u32 %v824, 4294901760
      %v2525 = vsub.f32 %v824, %v2524
      %v2526 = vand.u32 %v2525, 4294901760
      %2527 = vmatpush1.msra.mxu0 %v2526
      %v2528 = vand.u32 %v833, 4294901760
      %v2529 = vsub.f32 %v833, %v2528
      %v2530 = vand.u32 %v2529, 4294901760
      %2531 = vmatprep.subr.mxu0 %v2530
      %v2532 = vand.u32 %v832, 4294901760
      %v2533 = vsub.f32 %v832, %v2532
      %v2534 = vand.u32 %v2533, 4294901760
      %2535 = vmatpush1.msra.mxu0 %v2534
      %v2536 = vand.u32 %v841, 4294901760
      %v2537 = vsub.f32 %v841, %v2536
      %v2538 = vand.u32 %v2537, 4294901760
      %2539 = vmatprep.subr.mxu0 %v2538
      %v2540 = vand.u32 %v840, 4294901760
      %v2541 = vsub.f32 %v840, %v2540
      %v2542 = vand.u32 %v2541, 4294901760
      %2543 = vmatpush1.msra.mxu0 %v2542
      %v2544 = vand.u32 %v849, 4294901760
      %v2545 = vsub.f32 %v849, %v2544
      %v2546 = vand.u32 %v2545, 4294901760
      %2547 = vmatprep.subr.mxu0 %v2546
      %v2548 = vand.u32 %v848, 4294901760
      %v2549 = vsub.f32 %v848, %v2548
      %v2550 = vand.u32 %v2549, 4294901760
      %2551 = vmatpush1.msra.mxu0 %v2550
      %v2552 = vand.u32 %v944, 4294901760
      %v2553 = vsub.f32 %v944, %v2552
      %v2554 = vand.u32 %v2553, 4294901760
      %2555 = vmatprep.subr.mxu0 %v2554
      %v2556 = vand.u32 %v941, 4294901760
      %v2557 = vsub.f32 %v941, %v2556
      %v2558 = vand.u32 %v2557, 4294901760
      %2559 = vmatpush1.msra.mxu0 %v2558
      %2560 = vmatprep.subr.mxu0 0.0
      %2561 = vmatpush1.msra.mxu0 0.0
      %2562 = vmatprep.subr.mxu0 0.0
      %2563 = vmatpush1.msra.mxu0 0.0
      %2564 = vmatprep.subr.mxu0 0.0
      %2565 = vmatpush1.msra.mxu0 0.0
      %2566 = vmatprep.subr.mxu0 0.0
      %2567 = vmatpush1.msra.mxu0 0.0
      %2568 = vmatprep.subr.mxu0 0.0
      %2569 = vmatpush1.msra.mxu0 0.0
      %2570 = vmatprep.subr.mxu0 0.0
      %2571 = vmatpush1.msra.mxu0 0.0
      %2572 = vmatprep.subr.mxu0 0.0
      %2573 = vmatpush1.msra.mxu0 0.0
      %2574 = vmatprep.subr.mxu0 0.0
      %2575 = vmatpush1.msra.mxu0 0.0
      %2576 = vmatprep.subr.mxu0 0.0
      %2577 = vmatpush1.msra.mxu0 0.0
      %2578 = vmatprep.subr.mxu0 0.0
      %2579 = vmatpush1.msra.mxu0 0.0
      %2580 = vmatprep.subr.mxu0 0.0
      %2581 = vmatpush1.msra.mxu0 0.0
      %2582 = vmatprep.subr.mxu0 0.0
      %2583 = vmatpush1.msra.mxu0 0.0
      %2584 = vmatprep.subr.mxu0 0.0
      %2585 = vmatpush1.msra.mxu0 0.0
      %2586 = vmatprep.subr.mxu0 0.0
      %2587 = vmatpush1.msra.mxu0 0.0
      %2588 = vmatprep.subr.mxu0 0.0
      %2589 = vmatpush1.msra.mxu0 0.0
      %2590 = vmatprep.subr.mxu0 0.0
      %2591 = vmatpush1.msra.mxu0 0.0
      %2592 = vmatprep.subr.mxu0 0.0
      %2593 = vmatpush1.msra.mxu0 0.0
      %2594 = vmatprep.subr.mxu0 0.0
      %2595 = vmatpush1.msra.mxu0 0.0
      %2596 = vmatprep.subr.mxu0 0.0
      %2597 = vmatpush1.msra.mxu0 0.0
      %2598 = vmatprep.subr.mxu0 0.0
      %2599 = vmatpush1.msra.mxu0 0.0
      %2600 = vmatprep.subr.mxu0 0.0
      %2601 = vmatpush1.msra.mxu0 0.0
      %2602 = vmatprep.subr.mxu0 0.0
      %2603 = vmatpush1.msra.mxu0 0.0
      %2604 = vmatprep.subr.mxu0 0.0
      %2605 = vmatpush1.msra.mxu0 0.0
      %2606 = vmatprep.subr.mxu0 0.0
      %2607 = vmatpush1.msra.mxu0 0.0
      %2608 = vmatprep.subr.mxu0 0.0
      %2609 = vmatpush1.msra.mxu0 0.0
      %2610 = vmatprep.mubr.f32.mxu0 0.0
      %v2611 = vand.u32 %v913, 4294901760
      %2612 = vmatmul.mubr.f32.gmra.mrb[0].mxu0 %v2611
      %v2613 = vpop.f32.mrb[0].mxu0
      %v2614 = vadd.f32 %v2446, %v2613
      %v2615 = vpop.f32.mrb[0].mxu0
      %v2616 = vadd.f32 %v2448, %v2615
      %2617 = vmatprep.mubr.f32.mxu0 0.0
      %v2618 = vand.u32 %v916, 4294901760
      %2619 = vmatmul.mubr.f32.gmra.mrb[0].mxu0 %v2618
      %v2620 = vpop.f32.mrb[0].mxu0
      %v2621 = vadd.f32 %v2455, %v2620
      %v2622 = vpop.f32.mrb[0].mxu0
      %v2623 = vadd.f32 %v2457, %v2622
      %2624 = vmatprep.mubr.f32.mxu0 0.0
      %v2625 = vand.u32 %v919, 4294901760
      %2626 = vmatmul.mubr.f32.gmra.mrb[0].mxu0 %v2625
      %v2627 = vpop.f32.mrb[0].mxu0
      %v2628 = vadd.f32 %v2464, %v2627
      %v2629 = vpop.f32.mrb[0].mxu0
      %v2630 = vadd.f32 %v2466, %v2629
      %2631 = vmatprep.mubr.f32.mxu0 0.0
      %v2632 = vand.u32 %v922, 4294901760
      %2633 = vmatmul.mubr.f32.gmra.mrb[0].mxu0 %v2632
      %v2634 = vpop.f32.mrb[0].mxu0
      %v2635 = vadd.f32 %v2473, %v2634
      %v2636 = vpop.f32.mrb[0].mxu0
      %v2637 = vadd.f32 %v2475, %v2636
      %2638 = vmatprep.mubr.f32.mxu0 0.0
      %v2639 = vand.u32 %v925, 4294901760
      %2640 = vmatmul.mubr.f32.gmra.mrb[0].mxu0 %v2639
      %v2641 = vpop.f32.mrb[0].mxu0
      %v2642 = vadd.f32 %v2482, %v2641
      %v2643 = vpop.f32.mrb[0].mxu0
      %v2644 = vadd.f32 %v2484, %v2643
      %2645 = vmatprep.mubr.f32.mxu0 0.0
      %v2646 = vand.u32 %v928, 4294901760
      %2647 = vmatmul.mubr.f32.gmra.mrb[0].mxu0 %v2646
      %v2648 = vpop.f32.mrb[0].mxu0
      %v2649 = vadd.f32 %v2491, %v2648
      %v2650 = vpop.f32.mrb[0].mxu0
      %v2651 = vadd.f32 %v2493, %v2650
      %2652 = vmatprep.mubr.f32.mxu0 0.0
      %v2653 = vand.u32 %v931, 4294901760
      %2654 = vmatmul.mubr.f32.gmra.mrb[0].mxu0 %v2653
      %v2655 = vpop.f32.mrb[0].mxu0
      %v2656 = vadd.f32 %v2500, %v2655
      %v2657 = vpop.f32.mrb[0].mxu0
      %v2658 = vadd.f32 %v2502, %v2657
      %2659 = vdwg.mxu0
      %v2660 = vand.u32 %v809, 4294901760
      %2661 = vmatprep.subr.mxu0 %v2660
      %v2662 = vand.u32 %v808, 4294901760
      %2663 = vmatpush1.msra.mxu0 %v2662
      %v2664 = vand.u32 %v817, 4294901760
      %2665 = vmatprep.subr.mxu0 %v2664
      %v2666 = vand.u32 %v816, 4294901760
      %2667 = vmatpush1.msra.mxu0 %v2666
      %v2668 = vand.u32 %v825, 4294901760
      %2669 = vmatprep.subr.mxu0 %v2668
      %v2670 = vand.u32 %v824, 4294901760
      %2671 = vmatpush1.msra.mxu0 %v2670
      %v2672 = vand.u32 %v833, 4294901760
      %2673 = vmatprep.subr.mxu0 %v2672
      %v2674 = vand.u32 %v832, 4294901760
      %2675 = vmatpush1.msra.mxu0 %v2674
      %v2676 = vand.u32 %v841, 4294901760
      %2677 = vmatprep.subr.mxu0 %v2676
      %v2678 = vand.u32 %v840, 4294901760
      %2679 = vmatpush1.msra.mxu0 %v2678
      %v2680 = vand.u32 %v849, 4294901760
      %2681 = vmatprep.subr.mxu0 %v2680
      %v2682 = vand.u32 %v848, 4294901760
      %2683 = vmatpush1.msra.mxu0 %v2682
      %v2684 = vand.u32 %v944, 4294901760
      %2685 = vmatprep.subr.mxu0 %v2684
      %v2686 = vand.u32 %v941, 4294901760
      %2687 = vmatpush1.msra.mxu0 %v2686
      %2688 = vmatprep.subr.mxu0 0.0
      %2689 = vmatpush1.msra.mxu0 0.0
      %2690 = vmatprep.subr.mxu0 0.0
      %2691 = vmatpush1.msra.mxu0 0.0
      %2692 = vmatprep.subr.mxu0 0.0
      %2693 = vmatpush1.msra.mxu0 0.0
      %2694 = vmatprep.subr.mxu0 0.0
      %2695 = vmatpush1.msra.mxu0 0.0
      %2696 = vmatprep.subr.mxu0 0.0
      %2697 = vmatpush1.msra.mxu0 0.0
      %2698 = vmatprep.subr.mxu0 0.0
      %2699 = vmatpush1.msra.mxu0 0.0
      %2700 = vmatprep.subr.mxu0 0.0
      %2701 = vmatpush1.msra.mxu0 0.0
      %2702 = vmatprep.subr.mxu0 0.0
      %2703 = vmatpush1.msra.mxu0 0.0
      %2704 = vmatprep.subr.mxu0 0.0
      %2705 = vmatpush1.msra.mxu0 0.0
      %2706 = vmatprep.subr.mxu0 0.0
      %2707 = vmatpush1.msra.mxu0 0.0
      %2708 = vmatprep.subr.mxu0 0.0
      %2709 = vmatpush1.msra.mxu0 0.0
      %2710 = vmatprep.subr.mxu0 0.0
      %2711 = vmatpush1.msra.mxu0 0.0
      %2712 = vmatprep.subr.mxu0 0.0
      %2713 = vmatpush1.msra.mxu0 0.0
      %2714 = vmatprep.subr.mxu0 0.0
      %2715 = vmatpush1.msra.mxu0 0.0
      %2716 = vmatprep.subr.mxu0 0.0
      %2717 = vmatpush1.msra.mxu0 0.0
      %2718 = vmatprep.subr.mxu0 0.0
      %2719 = vmatpush1.msra.mxu0 0.0
      %2720 = vmatprep.subr.mxu0 0.0
      %2721 = vmatpush1.msra.mxu0 0.0
      %2722 = vmatprep.subr.mxu0 0.0
      %2723 = vmatpush1.msra.mxu0 0.0
      %2724 = vmatprep.subr.mxu0 0.0
      %2725 = vmatpush1.msra.mxu0 0.0
      %2726 = vmatprep.subr.mxu0 0.0
      %2727 = vmatpush1.msra.mxu0 0.0
      %2728 = vmatprep.subr.mxu0 0.0
      %2729 = vmatpush1.msra.mxu0 0.0
      %2730 = vmatprep.subr.mxu0 0.0
      %2731 = vmatpush1.msra.mxu0 0.0
      %2732 = vmatprep.subr.mxu0 0.0
      %2733 = vmatpush1.msra.mxu0 0.0
      %2734 = vmatprep.subr.mxu0 0.0
      %2735 = vmatpush1.msra.mxu0 0.0
      %2736 = vmatprep.subr.mxu0 0.0
      %2737 = vmatpush1.msra.mxu0 0.0
      %2738 = vmatprep.mubr.f32.mxu0 0.0
      %v2739 = vand.u32 %v913, 4294901760
      %2740 = vmatmul.mubr.f32.gmra.mrb[0].mxu0 %v2739
      %v2741 = vpop.f32.mrb[0].mxu0
      %v2742 = vadd.f32 %v2614, %v2741
      %v2743 = vpop.f32.mrb[0].mxu0
      %v2744 = vadd.f32 %v2616, %v2743
      %2745 = vmatprep.mubr.f32.mxu0 0.0
      %v2746 = vand.u32 %v916, 4294901760
      %2747 = vmatmul.mubr.f32.gmra.mrb[0].mxu0 %v2746
      %v2748 = vpop.f32.mrb[0].mxu0
      %v2749 = vadd.f32 %v2621, %v2748
      %v2750 = vpop.f32.mrb[0].mxu0
      %v2751 = vadd.f32 %v2623, %v2750
      %2752 = vmatprep.mubr.f32.mxu0 0.0
      %v2753 = vand.u32 %v919, 4294901760
      %2754 = vmatmul.mubr.f32.gmra.mrb[0].mxu0 %v2753
      %v2755 = vpop.f32.mrb[0].mxu0
      %v2756 = vadd.f32 %v2628, %v2755
      %v2757 = vpop.f32.mrb[0].mxu0
      %v2758 = vadd.f32 %v2630, %v2757
      %2759 = vmatprep.mubr.f32.mxu0 0.0
      %v2760 = vand.u32 %v922, 4294901760
      %2761 = vmatmul.mubr.f32.gmra.mrb[0].mxu0 %v2760
      %v2762 = vpop.f32.mrb[0].mxu0
      %v2763 = vadd.f32 %v2635, %v2762
      %v2764 = vpop.f32.mrb[0].mxu0
      %v2765 = vadd.f32 %v2637, %v2764
      %2766 = vmatprep.mubr.f32.mxu0 0.0
      %v2767 = vand.u32 %v925, 4294901760
      %2768 = vmatmul.mubr.f32.gmra.mrb[0].mxu0 %v2767
      %v2769 = vpop.f32.mrb[0].mxu0
      %v2770 = vadd.f32 %v2642, %v2769
      %v2771 = vpop.f32.mrb[0].mxu0
      %v2772 = vadd.f32 %v2644, %v2771
      %2773 = vmatprep.mubr.f32.mxu0 0.0
      %v2774 = vand.u32 %v928, 4294901760
      %2775 = vmatmul.mubr.f32.gmra.mrb[0].mxu0 %v2774
      %v2776 = vpop.f32.mrb[0].mxu0
      %v2777 = vadd.f32 %v2649, %v2776
      %v2778 = vpop.f32.mrb[0].mxu0
      %v2779 = vadd.f32 %v2651, %v2778
      %2780 = vmatprep.mubr.f32.mxu0 0.0
      %v2781 = vand.u32 %v931, 4294901760
      %2782 = vmatmul.mubr.f32.gmra.mrb[0].mxu0 %v2781
      %v2783 = vpop.f32.mrb[0].mxu0
      %v2784 = vadd.f32 %v2656, %v2783
      %v2785 = vpop.f32.mrb[0].mxu0
      %v2786 = vadd.f32 %v2658, %v2785
      %2787 = vdwg.mxu0
      %v2788 = vand.u32 %v811, 4294901760
      %2789 = vmatprep.subr.mxu0 %v2788
      %v2790 = vand.u32 %v810, 4294901760
      %2791 = vmatpush1.msra.mxu0 %v2790
      %v2792 = vand.u32 %v819, 4294901760
      %2793 = vmatprep.subr.mxu0 %v2792
      %v2794 = vand.u32 %v818, 4294901760
      %2795 = vmatpush1.msra.mxu0 %v2794
      %v2796 = vand.u32 %v827, 4294901760
      %2797 = vmatprep.subr.mxu0 %v2796
      %v2798 = vand.u32 %v826, 4294901760
      %2799 = vmatpush1.msra.mxu0 %v2798
      %v2800 = vand.u32 %v835, 4294901760
      %2801 = vmatprep.subr.mxu0 %v2800
      %v2802 = vand.u32 %v834, 4294901760
      %2803 = vmatpush1.msra.mxu0 %v2802
      %v2804 = vand.u32 %v843, 4294901760
      %2805 = vmatprep.subr.mxu0 %v2804
      %v2806 = vand.u32 %v842, 4294901760
      %2807 = vmatpush1.msra.mxu0 %v2806
      %v2808 = vand.u32 %v851, 4294901760
      %2809 = vmatprep.subr.mxu0 %v2808
      %v2810 = vand.u32 %v850, 4294901760
      %2811 = vmatpush1.msra.mxu0 %v2810
      %v2812 = vand.u32 %v950, 4294901760
      %2813 = vmatprep.subr.mxu0 %v2812
      %v2814 = vand.u32 %v947, 4294901760
      %2815 = vmatpush1.msra.mxu0 %v2814
      %2816 = vmatprep.subr.mxu0 0.0
      %2817 = vmatpush1.msra.mxu0 0.0
      %2818 = vmatprep.subr.mxu0 0.0
      %2819 = vmatpush1.msra.mxu0 0.0
      %2820 = vmatprep.subr.mxu0 0.0
      %2821 = vmatpush1.msra.mxu0 0.0
      %2822 = vmatprep.subr.mxu0 0.0
      %2823 = vmatpush1.msra.mxu0 0.0
      %2824 = vmatprep.subr.mxu0 0.0
      %2825 = vmatpush1.msra.mxu0 0.0
      %2826 = vmatprep.subr.mxu0 0.0
      %2827 = vmatpush1.msra.mxu0 0.0
      %2828 = vmatprep.subr.mxu0 0.0
      %2829 = vmatpush1.msra.mxu0 0.0
      %2830 = vmatprep.subr.mxu0 0.0
      %2831 = vmatpush1.msra.mxu0 0.0
      %2832 = vmatprep.subr.mxu0 0.0
      %2833 = vmatpush1.msra.mxu0 0.0
      %2834 = vmatprep.subr.mxu0 0.0
      %2835 = vmatpush1.msra.mxu0 0.0
      %2836 = vmatprep.subr.mxu0 0.0
      %2837 = vmatpush1.msra.mxu0 0.0
      %2838 = vmatprep.subr.mxu0 0.0
      %2839 = vmatpush1.msra.mxu0 0.0
      %2840 = vmatprep.subr.mxu0 0.0
      %2841 = vmatpush1.msra.mxu0 0.0
      %2842 = vmatprep.subr.mxu0 0.0
      %2843 = vmatpush1.msra.mxu0 0.0
      %2844 = vmatprep.subr.mxu0 0.0
      %2845 = vmatpush1.msra.mxu0 0.0
      %2846 = vmatprep.subr.mxu0 0.0
      %2847 = vmatpush1.msra.mxu0 0.0
      %2848 = vmatprep.subr.mxu0 0.0
      %2849 = vmatpush1.msra.mxu0 0.0
      %2850 = vmatprep.subr.mxu0 0.0
      %2851 = vmatpush1.msra.mxu0 0.0
      %2852 = vmatprep.subr.mxu0 0.0
      %2853 = vmatpush1.msra.mxu0 0.0
      %2854 = vmatprep.subr.mxu0 0.0
      %2855 = vmatpush1.msra.mxu0 0.0
      %2856 = vmatprep.subr.mxu0 0.0
      %2857 = vmatpush1.msra.mxu0 0.0
      %2858 = vmatprep.subr.mxu0 0.0
      %2859 = vmatpush1.msra.mxu0 0.0
      %2860 = vmatprep.subr.mxu0 0.0
      %2861 = vmatpush1.msra.mxu0 0.0
      %2862 = vmatprep.subr.mxu0 0.0
      %2863 = vmatpush1.msra.mxu0 0.0
      %2864 = vmatprep.subr.mxu0 0.0
      %2865 = vmatpush1.msra.mxu0 0.0
      %2866 = vmatprep.mubr.f32.mxu0 0.0
      %v2867 = vand.u32 %v913, 4294901760
      %v2868 = vsub.f32 %v913, %v2867
      %v2869 = vand.u32 %v2868, 4294901760
      %v2870 = vsub.f32 %v2868, %v2869
      %v2871 = vand.u32 %v2870, 4294901760
      %2872 = vmatmul.mubr.f32.gmra.mrb[0].mxu0 %v2871
      %v2873 = vpop.f32.mrb[0].mxu0
      %v2874 = vadd.f32 %v879, %v2873
      %v2875 = vpop.f32.mrb[0].mxu0
      %v2876 = vadd.f32 %v879, %v2875
      %2877 = vmatprep.mubr.f32.mxu0 0.0
      %v2878 = vand.u32 %v916, 4294901760
      %v2879 = vsub.f32 %v916, %v2878
      %v2880 = vand.u32 %v2879, 4294901760
      %v2881 = vsub.f32 %v2879, %v2880
      %v2882 = vand.u32 %v2881, 4294901760
      %2883 = vmatmul.mubr.f32.gmra.mrb[0].mxu0 %v2882
      %v2884 = vpop.f32.mrb[0].mxu0
      %v2885 = vadd.f32 %v884, %v2884
      %v2886 = vpop.f32.mrb[0].mxu0
      %v2887 = vadd.f32 %v884, %v2886
      %2888 = vmatprep.mubr.f32.mxu0 0.0
      %v2889 = vand.u32 %v919, 4294901760
      %v2890 = vsub.f32 %v919, %v2889
      %v2891 = vand.u32 %v2890, 4294901760
      %v2892 = vsub.f32 %v2890, %v2891
      %v2893 = vand.u32 %v2892, 4294901760
      %2894 = vmatmul.mubr.f32.gmra.mrb[0].mxu0 %v2893
      %v2895 = vpop.f32.mrb[0].mxu0
      %v2896 = vadd.f32 %v889, %v2895
      %v2897 = vpop.f32.mrb[0].mxu0
      %v2898 = vadd.f32 %v889, %v2897
      %2899 = vmatprep.mubr.f32.mxu0 0.0
      %v2900 = vand.u32 %v922, 4294901760
      %v2901 = vsub.f32 %v922, %v2900
      %v2902 = vand.u32 %v2901, 4294901760
      %v2903 = vsub.f32 %v2901, %v2902
      %v2904 = vand.u32 %v2903, 4294901760
      %2905 = vmatmul.mubr.f32.gmra.mrb[0].mxu0 %v2904
      %v2906 = vpop.f32.mrb[0].mxu0
      %v2907 = vadd.f32 %v894, %v2906
      %v2908 = vpop.f32.mrb[0].mxu0
      %v2909 = vadd.f32 %v894, %v2908
      %2910 = vmatprep.mubr.f32.mxu0 0.0
      %v2911 = vand.u32 %v925, 4294901760
      %v2912 = vsub.f32 %v925, %v2911
      %v2913 = vand.u32 %v2912, 4294901760
      %v2914 = vsub.f32 %v2912, %v2913
      %v2915 = vand.u32 %v2914, 4294901760
      %2916 = vmatmul.mubr.f32.gmra.mrb[0].mxu0 %v2915
      %v2917 = vpop.f32.mrb[0].mxu0
      %v2918 = vadd.f32 %v899, %v2917
      %v2919 = vpop.f32.mrb[0].mxu0
      %v2920 = vadd.f32 %v899, %v2919
      %2921 = vmatprep.mubr.f32.mxu0 0.0
      %v2922 = vand.u32 %v928, 4294901760
      %v2923 = vsub.f32 %v928, %v2922
      %v2924 = vand.u32 %v2923, 4294901760
      %v2925 = vsub.f32 %v2923, %v2924
      %v2926 = vand.u32 %v2925, 4294901760
      %2927 = vmatmul.mubr.f32.gmra.mrb[0].mxu0 %v2926
      %v2928 = vpop.f32.mrb[0].mxu0
      %v2929 = vadd.f32 %v904, %v2928
      %v2930 = vpop.f32.mrb[0].mxu0
      %v2931 = vadd.f32 %v904, %v2930
      %2932 = vmatprep.mubr.f32.mxu0 0.0
      %v2933 = vand.u32 %v931, 4294901760
      %v2934 = vsub.f32 %v931, %v2933
      %v2935 = vand.u32 %v2934, 4294901760
      %v2936 = vsub.f32 %v2934, %v2935
      %v2937 = vand.u32 %v2936, 4294901760
      %2938 = vmatmul.mubr.f32.gmra.mrb[0].mxu0 %v2937
      %v2939 = vpop.f32.mrb[0].mxu0
      %v2940 = vadd.f32 %v909, %v2939
      %v2941 = vpop.f32.mrb[0].mxu0
      %v2942 = vadd.f32 %v909, %v2941
      %2943 = vdwg.mxu0
      %v2944 = vand.u32 %v811, 4294901760
      %v2945 = vsub.f32 %v811, %v2944
      %v2946 = vand.u32 %v2945, 4294901760
      %v2947 = vsub.f32 %v2945, %v2946
      %v2948 = vand.u32 %v2947, 4294901760
      %2949 = vmatprep.subr.mxu0 %v2948
      %v2950 = vand.u32 %v810, 4294901760
      %v2951 = vsub.f32 %v810, %v2950
      %v2952 = vand.u32 %v2951, 4294901760
      %v2953 = vsub.f32 %v2951, %v2952
      %v2954 = vand.u32 %v2953, 4294901760
      %2955 = vmatpush1.msra.mxu0 %v2954
      %v2956 = vand.u32 %v819, 4294901760
      %v2957 = vsub.f32 %v819, %v2956
      %v2958 = vand.u32 %v2957, 4294901760
      %v2959 = vsub.f32 %v2957, %v2958
      %v2960 = vand.u32 %v2959, 4294901760
      %2961 = vmatprep.subr.mxu0 %v2960
      %v2962 = vand.u32 %v818, 4294901760
      %v2963 = vsub.f32 %v818, %v2962
      %v2964 = vand.u32 %v2963, 4294901760
      %v2965 = vsub.f32 %v2963, %v2964
      %v2966 = vand.u32 %v2965, 4294901760
      %2967 = vmatpush1.msra.mxu0 %v2966
      %v2968 = vand.u32 %v827, 4294901760
      %v2969 = vsub.f32 %v827, %v2968
      %v2970 = vand.u32 %v2969, 4294901760
      %v2971 = vsub.f32 %v2969, %v2970
      %v2972 = vand.u32 %v2971, 4294901760
      %2973 = vmatprep.subr.mxu0 %v2972
      %v2974 = vand.u32 %v826, 4294901760
      %v2975 = vsub.f32 %v826, %v2974
      %v2976 = vand.u32 %v2975, 4294901760
      %v2977 = vsub.f32 %v2975, %v2976
      %v2978 = vand.u32 %v2977, 4294901760
      %2979 = vmatpush1.msra.mxu0 %v2978
      %v2980 = vand.u32 %v835, 4294901760
      %v2981 = vsub.f32 %v835, %v2980
      %v2982 = vand.u32 %v2981, 4294901760
      %v2983 = vsub.f32 %v2981, %v2982
      %v2984 = vand.u32 %v2983, 4294901760
      %2985 = vmatprep.subr.mxu0 %v2984
      %v2986 = vand.u32 %v834, 4294901760
      %v2987 = vsub.f32 %v834, %v2986
      %v2988 = vand.u32 %v2987, 4294901760
      %v2989 = vsub.f32 %v2987, %v2988
      %v2990 = vand.u32 %v2989, 4294901760
      %2991 = vmatpush1.msra.mxu0 %v2990
      %v2992 = vand.u32 %v843, 4294901760
      %v2993 = vsub.f32 %v843, %v2992
      %v2994 = vand.u32 %v2993, 4294901760
      %v2995 = vsub.f32 %v2993, %v2994
      %v2996 = vand.u32 %v2995, 4294901760
      %2997 = vmatprep.subr.mxu0 %v2996
      %v2998 = vand.u32 %v842, 4294901760
      %v2999 = vsub.f32 %v842, %v2998
      %v3000 = vand.u32 %v2999, 4294901760
      %v3001 = vsub.f32 %v2999, %v3000
      %v3002 = vand.u32 %v3001, 4294901760
      %3003 = vmatpush1.msra.mxu0 %v3002
      %v3004 = vand.u32 %v851, 4294901760
      %v3005 = vsub.f32 %v851, %v3004
      %v3006 = vand.u32 %v3005, 4294901760
      %v3007 = vsub.f32 %v3005, %v3006
      %v3008 = vand.u32 %v3007, 4294901760
      %3009 = vmatprep.subr.mxu0 %v3008
      %v3010 = vand.u32 %v850, 4294901760
      %v3011 = vsub.f32 %v850, %v3010
      %v3012 = vand.u32 %v3011, 4294901760
      %v3013 = vsub.f32 %v3011, %v3012
      %v3014 = vand.u32 %v3013, 4294901760
      %3015 = vmatpush1.msra.mxu0 %v3014
      %v3016 = vand.u32 %v950, 4294901760
      %v3017 = vsub.f32 %v950, %v3016
      %v3018 = vand.u32 %v3017, 4294901760
      %v3019 = vsub.f32 %v3017, %v3018
      %v3020 = vand.u32 %v3019, 4294901760
      %3021 = vmatprep.subr.mxu0 %v3020
      %v3022 = vand.u32 %v947, 4294901760
      %v3023 = vsub.f32 %v947, %v3022
      %v3024 = vand.u32 %v3023, 4294901760
      %v3025 = vsub.f32 %v3023, %v3024
      %v3026 = vand.u32 %v3025, 4294901760
      %3027 = vmatpush1.msra.mxu0 %v3026
      %3028 = vmatprep.subr.mxu0 0.0
      %3029 = vmatpush1.msra.mxu0 0.0
      %3030 = vmatprep.subr.mxu0 0.0
      %3031 = vmatpush1.msra.mxu0 0.0
      %3032 = vmatprep.subr.mxu0 0.0
      %3033 = vmatpush1.msra.mxu0 0.0
      %3034 = vmatprep.subr.mxu0 0.0
      %3035 = vmatpush1.msra.mxu0 0.0
      %3036 = vmatprep.subr.mxu0 0.0
      %3037 = vmatpush1.msra.mxu0 0.0
      %3038 = vmatprep.subr.mxu0 0.0
      %3039 = vmatpush1.msra.mxu0 0.0
      %3040 = vmatprep.subr.mxu0 0.0
      %3041 = vmatpush1.msra.mxu0 0.0
      %3042 = vmatprep.subr.mxu0 0.0
      %3043 = vmatpush1.msra.mxu0 0.0
      %3044 = vmatprep.subr.mxu0 0.0
      %3045 = vmatpush1.msra.mxu0 0.0
      %3046 = vmatprep.subr.mxu0 0.0
      %3047 = vmatpush1.msra.mxu0 0.0
      %3048 = vmatprep.subr.mxu0 0.0
      %3049 = vmatpush1.msra.mxu0 0.0
      %3050 = vmatprep.subr.mxu0 0.0
      %3051 = vmatpush1.msra.mxu0 0.0
      %3052 = vmatprep.subr.mxu0 0.0
      %3053 = vmatpush1.msra.mxu0 0.0
      %3054 = vmatprep.subr.mxu0 0.0
      %3055 = vmatpush1.msra.mxu0 0.0
      %3056 = vmatprep.subr.mxu0 0.0
      %3057 = vmatpush1.msra.mxu0 0.0
      %3058 = vmatprep.subr.mxu0 0.0
      %3059 = vmatpush1.msra.mxu0 0.0
      %3060 = vmatprep.subr.mxu0 0.0
      %3061 = vmatpush1.msra.mxu0 0.0
      %3062 = vmatprep.subr.mxu0 0.0
      %3063 = vmatpush1.msra.mxu0 0.0
      %3064 = vmatprep.subr.mxu0 0.0
      %3065 = vmatpush1.msra.mxu0 0.0
      %3066 = vmatprep.subr.mxu0 0.0
      %3067 = vmatpush1.msra.mxu0 0.0
      %3068 = vmatprep.subr.mxu0 0.0
      %3069 = vmatpush1.msra.mxu0 0.0
      %3070 = vmatprep.subr.mxu0 0.0
      %3071 = vmatpush1.msra.mxu0 0.0
      %3072 = vmatprep.subr.mxu0 0.0
      %3073 = vmatpush1.msra.mxu0 0.0
      %3074 = vmatprep.subr.mxu0 0.0
      %3075 = vmatpush1.msra.mxu0 0.0
      %3076 = vmatprep.subr.mxu0 0.0
      %3077 = vmatpush1.msra.mxu0 0.0
      %3078 = vmatprep.mubr.f32.mxu0 0.0
      %v3079 = vand.u32 %v913, 4294901760
      %3080 = vmatmul.mubr.f32.gmra.mrb[0].mxu0 %v3079
      %v3081 = vpop.f32.mrb[0].mxu0
      %v3082 = vadd.f32 %v2874, %v3081
      %v3083 = vpop.f32.mrb[0].mxu0
      %v3084 = vadd.f32 %v2876, %v3083
      %3085 = vmatprep.mubr.f32.mxu0 0.0
      %v3086 = vand.u32 %v916, 4294901760
      %3087 = vmatmul.mubr.f32.gmra.mrb[0].mxu0 %v3086
      %v3088 = vpop.f32.mrb[0].mxu0
      %v3089 = vadd.f32 %v2885, %v3088
      %v3090 = vpop.f32.mrb[0].mxu0
      %v3091 = vadd.f32 %v2887, %v3090
      %3092 = vmatprep.mubr.f32.mxu0 0.0
      %v3093 = vand.u32 %v919, 4294901760
      %3094 = vmatmul.mubr.f32.gmra.mrb[0].mxu0 %v3093
      %v3095 = vpop.f32.mrb[0].mxu0
      %v3096 = vadd.f32 %v2896, %v3095
      %v3097 = vpop.f32.mrb[0].mxu0
      %v3098 = vadd.f32 %v2898, %v3097
      %3099 = vmatprep.mubr.f32.mxu0 0.0
      %v3100 = vand.u32 %v922, 4294901760
      %3101 = vmatmul.mubr.f32.gmra.mrb[0].mxu0 %v3100
      %v3102 = vpop.f32.mrb[0].mxu0
      %v3103 = vadd.f32 %v2907, %v3102
      %v3104 = vpop.f32.mrb[0].mxu0
      %v3105 = vadd.f32 %v2909, %v3104
      %3106 = vmatprep.mubr.f32.mxu0 0.0
      %v3107 = vand.u32 %v925, 4294901760
      %3108 = vmatmul.mubr.f32.gmra.mrb[0].mxu0 %v3107
      %v3109 = vpop.f32.mrb[0].mxu0
      %v3110 = vadd.f32 %v2918, %v3109
      %v3111 = vpop.f32.mrb[0].mxu0
      %v3112 = vadd.f32 %v2920, %v3111
      %3113 = vmatprep.mubr.f32.mxu0 0.0
      %v3114 = vand.u32 %v928, 4294901760
      %3115 = vmatmul.mubr.f32.gmra.mrb[0].mxu0 %v3114
      %v3116 = vpop.f32.mrb[0].mxu0
      %v3117 = vadd.f32 %v2929, %v3116
      %v3118 = vpop.f32.mrb[0].mxu0
      %v3119 = vadd.f32 %v2931, %v3118
      %3120 = vmatprep.mubr.f32.mxu0 0.0
      %v3121 = vand.u32 %v931, 4294901760
      %3122 = vmatmul.mubr.f32.gmra.mrb[0].mxu0 %v3121
      %v3123 = vpop.f32.mrb[0].mxu0
      %v3124 = vadd.f32 %v2940, %v3123
      %v3125 = vpop.f32.mrb[0].mxu0
      %v3126 = vadd.f32 %v2942, %v3125
      %3127 = vdwg.mxu0
      %v3128 = vand.u32 %v811, 4294901760
      %v3129 = vsub.f32 %v811, %v3128
      %3130 = vmatprep.subr.mxu0 %v3129
      %v3131 = vand.u32 %v810, 4294901760
      %v3132 = vsub.f32 %v810, %v3131
      %3133 = vmatpush1.msra.mxu0 %v3132
      %v3134 = vand.u32 %v819, 4294901760
      %v3135 = vsub.f32 %v819, %v3134
      %3136 = vmatprep.subr.mxu0 %v3135
      %v3137 = vand.u32 %v818, 4294901760
      %v3138 = vsub.f32 %v818, %v3137
      %3139 = vmatpush1.msra.mxu0 %v3138
      %v3140 = vand.u32 %v827, 4294901760
      %v3141 = vsub.f32 %v827, %v3140
      %3142 = vmatprep.subr.mxu0 %v3141
      %v3143 = vand.u32 %v826, 4294901760
      %v3144 = vsub.f32 %v826, %v3143
      %3145 = vmatpush1.msra.mxu0 %v3144
      %v3146 = vand.u32 %v835, 4294901760
      %v3147 = vsub.f32 %v835, %v3146
      %3148 = vmatprep.subr.mxu0 %v3147
      %v3149 = vand.u32 %v834, 4294901760
      %v3150 = vsub.f32 %v834, %v3149
      %3151 = vmatpush1.msra.mxu0 %v3150
      %v3152 = vand.u32 %v843, 4294901760
      %v3153 = vsub.f32 %v843, %v3152
      %3154 = vmatprep.subr.mxu0 %v3153
      %v3155 = vand.u32 %v842, 4294901760
      %v3156 = vsub.f32 %v842, %v3155
      %3157 = vmatpush1.msra.mxu0 %v3156
      %v3158 = vand.u32 %v851, 4294901760
      %v3159 = vsub.f32 %v851, %v3158
      %3160 = vmatprep.subr.mxu0 %v3159
      %v3161 = vand.u32 %v850, 4294901760
      %v3162 = vsub.f32 %v850, %v3161
      %3163 = vmatpush1.msra.mxu0 %v3162
      %v3164 = vand.u32 %v950, 4294901760
      %v3165 = vsub.f32 %v950, %v3164
      %3166 = vmatprep.subr.mxu0 %v3165
      %v3167 = vand.u32 %v947, 4294901760
      %v3168 = vsub.f32 %v947, %v3167
      %3169 = vmatpush1.msra.mxu0 %v3168
      %3170 = vmatprep.subr.mxu0 0.0
      %3171 = vmatpush1.msra.mxu0 0.0
      %3172 = vmatprep.subr.mxu0 0.0
      %3173 = vmatpush1.msra.mxu0 0.0
      %3174 = vmatprep.subr.mxu0 0.0
      %3175 = vmatpush1.msra.mxu0 0.0
      %3176 = vmatprep.subr.mxu0 0.0
      %3177 = vmatpush1.msra.mxu0 0.0
      %3178 = vmatprep.subr.mxu0 0.0
      %3179 = vmatpush1.msra.mxu0 0.0
      %3180 = vmatprep.subr.mxu0 0.0
      %3181 = vmatpush1.msra.mxu0 0.0
      %3182 = vmatprep.subr.mxu0 0.0
      %3183 = vmatpush1.msra.mxu0 0.0
      %3184 = vmatprep.subr.mxu0 0.0
      %3185 = vmatpush1.msra.mxu0 0.0
      %3186 = vmatprep.subr.mxu0 0.0
      %3187 = vmatpush1.msra.mxu0 0.0
      %3188 = vmatprep.subr.mxu0 0.0
      %3189 = vmatpush1.msra.mxu0 0.0
      %3190 = vmatprep.subr.mxu0 0.0
      %3191 = vmatpush1.msra.mxu0 0.0
      %3192 = vmatprep.subr.mxu0 0.0
      %3193 = vmatpush1.msra.mxu0 0.0
      %3194 = vmatprep.subr.mxu0 0.0
      %3195 = vmatpush1.msra.mxu0 0.0
      %3196 = vmatprep.subr.mxu0 0.0
      %3197 = vmatpush1.msra.mxu0 0.0
      %3198 = vmatprep.subr.mxu0 0.0
      %3199 = vmatpush1.msra.mxu0 0.0
      %3200 = vmatprep.subr.mxu0 0.0
      %3201 = vmatpush1.msra.mxu0 0.0
      %3202 = vmatprep.subr.mxu0 0.0
      %3203 = vmatpush1.msra.mxu0 0.0
      %3204 = vmatprep.subr.mxu0 0.0
      %3205 = vmatpush1.msra.mxu0 0.0
      %3206 = vmatprep.subr.mxu0 0.0
      %3207 = vmatpush1.msra.mxu0 0.0
      %3208 = vmatprep.subr.mxu0 0.0
      %3209 = vmatpush1.msra.mxu0 0.0
      %3210 = vmatprep.subr.mxu0 0.0
      %3211 = vmatpush1.msra.mxu0 0.0
      %3212 = vmatprep.subr.mxu0 0.0
      %3213 = vmatpush1.msra.mxu0 0.0
      %3214 = vmatprep.subr.mxu0 0.0
      %3215 = vmatpush1.msra.mxu0 0.0
      %3216 = vmatprep.subr.mxu0 0.0
      %3217 = vmatpush1.msra.mxu0 0.0
      %3218 = vmatprep.subr.mxu0 0.0
      %3219 = vmatpush1.msra.mxu0 0.0
      %3220 = vmatprep.mubr.f32.mxu0 0.0
      %v3221 = vand.u32 %v913, 4294901760
      %v3222 = vsub.f32 %v913, %v3221
      %3223 = vmatmul.mubr.f32.gmra.mrb[0].mxu0 %v3222
      %v3224 = vpop.f32.mrb[0].mxu0
      %v3225 = vadd.f32 %v3082, %v3224
      %v3226 = vpop.f32.mrb[0].mxu0
      %v3227 = vadd.f32 %v3084, %v3226
      %3228 = vmatprep.mubr.f32.mxu0 0.0
      %v3229 = vand.u32 %v916, 4294901760
      %v3230 = vsub.f32 %v916, %v3229
      %3231 = vmatmul.mubr.f32.gmra.mrb[0].mxu0 %v3230
      %v3232 = vpop.f32.mrb[0].mxu0
      %v3233 = vadd.f32 %v3089, %v3232
      %v3234 = vpop.f32.mrb[0].mxu0
      %v3235 = vadd.f32 %v3091, %v3234
      %3236 = vmatprep.mubr.f32.mxu0 0.0
      %v3237 = vand.u32 %v919, 4294901760
      %v3238 = vsub.f32 %v919, %v3237
      %3239 = vmatmul.mubr.f32.gmra.mrb[0].mxu0 %v3238
      %v3240 = vpop.f32.mrb[0].mxu0
      %v3241 = vadd.f32 %v3096, %v3240
      %v3242 = vpop.f32.mrb[0].mxu0
      %v3243 = vadd.f32 %v3098, %v3242
      %3244 = vmatprep.mubr.f32.mxu0 0.0
      %v3245 = vand.u32 %v922, 4294901760
      %v3246 = vsub.f32 %v922, %v3245
      %3247 = vmatmul.mubr.f32.gmra.mrb[0].mxu0 %v3246
      %v3248 = vpop.f32.mrb[0].mxu0
      %v3249 = vadd.f32 %v3103, %v3248
      %v3250 = vpop.f32.mrb[0].mxu0
      %v3251 = vadd.f32 %v3105, %v3250
      %3252 = vmatprep.mubr.f32.mxu0 0.0
      %v3253 = vand.u32 %v925, 4294901760
      %v3254 = vsub.f32 %v925, %v3253
      %3255 = vmatmul.mubr.f32.gmra.mrb[0].mxu0 %v3254
      %v3256 = vpop.f32.mrb[0].mxu0
      %v3257 = vadd.f32 %v3110, %v3256
      %v3258 = vpop.f32.mrb[0].mxu0
      %v3259 = vadd.f32 %v3112, %v3258
      %3260 = vmatprep.mubr.f32.mxu0 0.0
      %v3261 = vand.u32 %v928, 4294901760
      %v3262 = vsub.f32 %v928, %v3261
      %3263 = vmatmul.mubr.f32.gmra.mrb[0].mxu0 %v3262
      %v3264 = vpop.f32.mrb[0].mxu0
      %v3265 = vadd.f32 %v3117, %v3264
      %v3266 = vpop.f32.mrb[0].mxu0
      %v3267 = vadd.f32 %v3119, %v3266
      %3268 = vmatprep.mubr.f32.mxu0 0.0
      %v3269 = vand.u32 %v931, 4294901760
      %v3270 = vsub.f32 %v931, %v3269
      %3271 = vmatmul.mubr.f32.gmra.mrb[0].mxu0 %v3270
      %v3272 = vpop.f32.mrb[0].mxu0
      %v3273 = vadd.f32 %v3124, %v3272
      %v3274 = vpop.f32.mrb[0].mxu0
      %v3275 = vadd.f32 %v3126, %v3274
      %3276 = vdwg.mxu0
      %v3277 = vand.u32 %v811, 4294901760
      %3278 = vmatprep.subr.mxu0 %v3277
      %v3279 = vand.u32 %v810, 4294901760
      %3280 = vmatpush1.msra.mxu0 %v3279
      %v3281 = vand.u32 %v819, 4294901760
      %3282 = vmatprep.subr.mxu0 %v3281
      %v3283 = vand.u32 %v818, 4294901760
      %3284 = vmatpush1.msra.mxu0 %v3283
      %v3285 = vand.u32 %v827, 4294901760
      %3286 = vmatprep.subr.mxu0 %v3285
      %v3287 = vand.u32 %v826, 4294901760
      %3288 = vmatpush1.msra.mxu0 %v3287
      %v3289 = vand.u32 %v835, 4294901760
      %3290 = vmatprep.subr.mxu0 %v3289
      %v3291 = vand.u32 %v834, 4294901760
      %3292 = vmatpush1.msra.mxu0 %v3291
      %v3293 = vand.u32 %v843, 4294901760
      %3294 = vmatprep.subr.mxu0 %v3293
      %v3295 = vand.u32 %v842, 4294901760
      %3296 = vmatpush1.msra.mxu0 %v3295
      %v3297 = vand.u32 %v851, 4294901760
      %3298 = vmatprep.subr.mxu0 %v3297
      %v3299 = vand.u32 %v850, 4294901760
      %3300 = vmatpush1.msra.mxu0 %v3299
      %v3301 = vand.u32 %v950, 4294901760
      %3302 = vmatprep.subr.mxu0 %v3301
      %v3303 = vand.u32 %v947, 4294901760
      %3304 = vmatpush1.msra.mxu0 %v3303
      %3305 = vmatprep.subr.mxu0 0.0
      %3306 = vmatpush1.msra.mxu0 0.0
      %3307 = vmatprep.subr.mxu0 0.0
      %3308 = vmatpush1.msra.mxu0 0.0
      %3309 = vmatprep.subr.mxu0 0.0
      %3310 = vmatpush1.msra.mxu0 0.0
      %3311 = vmatprep.subr.mxu0 0.0
      %3312 = vmatpush1.msra.mxu0 0.0
      %3313 = vmatprep.subr.mxu0 0.0
      %3314 = vmatpush1.msra.mxu0 0.0
      %3315 = vmatprep.subr.mxu0 0.0
      %3316 = vmatpush1.msra.mxu0 0.0
      %3317 = vmatprep.subr.mxu0 0.0
      %3318 = vmatpush1.msra.mxu0 0.0
      %3319 = vmatprep.subr.mxu0 0.0
      %3320 = vmatpush1.msra.mxu0 0.0
      %3321 = vmatprep.subr.mxu0 0.0
      %3322 = vmatpush1.msra.mxu0 0.0
      %3323 = vmatprep.subr.mxu0 0.0
      %3324 = vmatpush1.msra.mxu0 0.0
      %3325 = vmatprep.subr.mxu0 0.0
      %3326 = vmatpush1.msra.mxu0 0.0
      %3327 = vmatprep.subr.mxu0 0.0
      %3328 = vmatpush1.msra.mxu0 0.0
      %3329 = vmatprep.subr.mxu0 0.0
      %3330 = vmatpush1.msra.mxu0 0.0
      %3331 = vmatprep.subr.mxu0 0.0
      %3332 = vmatpush1.msra.mxu0 0.0
      %3333 = vmatprep.subr.mxu0 0.0
      %3334 = vmatpush1.msra.mxu0 0.0
      %3335 = vmatprep.subr.mxu0 0.0
      %3336 = vmatpush1.msra.mxu0 0.0
      %3337 = vmatprep.subr.mxu0 0.0
      %3338 = vmatpush1.msra.mxu0 0.0
      %3339 = vmatprep.subr.mxu0 0.0
      %3340 = vmatpush1.msra.mxu0 0.0
      %3341 = vmatprep.subr.mxu0 0.0
      %3342 = vmatpush1.msra.mxu0 0.0
      %3343 = vmatprep.subr.mxu0 0.0
      %3344 = vmatpush1.msra.mxu0 0.0
      %3345 = vmatprep.subr.mxu0 0.0
      %3346 = vmatpush1.msra.mxu0 0.0
      %3347 = vmatprep.subr.mxu0 0.0
      %3348 = vmatpush1.msra.mxu0 0.0
      %3349 = vmatprep.subr.mxu0 0.0
      %3350 = vmatpush1.msra.mxu0 0.0
      %3351 = vmatprep.subr.mxu0 0.0
      %3352 = vmatpush1.msra.mxu0 0.0
      %3353 = vmatprep.subr.mxu0 0.0
      %3354 = vmatpush1.msra.mxu0 0.0
      %3355 = vmatprep.mubr.f32.mxu0 0.0
      %v3356 = vand.u32 %v913, 4294901760
      %v3357 = vsub.f32 %v913, %v3356
      %v3358 = vand.u32 %v3357, 4294901760
      %3359 = vmatmul.mubr.f32.gmra.mrb[0].mxu0 %v3358
      %v3360 = vpop.f32.mrb[0].mxu0
      %v3361 = vadd.f32 %v3225, %v3360
      %v3362 = vpop.f32.mrb[0].mxu0
      %v3363 = vadd.f32 %v3227, %v3362
      %3364 = vmatprep.mubr.f32.mxu0 0.0
      %v3365 = vand.u32 %v916, 4294901760
      %v3366 = vsub.f32 %v916, %v3365
      %v3367 = vand.u32 %v3366, 4294901760
      %3368 = vmatmul.mubr.f32.gmra.mrb[0].mxu0 %v3367
      %v3369 = vpop.f32.mrb[0].mxu0
      %v3370 = vadd.f32 %v3233, %v3369
      %v3371 = vpop.f32.mrb[0].mxu0
      %v3372 = vadd.f32 %v3235, %v3371
      %3373 = vmatprep.mubr.f32.mxu0 0.0
      %v3374 = vand.u32 %v919, 4294901760
      %v3375 = vsub.f32 %v919, %v3374
      %v3376 = vand.u32 %v3375, 4294901760
      %3377 = vmatmul.mubr.f32.gmra.mrb[0].mxu0 %v3376
      %v3378 = vpop.f32.mrb[0].mxu0
      %v3379 = vadd.f32 %v3241, %v3378
      %v3380 = vpop.f32.mrb[0].mxu0
      %v3381 = vadd.f32 %v3243, %v3380
      %3382 = vmatprep.mubr.f32.mxu0 0.0
      %v3383 = vand.u32 %v922, 4294901760
      %v3384 = vsub.f32 %v922, %v3383
      %v3385 = vand.u32 %v3384, 4294901760
      %3386 = vmatmul.mubr.f32.gmra.mrb[0].mxu0 %v3385
      %v3387 = vpop.f32.mrb[0].mxu0
      %v3388 = vadd.f32 %v3249, %v3387
      %v3389 = vpop.f32.mrb[0].mxu0
      %v3390 = vadd.f32 %v3251, %v3389
      %3391 = vmatprep.mubr.f32.mxu0 0.0
      %v3392 = vand.u32 %v925, 4294901760
      %v3393 = vsub.f32 %v925, %v3392
      %v3394 = vand.u32 %v3393, 4294901760
      %3395 = vmatmul.mubr.f32.gmra.mrb[0].mxu0 %v3394
      %v3396 = vpop.f32.mrb[0].mxu0
      %v3397 = vadd.f32 %v3257, %v3396
      %v3398 = vpop.f32.mrb[0].mxu0
      %v3399 = vadd.f32 %v3259, %v3398
      %3400 = vmatprep.mubr.f32.mxu0 0.0
      %v3401 = vand.u32 %v928, 4294901760
      %v3402 = vsub.f32 %v928, %v3401
      %v3403 = vand.u32 %v3402, 4294901760
      %3404 = vmatmul.mubr.f32.gmra.mrb[0].mxu0 %v3403
      %v3405 = vpop.f32.mrb[0].mxu0
      %v3406 = vadd.f32 %v3265, %v3405
      %v3407 = vpop.f32.mrb[0].mxu0
      %v3408 = vadd.f32 %v3267, %v3407
      %3409 = vmatprep.mubr.f32.mxu0 0.0
      %v3410 = vand.u32 %v931, 4294901760
      %v3411 = vsub.f32 %v931, %v3410
      %v3412 = vand.u32 %v3411, 4294901760
      %3413 = vmatmul.mubr.f32.gmra.mrb[0].mxu0 %v3412
      %v3414 = vpop.f32.mrb[0].mxu0
      %v3415 = vadd.f32 %v3273, %v3414
      %v3416 = vpop.f32.mrb[0].mxu0
      %v3417 = vadd.f32 %v3275, %v3416
      %3418 = vdwg.mxu0
      %v3419 = vand.u32 %v811, 4294901760
      %v3420 = vsub.f32 %v811, %v3419
      %v3421 = vand.u32 %v3420, 4294901760
      %3422 = vmatprep.subr.mxu0 %v3421
      %v3423 = vand.u32 %v810, 4294901760
      %v3424 = vsub.f32 %v810, %v3423
      %v3425 = vand.u32 %v3424, 4294901760
      %3426 = vmatpush1.msra.mxu0 %v3425
      %v3427 = vand.u32 %v819, 4294901760
      %v3428 = vsub.f32 %v819, %v3427
      %v3429 = vand.u32 %v3428, 4294901760
      %3430 = vmatprep.subr.mxu0 %v3429
      %v3431 = vand.u32 %v818, 4294901760
      %v3432 = vsub.f32 %v818, %v3431
      %v3433 = vand.u32 %v3432, 4294901760
      %3434 = vmatpush1.msra.mxu0 %v3433
      %v3435 = vand.u32 %v827, 4294901760
      %v3436 = vsub.f32 %v827, %v3435
      %v3437 = vand.u32 %v3436, 4294901760
      %3438 = vmatprep.subr.mxu0 %v3437
      %v3439 = vand.u32 %v826, 4294901760
      %v3440 = vsub.f32 %v826, %v3439
      %v3441 = vand.u32 %v3440, 4294901760
      %3442 = vmatpush1.msra.mxu0 %v3441
      %v3443 = vand.u32 %v835, 4294901760
      %v3444 = vsub.f32 %v835, %v3443
      %v3445 = vand.u32 %v3444, 4294901760
      %3446 = vmatprep.subr.mxu0 %v3445
      %v3447 = vand.u32 %v834, 4294901760
      %v3448 = vsub.f32 %v834, %v3447
      %v3449 = vand.u32 %v3448, 4294901760
      %3450 = vmatpush1.msra.mxu0 %v3449
      %v3451 = vand.u32 %v843, 4294901760
      %v3452 = vsub.f32 %v843, %v3451
      %v3453 = vand.u32 %v3452, 4294901760
      %3454 = vmatprep.subr.mxu0 %v3453
      %v3455 = vand.u32 %v842, 4294901760
      %v3456 = vsub.f32 %v842, %v3455
      %v3457 = vand.u32 %v3456, 4294901760
      %3458 = vmatpush1.msra.mxu0 %v3457
      %v3459 = vand.u32 %v851, 4294901760
      %v3460 = vsub.f32 %v851, %v3459
      %v3461 = vand.u32 %v3460, 4294901760
      %3462 = vmatprep.subr.mxu0 %v3461
      %v3463 = vand.u32 %v850, 4294901760
      %v3464 = vsub.f32 %v850, %v3463
      %v3465 = vand.u32 %v3464, 4294901760
      %3466 = vmatpush1.msra.mxu0 %v3465
      %v3467 = vand.u32 %v950, 4294901760
      %v3468 = vsub.f32 %v950, %v3467
      %v3469 = vand.u32 %v3468, 4294901760
      %3470 = vmatprep.subr.mxu0 %v3469
      %v3471 = vand.u32 %v947, 4294901760
      %v3472 = vsub.f32 %v947, %v3471
      %v3473 = vand.u32 %v3472, 4294901760
      %3474 = vmatpush1.msra.mxu0 %v3473
      %3475 = vmatprep.subr.mxu0 0.0
      %3476 = vmatpush1.msra.mxu0 0.0
      %3477 = vmatprep.subr.mxu0 0.0
      %3478 = vmatpush1.msra.mxu0 0.0
      %3479 = vmatprep.subr.mxu0 0.0
      %3480 = vmatpush1.msra.mxu0 0.0
      %3481 = vmatprep.subr.mxu0 0.0
      %3482 = vmatpush1.msra.mxu0 0.0
      %3483 = vmatprep.subr.mxu0 0.0
      %3484 = vmatpush1.msra.mxu0 0.0
      %3485 = vmatprep.subr.mxu0 0.0
      %3486 = vmatpush1.msra.mxu0 0.0
      %3487 = vmatprep.subr.mxu0 0.0
      %3488 = vmatpush1.msra.mxu0 0.0
      %3489 = vmatprep.subr.mxu0 0.0
      %3490 = vmatpush1.msra.mxu0 0.0
      %3491 = vmatprep.subr.mxu0 0.0
      %3492 = vmatpush1.msra.mxu0 0.0
      %3493 = vmatprep.subr.mxu0 0.0
      %3494 = vmatpush1.msra.mxu0 0.0
      %3495 = vmatprep.subr.mxu0 0.0
      %3496 = vmatpush1.msra.mxu0 0.0
      %3497 = vmatprep.subr.mxu0 0.0
      %3498 = vmatpush1.msra.mxu0 0.0
      %3499 = vmatprep.subr.mxu0 0.0
      %3500 = vmatpush1.msra.mxu0 0.0
      %3501 = vmatprep.subr.mxu0 0.0
      %3502 = vmatpush1.msra.mxu0 0.0
      %3503 = vmatprep.subr.mxu0 0.0
      %3504 = vmatpush1.msra.mxu0 0.0
      %3505 = vmatprep.subr.mxu0 0.0
      %3506 = vmatpush1.msra.mxu0 0.0
      %3507 = vmatprep.subr.mxu0 0.0
      %3508 = vmatpush1.msra.mxu0 0.0
      %3509 = vmatprep.subr.mxu0 0.0
      %3510 = vmatpush1.msra.mxu0 0.0
      %3511 = vmatprep.subr.mxu0 0.0
      %3512 = vmatpush1.msra.mxu0 0.0
      %3513 = vmatprep.subr.mxu0 0.0
      %3514 = vmatpush1.msra.mxu0 0.0
      %3515 = vmatprep.subr.mxu0 0.0
      %3516 = vmatpush1.msra.mxu0 0.0
      %3517 = vmatprep.subr.mxu0 0.0
      %3518 = vmatpush1.msra.mxu0 0.0
      %3519 = vmatprep.subr.mxu0 0.0
      %3520 = vmatpush1.msra.mxu0 0.0
      %3521 = vmatprep.subr.mxu0 0.0
      %3522 = vmatpush1.msra.mxu0 0.0
      %3523 = vmatprep.subr.mxu0 0.0
      %3524 = vmatpush1.msra.mxu0 0.0
      %3525 = vmatprep.mubr.f32.mxu0 0.0
      %v3526 = vand.u32 %v913, 4294901760
      %3527 = vmatmul.mubr.f32.gmra.mrb[0].mxu0 %v3526
      %v3528 = vpop.f32.mrb[0].mxu0
      %v3529 = vadd.f32 %v3361, %v3528
      %v3530 = vpop.f32.mrb[0].mxu0
      %v3531 = vadd.f32 %v3363, %v3530
      %3532 = vmatprep.mubr.f32.mxu0 0.0
      %v3533 = vand.u32 %v916, 4294901760
      %3534 = vmatmul.mubr.f32.gmra.mrb[0].mxu0 %v3533
      %v3535 = vpop.f32.mrb[0].mxu0
      %v3536 = vadd.f32 %v3370, %v3535
      %v3537 = vpop.f32.mrb[0].mxu0
      %v3538 = vadd.f32 %v3372, %v3537
      %3539 = vmatprep.mubr.f32.mxu0 0.0
      %v3540 = vand.u32 %v919, 4294901760
      %3541 = vmatmul.mubr.f32.gmra.mrb[0].mxu0 %v3540
      %v3542 = vpop.f32.mrb[0].mxu0
      %v3543 = vadd.f32 %v3379, %v3542
      %v3544 = vpop.f32.mrb[0].mxu0
      %v3545 = vadd.f32 %v3381, %v3544
      %3546 = vmatprep.mubr.f32.mxu0 0.0
      %v3547 = vand.u32 %v922, 4294901760
      %3548 = vmatmul.mubr.f32.gmra.mrb[0].mxu0 %v3547
      %v3549 = vpop.f32.mrb[0].mxu0
      %v3550 = vadd.f32 %v3388, %v3549
      %v3551 = vpop.f32.mrb[0].mxu0
      %v3552 = vadd.f32 %v3390, %v3551
      %3553 = vmatprep.mubr.f32.mxu0 0.0
      %v3554 = vand.u32 %v925, 4294901760
      %3555 = vmatmul.mubr.f32.gmra.mrb[0].mxu0 %v3554
      %v3556 = vpop.f32.mrb[0].mxu0
      %v3557 = vadd.f32 %v3397, %v3556
      %v3558 = vpop.f32.mrb[0].mxu0
      %v3559 = vadd.f32 %v3399, %v3558
      %3560 = vmatprep.mubr.f32.mxu0 0.0
      %v3561 = vand.u32 %v928, 4294901760
      %3562 = vmatmul.mubr.f32.gmra.mrb[0].mxu0 %v3561
      %v3563 = vpop.f32.mrb[0].mxu0
      %v3564 = vadd.f32 %v3406, %v3563
      %v3565 = vpop.f32.mrb[0].mxu0
      %v3566 = vadd.f32 %v3408, %v3565
      %3567 = vmatprep.mubr.f32.mxu0 0.0
      %v3568 = vand.u32 %v931, 4294901760
      %3569 = vmatmul.mubr.f32.gmra.mrb[0].mxu0 %v3568
      %v3570 = vpop.f32.mrb[0].mxu0
      %v3571 = vadd.f32 %v3415, %v3570
      %v3572 = vpop.f32.mrb[0].mxu0
      %v3573 = vadd.f32 %v3417, %v3572
      %3574 = vdwg.mxu0
      %v3575 = vand.u32 %v811, 4294901760
      %3576 = vmatprep.subr.mxu0 %v3575
      %v3577 = vand.u32 %v810, 4294901760
      %3578 = vmatpush1.msra.mxu0 %v3577
      %v3579 = vand.u32 %v819, 4294901760
      %3580 = vmatprep.subr.mxu0 %v3579
      %v3581 = vand.u32 %v818, 4294901760
      %3582 = vmatpush1.msra.mxu0 %v3581
      %v3583 = vand.u32 %v827, 4294901760
      %3584 = vmatprep.subr.mxu0 %v3583
      %v3585 = vand.u32 %v826, 4294901760
      %3586 = vmatpush1.msra.mxu0 %v3585
      %v3587 = vand.u32 %v835, 4294901760
      %3588 = vmatprep.subr.mxu0 %v3587
      %v3589 = vand.u32 %v834, 4294901760
      %3590 = vmatpush1.msra.mxu0 %v3589
      %v3591 = vand.u32 %v843, 4294901760
      %3592 = vmatprep.subr.mxu0 %v3591
      %v3593 = vand.u32 %v842, 4294901760
      %3594 = vmatpush1.msra.mxu0 %v3593
      %v3595 = vand.u32 %v851, 4294901760
      %3596 = vmatprep.subr.mxu0 %v3595
      %v3597 = vand.u32 %v850, 4294901760
      %3598 = vmatpush1.msra.mxu0 %v3597
      %v3599 = vand.u32 %v950, 4294901760
      %3600 = vmatprep.subr.mxu0 %v3599
      %v3601 = vand.u32 %v947, 4294901760
      %3602 = vmatpush1.msra.mxu0 %v3601
      %3603 = vmatprep.subr.mxu0 0.0
      %3604 = vmatpush1.msra.mxu0 0.0
      %3605 = vmatprep.subr.mxu0 0.0
      %3606 = vmatpush1.msra.mxu0 0.0
      %3607 = vmatprep.subr.mxu0 0.0
      %3608 = vmatpush1.msra.mxu0 0.0
      %3609 = vmatprep.subr.mxu0 0.0
      %3610 = vmatpush1.msra.mxu0 0.0
      %3611 = vmatprep.subr.mxu0 0.0
      %3612 = vmatpush1.msra.mxu0 0.0
      %3613 = vmatprep.subr.mxu0 0.0
      %3614 = vmatpush1.msra.mxu0 0.0
      %3615 = vmatprep.subr.mxu0 0.0
      %3616 = vmatpush1.msra.mxu0 0.0
      %3617 = vmatprep.subr.mxu0 0.0
      %3618 = vmatpush1.msra.mxu0 0.0
      %3619 = vmatprep.subr.mxu0 0.0
      %3620 = vmatpush1.msra.mxu0 0.0
      %3621 = vmatprep.subr.mxu0 0.0
      %3622 = vmatpush1.msra.mxu0 0.0
      %3623 = vmatprep.subr.mxu0 0.0
      %3624 = vmatpush1.msra.mxu0 0.0
      %3625 = vmatprep.subr.mxu0 0.0
      %3626 = vmatpush1.msra.mxu0 0.0
      %3627 = vmatprep.subr.mxu0 0.0
      %3628 = vmatpush1.msra.mxu0 0.0
      %3629 = vmatprep.subr.mxu0 0.0
      %3630 = vmatpush1.msra.mxu0 0.0
      %3631 = vmatprep.subr.mxu0 0.0
      %3632 = vmatpush1.msra.mxu0 0.0
      %3633 = vmatprep.subr.mxu0 0.0
      %3634 = vmatpush1.msra.mxu0 0.0
      %3635 = vmatprep.subr.mxu0 0.0
      %3636 = vmatpush1.msra.mxu0 0.0
      %3637 = vmatprep.subr.mxu0 0.0
      %3638 = vmatpush1.msra.mxu0 0.0
      %3639 = vmatprep.subr.mxu0 0.0
      %3640 = vmatpush1.msra.mxu0 0.0
      %3641 = vmatprep.subr.mxu0 0.0
      %3642 = vmatpush1.msra.mxu0 0.0
      %3643 = vmatprep.subr.mxu0 0.0
      %3644 = vmatpush1.msra.mxu0 0.0
      %3645 = vmatprep.subr.mxu0 0.0
      %3646 = vmatpush1.msra.mxu0 0.0
      %3647 = vmatprep.subr.mxu0 0.0
      %3648 = vmatpush1.msra.mxu0 0.0
      %3649 = vmatprep.subr.mxu0 0.0
      %3650 = vmatpush1.msra.mxu0 0.0
      %3651 = vmatprep.subr.mxu0 0.0
      %3652 = vmatpush1.msra.mxu0 0.0
      %3653 = vmatprep.mubr.f32.mxu0 0.0
      %v3654 = vand.u32 %v913, 4294901760
      %3655 = vmatmul.mubr.f32.gmra.mrb[0].mxu0 %v3654
      %v3656 = vpop.f32.mrb[0].mxu0
      %v3657 = vadd.f32 %v3529, %v3656
      %v3658 = vpop.f32.mrb[0].mxu0
      %v3659 = vadd.f32 %v3531, %v3658
      %3660 = vmatprep.mubr.f32.mxu0 0.0
      %v3661 = vand.u32 %v916, 4294901760
      %3662 = vmatmul.mubr.f32.gmra.mrb[0].mxu0 %v3661
      %v3663 = vpop.f32.mrb[0].mxu0
      %v3664 = vadd.f32 %v3536, %v3663
      %v3665 = vpop.f32.mrb[0].mxu0
      %v3666 = vadd.f32 %v3538, %v3665
      %3667 = vmatprep.mubr.f32.mxu0 0.0
      %v3668 = vand.u32 %v919, 4294901760
      %3669 = vmatmul.mubr.f32.gmra.mrb[0].mxu0 %v3668
      %v3670 = vpop.f32.mrb[0].mxu0
      %v3671 = vadd.f32 %v3543, %v3670
      %v3672 = vpop.f32.mrb[0].mxu0
      %v3673 = vadd.f32 %v3545, %v3672
      %3674 = vmatprep.mubr.f32.mxu0 0.0
      %v3675 = vand.u32 %v922, 4294901760
      %3676 = vmatmul.mubr.f32.gmra.mrb[0].mxu0 %v3675
      %v3677 = vpop.f32.mrb[0].mxu0
      %v3678 = vadd.f32 %v3550, %v3677
      %v3679 = vpop.f32.mrb[0].mxu0
      %v3680 = vadd.f32 %v3552, %v3679
      %3681 = vmatprep.mubr.f32.mxu0 0.0
      %v3682 = vand.u32 %v925, 4294901760
      %3683 = vmatmul.mubr.f32.gmra.mrb[0].mxu0 %v3682
      %v3684 = vpop.f32.mrb[0].mxu0
      %v3685 = vadd.f32 %v3557, %v3684
      %v3686 = vpop.f32.mrb[0].mxu0
      %v3687 = vadd.f32 %v3559, %v3686
      %3688 = vmatprep.mubr.f32.mxu0 0.0
      %v3689 = vand.u32 %v928, 4294901760
      %3690 = vmatmul.mubr.f32.gmra.mrb[0].mxu0 %v3689
      %v3691 = vpop.f32.mrb[0].mxu0
      %v3692 = vadd.f32 %v3564, %v3691
      %v3693 = vpop.f32.mrb[0].mxu0
      %v3694 = vadd.f32 %v3566, %v3693
      %3695 = vmatprep.mubr.f32.mxu0 0.0
      %v3696 = vand.u32 %v931, 4294901760
      %3697 = vmatmul.mubr.f32.gmra.mrb[0].mxu0 %v3696
      %v3698 = vpop.f32.mrb[0].mxu0
      %v3699 = vadd.f32 %v3571, %v3698
      %v3700 = vpop.f32.mrb[0].mxu0
      %v3701 = vadd.f32 %v3573, %v3700
      %3702 = vdwg.mxu0
      %v3703 = vand.u32 %v813, 4294901760
      %3704 = vmatprep.subr.mxu0 %v3703
      %v3705 = vand.u32 %v812, 4294901760
      %3706 = vmatpush1.msra.mxu0 %v3705
      %v3707 = vand.u32 %v821, 4294901760
      %3708 = vmatprep.subr.mxu0 %v3707
      %v3709 = vand.u32 %v820, 4294901760
      %3710 = vmatpush1.msra.mxu0 %v3709
      %v3711 = vand.u32 %v829, 4294901760
      %3712 = vmatprep.subr.mxu0 %v3711
      %v3713 = vand.u32 %v828, 4294901760
      %3714 = vmatpush1.msra.mxu0 %v3713
      %v3715 = vand.u32 %v837, 4294901760
      %3716 = vmatprep.subr.mxu0 %v3715
      %v3717 = vand.u32 %v836, 4294901760
      %3718 = vmatpush1.msra.mxu0 %v3717
      %v3719 = vand.u32 %v845, 4294901760
      %3720 = vmatprep.subr.mxu0 %v3719
      %v3721 = vand.u32 %v844, 4294901760
      %3722 = vmatpush1.msra.mxu0 %v3721
      %v3723 = vand.u32 %v853, 4294901760
      %3724 = vmatprep.subr.mxu0 %v3723
      %v3725 = vand.u32 %v852, 4294901760
      %3726 = vmatpush1.msra.mxu0 %v3725
      %v3727 = vand.u32 %v956, 4294901760
      %3728 = vmatprep.subr.mxu0 %v3727
      %v3729 = vand.u32 %v953, 4294901760
      %3730 = vmatpush1.msra.mxu0 %v3729
      %3731 = vmatprep.subr.mxu0 0.0
      %3732 = vmatpush1.msra.mxu0 0.0
      %3733 = vmatprep.subr.mxu0 0.0
      %3734 = vmatpush1.msra.mxu0 0.0
      %3735 = vmatprep.subr.mxu0 0.0
      %3736 = vmatpush1.msra.mxu0 0.0
      %3737 = vmatprep.subr.mxu0 0.0
      %3738 = vmatpush1.msra.mxu0 0.0
      %3739 = vmatprep.subr.mxu0 0.0
      %3740 = vmatpush1.msra.mxu0 0.0
      %3741 = vmatprep.subr.mxu0 0.0
      %3742 = vmatpush1.msra.mxu0 0.0
      %3743 = vmatprep.subr.mxu0 0.0
      %3744 = vmatpush1.msra.mxu0 0.0
      %3745 = vmatprep.subr.mxu0 0.0
      %3746 = vmatpush1.msra.mxu0 0.0
      %3747 = vmatprep.subr.mxu0 0.0
      %3748 = vmatpush1.msra.mxu0 0.0
      %3749 = vmatprep.subr.mxu0 0.0
      %3750 = vmatpush1.msra.mxu0 0.0
      %3751 = vmatprep.subr.mxu0 0.0
      %3752 = vmatpush1.msra.mxu0 0.0
      %3753 = vmatprep.subr.mxu0 0.0
      %3754 = vmatpush1.msra.mxu0 0.0
      %3755 = vmatprep.subr.mxu0 0.0
      %3756 = vmatpush1.msra.mxu0 0.0
      %3757 = vmatprep.subr.mxu0 0.0
      %3758 = vmatpush1.msra.mxu0 0.0
      %3759 = vmatprep.subr.mxu0 0.0
      %3760 = vmatpush1.msra.mxu0 0.0
      %3761 = vmatprep.subr.mxu0 0.0
      %3762 = vmatpush1.msra.mxu0 0.0
      %3763 = vmatprep.subr.mxu0 0.0
      %3764 = vmatpush1.msra.mxu0 0.0
      %3765 = vmatprep.subr.mxu0 0.0
      %3766 = vmatpush1.msra.mxu0 0.0
      %3767 = vmatprep.subr.mxu0 0.0
      %3768 = vmatpush1.msra.mxu0 0.0
      %3769 = vmatprep.subr.mxu0 0.0
      %3770 = vmatpush1.msra.mxu0 0.0
      %3771 = vmatprep.subr.mxu0 0.0
      %3772 = vmatpush1.msra.mxu0 0.0
      %3773 = vmatprep.subr.mxu0 0.0
      %3774 = vmatpush1.msra.mxu0 0.0
      %3775 = vmatprep.subr.mxu0 0.0
      %3776 = vmatpush1.msra.mxu0 0.0
      %3777 = vmatprep.subr.mxu0 0.0
      %3778 = vmatpush1.msra.mxu0 0.0
      %3779 = vmatprep.subr.mxu0 0.0
      %3780 = vmatpush1.msra.mxu0 0.0
      %3781 = vmatprep.mubr.f32.mxu0 0.0
      %v3782 = vand.u32 %v913, 4294901760
      %v3783 = vsub.f32 %v913, %v3782
      %v3784 = vand.u32 %v3783, 4294901760
      %v3785 = vsub.f32 %v3783, %v3784
      %v3786 = vand.u32 %v3785, 4294901760
      %3787 = vmatmul.mubr.f32.gmra.mrb[0].mxu0 %v3786
      %v3788 = vpop.f32.mrb[0].mxu0
      %v3789 = vadd.f32 %v879, %v3788
      %v3790 = vpop.f32.mrb[0].mxu0
      %v3791 = vadd.f32 %v879, %v3790
      %3792 = vmatprep.mubr.f32.mxu0 0.0
      %v3793 = vand.u32 %v916, 4294901760
      %v3794 = vsub.f32 %v916, %v3793
      %v3795 = vand.u32 %v3794, 4294901760
      %v3796 = vsub.f32 %v3794, %v3795
      %v3797 = vand.u32 %v3796, 4294901760
      %3798 = vmatmul.mubr.f32.gmra.mrb[0].mxu0 %v3797
      %v3799 = vpop.f32.mrb[0].mxu0
      %v3800 = vadd.f32 %v884, %v3799
      %v3801 = vpop.f32.mrb[0].mxu0
      %v3802 = vadd.f32 %v884, %v3801
      %3803 = vmatprep.mubr.f32.mxu0 0.0
      %v3804 = vand.u32 %v919, 4294901760
      %v3805 = vsub.f32 %v919, %v3804
      %v3806 = vand.u32 %v3805, 4294901760
      %v3807 = vsub.f32 %v3805, %v3806
      %v3808 = vand.u32 %v3807, 4294901760
      %3809 = vmatmul.mubr.f32.gmra.mrb[0].mxu0 %v3808
      %v3810 = vpop.f32.mrb[0].mxu0
      %v3811 = vadd.f32 %v889, %v3810
      %v3812 = vpop.f32.mrb[0].mxu0
      %v3813 = vadd.f32 %v889, %v3812
      %3814 = vmatprep.mubr.f32.mxu0 0.0
      %v3815 = vand.u32 %v922, 4294901760
      %v3816 = vsub.f32 %v922, %v3815
      %v3817 = vand.u32 %v3816, 4294901760
      %v3818 = vsub.f32 %v3816, %v3817
      %v3819 = vand.u32 %v3818, 4294901760
      %3820 = vmatmul.mubr.f32.gmra.mrb[0].mxu0 %v3819
      %v3821 = vpop.f32.mrb[0].mxu0
      %v3822 = vadd.f32 %v894, %v3821
      %v3823 = vpop.f32.mrb[0].mxu0
      %v3824 = vadd.f32 %v894, %v3823
      %3825 = vmatprep.mubr.f32.mxu0 0.0
      %v3826 = vand.u32 %v925, 4294901760
      %v3827 = vsub.f32 %v925, %v3826
      %v3828 = vand.u32 %v3827, 4294901760
      %v3829 = vsub.f32 %v3827, %v3828
      %v3830 = vand.u32 %v3829, 4294901760
      %3831 = vmatmul.mubr.f32.gmra.mrb[0].mxu0 %v3830
      %v3832 = vpop.f32.mrb[0].mxu0
      %v3833 = vadd.f32 %v899, %v3832
      %v3834 = vpop.f32.mrb[0].mxu0
      %v3835 = vadd.f32 %v899, %v3834
      %3836 = vmatprep.mubr.f32.mxu0 0.0
      %v3837 = vand.u32 %v928, 4294901760
      %v3838 = vsub.f32 %v928, %v3837
      %v3839 = vand.u32 %v3838, 4294901760
      %v3840 = vsub.f32 %v3838, %v3839
      %v3841 = vand.u32 %v3840, 4294901760
      %3842 = vmatmul.mubr.f32.gmra.mrb[0].mxu0 %v3841
      %v3843 = vpop.f32.mrb[0].mxu0
      %v3844 = vadd.f32 %v904, %v3843
      %v3845 = vpop.f32.mrb[0].mxu0
      %v3846 = vadd.f32 %v904, %v3845
      %3847 = vmatprep.mubr.f32.mxu0 0.0
      %v3848 = vand.u32 %v931, 4294901760
      %v3849 = vsub.f32 %v931, %v3848
      %v3850 = vand.u32 %v3849, 4294901760
      %v3851 = vsub.f32 %v3849, %v3850
      %v3852 = vand.u32 %v3851, 4294901760
      %3853 = vmatmul.mubr.f32.gmra.mrb[0].mxu0 %v3852
      %v3854 = vpop.f32.mrb[0].mxu0
      %v3855 = vadd.f32 %v909, %v3854
      %v3856 = vpop.f32.mrb[0].mxu0
      %v3857 = vadd.f32 %v909, %v3856
      %3858 = vdwg.mxu0
      %v3859 = vand.u32 %v813, 4294901760
      %v3860 = vsub.f32 %v813, %v3859
      %v3861 = vand.u32 %v3860, 4294901760
      %v3862 = vsub.f32 %v3860, %v3861
      %v3863 = vand.u32 %v3862, 4294901760
      %3864 = vmatprep.subr.mxu0 %v3863
      %v3865 = vand.u32 %v812, 4294901760
      %v3866 = vsub.f32 %v812, %v3865
      %v3867 = vand.u32 %v3866, 4294901760
      %v3868 = vsub.f32 %v3866, %v3867
      %v3869 = vand.u32 %v3868, 4294901760
      %3870 = vmatpush1.msra.mxu0 %v3869
      %v3871 = vand.u32 %v821, 4294901760
      %v3872 = vsub.f32 %v821, %v3871
      %v3873 = vand.u32 %v3872, 4294901760
      %v3874 = vsub.f32 %v3872, %v3873
      %v3875 = vand.u32 %v3874, 4294901760
      %3876 = vmatprep.subr.mxu0 %v3875
      %v3877 = vand.u32 %v820, 4294901760
      %v3878 = vsub.f32 %v820, %v3877
      %v3879 = vand.u32 %v3878, 4294901760
      %v3880 = vsub.f32 %v3878, %v3879
      %v3881 = vand.u32 %v3880, 4294901760
      %3882 = vmatpush1.msra.mxu0 %v3881
      %v3883 = vand.u32 %v829, 4294901760
      %v3884 = vsub.f32 %v829, %v3883
      %v3885 = vand.u32 %v3884, 4294901760
      %v3886 = vsub.f32 %v3884, %v3885
      %v3887 = vand.u32 %v3886, 4294901760
      %3888 = vmatprep.subr.mxu0 %v3887
      %v3889 = vand.u32 %v828, 4294901760
      %v3890 = vsub.f32 %v828, %v3889
      %v3891 = vand.u32 %v3890, 4294901760
      %v3892 = vsub.f32 %v3890, %v3891
      %v3893 = vand.u32 %v3892, 4294901760
      %3894 = vmatpush1.msra.mxu0 %v3893
      %v3895 = vand.u32 %v837, 4294901760
      %v3896 = vsub.f32 %v837, %v3895
      %v3897 = vand.u32 %v3896, 4294901760
      %v3898 = vsub.f32 %v3896, %v3897
      %v3899 = vand.u32 %v3898, 4294901760
      %3900 = vmatprep.subr.mxu0 %v3899
      %v3901 = vand.u32 %v836, 4294901760
      %v3902 = vsub.f32 %v836, %v3901
      %v3903 = vand.u32 %v3902, 4294901760
      %v3904 = vsub.f32 %v3902, %v3903
      %v3905 = vand.u32 %v3904, 4294901760
      %3906 = vmatpush1.msra.mxu0 %v3905
      %v3907 = vand.u32 %v845, 4294901760
      %v3908 = vsub.f32 %v845, %v3907
      %v3909 = vand.u32 %v3908, 4294901760
      %v3910 = vsub.f32 %v3908, %v3909
      %v3911 = vand.u32 %v3910, 4294901760
      %3912 = vmatprep.subr.mxu0 %v3911
      %v3913 = vand.u32 %v844, 4294901760
      %v3914 = vsub.f32 %v844, %v3913
      %v3915 = vand.u32 %v3914, 4294901760
      %v3916 = vsub.f32 %v3914, %v3915
      %v3917 = vand.u32 %v3916, 4294901760
      %3918 = vmatpush1.msra.mxu0 %v3917
      %v3919 = vand.u32 %v853, 4294901760
      %v3920 = vsub.f32 %v853, %v3919
      %v3921 = vand.u32 %v3920, 4294901760
      %v3922 = vsub.f32 %v3920, %v3921
      %v3923 = vand.u32 %v3922, 4294901760
      %3924 = vmatprep.subr.mxu0 %v3923
      %v3925 = vand.u32 %v852, 4294901760
      %v3926 = vsub.f32 %v852, %v3925
      %v3927 = vand.u32 %v3926, 4294901760
      %v3928 = vsub.f32 %v3926, %v3927
      %v3929 = vand.u32 %v3928, 4294901760
      %3930 = vmatpush1.msra.mxu0 %v3929
      %v3931 = vand.u32 %v956, 4294901760
      %v3932 = vsub.f32 %v956, %v3931
      %v3933 = vand.u32 %v3932, 4294901760
      %v3934 = vsub.f32 %v3932, %v3933
      %v3935 = vand.u32 %v3934, 4294901760
      %3936 = vmatprep.subr.mxu0 %v3935
      %v3937 = vand.u32 %v953, 4294901760
      %v3938 = vsub.f32 %v953, %v3937
      %v3939 = vand.u32 %v3938, 4294901760
      %v3940 = vsub.f32 %v3938, %v3939
      %v3941 = vand.u32 %v3940, 4294901760
      %3942 = vmatpush1.msra.mxu0 %v3941
      %3943 = vmatprep.subr.mxu0 0.0
      %3944 = vmatpush1.msra.mxu0 0.0
      %3945 = vmatprep.subr.mxu0 0.0
      %3946 = vmatpush1.msra.mxu0 0.0
      %3947 = vmatprep.subr.mxu0 0.0
      %3948 = vmatpush1.msra.mxu0 0.0
      %3949 = vmatprep.subr.mxu0 0.0
      %3950 = vmatpush1.msra.mxu0 0.0
      %3951 = vmatprep.subr.mxu0 0.0
      %3952 = vmatpush1.msra.mxu0 0.0
      %3953 = vmatprep.subr.mxu0 0.0
      %3954 = vmatpush1.msra.mxu0 0.0
      %3955 = vmatprep.subr.mxu0 0.0
      %3956 = vmatpush1.msra.mxu0 0.0
      %3957 = vmatprep.subr.mxu0 0.0
      %3958 = vmatpush1.msra.mxu0 0.0
      %3959 = vmatprep.subr.mxu0 0.0
      %3960 = vmatpush1.msra.mxu0 0.0
      %3961 = vmatprep.subr.mxu0 0.0
      %3962 = vmatpush1.msra.mxu0 0.0
      %3963 = vmatprep.subr.mxu0 0.0
      %3964 = vmatpush1.msra.mxu0 0.0
      %3965 = vmatprep.subr.mxu0 0.0
      %3966 = vmatpush1.msra.mxu0 0.0
      %3967 = vmatprep.subr.mxu0 0.0
      %3968 = vmatpush1.msra.mxu0 0.0
      %3969 = vmatprep.subr.mxu0 0.0
      %3970 = vmatpush1.msra.mxu0 0.0
      %3971 = vmatprep.subr.mxu0 0.0
      %3972 = vmatpush1.msra.mxu0 0.0
      %3973 = vmatprep.subr.mxu0 0.0
      %3974 = vmatpush1.msra.mxu0 0.0
      %3975 = vmatprep.subr.mxu0 0.0
      %3976 = vmatpush1.msra.mxu0 0.0
      %3977 = vmatprep.subr.mxu0 0.0
      %3978 = vmatpush1.msra.mxu0 0.0
      %3979 = vmatprep.subr.mxu0 0.0
      %3980 = vmatpush1.msra.mxu0 0.0
      %3981 = vmatprep.subr.mxu0 0.0
      %3982 = vmatpush1.msra.mxu0 0.0
      %3983 = vmatprep.subr.mxu0 0.0
      %3984 = vmatpush1.msra.mxu0 0.0
      %3985 = vmatprep.subr.mxu0 0.0
      %3986 = vmatpush1.msra.mxu0 0.0
      %3987 = vmatprep.subr.mxu0 0.0
      %3988 = vmatpush1.msra.mxu0 0.0
      %3989 = vmatprep.subr.mxu0 0.0
      %3990 = vmatpush1.msra.mxu0 0.0
      %3991 = vmatprep.subr.mxu0 0.0
      %3992 = vmatpush1.msra.mxu0 0.0
      %3993 = vmatprep.mubr.f32.mxu0 0.0
      %v3994 = vand.u32 %v913, 4294901760
      %3995 = vmatmul.mubr.f32.gmra.mrb[0].mxu0 %v3994
      %v3996 = vpop.f32.mrb[0].mxu0
      %v3997 = vadd.f32 %v3789, %v3996
      %v3998 = vpop.f32.mrb[0].mxu0
      %v3999 = vadd.f32 %v3791, %v3998
      %4000 = vmatprep.mubr.f32.mxu0 0.0
      %v4001 = vand.u32 %v916, 4294901760
      %4002 = vmatmul.mubr.f32.gmra.mrb[0].mxu0 %v4001
      %v4003 = vpop.f32.mrb[0].mxu0
      %v4004 = vadd.f32 %v3800, %v4003
      %v4005 = vpop.f32.mrb[0].mxu0
      %v4006 = vadd.f32 %v3802, %v4005
      %4007 = vmatprep.mubr.f32.mxu0 0.0
      %v4008 = vand.u32 %v919, 4294901760
      %4009 = vmatmul.mubr.f32.gmra.mrb[0].mxu0 %v4008
      %v4010 = vpop.f32.mrb[0].mxu0
      %v4011 = vadd.f32 %v3811, %v4010
      %v4012 = vpop.f32.mrb[0].mxu0
      %v4013 = vadd.f32 %v3813, %v4012
      %4014 = vmatprep.mubr.f32.mxu0 0.0
      %v4015 = vand.u32 %v922, 4294901760
      %4016 = vmatmul.mubr.f32.gmra.mrb[0].mxu0 %v4015
      %v4017 = vpop.f32.mrb[0].mxu0
      %v4018 = vadd.f32 %v3822, %v4017
      %v4019 = vpop.f32.mrb[0].mxu0
      %v4020 = vadd.f32 %v3824, %v4019
      %4021 = vmatprep.mubr.f32.mxu0 0.0
      %v4022 = vand.u32 %v925, 4294901760
      %4023 = vmatmul.mubr.f32.gmra.mrb[0].mxu0 %v4022
      %v4024 = vpop.f32.mrb[0].mxu0
      %v4025 = vadd.f32 %v3833, %v4024
      %v4026 = vpop.f32.mrb[0].mxu0
      %v4027 = vadd.f32 %v3835, %v4026
      %4028 = vmatprep.mubr.f32.mxu0 0.0
      %v4029 = vand.u32 %v928, 4294901760
      %4030 = vmatmul.mubr.f32.gmra.mrb[0].mxu0 %v4029
      %v4031 = vpop.f32.mrb[0].mxu0
      %v4032 = vadd.f32 %v3844, %v4031
      %v4033 = vpop.f32.mrb[0].mxu0
      %v4034 = vadd.f32 %v3846, %v4033
      %4035 = vmatprep.mubr.f32.mxu0 0.0
      %v4036 = vand.u32 %v931, 4294901760
      %4037 = vmatmul.mubr.f32.gmra.mrb[0].mxu0 %v4036
      %v4038 = vpop.f32.mrb[0].mxu0
      %v4039 = vadd.f32 %v3855, %v4038
      %v4040 = vpop.f32.mrb[0].mxu0
      %v4041 = vadd.f32 %v3857, %v4040
      %4042 = vdwg.mxu0
      %v4043 = vand.u32 %v813, 4294901760
      %v4044 = vsub.f32 %v813, %v4043
      %4045 = vmatprep.subr.mxu0 %v4044
      %v4046 = vand.u32 %v812, 4294901760
      %v4047 = vsub.f32 %v812, %v4046
      %4048 = vmatpush1.msra.mxu0 %v4047
      %v4049 = vand.u32 %v821, 4294901760
      %v4050 = vsub.f32 %v821, %v4049
      %4051 = vmatprep.subr.mxu0 %v4050
      %v4052 = vand.u32 %v820, 4294901760
      %v4053 = vsub.f32 %v820, %v4052
      %4054 = vmatpush1.msra.mxu0 %v4053
      %v4055 = vand.u32 %v829, 4294901760
      %v4056 = vsub.f32 %v829, %v4055
      %4057 = vmatprep.subr.mxu0 %v4056
      %v4058 = vand.u32 %v828, 4294901760
      %v4059 = vsub.f32 %v828, %v4058
      %4060 = vmatpush1.msra.mxu0 %v4059
      %v4061 = vand.u32 %v837, 4294901760
      %v4062 = vsub.f32 %v837, %v4061
      %4063 = vmatprep.subr.mxu0 %v4062
      %v4064 = vand.u32 %v836, 4294901760
      %v4065 = vsub.f32 %v836, %v4064
      %4066 = vmatpush1.msra.mxu0 %v4065
      %v4067 = vand.u32 %v845, 4294901760
      %v4068 = vsub.f32 %v845, %v4067
      %4069 = vmatprep.subr.mxu0 %v4068
      %v4070 = vand.u32 %v844, 4294901760
      %v4071 = vsub.f32 %v844, %v4070
      %4072 = vmatpush1.msra.mxu0 %v4071
      %v4073 = vand.u32 %v853, 4294901760
      %v4074 = vsub.f32 %v853, %v4073
      %4075 = vmatprep.subr.mxu0 %v4074
      %v4076 = vand.u32 %v852, 4294901760
      %v4077 = vsub.f32 %v852, %v4076
      %4078 = vmatpush1.msra.mxu0 %v4077
      %v4079 = vand.u32 %v956, 4294901760
      %v4080 = vsub.f32 %v956, %v4079
      %4081 = vmatprep.subr.mxu0 %v4080
      %v4082 = vand.u32 %v953, 4294901760
      %v4083 = vsub.f32 %v953, %v4082
      %4084 = vmatpush1.msra.mxu0 %v4083
      %4085 = vmatprep.subr.mxu0 0.0
      %4086 = vmatpush1.msra.mxu0 0.0
      %4087 = vmatprep.subr.mxu0 0.0
      %4088 = vmatpush1.msra.mxu0 0.0
      %4089 = vmatprep.subr.mxu0 0.0
      %4090 = vmatpush1.msra.mxu0 0.0
      %4091 = vmatprep.subr.mxu0 0.0
      %4092 = vmatpush1.msra.mxu0 0.0
      %4093 = vmatprep.subr.mxu0 0.0
      %4094 = vmatpush1.msra.mxu0 0.0
      %4095 = vmatprep.subr.mxu0 0.0
      %4096 = vmatpush1.msra.mxu0 0.0
      %4097 = vmatprep.subr.mxu0 0.0
      %4098 = vmatpush1.msra.mxu0 0.0
      %4099 = vmatprep.subr.mxu0 0.0
      %4100 = vmatpush1.msra.mxu0 0.0
      %4101 = vmatprep.subr.mxu0 0.0
      %4102 = vmatpush1.msra.mxu0 0.0
      %4103 = vmatprep.subr.mxu0 0.0
      %4104 = vmatpush1.msra.mxu0 0.0
      %4105 = vmatprep.subr.mxu0 0.0
      %4106 = vmatpush1.msra.mxu0 0.0
      %4107 = vmatprep.subr.mxu0 0.0
      %4108 = vmatpush1.msra.mxu0 0.0
      %4109 = vmatprep.subr.mxu0 0.0
      %4110 = vmatpush1.msra.mxu0 0.0
      %4111 = vmatprep.subr.mxu0 0.0
      %4112 = vmatpush1.msra.mxu0 0.0
      %4113 = vmatprep.subr.mxu0 0.0
      %4114 = vmatpush1.msra.mxu0 0.0
      %4115 = vmatprep.subr.mxu0 0.0
      %4116 = vmatpush1.msra.mxu0 0.0
      %4117 = vmatprep.subr.mxu0 0.0
      %4118 = vmatpush1.msra.mxu0 0.0
      %4119 = vmatprep.subr.mxu0 0.0
      %4120 = vmatpush1.msra.mxu0 0.0
      %4121 = vmatprep.subr.mxu0 0.0
      %4122 = vmatpush1.msra.mxu0 0.0
      %4123 = vmatprep.subr.mxu0 0.0
      %4124 = vmatpush1.msra.mxu0 0.0
      %4125 = vmatprep.subr.mxu0 0.0
      %4126 = vmatpush1.msra.mxu0 0.0
      %4127 = vmatprep.subr.mxu0 0.0
      %4128 = vmatpush1.msra.mxu0 0.0
      %4129 = vmatprep.subr.mxu0 0.0
      %4130 = vmatpush1.msra.mxu0 0.0
      %4131 = vmatprep.subr.mxu0 0.0
      %4132 = vmatpush1.msra.mxu0 0.0
      %4133 = vmatprep.subr.mxu0 0.0
      %4134 = vmatpush1.msra.mxu0 0.0
      %4135 = vmatprep.mubr.f32.mxu0 0.0
      %v4136 = vand.u32 %v913, 4294901760
      %v4137 = vsub.f32 %v913, %v4136
      %4138 = vmatmul.mubr.f32.gmra.mrb[0].mxu0 %v4137
      %v4139 = vpop.f32.mrb[0].mxu0
      %v4140 = vadd.f32 %v3997, %v4139
      %v4141 = vpop.f32.mrb[0].mxu0
      %v4142 = vadd.f32 %v3999, %v4141
      %4143 = vmatprep.mubr.f32.mxu0 0.0
      %v4144 = vand.u32 %v916, 4294901760
      %v4145 = vsub.f32 %v916, %v4144
      %4146 = vmatmul.mubr.f32.gmra.mrb[0].mxu0 %v4145
      %v4147 = vpop.f32.mrb[0].mxu0
      %v4148 = vadd.f32 %v4004, %v4147
      %v4149 = vpop.f32.mrb[0].mxu0
      %v4150 = vadd.f32 %v4006, %v4149
      %4151 = vmatprep.mubr.f32.mxu0 0.0
      %v4152 = vand.u32 %v919, 4294901760
      %v4153 = vsub.f32 %v919, %v4152
      %4154 = vmatmul.mubr.f32.gmra.mrb[0].mxu0 %v4153
      %v4155 = vpop.f32.mrb[0].mxu0
      %v4156 = vadd.f32 %v4011, %v4155
      %v4157 = vpop.f32.mrb[0].mxu0
      %v4158 = vadd.f32 %v4013, %v4157
      %4159 = vmatprep.mubr.f32.mxu0 0.0
      %v4160 = vand.u32 %v922, 4294901760
      %v4161 = vsub.f32 %v922, %v4160
      %4162 = vmatmul.mubr.f32.gmra.mrb[0].mxu0 %v4161
      %v4163 = vpop.f32.mrb[0].mxu0
      %v4164 = vadd.f32 %v4018, %v4163
      %v4165 = vpop.f32.mrb[0].mxu0
      %v4166 = vadd.f32 %v4020, %v4165
      %4167 = vmatprep.mubr.f32.mxu0 0.0
      %v4168 = vand.u32 %v925, 4294901760
      %v4169 = vsub.f32 %v925, %v4168
      %4170 = vmatmul.mubr.f32.gmra.mrb[0].mxu0 %v4169
      %v4171 = vpop.f32.mrb[0].mxu0
      %v4172 = vadd.f32 %v4025, %v4171
      %v4173 = vpop.f32.mrb[0].mxu0
      %v4174 = vadd.f32 %v4027, %v4173
      %4175 = vmatprep.mubr.f32.mxu0 0.0
      %v4176 = vand.u32 %v928, 4294901760
      %v4177 = vsub.f32 %v928, %v4176
      %4178 = vmatmul.mubr.f32.gmra.mrb[0].mxu0 %v4177
      %v4179 = vpop.f32.mrb[0].mxu0
      %v4180 = vadd.f32 %v4032, %v4179
      %v4181 = vpop.f32.mrb[0].mxu0
      %v4182 = vadd.f32 %v4034, %v4181
      %4183 = vmatprep.mubr.f32.mxu0 0.0
      %v4184 = vand.u32 %v931, 4294901760
      %v4185 = vsub.f32 %v931, %v4184
      %4186 = vmatmul.mubr.f32.gmra.mrb[0].mxu0 %v4185
      %v4187 = vpop.f32.mrb[0].mxu0
      %v4188 = vadd.f32 %v4039, %v4187
      %v4189 = vpop.f32.mrb[0].mxu0
      %v4190 = vadd.f32 %v4041, %v4189
      %4191 = vdwg.mxu0
      %v4192 = vand.u32 %v813, 4294901760
      %4193 = vmatprep.subr.mxu0 %v4192
      %v4194 = vand.u32 %v812, 4294901760
      %4195 = vmatpush1.msra.mxu0 %v4194
      %v4196 = vand.u32 %v821, 4294901760
      %4197 = vmatprep.subr.mxu0 %v4196
      %v4198 = vand.u32 %v820, 4294901760
      %4199 = vmatpush1.msra.mxu0 %v4198
      %v4200 = vand.u32 %v829, 4294901760
      %4201 = vmatprep.subr.mxu0 %v4200
      %v4202 = vand.u32 %v828, 4294901760
      %4203 = vmatpush1.msra.mxu0 %v4202
      %v4204 = vand.u32 %v837, 4294901760
      %4205 = vmatprep.subr.mxu0 %v4204
      %v4206 = vand.u32 %v836, 4294901760
      %4207 = vmatpush1.msra.mxu0 %v4206
      %v4208 = vand.u32 %v845, 4294901760
      %4209 = vmatprep.subr.mxu0 %v4208
      %v4210 = vand.u32 %v844, 4294901760
      %4211 = vmatpush1.msra.mxu0 %v4210
      %v4212 = vand.u32 %v853, 4294901760
      %4213 = vmatprep.subr.mxu0 %v4212
      %v4214 = vand.u32 %v852, 4294901760
      %4215 = vmatpush1.msra.mxu0 %v4214
      %v4216 = vand.u32 %v956, 4294901760
      %4217 = vmatprep.subr.mxu0 %v4216
      %v4218 = vand.u32 %v953, 4294901760
      %4219 = vmatpush1.msra.mxu0 %v4218
      %4220 = vmatprep.subr.mxu0 0.0
      %4221 = vmatpush1.msra.mxu0 0.0
      %4222 = vmatprep.subr.mxu0 0.0
      %4223 = vmatpush1.msra.mxu0 0.0
      %4224 = vmatprep.subr.mxu0 0.0
      %4225 = vmatpush1.msra.mxu0 0.0
      %4226 = vmatprep.subr.mxu0 0.0
      %4227 = vmatpush1.msra.mxu0 0.0
      %4228 = vmatprep.subr.mxu0 0.0
      %4229 = vmatpush1.msra.mxu0 0.0
      %4230 = vmatprep.subr.mxu0 0.0
      %4231 = vmatpush1.msra.mxu0 0.0
      %4232 = vmatprep.subr.mxu0 0.0
      %4233 = vmatpush1.msra.mxu0 0.0
      %4234 = vmatprep.subr.mxu0 0.0
      %4235 = vmatpush1.msra.mxu0 0.0
      %4236 = vmatprep.subr.mxu0 0.0
      %4237 = vmatpush1.msra.mxu0 0.0
      %4238 = vmatprep.subr.mxu0 0.0
      %4239 = vmatpush1.msra.mxu0 0.0
      %4240 = vmatprep.subr.mxu0 0.0
      %4241 = vmatpush1.msra.mxu0 0.0
      %4242 = vmatprep.subr.mxu0 0.0
      %4243 = vmatpush1.msra.mxu0 0.0
      %4244 = vmatprep.subr.mxu0 0.0
      %4245 = vmatpush1.msra.mxu0 0.0
      %4246 = vmatprep.subr.mxu0 0.0
      %4247 = vmatpush1.msra.mxu0 0.0
      %4248 = vmatprep.subr.mxu0 0.0
      %4249 = vmatpush1.msra.mxu0 0.0
      %4250 = vmatprep.subr.mxu0 0.0
      %4251 = vmatpush1.msra.mxu0 0.0
      %4252 = vmatprep.subr.mxu0 0.0
      %4253 = vmatpush1.msra.mxu0 0.0
      %4254 = vmatprep.subr.mxu0 0.0
      %4255 = vmatpush1.msra.mxu0 0.0
      %4256 = vmatprep.subr.mxu0 0.0
      %4257 = vmatpush1.msra.mxu0 0.0
      %4258 = vmatprep.subr.mxu0 0.0
      %4259 = vmatpush1.msra.mxu0 0.0
      %4260 = vmatprep.subr.mxu0 0.0
      %4261 = vmatpush1.msra.mxu0 0.0
      %4262 = vmatprep.subr.mxu0 0.0
      %4263 = vmatpush1.msra.mxu0 0.0
      %4264 = vmatprep.subr.mxu0 0.0
      %4265 = vmatpush1.msra.mxu0 0.0
      %4266 = vmatprep.subr.mxu0 0.0
      %4267 = vmatpush1.msra.mxu0 0.0
      %4268 = vmatprep.subr.mxu0 0.0
      %4269 = vmatpush1.msra.mxu0 0.0
      %4270 = vmatprep.mubr.f32.mxu0 0.0
      %v4271 = vand.u32 %v913, 4294901760
      %v4272 = vsub.f32 %v913, %v4271
      %v4273 = vand.u32 %v4272, 4294901760
      %4274 = vmatmul.mubr.f32.gmra.mrb[0].mxu0 %v4273
      %v4275 = vpop.f32.mrb[0].mxu0
      %v4276 = vadd.f32 %v4140, %v4275
      %v4277 = vpop.f32.mrb[0].mxu0
      %v4278 = vadd.f32 %v4142, %v4277
      %4279 = vmatprep.mubr.f32.mxu0 0.0
      %v4280 = vand.u32 %v916, 4294901760
      %v4281 = vsub.f32 %v916, %v4280
      %v4282 = vand.u32 %v4281, 4294901760
      %4283 = vmatmul.mubr.f32.gmra.mrb[0].mxu0 %v4282
      %v4284 = vpop.f32.mrb[0].mxu0
      %v4285 = vadd.f32 %v4148, %v4284
      %v4286 = vpop.f32.mrb[0].mxu0
      %v4287 = vadd.f32 %v4150, %v4286
      %4288 = vmatprep.mubr.f32.mxu0 0.0
      %v4289 = vand.u32 %v919, 4294901760
      %v4290 = vsub.f32 %v919, %v4289
      %v4291 = vand.u32 %v4290, 4294901760
      %4292 = vmatmul.mubr.f32.gmra.mrb[0].mxu0 %v4291
      %v4293 = vpop.f32.mrb[0].mxu0
      %v4294 = vadd.f32 %v4156, %v4293
      %v4295 = vpop.f32.mrb[0].mxu0
      %v4296 = vadd.f32 %v4158, %v4295
      %4297 = vmatprep.mubr.f32.mxu0 0.0
      %v4298 = vand.u32 %v922, 4294901760
      %v4299 = vsub.f32 %v922, %v4298
      %v4300 = vand.u32 %v4299, 4294901760
      %4301 = vmatmul.mubr.f32.gmra.mrb[0].mxu0 %v4300
      %v4302 = vpop.f32.mrb[0].mxu0
      %v4303 = vadd.f32 %v4164, %v4302
      %v4304 = vpop.f32.mrb[0].mxu0
      %v4305 = vadd.f32 %v4166, %v4304
      %4306 = vmatprep.mubr.f32.mxu0 0.0
      %v4307 = vand.u32 %v925, 4294901760
      %v4308 = vsub.f32 %v925, %v4307
      %v4309 = vand.u32 %v4308, 4294901760
      %4310 = vmatmul.mubr.f32.gmra.mrb[0].mxu0 %v4309
      %v4311 = vpop.f32.mrb[0].mxu0
      %v4312 = vadd.f32 %v4172, %v4311
      %v4313 = vpop.f32.mrb[0].mxu0
      %v4314 = vadd.f32 %v4174, %v4313
      %4315 = vmatprep.mubr.f32.mxu0 0.0
      %v4316 = vand.u32 %v928, 4294901760
      %v4317 = vsub.f32 %v928, %v4316
      %v4318 = vand.u32 %v4317, 4294901760
      %4319 = vmatmul.mubr.f32.gmra.mrb[0].mxu0 %v4318
      %v4320 = vpop.f32.mrb[0].mxu0
      %v4321 = vadd.f32 %v4180, %v4320
      %v4322 = vpop.f32.mrb[0].mxu0
      %v4323 = vadd.f32 %v4182, %v4322
      %4324 = vmatprep.mubr.f32.mxu0 0.0
      %v4325 = vand.u32 %v931, 4294901760
      %v4326 = vsub.f32 %v931, %v4325
      %v4327 = vand.u32 %v4326, 4294901760
      %4328 = vmatmul.mubr.f32.gmra.mrb[0].mxu0 %v4327
      %v4329 = vpop.f32.mrb[0].mxu0
      %v4330 = vadd.f32 %v4188, %v4329
      %v4331 = vpop.f32.mrb[0].mxu0
      %v4332 = vadd.f32 %v4190, %v4331
      %4333 = vdwg.mxu0
      %v4334 = vand.u32 %v813, 4294901760
      %v4335 = vsub.f32 %v813, %v4334
      %v4336 = vand.u32 %v4335, 4294901760
      %4337 = vmatprep.subr.mxu0 %v4336
      %v4338 = vand.u32 %v812, 4294901760
      %v4339 = vsub.f32 %v812, %v4338
      %v4340 = vand.u32 %v4339, 4294901760
      %4341 = vmatpush1.msra.mxu0 %v4340
      %v4342 = vand.u32 %v821, 4294901760
      %v4343 = vsub.f32 %v821, %v4342
      %v4344 = vand.u32 %v4343, 4294901760
      %4345 = vmatprep.subr.mxu0 %v4344
      %v4346 = vand.u32 %v820, 4294901760
      %v4347 = vsub.f32 %v820, %v4346
      %v4348 = vand.u32 %v4347, 4294901760
      %4349 = vmatpush1.msra.mxu0 %v4348
      %v4350 = vand.u32 %v829, 4294901760
      %v4351 = vsub.f32 %v829, %v4350
      %v4352 = vand.u32 %v4351, 4294901760
      %4353 = vmatprep.subr.mxu0 %v4352
      %v4354 = vand.u32 %v828, 4294901760
      %v4355 = vsub.f32 %v828, %v4354
      %v4356 = vand.u32 %v4355, 4294901760
      %4357 = vmatpush1.msra.mxu0 %v4356
      %v4358 = vand.u32 %v837, 4294901760
      %v4359 = vsub.f32 %v837, %v4358
      %v4360 = vand.u32 %v4359, 4294901760
      %4361 = vmatprep.subr.mxu0 %v4360
      %v4362 = vand.u32 %v836, 4294901760
      %v4363 = vsub.f32 %v836, %v4362
      %v4364 = vand.u32 %v4363, 4294901760
      %4365 = vmatpush1.msra.mxu0 %v4364
      %v4366 = vand.u32 %v845, 4294901760
      %v4367 = vsub.f32 %v845, %v4366
      %v4368 = vand.u32 %v4367, 4294901760
      %4369 = vmatprep.subr.mxu0 %v4368
      %v4370 = vand.u32 %v844, 4294901760
      %v4371 = vsub.f32 %v844, %v4370
      %v4372 = vand.u32 %v4371, 4294901760
      %4373 = vmatpush1.msra.mxu0 %v4372
      %v4374 = vand.u32 %v853, 4294901760
      %v4375 = vsub.f32 %v853, %v4374
      %v4376 = vand.u32 %v4375, 4294901760
      %4377 = vmatprep.subr.mxu0 %v4376
      %v4378 = vand.u32 %v852, 4294901760
      %v4379 = vsub.f32 %v852, %v4378
      %v4380 = vand.u32 %v4379, 4294901760
      %4381 = vmatpush1.msra.mxu0 %v4380
      %v4382 = vand.u32 %v956, 4294901760
      %v4383 = vsub.f32 %v956, %v4382
      %v4384 = vand.u32 %v4383, 4294901760
      %4385 = vmatprep.subr.mxu0 %v4384
      %v4386 = vand.u32 %v953, 4294901760
      %v4387 = vsub.f32 %v953, %v4386
      %v4388 = vand.u32 %v4387, 4294901760
      %4389 = vmatpush1.msra.mxu0 %v4388
      %4390 = vmatprep.subr.mxu0 0.0
      %4391 = vmatpush1.msra.mxu0 0.0
      %4392 = vmatprep.subr.mxu0 0.0
      %4393 = vmatpush1.msra.mxu0 0.0
      %4394 = vmatprep.subr.mxu0 0.0
      %4395 = vmatpush1.msra.mxu0 0.0
      %4396 = vmatprep.subr.mxu0 0.0
      %4397 = vmatpush1.msra.mxu0 0.0
      %4398 = vmatprep.subr.mxu0 0.0
      %4399 = vmatpush1.msra.mxu0 0.0
      %4400 = vmatprep.subr.mxu0 0.0
      %4401 = vmatpush1.msra.mxu0 0.0
      %4402 = vmatprep.subr.mxu0 0.0
      %4403 = vmatpush1.msra.mxu0 0.0
      %4404 = vmatprep.subr.mxu0 0.0
      %4405 = vmatpush1.msra.mxu0 0.0
      %4406 = vmatprep.subr.mxu0 0.0
      %4407 = vmatpush1.msra.mxu0 0.0
      %4408 = vmatprep.subr.mxu0 0.0
      %4409 = vmatpush1.msra.mxu0 0.0
      %4410 = vmatprep.subr.mxu0 0.0
      %4411 = vmatpush1.msra.mxu0 0.0
      %4412 = vmatprep.subr.mxu0 0.0
      %4413 = vmatpush1.msra.mxu0 0.0
      %4414 = vmatprep.subr.mxu0 0.0
      %4415 = vmatpush1.msra.mxu0 0.0
      %4416 = vmatprep.subr.mxu0 0.0
      %4417 = vmatpush1.msra.mxu0 0.0
      %4418 = vmatprep.subr.mxu0 0.0
      %4419 = vmatpush1.msra.mxu0 0.0
      %4420 = vmatprep.subr.mxu0 0.0
      %4421 = vmatpush1.msra.mxu0 0.0
      %4422 = vmatprep.subr.mxu0 0.0
      %4423 = vmatpush1.msra.mxu0 0.0
      %4424 = vmatprep.subr.mxu0 0.0
      %4425 = vmatpush1.msra.mxu0 0.0
      %4426 = vmatprep.subr.mxu0 0.0
      %4427 = vmatpush1.msra.mxu0 0.0
      %4428 = vmatprep.subr.mxu0 0.0
      %4429 = vmatpush1.msra.mxu0 0.0
      %4430 = vmatprep.subr.mxu0 0.0
      %4431 = vmatpush1.msra.mxu0 0.0
      %4432 = vmatprep.subr.mxu0 0.0
      %4433 = vmatpush1.msra.mxu0 0.0
      %4434 = vmatprep.subr.mxu0 0.0
      %4435 = vmatpush1.msra.mxu0 0.0
      %4436 = vmatprep.subr.mxu0 0.0
      %4437 = vmatpush1.msra.mxu0 0.0
      %4438 = vmatprep.subr.mxu0 0.0
      %4439 = vmatpush1.msra.mxu0 0.0
      %4440 = vmatprep.mubr.f32.mxu0 0.0
      %v4441 = vand.u32 %v913, 4294901760
      %4442 = vmatmul.mubr.f32.gmra.mrb[0].mxu0 %v4441
      %v4443 = vpop.f32.mrb[0].mxu0
      %v4444 = vadd.f32 %v4276, %v4443
      %v4445 = vpop.f32.mrb[0].mxu0
      %v4446 = vadd.f32 %v4278, %v4445
      %4447 = vmatprep.mubr.f32.mxu0 0.0
      %v4448 = vand.u32 %v916, 4294901760
      %4449 = vmatmul.mubr.f32.gmra.mrb[0].mxu0 %v4448
      %v4450 = vpop.f32.mrb[0].mxu0
      %v4451 = vadd.f32 %v4285, %v4450
      %v4452 = vpop.f32.mrb[0].mxu0
      %v4453 = vadd.f32 %v4287, %v4452
      %4454 = vmatprep.mubr.f32.mxu0 0.0
      %v4455 = vand.u32 %v919, 4294901760
      %4456 = vmatmul.mubr.f32.gmra.mrb[0].mxu0 %v4455
      %v4457 = vpop.f32.mrb[0].mxu0
      %v4458 = vadd.f32 %v4294, %v4457
      %v4459 = vpop.f32.mrb[0].mxu0
      %v4460 = vadd.f32 %v4296, %v4459
      %4461 = vmatprep.mubr.f32.mxu0 0.0
      %v4462 = vand.u32 %v922, 4294901760
      %4463 = vmatmul.mubr.f32.gmra.mrb[0].mxu0 %v4462
      %v4464 = vpop.f32.mrb[0].mxu0
      %v4465 = vadd.f32 %v4303, %v4464
      %v4466 = vpop.f32.mrb[0].mxu0
      %v4467 = vadd.f32 %v4305, %v4466
      %4468 = vmatprep.mubr.f32.mxu0 0.0
      %v4469 = vand.u32 %v925, 4294901760
      %4470 = vmatmul.mubr.f32.gmra.mrb[0].mxu0 %v4469
      %v4471 = vpop.f32.mrb[0].mxu0
      %v4472 = vadd.f32 %v4312, %v4471
      %v4473 = vpop.f32.mrb[0].mxu0
      %v4474 = vadd.f32 %v4314, %v4473
      %4475 = vmatprep.mubr.f32.mxu0 0.0
      %v4476 = vand.u32 %v928, 4294901760
      %4477 = vmatmul.mubr.f32.gmra.mrb[0].mxu0 %v4476
      %v4478 = vpop.f32.mrb[0].mxu0
      %v4479 = vadd.f32 %v4321, %v4478
      %v4480 = vpop.f32.mrb[0].mxu0
      %v4481 = vadd.f32 %v4323, %v4480
      %4482 = vmatprep.mubr.f32.mxu0 0.0
      %v4483 = vand.u32 %v931, 4294901760
      %4484 = vmatmul.mubr.f32.gmra.mrb[0].mxu0 %v4483
      %v4485 = vpop.f32.mrb[0].mxu0
      %v4486 = vadd.f32 %v4330, %v4485
      %v4487 = vpop.f32.mrb[0].mxu0
      %v4488 = vadd.f32 %v4332, %v4487
      %4489 = vdwg.mxu0
      %v4490 = vand.u32 %v813, 4294901760
      %4491 = vmatprep.subr.mxu0 %v4490
      %v4492 = vand.u32 %v812, 4294901760
      %4493 = vmatpush1.msra.mxu0 %v4492
      %v4494 = vand.u32 %v821, 4294901760
      %4495 = vmatprep.subr.mxu0 %v4494
      %v4496 = vand.u32 %v820, 4294901760
      %4497 = vmatpush1.msra.mxu0 %v4496
      %v4498 = vand.u32 %v829, 4294901760
      %4499 = vmatprep.subr.mxu0 %v4498
      %v4500 = vand.u32 %v828, 4294901760
      %4501 = vmatpush1.msra.mxu0 %v4500
      %v4502 = vand.u32 %v837, 4294901760
      %4503 = vmatprep.subr.mxu0 %v4502
      %v4504 = vand.u32 %v836, 4294901760
      %4505 = vmatpush1.msra.mxu0 %v4504
      %v4506 = vand.u32 %v845, 4294901760
      %4507 = vmatprep.subr.mxu0 %v4506
      %v4508 = vand.u32 %v844, 4294901760
      %4509 = vmatpush1.msra.mxu0 %v4508
      %v4510 = vand.u32 %v853, 4294901760
      %4511 = vmatprep.subr.mxu0 %v4510
      %v4512 = vand.u32 %v852, 4294901760
      %4513 = vmatpush1.msra.mxu0 %v4512
      %v4514 = vand.u32 %v956, 4294901760
      %4515 = vmatprep.subr.mxu0 %v4514
      %v4516 = vand.u32 %v953, 4294901760
      %4517 = vmatpush1.msra.mxu0 %v4516
      %4518 = vmatprep.subr.mxu0 0.0
      %4519 = vmatpush1.msra.mxu0 0.0
      %4520 = vmatprep.subr.mxu0 0.0
      %4521 = vmatpush1.msra.mxu0 0.0
      %4522 = vmatprep.subr.mxu0 0.0
      %4523 = vmatpush1.msra.mxu0 0.0
      %4524 = vmatprep.subr.mxu0 0.0
      %4525 = vmatpush1.msra.mxu0 0.0
      %4526 = vmatprep.subr.mxu0 0.0
      %4527 = vmatpush1.msra.mxu0 0.0
      %4528 = vmatprep.subr.mxu0 0.0
      %4529 = vmatpush1.msra.mxu0 0.0
      %4530 = vmatprep.subr.mxu0 0.0
      %4531 = vmatpush1.msra.mxu0 0.0
      %4532 = vmatprep.subr.mxu0 0.0
      %4533 = vmatpush1.msra.mxu0 0.0
      %4534 = vmatprep.subr.mxu0 0.0
      %4535 = vmatpush1.msra.mxu0 0.0
      %4536 = vmatprep.subr.mxu0 0.0
      %4537 = vmatpush1.msra.mxu0 0.0
      %4538 = vmatprep.subr.mxu0 0.0
      %4539 = vmatpush1.msra.mxu0 0.0
      %4540 = vmatprep.subr.mxu0 0.0
      %4541 = vmatpush1.msra.mxu0 0.0
      %4542 = vmatprep.subr.mxu0 0.0
      %4543 = vmatpush1.msra.mxu0 0.0
      %4544 = vmatprep.subr.mxu0 0.0
      %4545 = vmatpush1.msra.mxu0 0.0
      %4546 = vmatprep.subr.mxu0 0.0
      %4547 = vmatpush1.msra.mxu0 0.0
      %4548 = vmatprep.subr.mxu0 0.0
      %4549 = vmatpush1.msra.mxu0 0.0
      %4550 = vmatprep.subr.mxu0 0.0
      %4551 = vmatpush1.msra.mxu0 0.0
      %4552 = vmatprep.subr.mxu0 0.0
      %4553 = vmatpush1.msra.mxu0 0.0
      %4554 = vmatprep.subr.mxu0 0.0
      %4555 = vmatpush1.msra.mxu0 0.0
      %4556 = vmatprep.subr.mxu0 0.0
      %4557 = vmatpush1.msra.mxu0 0.0
      %4558 = vmatprep.subr.mxu0 0.0
      %4559 = vmatpush1.msra.mxu0 0.0
      %4560 = vmatprep.subr.mxu0 0.0
      %4561 = vmatpush1.msra.mxu0 0.0
      %4562 = vmatprep.subr.mxu0 0.0
      %4563 = vmatpush1.msra.mxu0 0.0
      %4564 = vmatprep.subr.mxu0 0.0
      %4565 = vmatpush1.msra.mxu0 0.0
      %4566 = vmatprep.subr.mxu0 0.0
      %4567 = vmatpush1.msra.mxu0 0.0
      %4568 = vmatprep.mubr.f32.mxu0 0.0
      %v4569 = vand.u32 %v913, 4294901760
      %4570 = vmatmul.mubr.f32.gmra.mrb[0].mxu0 %v4569
      %v4571 = vpop.f32.mrb[0].mxu0
      %v4572 = vadd.f32 %v4444, %v4571
      %v4573 = vpop.f32.mrb[0].mxu0
      %v4574 = vadd.f32 %v4446, %v4573
      %4575 = vmatprep.mubr.f32.mxu0 0.0
      %v4576 = vand.u32 %v916, 4294901760
      %4577 = vmatmul.mubr.f32.gmra.mrb[0].mxu0 %v4576
      %v4578 = vpop.f32.mrb[0].mxu0
      %v4579 = vadd.f32 %v4451, %v4578
      %v4580 = vpop.f32.mrb[0].mxu0
      %v4581 = vadd.f32 %v4453, %v4580
      %4582 = vmatprep.mubr.f32.mxu0 0.0
      %v4583 = vand.u32 %v919, 4294901760
      %4584 = vmatmul.mubr.f32.gmra.mrb[0].mxu0 %v4583
      %v4585 = vpop.f32.mrb[0].mxu0
      %v4586 = vadd.f32 %v4458, %v4585
      %v4587 = vpop.f32.mrb[0].mxu0
      %v4588 = vadd.f32 %v4460, %v4587
      %4589 = vmatprep.mubr.f32.mxu0 0.0
      %v4590 = vand.u32 %v922, 4294901760
      %4591 = vmatmul.mubr.f32.gmra.mrb[0].mxu0 %v4590
      %v4592 = vpop.f32.mrb[0].mxu0
      %v4593 = vadd.f32 %v4465, %v4592
      %v4594 = vpop.f32.mrb[0].mxu0
      %v4595 = vadd.f32 %v4467, %v4594
      %4596 = vmatprep.mubr.f32.mxu0 0.0
      %v4597 = vand.u32 %v925, 4294901760
      %4598 = vmatmul.mubr.f32.gmra.mrb[0].mxu0 %v4597
      %v4599 = vpop.f32.mrb[0].mxu0
      %v4600 = vadd.f32 %v4472, %v4599
      %v4601 = vpop.f32.mrb[0].mxu0
      %v4602 = vadd.f32 %v4474, %v4601
      %4603 = vmatprep.mubr.f32.mxu0 0.0
      %v4604 = vand.u32 %v928, 4294901760
      %4605 = vmatmul.mubr.f32.gmra.mrb[0].mxu0 %v4604
      %v4606 = vpop.f32.mrb[0].mxu0
      %v4607 = vadd.f32 %v4479, %v4606
      %v4608 = vpop.f32.mrb[0].mxu0
      %v4609 = vadd.f32 %v4481, %v4608
      %4610 = vmatprep.mubr.f32.mxu0 0.0
      %v4611 = vand.u32 %v931, 4294901760
      %4612 = vmatmul.mubr.f32.gmra.mrb[0].mxu0 %v4611
      %v4613 = vpop.f32.mrb[0].mxu0
      %v4614 = vadd.f32 %v4486, %v4613
      %v4615 = vpop.f32.mrb[0].mxu0
      %v4616 = vadd.f32 %v4488, %v4615
      %4617 = vdwg.mxu0
      %v4618 = vtanh.pop %v1827
      %v4619 = vtanh.pop %v1829
      %v4620 = vtanh.pop %v2742
      %v4621 = vtanh.pop %v2744
      %v4622 = vtanh.pop %v3657
      %v4623 = vtanh.pop %v3659
      %v4624 = vtanh.pop %v4572
      %v4625 = vtanh.pop %v4574
      %v4626 = vtanh.pop %v1834
      %v4627 = vtanh.pop %v1836
      %v4628 = vtanh.pop %v2749
      %v4629 = vtanh.pop %v2751
      %v4630 = vtanh.pop %v3664
      %v4631 = vtanh.pop %v3666
      %v4632 = vtanh.pop %v4579
      %v4633 = vtanh.pop %v4581
      %v4634 = vtanh.pop %v1841
      %v4635 = vtanh.pop %v1843
      %v4636 = vtanh.pop %v2756
      %v4637 = vtanh.pop %v2758
      %v4638 = vtanh.pop %v3671
      %v4639 = vtanh.pop %v3673
      %v4640 = vtanh.pop %v4586
      %v4641 = vtanh.pop %v4588
      %v4642 = vtanh.pop %v1848
      %v4643 = vtanh.pop %v1850
      %v4644 = vtanh.pop %v2763
      %v4645 = vtanh.pop %v2765
      %v4646 = vtanh.pop %v3678
      %v4647 = vtanh.pop %v3680
      %v4648 = vtanh.pop %v4593
      %v4649 = vtanh.pop %v4595
      %v4650 = vtanh.pop %v1855
      %v4651 = vtanh.pop %v1857
      %v4652 = vtanh.pop %v2770
      %v4653 = vtanh.pop %v2772
      %v4654 = vtanh.pop %v3685
      %v4655 = vtanh.pop %v3687
      %v4656 = vtanh.pop %v4600
      %v4657 = vtanh.pop %v4602
      %v4658 = vtanh.pop %v1862
      %v4659 = vtanh.pop %v1864
      %v4660 = vtanh.pop %v2777
      %v4661 = vtanh.pop %v2779
      %v4662 = vtanh.pop %v3692
      %v4663 = vtanh.pop %v3694
      %v4664 = vtanh.pop %v4607
      %v4665 = vtanh.pop %v4609
      %v4666 = vtanh.pop %v1869
      %v4667 = vtanh.pop %v1871
      %v4668 = vtanh.pop %v2784
      %v4669 = vtanh.pop %v2786
      %v4670 = vtanh.pop %v3699
      %v4671 = vtanh.pop %v3701
      %v4672 = vtanh.pop %v4614
      %v4673 = vtanh.pop %v4616
      %v4674 = vld [vmem:[%s6] sm:$0x1]
      %s4675 = sld [smem:[#allocation2]]
      %v4676 = vstv %s4675
      %v4678 = vsel %vm911, %v4674, 0
      %v4681 = vsel %vm933, %v4666, 0
      %v4684 = vsel %vm933, %v4667, 0
      %v4687 = vsel %vm933, %v4668, 0
      %v4690 = vsel %vm933, %v4669, 0
      %v4693 = vsel %vm933, %v4670, 0
      %v4696 = vsel %vm933, %v4671, 0
      %v4699 = vsel %vm933, %v4672, 0
      %v4702 = vsel %vm933, %v4673, 0
      %v4704 = vand.u32 %v4619, 4294901760
      %4705 = vmatprep.subr.mxu0 %v4704
      %v4706 = vand.u32 %v4618, 4294901760
      %4707 = vmatpush1.msra.mxu0 %v4706
      %v4708 = vand.u32 %v4627, 4294901760
      %4709 = vmatprep.subr.mxu0 %v4708
      %v4710 = vand.u32 %v4626, 4294901760
      %4711 = vmatpush1.msra.mxu0 %v4710
      %v4712 = vand.u32 %v4635, 4294901760
      %4713 = vmatprep.subr.mxu0 %v4712
      %v4714 = vand.u32 %v4634, 4294901760
      %4715 = vmatpush1.msra.mxu0 %v4714
      %v4716 = vand.u32 %v4643, 4294901760
      %4717 = vmatprep.subr.mxu0 %v4716
      %v4718 = vand.u32 %v4642, 4294901760
      %4719 = vmatpush1.msra.mxu0 %v4718
      %v4720 = vand.u32 %v4651, 4294901760
      %4721 = vmatprep.subr.mxu0 %v4720
      %v4722 = vand.u32 %v4650, 4294901760
      %4723 = vmatpush1.msra.mxu0 %v4722
      %v4724 = vand.u32 %v4659, 4294901760
      %4725 = vmatprep.subr.mxu0 %v4724
      %v4726 = vand.u32 %v4658, 4294901760
      %4727 = vmatpush1.msra.mxu0 %v4726
      %v4728 = vand.u32 %v4684, 4294901760
      %4729 = vmatprep.subr.mxu0 %v4728
      %v4730 = vand.u32 %v4681, 4294901760
      %4731 = vmatpush1.msra.mxu0 %v4730
      %4732 = vmatprep.subr.mxu0 0.0
      %4733 = vmatpush1.msra.mxu0 0.0
      %4734 = vmatprep.subr.mxu0 0.0
      %4735 = vmatpush1.msra.mxu0 0.0
      %4736 = vmatprep.subr.mxu0 0.0
      %4737 = vmatpush1.msra.mxu0 0.0
      %4738 = vmatprep.subr.mxu0 0.0
      %4739 = vmatpush1.msra.mxu0 0.0
      %4740 = vmatprep.subr.mxu0 0.0
      %4741 = vmatpush1.msra.mxu0 0.0
      %4742 = vmatprep.subr.mxu0 0.0
      %4743 = vmatpush1.msra.mxu0 0.0
      %4744 = vmatprep.subr.mxu0 0.0
      %4745 = vmatpush1.msra.mxu0 0.0
      %4746 = vmatprep.subr.mxu0 0.0
      %4747 = vmatpush1.msra.mxu0 0.0
      %4748 = vmatprep.subr.mxu0 0.0
      %4749 = vmatpush1.msra.mxu0 0.0
      %4750 = vmatprep.subr.mxu0 0.0
      %4751 = vmatpush1.msra.mxu0 0.0
      %4752 = vmatprep.subr.mxu0 0.0
      %4753 = vmatpush1.msra.mxu0 0.0
      %4754 = vmatprep.subr.mxu0 0.0
      %4755 = vmatpush1.msra.mxu0 0.0
      %4756 = vmatprep.subr.mxu0 0.0
      %4757 = vmatpush1.msra.mxu0 0.0
      %4758 = vmatprep.subr.mxu0 0.0
      %4759 = vmatpush1.msra.mxu0 0.0
      %4760 = vmatprep.subr.mxu0 0.0
      %4761 = vmatpush1.msra.mxu0 0.0
      %4762 = vmatprep.subr.mxu0 0.0
      %4763 = vmatpush1.msra.mxu0 0.0
      %4764 = vmatprep.subr.mxu0 0.0
      %4765 = vmatpush1.msra.mxu0 0.0
      %4766 = vmatprep.subr.mxu0 0.0
      %4767 = vmatpush1.msra.mxu0 0.0
      %4768 = vmatprep.subr.mxu0 0.0
      %4769 = vmatpush1.msra.mxu0 0.0
      %4770 = vmatprep.subr.mxu0 0.0
      %4771 = vmatpush1.msra.mxu0 0.0
      %4772 = vmatprep.subr.mxu0 0.0
      %4773 = vmatpush1.msra.mxu0 0.0
      %4774 = vmatprep.subr.mxu0 0.0
      %4775 = vmatpush1.msra.mxu0 0.0
      %4776 = vmatprep.subr.mxu0 0.0
      %4777 = vmatpush1.msra.mxu0 0.0
      %4778 = vmatprep.subr.mxu0 0.0
      %4779 = vmatpush1.msra.mxu0 0.0
      %4780 = vmatprep.subr.mxu0 0.0
      %4781 = vmatpush1.msra.mxu0 0.0
      %4782 = vmatprep.mubr.f32.mxu0 0.0
      %v4783 = vand.u32 %v4678, 4294901760
      %v4784 = vsub.f32 %v4678, %v4783
      %v4785 = vand.u32 %v4784, 4294901760
      %v4786 = vsub.f32 %v4784, %v4785
      %v4787 = vand.u32 %v4786, 4294901760
      %4788 = vmatmul.mubr.f32.gmra.mrb[0].mxu0 %v4787
      %v4789 = vpop.f32.mrb[0].mxu0
      %v4790 = vadd.f32 %v4676, %v4789
      %v4791 = vpop.f32.mrb[0].mxu0
      %v4792 = vadd.f32 %v4676, %v4791
      %4793 = vdwg.mxu0
      %v4794 = vand.u32 %v4619, 4294901760
      %v4795 = vsub.f32 %v4619, %v4794
      %v4796 = vand.u32 %v4795, 4294901760
      %v4797 = vsub.f32 %v4795, %v4796
      %v4798 = vand.u32 %v4797, 4294901760
      %4799 = vmatprep.subr.mxu0 %v4798
      %v4800 = vand.u32 %v4618, 4294901760
      %v4801 = vsub.f32 %v4618, %v4800
      %v4802 = vand.u32 %v4801, 4294901760
      %v4803 = vsub.f32 %v4801, %v4802
      %v4804 = vand.u32 %v4803, 4294901760
      %4805 = vmatpush1.msra.mxu0 %v4804
      %v4806 = vand.u32 %v4627, 4294901760
      %v4807 = vsub.f32 %v4627, %v4806
      %v4808 = vand.u32 %v4807, 4294901760
      %v4809 = vsub.f32 %v4807, %v4808
      %v4810 = vand.u32 %v4809, 4294901760
      %4811 = vmatprep.subr.mxu0 %v4810
      %v4812 = vand.u32 %v4626, 4294901760
      %v4813 = vsub.f32 %v4626, %v4812
      %v4814 = vand.u32 %v4813, 4294901760
      %v4815 = vsub.f32 %v4813, %v4814
      %v4816 = vand.u32 %v4815, 4294901760
      %4817 = vmatpush1.msra.mxu0 %v4816
      %v4818 = vand.u32 %v4635, 4294901760
      %v4819 = vsub.f32 %v4635, %v4818
      %v4820 = vand.u32 %v4819, 4294901760
      %v4821 = vsub.f32 %v4819, %v4820
      %v4822 = vand.u32 %v4821, 4294901760
      %4823 = vmatprep.subr.mxu0 %v4822
      %v4824 = vand.u32 %v4634, 4294901760
      %v4825 = vsub.f32 %v4634, %v4824
      %v4826 = vand.u32 %v4825, 4294901760
      %v4827 = vsub.f32 %v4825, %v4826
      %v4828 = vand.u32 %v4827, 4294901760
      %4829 = vmatpush1.msra.mxu0 %v4828
      %v4830 = vand.u32 %v4643, 4294901760
      %v4831 = vsub.f32 %v4643, %v4830
      %v4832 = vand.u32 %v4831, 4294901760
      %v4833 = vsub.f32 %v4831, %v4832
      %v4834 = vand.u32 %v4833, 4294901760
      %4835 = vmatprep.subr.mxu0 %v4834
      %v4836 = vand.u32 %v4642, 4294901760
      %v4837 = vsub.f32 %v4642, %v4836
      %v4838 = vand.u32 %v4837, 4294901760
      %v4839 = vsub.f32 %v4837, %v4838
      %v4840 = vand.u32 %v4839, 4294901760
      %4841 = vmatpush1.msra.mxu0 %v4840
      %v4842 = vand.u32 %v4651, 4294901760
      %v4843 = vsub.f32 %v4651, %v4842
      %v4844 = vand.u32 %v4843, 4294901760
      %v4845 = vsub.f32 %v4843, %v4844
      %v4846 = vand.u32 %v4845, 4294901760
      %4847 = vmatprep.subr.mxu0 %v4846
      %v4848 = vand.u32 %v4650, 4294901760
      %v4849 = vsub.f32 %v4650, %v4848
      %v4850 = vand.u32 %v4849, 4294901760
      %v4851 = vsub.f32 %v4849, %v4850
      %v4852 = vand.u32 %v4851, 4294901760
      %4853 = vmatpush1.msra.mxu0 %v4852
      %v4854 = vand.u32 %v4659, 4294901760
      %v4855 = vsub.f32 %v4659, %v4854
      %v4856 = vand.u32 %v4855, 4294901760
      %v4857 = vsub.f32 %v4855, %v4856
      %v4858 = vand.u32 %v4857, 4294901760
      %4859 = vmatprep.subr.mxu0 %v4858
      %v4860 = vand.u32 %v4658, 4294901760
      %v4861 = vsub.f32 %v4658, %v4860
      %v4862 = vand.u32 %v4861, 4294901760
      %v4863 = vsub.f32 %v4861, %v4862
      %v4864 = vand.u32 %v4863, 4294901760
      %4865 = vmatpush1.msra.mxu0 %v4864
      %v4866 = vand.u32 %v4684, 4294901760
      %v4867 = vsub.f32 %v4684, %v4866
      %v4868 = vand.u32 %v4867, 4294901760
      %v4869 = vsub.f32 %v4867, %v4868
      %v4870 = vand.u32 %v4869, 4294901760
      %4871 = vmatprep.subr.mxu0 %v4870
      %v4872 = vand.u32 %v4681, 4294901760
      %v4873 = vsub.f32 %v4681, %v4872
      %v4874 = vand.u32 %v4873, 4294901760
      %v4875 = vsub.f32 %v4873, %v4874
      %v4876 = vand.u32 %v4875, 4294901760
      %4877 = vmatpush1.msra.mxu0 %v4876
      %4878 = vmatprep.subr.mxu0 0.0
      %4879 = vmatpush1.msra.mxu0 0.0
      %4880 = vmatprep.subr.mxu0 0.0
      %4881 = vmatpush1.msra.mxu0 0.0
      %4882 = vmatprep.subr.mxu0 0.0
      %4883 = vmatpush1.msra.mxu0 0.0
      %4884 = vmatprep.subr.mxu0 0.0
      %4885 = vmatpush1.msra.mxu0 0.0
      %4886 = vmatprep.subr.mxu0 0.0
      %4887 = vmatpush1.msra.mxu0 0.0
      %4888 = vmatprep.subr.mxu0 0.0
      %4889 = vmatpush1.msra.mxu0 0.0
      %4890 = vmatprep.subr.mxu0 0.0
      %4891 = vmatpush1.msra.mxu0 0.0
      %4892 = vmatprep.subr.mxu0 0.0
      %4893 = vmatpush1.msra.mxu0 0.0
      %4894 = vmatprep.subr.mxu0 0.0
      %4895 = vmatpush1.msra.mxu0 0.0
      %4896 = vmatprep.subr.mxu0 0.0
      %4897 = vmatpush1.msra.mxu0 0.0
      %4898 = vmatprep.subr.mxu0 0.0
      %4899 = vmatpush1.msra.mxu0 0.0
      %4900 = vmatprep.subr.mxu0 0.0
      %4901 = vmatpush1.msra.mxu0 0.0
      %4902 = vmatprep.subr.mxu0 0.0
      %4903 = vmatpush1.msra.mxu0 0.0
      %4904 = vmatprep.subr.mxu0 0.0
      %4905 = vmatpush1.msra.mxu0 0.0
      %4906 = vmatprep.subr.mxu0 0.0
      %4907 = vmatpush1.msra.mxu0 0.0
      %4908 = vmatprep.subr.mxu0 0.0
      %4909 = vmatpush1.msra.mxu0 0.0
      %4910 = vmatprep.subr.mxu0 0.0
      %4911 = vmatpush1.msra.mxu0 0.0
      %4912 = vmatprep.subr.mxu0 0.0
      %4913 = vmatpush1.msra.mxu0 0.0
      %4914 = vmatprep.subr.mxu0 0.0
      %4915 = vmatpush1.msra.mxu0 0.0
      %4916 = vmatprep.subr.mxu0 0.0
      %4917 = vmatpush1.msra.mxu0 0.0
      %4918 = vmatprep.subr.mxu0 0.0
      %4919 = vmatpush1.msra.mxu0 0.0
      %4920 = vmatprep.subr.mxu0 0.0
      %4921 = vmatpush1.msra.mxu0 0.0
      %4922 = vmatprep.subr.mxu0 0.0
      %4923 = vmatpush1.msra.mxu0 0.0
      %4924 = vmatprep.subr.mxu0 0.0
      %4925 = vmatpush1.msra.mxu0 0.0
      %4926 = vmatprep.subr.mxu0 0.0
      %4927 = vmatpush1.msra.mxu0 0.0
      %4928 = vmatprep.mubr.f32.mxu0 0.0
      %v4929 = vand.u32 %v4678, 4294901760
      %4930 = vmatmul.mubr.f32.gmra.mrb[0].mxu0 %v4929
      %v4931 = vpop.f32.mrb[0].mxu0
      %v4932 = vadd.f32 %v4790, %v4931
      %v4933 = vpop.f32.mrb[0].mxu0
      %v4934 = vadd.f32 %v4792, %v4933
      %4935 = vdwg.mxu0
      %v4936 = vand.u32 %v4619, 4294901760
      %v4937 = vsub.f32 %v4619, %v4936
      %4938 = vmatprep.subr.mxu0 %v4937
      %v4939 = vand.u32 %v4618, 4294901760
      %v4940 = vsub.f32 %v4618, %v4939
      %4941 = vmatpush1.msra.mxu0 %v4940
      %v4942 = vand.u32 %v4627, 4294901760
      %v4943 = vsub.f32 %v4627, %v4942
      %4944 = vmatprep.subr.mxu0 %v4943
      %v4945 = vand.u32 %v4626, 4294901760
      %v4946 = vsub.f32 %v4626, %v4945
      %4947 = vmatpush1.msra.mxu0 %v4946
      %v4948 = vand.u32 %v4635, 4294901760
      %v4949 = vsub.f32 %v4635, %v4948
      %4950 = vmatprep.subr.mxu0 %v4949
      %v4951 = vand.u32 %v4634, 4294901760
      %v4952 = vsub.f32 %v4634, %v4951
      %4953 = vmatpush1.msra.mxu0 %v4952
      %v4954 = vand.u32 %v4643, 4294901760
      %v4955 = vsub.f32 %v4643, %v4954
      %4956 = vmatprep.subr.mxu0 %v4955
      %v4957 = vand.u32 %v4642, 4294901760
      %v4958 = vsub.f32 %v4642, %v4957
      %4959 = vmatpush1.msra.mxu0 %v4958
      %v4960 = vand.u32 %v4651, 4294901760
      %v4961 = vsub.f32 %v4651, %v4960
      %4962 = vmatprep.subr.mxu0 %v4961
      %v4963 = vand.u32 %v4650, 4294901760
      %v4964 = vsub.f32 %v4650, %v4963
      %4965 = vmatpush1.msra.mxu0 %v4964
      %v4966 = vand.u32 %v4659, 4294901760
      %v4967 = vsub.f32 %v4659, %v4966
      %4968 = vmatprep.subr.mxu0 %v4967
      %v4969 = vand.u32 %v4658, 4294901760
      %v4970 = vsub.f32 %v4658, %v4969
      %4971 = vmatpush1.msra.mxu0 %v4970
      %v4972 = vand.u32 %v4684, 4294901760
      %v4973 = vsub.f32 %v4684, %v4972
      %4974 = vmatprep.subr.mxu0 %v4973
      %v4975 = vand.u32 %v4681, 4294901760
      %v4976 = vsub.f32 %v4681, %v4975
      %4977 = vmatpush1.msra.mxu0 %v4976
      %4978 = vmatprep.subr.mxu0 0.0
      %4979 = vmatpush1.msra.mxu0 0.0
      %4980 = vmatprep.subr.mxu0 0.0
      %4981 = vmatpush1.msra.mxu0 0.0
      %4982 = vmatprep.subr.mxu0 0.0
      %4983 = vmatpush1.msra.mxu0 0.0
      %4984 = vmatprep.subr.mxu0 0.0
      %4985 = vmatpush1.msra.mxu0 0.0
      %4986 = vmatprep.subr.mxu0 0.0
      %4987 = vmatpush1.msra.mxu0 0.0
      %4988 = vmatprep.subr.mxu0 0.0
      %4989 = vmatpush1.msra.mxu0 0.0
      %4990 = vmatprep.subr.mxu0 0.0
      %4991 = vmatpush1.msra.mxu0 0.0
      %4992 = vmatprep.subr.mxu0 0.0
      %4993 = vmatpush1.msra.mxu0 0.0
      %4994 = vmatprep.subr.mxu0 0.0
      %4995 = vmatpush1.msra.mxu0 0.0
      %4996 = vmatprep.subr.mxu0 0.0
      %4997 = vmatpush1.msra.mxu0 0.0
      %4998 = vmatprep.subr.mxu0 0.0
      %4999 = vmatpush1.msra.mxu0 0.0
      %5000 = vmatprep.subr.mxu0 0.0
      %5001 = vmatpush1.msra.mxu0 0.0
      %5002 = vmatprep.subr.mxu0 0.0
      %5003 = vmatpush1.msra.mxu0 0.0
      %5004 = vmatprep.subr.mxu0 0.0
      %5005 = vmatpush1.msra.mxu0 0.0
      %5006 = vmatprep.subr.mxu0 0.0
      %5007 = vmatpush1.msra.mxu0 0.0
      %5008 = vmatprep.subr.mxu0 0.0
      %5009 = vmatpush1.msra.mxu0 0.0
      %5010 = vmatprep.subr.mxu0 0.0
      %5011 = vmatpush1.msra.mxu0 0.0
      %5012 = vmatprep.subr.mxu0 0.0
      %5013 = vmatpush1.msra.mxu0 0.0
      %5014 = vmatprep.subr.mxu0 0.0
      %5015 = vmatpush1.msra.mxu0 0.0
      %5016 = vmatprep.subr.mxu0 0.0
      %5017 = vmatpush1.msra.mxu0 0.0
      %5018 = vmatprep.subr.mxu0 0.0
      %5019 = vmatpush1.msra.mxu0 0.0
      %5020 = vmatprep.subr.mxu0 0.0
      %5021 = vmatpush1.msra.mxu0 0.0
      %5022 = vmatprep.subr.mxu0 0.0
      %5023 = vmatpush1.msra.mxu0 0.0
      %5024 = vmatprep.subr.mxu0 0.0
      %5025 = vmatpush1.msra.mxu0 0.0
      %5026 = vmatprep.subr.mxu0 0.0
      %5027 = vmatpush1.msra.mxu0 0.0
      %5028 = vmatprep.mubr.f32.mxu0 0.0
      %v5029 = vand.u32 %v4678, 4294901760
      %v5030 = vsub.f32 %v4678, %v5029
      %5031 = vmatmul.mubr.f32.gmra.mrb[0].mxu0 %v5030
      %v5032 = vpop.f32.mrb[0].mxu0
      %v5033 = vadd.f32 %v4932, %v5032
      %v5034 = vpop.f32.mrb[0].mxu0
      %v5035 = vadd.f32 %v4934, %v5034
      %5036 = vdwg.mxu0
      %v5037 = vand.u32 %v4619, 4294901760
      %5038 = vmatprep.subr.mxu0 %v5037
      %v5039 = vand.u32 %v4618, 4294901760
      %5040 = vmatpush1.msra.mxu0 %v5039
      %v5041 = vand.u32 %v4627, 4294901760
      %5042 = vmatprep.subr.mxu0 %v5041
      %v5043 = vand.u32 %v4626, 4294901760
      %5044 = vmatpush1.msra.mxu0 %v5043
      %v5045 = vand.u32 %v4635, 4294901760
      %5046 = vmatprep.subr.mxu0 %v5045
      %v5047 = vand.u32 %v4634, 4294901760
      %5048 = vmatpush1.msra.mxu0 %v5047
      %v5049 = vand.u32 %v4643, 4294901760
      %5050 = vmatprep.subr.mxu0 %v5049
      %v5051 = vand.u32 %v4642, 4294901760
      %5052 = vmatpush1.msra.mxu0 %v5051
      %v5053 = vand.u32 %v4651, 4294901760
      %5054 = vmatprep.subr.mxu0 %v5053
      %v5055 = vand.u32 %v4650, 4294901760
      %5056 = vmatpush1.msra.mxu0 %v5055
      %v5057 = vand.u32 %v4659, 4294901760
      %5058 = vmatprep.subr.mxu0 %v5057
      %v5059 = vand.u32 %v4658, 4294901760
      %5060 = vmatpush1.msra.mxu0 %v5059
      %v5061 = vand.u32 %v4684, 4294901760
      %5062 = vmatprep.subr.mxu0 %v5061
      %v5063 = vand.u32 %v4681, 4294901760
      %5064 = vmatpush1.msra.mxu0 %v5063
      %5065 = vmatprep.subr.mxu0 0.0
      %5066 = vmatpush1.msra.mxu0 0.0
      %5067 = vmatprep.subr.mxu0 0.0
      %5068 = vmatpush1.msra.mxu0 0.0
      %5069 = vmatprep.subr.mxu0 0.0
      %5070 = vmatpush1.msra.mxu0 0.0
      %5071 = vmatprep.subr.mxu0 0.0
      %5072 = vmatpush1.msra.mxu0 0.0
      %5073 = vmatprep.subr.mxu0 0.0
      %5074 = vmatpush1.msra.mxu0 0.0
      %5075 = vmatprep.subr.mxu0 0.0
      %5076 = vmatpush1.msra.mxu0 0.0
      %5077 = vmatprep.subr.mxu0 0.0
      %5078 = vmatpush1.msra.mxu0 0.0
      %5079 = vmatprep.subr.mxu0 0.0
      %5080 = vmatpush1.msra.mxu0 0.0
      %5081 = vmatprep.subr.mxu0 0.0
      %5082 = vmatpush1.msra.mxu0 0.0
      %5083 = vmatprep.subr.mxu0 0.0
      %5084 = vmatpush1.msra.mxu0 0.0
      %5085 = vmatprep.subr.mxu0 0.0
      %5086 = vmatpush1.msra.mxu0 0.0
      %5087 = vmatprep.subr.mxu0 0.0
      %5088 = vmatpush1.msra.mxu0 0.0
      %5089 = vmatprep.subr.mxu0 0.0
      %5090 = vmatpush1.msra.mxu0 0.0
      %5091 = vmatprep.subr.mxu0 0.0
      %5092 = vmatpush1.msra.mxu0 0.0
      %5093 = vmatprep.subr.mxu0 0.0
      %5094 = vmatpush1.msra.mxu0 0.0
      %5095 = vmatprep.subr.mxu0 0.0
      %5096 = vmatpush1.msra.mxu0 0.0
      %5097 = vmatprep.subr.mxu0 0.0
      %5098 = vmatpush1.msra.mxu0 0.0
      %5099 = vmatprep.subr.mxu0 0.0
      %5100 = vmatpush1.msra.mxu0 0.0
      %5101 = vmatprep.subr.mxu0 0.0
      %5102 = vmatpush1.msra.mxu0 0.0
      %5103 = vmatprep.subr.mxu0 0.0
      %5104 = vmatpush1.msra.mxu0 0.0
      %5105 = vmatprep.subr.mxu0 0.0
      %5106 = vmatpush1.msra.mxu0 0.0
      %5107 = vmatprep.subr.mxu0 0.0
      %5108 = vmatpush1.msra.mxu0 0.0
      %5109 = vmatprep.subr.mxu0 0.0
      %5110 = vmatpush1.msra.mxu0 0.0
      %5111 = vmatprep.subr.mxu0 0.0
      %5112 = vmatpush1.msra.mxu0 0.0
      %5113 = vmatprep.subr.mxu0 0.0
      %5114 = vmatpush1.msra.mxu0 0.0
      %5115 = vmatprep.mubr.f32.mxu0 0.0
      %v5116 = vand.u32 %v4678, 4294901760
      %v5117 = vsub.f32 %v4678, %v5116
      %v5118 = vand.u32 %v5117, 4294901760
      %5119 = vmatmul.mubr.f32.gmra.mrb[0].mxu0 %v5118
      %v5120 = vpop.f32.mrb[0].mxu0
      %v5121 = vadd.f32 %v5033, %v5120
      %v5122 = vpop.f32.mrb[0].mxu0
      %v5123 = vadd.f32 %v5035, %v5122
      %5124 = vdwg.mxu0
      %v5125 = vand.u32 %v4619, 4294901760
      %v5126 = vsub.f32 %v4619, %v5125
      %v5127 = vand.u32 %v5126, 4294901760
      %5128 = vmatprep.subr.mxu0 %v5127
      %v5129 = vand.u32 %v4618, 4294901760
      %v5130 = vsub.f32 %v4618, %v5129
      %v5131 = vand.u32 %v5130, 4294901760
      %5132 = vmatpush1.msra.mxu0 %v5131
      %v5133 = vand.u32 %v4627, 4294901760
      %v5134 = vsub.f32 %v4627, %v5133
      %v5135 = vand.u32 %v5134, 4294901760
      %5136 = vmatprep.subr.mxu0 %v5135
      %v5137 = vand.u32 %v4626, 4294901760
      %v5138 = vsub.f32 %v4626, %v5137
      %v5139 = vand.u32 %v5138, 4294901760
      %5140 = vmatpush1.msra.mxu0 %v5139
      %v5141 = vand.u32 %v4635, 4294901760
      %v5142 = vsub.f32 %v4635, %v5141
      %v5143 = vand.u32 %v5142, 4294901760
      %5144 = vmatprep.subr.mxu0 %v5143
      %v5145 = vand.u32 %v4634, 4294901760
      %v5146 = vsub.f32 %v4634, %v5145
      %v5147 = vand.u32 %v5146, 4294901760
      %5148 = vmatpush1.msra.mxu0 %v5147
      %v5149 = vand.u32 %v4643, 4294901760
      %v5150 = vsub.f32 %v4643, %v5149
      %v5151 = vand.u32 %v5150, 4294901760
      %5152 = vmatprep.subr.mxu0 %v5151
      %v5153 = vand.u32 %v4642, 4294901760
      %v5154 = vsub.f32 %v4642, %v5153
      %v5155 = vand.u32 %v5154, 4294901760
      %5156 = vmatpush1.msra.mxu0 %v5155
      %v5157 = vand.u32 %v4651, 4294901760
      %v5158 = vsub.f32 %v4651, %v5157
      %v5159 = vand.u32 %v5158, 4294901760
      %5160 = vmatprep.subr.mxu0 %v5159
      %v5161 = vand.u32 %v4650, 4294901760
      %v5162 = vsub.f32 %v4650, %v5161
      %v5163 = vand.u32 %v5162, 4294901760
      %5164 = vmatpush1.msra.mxu0 %v5163
      %v5165 = vand.u32 %v4659, 4294901760
      %v5166 = vsub.f32 %v4659, %v5165
      %v5167 = vand.u32 %v5166, 4294901760
      %5168 = vmatprep.subr.mxu0 %v5167
      %v5169 = vand.u32 %v4658, 4294901760
      %v5170 = vsub.f32 %v4658, %v5169
      %v5171 = vand.u32 %v5170, 4294901760
      %5172 = vmatpush1.msra.mxu0 %v5171
      %v5173 = vand.u32 %v4684, 4294901760
      %v5174 = vsub.f32 %v4684, %v5173
      %v5175 = vand.u32 %v5174, 4294901760
      %5176 = vmatprep.subr.mxu0 %v5175
      %v5177 = vand.u32 %v4681, 4294901760
      %v5178 = vsub.f32 %v4681, %v5177
      %v5179 = vand.u32 %v5178, 4294901760
      %5180 = vmatpush1.msra.mxu0 %v5179
      %5181 = vmatprep.subr.mxu0 0.0
      %5182 = vmatpush1.msra.mxu0 0.0
      %5183 = vmatprep.subr.mxu0 0.0
      %5184 = vmatpush1.msra.mxu0 0.0
      %5185 = vmatprep.subr.mxu0 0.0
      %5186 = vmatpush1.msra.mxu0 0.0
      %5187 = vmatprep.subr.mxu0 0.0
      %5188 = vmatpush1.msra.mxu0 0.0
      %5189 = vmatprep.subr.mxu0 0.0
      %5190 = vmatpush1.msra.mxu0 0.0
      %5191 = vmatprep.subr.mxu0 0.0
      %5192 = vmatpush1.msra.mxu0 0.0
      %5193 = vmatprep.subr.mxu0 0.0
      %5194 = vmatpush1.msra.mxu0 0.0
      %5195 = vmatprep.subr.mxu0 0.0
      %5196 = vmatpush1.msra.mxu0 0.0
      %5197 = vmatprep.subr.mxu0 0.0
      %5198 = vmatpush1.msra.mxu0 0.0
      %5199 = vmatprep.subr.mxu0 0.0
      %5200 = vmatpush1.msra.mxu0 0.0
      %5201 = vmatprep.subr.mxu0 0.0
      %5202 = vmatpush1.msra.mxu0 0.0
      %5203 = vmatprep.subr.mxu0 0.0
      %5204 = vmatpush1.msra.mxu0 0.0
      %5205 = vmatprep.subr.mxu0 0.0
      %5206 = vmatpush1.msra.mxu0 0.0
      %5207 = vmatprep.subr.mxu0 0.0
      %5208 = vmatpush1.msra.mxu0 0.0
      %5209 = vmatprep.subr.mxu0 0.0
      %5210 = vmatpush1.msra.mxu0 0.0
      %5211 = vmatprep.subr.mxu0 0.0
      %5212 = vmatpush1.msra.mxu0 0.0
      %5213 = vmatprep.subr.mxu0 0.0
      %5214 = vmatpush1.msra.mxu0 0.0
      %5215 = vmatprep.subr.mxu0 0.0
      %5216 = vmatpush1.msra.mxu0 0.0
      %5217 = vmatprep.subr.mxu0 0.0
      %5218 = vmatpush1.msra.mxu0 0.0
      %5219 = vmatprep.subr.mxu0 0.0
      %5220 = vmatpush1.msra.mxu0 0.0
      %5221 = vmatprep.subr.mxu0 0.0
      %5222 = vmatpush1.msra.mxu0 0.0
      %5223 = vmatprep.subr.mxu0 0.0
      %5224 = vmatpush1.msra.mxu0 0.0
      %5225 = vmatprep.subr.mxu0 0.0
      %5226 = vmatpush1.msra.mxu0 0.0
      %5227 = vmatprep.subr.mxu0 0.0
      %5228 = vmatpush1.msra.mxu0 0.0
      %5229 = vmatprep.subr.mxu0 0.0
      %5230 = vmatpush1.msra.mxu0 0.0
      %5231 = vmatprep.mubr.f32.mxu0 0.0
      %v5232 = vand.u32 %v4678, 4294901760
      %5233 = vmatmul.mubr.f32.gmra.mrb[0].mxu0 %v5232
      %v5234 = vpop.f32.mrb[0].mxu0
      %v5235 = vadd.f32 %v5121, %v5234
      %v5236 = vpop.f32.mrb[0].mxu0
      %v5237 = vadd.f32 %v5123, %v5236
      %5238 = vdwg.mxu0
      %v5239 = vand.u32 %v4619, 4294901760
      %5240 = vmatprep.subr.mxu0 %v5239
      %v5241 = vand.u32 %v4618, 4294901760
      %5242 = vmatpush1.msra.mxu0 %v5241
      %v5243 = vand.u32 %v4627, 4294901760
      %5244 = vmatprep.subr.mxu0 %v5243
      %v5245 = vand.u32 %v4626, 4294901760
      %5246 = vmatpush1.msra.mxu0 %v5245
      %v5247 = vand.u32 %v4635, 4294901760
      %5248 = vmatprep.subr.mxu0 %v5247
      %v5249 = vand.u32 %v4634, 4294901760
      %5250 = vmatpush1.msra.mxu0 %v5249
      %v5251 = vand.u32 %v4643, 4294901760
      %5252 = vmatprep.subr.mxu0 %v5251
      %v5253 = vand.u32 %v4642, 4294901760
      %5254 = vmatpush1.msra.mxu0 %v5253
      %v5255 = vand.u32 %v4651, 4294901760
      %5256 = vmatprep.subr.mxu0 %v5255
      %v5257 = vand.u32 %v4650, 4294901760
      %5258 = vmatpush1.msra.mxu0 %v5257
      %v5259 = vand.u32 %v4659, 4294901760
      %5260 = vmatprep.subr.mxu0 %v5259
      %v5261 = vand.u32 %v4658, 4294901760
      %5262 = vmatpush1.msra.mxu0 %v5261
      %v5263 = vand.u32 %v4684, 4294901760
      %5264 = vmatprep.subr.mxu0 %v5263
      %v5265 = vand.u32 %v4681, 4294901760
      %5266 = vmatpush1.msra.mxu0 %v5265
      %5267 = vmatprep.subr.mxu0 0.0
      %5268 = vmatpush1.msra.mxu0 0.0
      %5269 = vmatprep.subr.mxu0 0.0
      %5270 = vmatpush1.msra.mxu0 0.0
      %5271 = vmatprep.subr.mxu0 0.0
      %5272 = vmatpush1.msra.mxu0 0.0
      %5273 = vmatprep.subr.mxu0 0.0
      %5274 = vmatpush1.msra.mxu0 0.0
      %5275 = vmatprep.subr.mxu0 0.0
      %5276 = vmatpush1.msra.mxu0 0.0
      %5277 = vmatprep.subr.mxu0 0.0
      %5278 = vmatpush1.msra.mxu0 0.0
      %5279 = vmatprep.subr.mxu0 0.0
      %5280 = vmatpush1.msra.mxu0 0.0
      %5281 = vmatprep.subr.mxu0 0.0
      %5282 = vmatpush1.msra.mxu0 0.0
      %5283 = vmatprep.subr.mxu0 0.0
      %5284 = vmatpush1.msra.mxu0 0.0
      %5285 = vmatprep.subr.mxu0 0.0
      %5286 = vmatpush1.msra.mxu0 0.0
      %5287 = vmatprep.subr.mxu0 0.0
      %5288 = vmatpush1.msra.mxu0 0.0
      %5289 = vmatprep.subr.mxu0 0.0
      %5290 = vmatpush1.msra.mxu0 0.0
      %5291 = vmatprep.subr.mxu0 0.0
      %5292 = vmatpush1.msra.mxu0 0.0
      %5293 = vmatprep.subr.mxu0 0.0
      %5294 = vmatpush1.msra.mxu0 0.0
      %5295 = vmatprep.subr.mxu0 0.0
      %5296 = vmatpush1.msra.mxu0 0.0
      %5297 = vmatprep.subr.mxu0 0.0
      %5298 = vmatpush1.msra.mxu0 0.0
      %5299 = vmatprep.subr.mxu0 0.0
      %5300 = vmatpush1.msra.mxu0 0.0
      %5301 = vmatprep.subr.mxu0 0.0
      %5302 = vmatpush1.msra.mxu0 0.0
      %5303 = vmatprep.subr.mxu0 0.0
      %5304 = vmatpush1.msra.mxu0 0.0
      %5305 = vmatprep.subr.mxu0 0.0
      %5306 = vmatpush1.msra.mxu0 0.0
      %5307 = vmatprep.subr.mxu0 0.0
      %5308 = vmatpush1.msra.mxu0 0.0
      %5309 = vmatprep.subr.mxu0 0.0
      %5310 = vmatpush1.msra.mxu0 0.0
      %5311 = vmatprep.subr.mxu0 0.0
      %5312 = vmatpush1.msra.mxu0 0.0
      %5313 = vmatprep.subr.mxu0 0.0
      %5314 = vmatpush1.msra.mxu0 0.0
      %5315 = vmatprep.subr.mxu0 0.0
      %5316 = vmatpush1.msra.mxu0 0.0
      %5317 = vmatprep.mubr.f32.mxu0 0.0
      %v5318 = vand.u32 %v4678, 4294901760
      %5319 = vmatmul.mubr.f32.gmra.mrb[0].mxu0 %v5318
      %v5320 = vpop.f32.mrb[0].mxu0
      %v5321 = vadd.f32 %v5235, %v5320
      %v5322 = vpop.f32.mrb[0].mxu0
      %v5323 = vadd.f32 %v5237, %v5322
      %5324 = vdwg.mxu0
      %v5325 = vand.u32 %v4621, 4294901760
      %5326 = vmatprep.subr.mxu0 %v5325
      %v5327 = vand.u32 %v4620, 4294901760
      %5328 = vmatpush1.msra.mxu0 %v5327
      %v5329 = vand.u32 %v4629, 4294901760
      %5330 = vmatprep.subr.mxu0 %v5329
      %v5331 = vand.u32 %v4628, 4294901760
      %5332 = vmatpush1.msra.mxu0 %v5331
      %v5333 = vand.u32 %v4637, 4294901760
      %5334 = vmatprep.subr.mxu0 %v5333
      %v5335 = vand.u32 %v4636, 4294901760
      %5336 = vmatpush1.msra.mxu0 %v5335
      %v5337 = vand.u32 %v4645, 4294901760
      %5338 = vmatprep.subr.mxu0 %v5337
      %v5339 = vand.u32 %v4644, 4294901760
      %5340 = vmatpush1.msra.mxu0 %v5339
      %v5341 = vand.u32 %v4653, 4294901760
      %5342 = vmatprep.subr.mxu0 %v5341
      %v5343 = vand.u32 %v4652, 4294901760
      %5344 = vmatpush1.msra.mxu0 %v5343
      %v5345 = vand.u32 %v4661, 4294901760
      %5346 = vmatprep.subr.mxu0 %v5345
      %v5347 = vand.u32 %v4660, 4294901760
      %5348 = vmatpush1.msra.mxu0 %v5347
      %v5349 = vand.u32 %v4690, 4294901760
      %5350 = vmatprep.subr.mxu0 %v5349
      %v5351 = vand.u32 %v4687, 4294901760
      %5352 = vmatpush1.msra.mxu0 %v5351
      %5353 = vmatprep.subr.mxu0 0.0
      %5354 = vmatpush1.msra.mxu0 0.0
      %5355 = vmatprep.subr.mxu0 0.0
      %5356 = vmatpush1.msra.mxu0 0.0
      %5357 = vmatprep.subr.mxu0 0.0
      %5358 = vmatpush1.msra.mxu0 0.0
      %5359 = vmatprep.subr.mxu0 0.0
      %5360 = vmatpush1.msra.mxu0 0.0
      %5361 = vmatprep.subr.mxu0 0.0
      %5362 = vmatpush1.msra.mxu0 0.0
      %5363 = vmatprep.subr.mxu0 0.0
      %5364 = vmatpush1.msra.mxu0 0.0
      %5365 = vmatprep.subr.mxu0 0.0
      %5366 = vmatpush1.msra.mxu0 0.0
      %5367 = vmatprep.subr.mxu0 0.0
      %5368 = vmatpush1.msra.mxu0 0.0
      %5369 = vmatprep.subr.mxu0 0.0
      %5370 = vmatpush1.msra.mxu0 0.0
      %5371 = vmatprep.subr.mxu0 0.0
      %5372 = vmatpush1.msra.mxu0 0.0
      %5373 = vmatprep.subr.mxu0 0.0
      %5374 = vmatpush1.msra.mxu0 0.0
      %5375 = vmatprep.subr.mxu0 0.0
      %5376 = vmatpush1.msra.mxu0 0.0
      %5377 = vmatprep.subr.mxu0 0.0
      %5378 = vmatpush1.msra.mxu0 0.0
      %5379 = vmatprep.subr.mxu0 0.0
      %5380 = vmatpush1.msra.mxu0 0.0
      %5381 = vmatprep.subr.mxu0 0.0
      %5382 = vmatpush1.msra.mxu0 0.0
      %5383 = vmatprep.subr.mxu0 0.0
      %5384 = vmatpush1.msra.mxu0 0.0
      %5385 = vmatprep.subr.mxu0 0.0
      %5386 = vmatpush1.msra.mxu0 0.0
      %5387 = vmatprep.subr.mxu0 0.0
      %5388 = vmatpush1.msra.mxu0 0.0
      %5389 = vmatprep.subr.mxu0 0.0
      %5390 = vmatpush1.msra.mxu0 0.0
      %5391 = vmatprep.subr.mxu0 0.0
      %5392 = vmatpush1.msra.mxu0 0.0
      %5393 = vmatprep.subr.mxu0 0.0
      %5394 = vmatpush1.msra.mxu0 0.0
      %5395 = vmatprep.subr.mxu0 0.0
      %5396 = vmatpush1.msra.mxu0 0.0
      %5397 = vmatprep.subr.mxu0 0.0
      %5398 = vmatpush1.msra.mxu0 0.0
      %5399 = vmatprep.subr.mxu0 0.0
      %5400 = vmatpush1.msra.mxu0 0.0
      %5401 = vmatprep.subr.mxu0 0.0
      %5402 = vmatpush1.msra.mxu0 0.0
      %5403 = vmatprep.mubr.f32.mxu0 0.0
      %v5404 = vand.u32 %v4678, 4294901760
      %v5405 = vsub.f32 %v4678, %v5404
      %v5406 = vand.u32 %v5405, 4294901760
      %v5407 = vsub.f32 %v5405, %v5406
      %v5408 = vand.u32 %v5407, 4294901760
      %5409 = vmatmul.mubr.f32.gmra.mrb[0].mxu0 %v5408
      %v5410 = vpop.f32.mrb[0].mxu0
      %v5411 = vadd.f32 %v4676, %v5410
      %v5412 = vpop.f32.mrb[0].mxu0
      %v5413 = vadd.f32 %v4676, %v5412
      %5414 = vdwg.mxu0
      %v5415 = vand.u32 %v4621, 4294901760
      %v5416 = vsub.f32 %v4621, %v5415
      %v5417 = vand.u32 %v5416, 4294901760
      %v5418 = vsub.f32 %v5416, %v5417
      %v5419 = vand.u32 %v5418, 4294901760
      %5420 = vmatprep.subr.mxu0 %v5419
      %v5421 = vand.u32 %v4620, 4294901760
      %v5422 = vsub.f32 %v4620, %v5421
      %v5423 = vand.u32 %v5422, 4294901760
      %v5424 = vsub.f32 %v5422, %v5423
      %v5425 = vand.u32 %v5424, 4294901760
      %5426 = vmatpush1.msra.mxu0 %v5425
      %v5427 = vand.u32 %v4629, 4294901760
      %v5428 = vsub.f32 %v4629, %v5427
      %v5429 = vand.u32 %v5428, 4294901760
      %v5430 = vsub.f32 %v5428, %v5429
      %v5431 = vand.u32 %v5430, 4294901760
      %5432 = vmatprep.subr.mxu0 %v5431
      %v5433 = vand.u32 %v4628, 4294901760
      %v5434 = vsub.f32 %v4628, %v5433
      %v5435 = vand.u32 %v5434, 4294901760
      %v5436 = vsub.f32 %v5434, %v5435
      %v5437 = vand.u32 %v5436, 4294901760
      %5438 = vmatpush1.msra.mxu0 %v5437
      %v5439 = vand.u32 %v4637, 4294901760
      %v5440 = vsub.f32 %v4637, %v5439
      %v5441 = vand.u32 %v5440, 4294901760
      %v5442 = vsub.f32 %v5440, %v5441
      %v5443 = vand.u32 %v5442, 4294901760
      %5444 = vmatprep.subr.mxu0 %v5443
      %v5445 = vand.u32 %v4636, 4294901760
      %v5446 = vsub.f32 %v4636, %v5445
      %v5447 = vand.u32 %v5446, 4294901760
      %v5448 = vsub.f32 %v5446, %v5447
      %v5449 = vand.u32 %v5448, 4294901760
      %5450 = vmatpush1.msra.mxu0 %v5449
      %v5451 = vand.u32 %v4645, 4294901760
      %v5452 = vsub.f32 %v4645, %v5451
      %v5453 = vand.u32 %v5452, 4294901760
      %v5454 = vsub.f32 %v5452, %v5453
      %v5455 = vand.u32 %v5454, 4294901760
      %5456 = vmatprep.subr.mxu0 %v5455
      %v5457 = vand.u32 %v4644, 4294901760
      %v5458 = vsub.f32 %v4644, %v5457
      %v5459 = vand.u32 %v5458, 4294901760
      %v5460 = vsub.f32 %v5458, %v5459
      %v5461 = vand.u32 %v5460, 4294901760
      %5462 = vmatpush1.msra.mxu0 %v5461
      %v5463 = vand.u32 %v4653, 4294901760
      %v5464 = vsub.f32 %v4653, %v5463
      %v5465 = vand.u32 %v5464, 4294901760
      %v5466 = vsub.f32 %v5464, %v5465
      %v5467 = vand.u32 %v5466, 4294901760
      %5468 = vmatprep.subr.mxu0 %v5467
      %v5469 = vand.u32 %v4652, 4294901760
      %v5470 = vsub.f32 %v4652, %v5469
      %v5471 = vand.u32 %v5470, 4294901760
      %v5472 = vsub.f32 %v5470, %v5471
      %v5473 = vand.u32 %v5472, 4294901760
      %5474 = vmatpush1.msra.mxu0 %v5473
      %v5475 = vand.u32 %v4661, 4294901760
      %v5476 = vsub.f32 %v4661, %v5475
      %v5477 = vand.u32 %v5476, 4294901760
      %v5478 = vsub.f32 %v5476, %v5477
      %v5479 = vand.u32 %v5478, 4294901760
      %5480 = vmatprep.subr.mxu0 %v5479
      %v5481 = vand.u32 %v4660, 4294901760
      %v5482 = vsub.f32 %v4660, %v5481
      %v5483 = vand.u32 %v5482, 4294901760
      %v5484 = vsub.f32 %v5482, %v5483
      %v5485 = vand.u32 %v5484, 4294901760
      %5486 = vmatpush1.msra.mxu0 %v5485
      %v5487 = vand.u32 %v4690, 4294901760
      %v5488 = vsub.f32 %v4690, %v5487
      %v5489 = vand.u32 %v5488, 4294901760
      %v5490 = vsub.f32 %v5488, %v5489
      %v5491 = vand.u32 %v5490, 4294901760
      %5492 = vmatprep.subr.mxu0 %v5491
      %v5493 = vand.u32 %v4687, 4294901760
      %v5494 = vsub.f32 %v4687, %v5493
      %v5495 = vand.u32 %v5494, 4294901760
      %v5496 = vsub.f32 %v5494, %v5495
      %v5497 = vand.u32 %v5496, 4294901760
      %5498 = vmatpush1.msra.mxu0 %v5497
      %5499 = vmatprep.subr.mxu0 0.0
      %5500 = vmatpush1.msra.mxu0 0.0
      %5501 = vmatprep.subr.mxu0 0.0
      %5502 = vmatpush1.msra.mxu0 0.0
      %5503 = vmatprep.subr.mxu0 0.0
      %5504 = vmatpush1.msra.mxu0 0.0
      %5505 = vmatprep.subr.mxu0 0.0
      %5506 = vmatpush1.msra.mxu0 0.0
      %5507 = vmatprep.subr.mxu0 0.0
      %5508 = vmatpush1.msra.mxu0 0.0
      %5509 = vmatprep.subr.mxu0 0.0
      %5510 = vmatpush1.msra.mxu0 0.0
      %5511 = vmatprep.subr.mxu0 0.0
      %5512 = vmatpush1.msra.mxu0 0.0
      %5513 = vmatprep.subr.mxu0 0.0
      %5514 = vmatpush1.msra.mxu0 0.0
      %5515 = vmatprep.subr.mxu0 0.0
      %5516 = vmatpush1.msra.mxu0 0.0
      %5517 = vmatprep.subr.mxu0 0.0
      %5518 = vmatpush1.msra.mxu0 0.0
      %5519 = vmatprep.subr.mxu0 0.0
      %5520 = vmatpush1.msra.mxu0 0.0
      %5521 = vmatprep.subr.mxu0 0.0
      %5522 = vmatpush1.msra.mxu0 0.0
      %5523 = vmatprep.subr.mxu0 0.0
      %5524 = vmatpush1.msra.mxu0 0.0
      %5525 = vmatprep.subr.mxu0 0.0
      %5526 = vmatpush1.msra.mxu0 0.0
      %5527 = vmatprep.subr.mxu0 0.0
      %5528 = vmatpush1.msra.mxu0 0.0
      %5529 = vmatprep.subr.mxu0 0.0
      %5530 = vmatpush1.msra.mxu0 0.0
      %5531 = vmatprep.subr.mxu0 0.0
      %5532 = vmatpush1.msra.mxu0 0.0
      %5533 = vmatprep.subr.mxu0 0.0
      %5534 = vmatpush1.msra.mxu0 0.0
      %5535 = vmatprep.subr.mxu0 0.0
      %5536 = vmatpush1.msra.mxu0 0.0
      %5537 = vmatprep.subr.mxu0 0.0
      %5538 = vmatpush1.msra.mxu0 0.0
      %5539 = vmatprep.subr.mxu0 0.0
      %5540 = vmatpush1.msra.mxu0 0.0
      %5541 = vmatprep.subr.mxu0 0.0
      %5542 = vmatpush1.msra.mxu0 0.0
      %5543 = vmatprep.subr.mxu0 0.0
      %5544 = vmatpush1.msra.mxu0 0.0
      %5545 = vmatprep.subr.mxu0 0.0
      %5546 = vmatpush1.msra.mxu0 0.0
      %5547 = vmatprep.subr.mxu0 0.0
      %5548 = vmatpush1.msra.mxu0 0.0
      %5549 = vmatprep.mubr.f32.mxu0 0.0
      %v5550 = vand.u32 %v4678, 4294901760
      %5551 = vmatmul.mubr.f32.gmra.mrb[0].mxu0 %v5550
      %v5552 = vpop.f32.mrb[0].mxu0
      %v5553 = vadd.f32 %v5411, %v5552
      %v5554 = vpop.f32.mrb[0].mxu0
      %v5555 = vadd.f32 %v5413, %v5554
      %5556 = vdwg.mxu0
      %v5557 = vand.u32 %v4621, 4294901760
      %v5558 = vsub.f32 %v4621, %v5557
      %5559 = vmatprep.subr.mxu0 %v5558
      %v5560 = vand.u32 %v4620, 4294901760
      %v5561 = vsub.f32 %v4620, %v5560
      %5562 = vmatpush1.msra.mxu0 %v5561
      %v5563 = vand.u32 %v4629, 4294901760
      %v5564 = vsub.f32 %v4629, %v5563
      %5565 = vmatprep.subr.mxu0 %v5564
      %v5566 = vand.u32 %v4628, 4294901760
      %v5567 = vsub.f32 %v4628, %v5566
      %5568 = vmatpush1.msra.mxu0 %v5567
      %v5569 = vand.u32 %v4637, 4294901760
      %v5570 = vsub.f32 %v4637, %v5569
      %5571 = vmatprep.subr.mxu0 %v5570
      %v5572 = vand.u32 %v4636, 4294901760
      %v5573 = vsub.f32 %v4636, %v5572
      %5574 = vmatpush1.msra.mxu0 %v5573
      %v5575 = vand.u32 %v4645, 4294901760
      %v5576 = vsub.f32 %v4645, %v5575
      %5577 = vmatprep.subr.mxu0 %v5576
      %v5578 = vand.u32 %v4644, 4294901760
      %v5579 = vsub.f32 %v4644, %v5578
      %5580 = vmatpush1.msra.mxu0 %v5579
      %v5581 = vand.u32 %v4653, 4294901760
      %v5582 = vsub.f32 %v4653, %v5581
      %5583 = vmatprep.subr.mxu0 %v5582
      %v5584 = vand.u32 %v4652, 4294901760
      %v5585 = vsub.f32 %v4652, %v5584
      %5586 = vmatpush1.msra.mxu0 %v5585
      %v5587 = vand.u32 %v4661, 4294901760
      %v5588 = vsub.f32 %v4661, %v5587
      %5589 = vmatprep.subr.mxu0 %v5588
      %v5590 = vand.u32 %v4660, 4294901760
      %v5591 = vsub.f32 %v4660, %v5590
      %5592 = vmatpush1.msra.mxu0 %v5591
      %v5593 = vand.u32 %v4690, 4294901760
      %v5594 = vsub.f32 %v4690, %v5593
      %5595 = vmatprep.subr.mxu0 %v5594
      %v5596 = vand.u32 %v4687, 4294901760
      %v5597 = vsub.f32 %v4687, %v5596
      %5598 = vmatpush1.msra.mxu0 %v5597
      %5599 = vmatprep.subr.mxu0 0.0
      %5600 = vmatpush1.msra.mxu0 0.0
      %5601 = vmatprep.subr.mxu0 0.0
      %5602 = vmatpush1.msra.mxu0 0.0
      %5603 = vmatprep.subr.mxu0 0.0
      %5604 = vmatpush1.msra.mxu0 0.0
      %5605 = vmatprep.subr.mxu0 0.0
      %5606 = vmatpush1.msra.mxu0 0.0
      %5607 = vmatprep.subr.mxu0 0.0
      %5608 = vmatpush1.msra.mxu0 0.0
      %5609 = vmatprep.subr.mxu0 0.0
      %5610 = vmatpush1.msra.mxu0 0.0
      %5611 = vmatprep.subr.mxu0 0.0
      %5612 = vmatpush1.msra.mxu0 0.0
      %5613 = vmatprep.subr.mxu0 0.0
      %5614 = vmatpush1.msra.mxu0 0.0
      %5615 = vmatprep.subr.mxu0 0.0
      %5616 = vmatpush1.msra.mxu0 0.0
      %5617 = vmatprep.subr.mxu0 0.0
      %5618 = vmatpush1.msra.mxu0 0.0
      %5619 = vmatprep.subr.mxu0 0.0
      %5620 = vmatpush1.msra.mxu0 0.0
      %5621 = vmatprep.subr.mxu0 0.0
      %5622 = vmatpush1.msra.mxu0 0.0
      %5623 = vmatprep.subr.mxu0 0.0
      %5624 = vmatpush1.msra.mxu0 0.0
      %5625 = vmatprep.subr.mxu0 0.0
      %5626 = vmatpush1.msra.mxu0 0.0
      %5627 = vmatprep.subr.mxu0 0.0
      %5628 = vmatpush1.msra.mxu0 0.0
      %5629 = vmatprep.subr.mxu0 0.0
      %5630 = vmatpush1.msra.mxu0 0.0
      %5631 = vmatprep.subr.mxu0 0.0
      %5632 = vmatpush1.msra.mxu0 0.0
      %5633 = vmatprep.subr.mxu0 0.0
      %5634 = vmatpush1.msra.mxu0 0.0
      %5635 = vmatprep.subr.mxu0 0.0
      %5636 = vmatpush1.msra.mxu0 0.0
      %5637 = vmatprep.subr.mxu0 0.0
      %5638 = vmatpush1.msra.mxu0 0.0
      %5639 = vmatprep.subr.mxu0 0.0
      %5640 = vmatpush1.msra.mxu0 0.0
      %5641 = vmatprep.subr.mxu0 0.0
      %5642 = vmatpush1.msra.mxu0 0.0
      %5643 = vmatprep.subr.mxu0 0.0
      %5644 = vmatpush1.msra.mxu0 0.0
      %5645 = vmatprep.subr.mxu0 0.0
      %5646 = vmatpush1.msra.mxu0 0.0
      %5647 = vmatprep.subr.mxu0 0.0
      %5648 = vmatpush1.msra.mxu0 0.0
      %5649 = vmatprep.mubr.f32.mxu0 0.0
      %v5650 = vand.u32 %v4678, 4294901760
      %v5651 = vsub.f32 %v4678, %v5650
      %5652 = vmatmul.mubr.f32.gmra.mrb[0].mxu0 %v5651
      %v5653 = vpop.f32.mrb[0].mxu0
      %v5654 = vadd.f32 %v5553, %v5653
      %v5655 = vpop.f32.mrb[0].mxu0
      %v5656 = vadd.f32 %v5555, %v5655
      %5657 = vdwg.mxu0
      %v5658 = vand.u32 %v4621, 4294901760
      %5659 = vmatprep.subr.mxu0 %v5658
      %v5660 = vand.u32 %v4620, 4294901760
      %5661 = vmatpush1.msra.mxu0 %v5660
      %v5662 = vand.u32 %v4629, 4294901760
      %5663 = vmatprep.subr.mxu0 %v5662
      %v5664 = vand.u32 %v4628, 4294901760
      %5665 = vmatpush1.msra.mxu0 %v5664
      %v5666 = vand.u32 %v4637, 4294901760
      %5667 = vmatprep.subr.mxu0 %v5666
      %v5668 = vand.u32 %v4636, 4294901760
      %5669 = vmatpush1.msra.mxu0 %v5668
      %v5670 = vand.u32 %v4645, 4294901760
      %5671 = vmatprep.subr.mxu0 %v5670
      %v5672 = vand.u32 %v4644, 4294901760
      %5673 = vmatpush1.msra.mxu0 %v5672
      %v5674 = vand.u32 %v4653, 4294901760
      %5675 = vmatprep.subr.mxu0 %v5674
      %v5676 = vand.u32 %v4652, 4294901760
      %5677 = vmatpush1.msra.mxu0 %v5676
      %v5678 = vand.u32 %v4661, 4294901760
      %5679 = vmatprep.subr.mxu0 %v5678
      %v5680 = vand.u32 %v4660, 4294901760
      %5681 = vmatpush1.msra.mxu0 %v5680
      %v5682 = vand.u32 %v4690, 4294901760
      %5683 = vmatprep.subr.mxu0 %v5682
      %v5684 = vand.u32 %v4687, 4294901760
      %5685 = vmatpush1.msra.mxu0 %v5684
      %5686 = vmatprep.subr.mxu0 0.0
      %5687 = vmatpush1.msra.mxu0 0.0
      %5688 = vmatprep.subr.mxu0 0.0
      %5689 = vmatpush1.msra.mxu0 0.0
      %5690 = vmatprep.subr.mxu0 0.0
      %5691 = vmatpush1.msra.mxu0 0.0
      %5692 = vmatprep.subr.mxu0 0.0
      %5693 = vmatpush1.msra.mxu0 0.0
      %5694 = vmatprep.subr.mxu0 0.0
      %5695 = vmatpush1.msra.mxu0 0.0
      %5696 = vmatprep.subr.mxu0 0.0
      %5697 = vmatpush1.msra.mxu0 0.0
      %5698 = vmatprep.subr.mxu0 0.0
      %5699 = vmatpush1.msra.mxu0 0.0
      %5700 = vmatprep.subr.mxu0 0.0
      %5701 = vmatpush1.msra.mxu0 0.0
      %5702 = vmatprep.subr.mxu0 0.0
      %5703 = vmatpush1.msra.mxu0 0.0
      %5704 = vmatprep.subr.mxu0 0.0
      %5705 = vmatpush1.msra.mxu0 0.0
      %5706 = vmatprep.subr.mxu0 0.0
      %5707 = vmatpush1.msra.mxu0 0.0
      %5708 = vmatprep.subr.mxu0 0.0
      %5709 = vmatpush1.msra.mxu0 0.0
      %5710 = vmatprep.subr.mxu0 0.0
      %5711 = vmatpush1.msra.mxu0 0.0
      %5712 = vmatprep.subr.mxu0 0.0
      %5713 = vmatpush1.msra.mxu0 0.0
      %5714 = vmatprep.subr.mxu0 0.0
      %5715 = vmatpush1.msra.mxu0 0.0
      %5716 = vmatprep.subr.mxu0 0.0
      %5717 = vmatpush1.msra.mxu0 0.0
      %5718 = vmatprep.subr.mxu0 0.0
      %5719 = vmatpush1.msra.mxu0 0.0
      %5720 = vmatprep.subr.mxu0 0.0
      %5721 = vmatpush1.msra.mxu0 0.0
      %5722 = vmatprep.subr.mxu0 0.0
      %5723 = vmatpush1.msra.mxu0 0.0
      %5724 = vmatprep.subr.mxu0 0.0
      %5725 = vmatpush1.msra.mxu0 0.0
      %5726 = vmatprep.subr.mxu0 0.0
      %5727 = vmatpush1.msra.mxu0 0.0
      %5728 = vmatprep.subr.mxu0 0.0
      %5729 = vmatpush1.msra.mxu0 0.0
      %5730 = vmatprep.subr.mxu0 0.0
      %5731 = vmatpush1.msra.mxu0 0.0
      %5732 = vmatprep.subr.mxu0 0.0
      %5733 = vmatpush1.msra.mxu0 0.0
      %5734 = vmatprep.subr.mxu0 0.0
      %5735 = vmatpush1.msra.mxu0 0.0
      %5736 = vmatprep.mubr.f32.mxu0 0.0
      %v5737 = vand.u32 %v4678, 4294901760
      %v5738 = vsub.f32 %v4678, %v5737
      %v5739 = vand.u32 %v5738, 4294901760
      %5740 = vmatmul.mubr.f32.gmra.mrb[0].mxu0 %v5739
      %v5741 = vpop.f32.mrb[0].mxu0
      %v5742 = vadd.f32 %v5654, %v5741
      %v5743 = vpop.f32.mrb[0].mxu0
      %v5744 = vadd.f32 %v5656, %v5743
      %5745 = vdwg.mxu0
      %v5746 = vand.u32 %v4621, 4294901760
      %v5747 = vsub.f32 %v4621, %v5746
      %v5748 = vand.u32 %v5747, 4294901760
      %5749 = vmatprep.subr.mxu0 %v5748
      %v5750 = vand.u32 %v4620, 4294901760
      %v5751 = vsub.f32 %v4620, %v5750
      %v5752 = vand.u32 %v5751, 4294901760
      %5753 = vmatpush1.msra.mxu0 %v5752
      %v5754 = vand.u32 %v4629, 4294901760
      %v5755 = vsub.f32 %v4629, %v5754
      %v5756 = vand.u32 %v5755, 4294901760
      %5757 = vmatprep.subr.mxu0 %v5756
      %v5758 = vand.u32 %v4628, 4294901760
      %v5759 = vsub.f32 %v4628, %v5758
      %v5760 = vand.u32 %v5759, 4294901760
      %5761 = vmatpush1.msra.mxu0 %v5760
      %v5762 = vand.u32 %v4637, 4294901760
      %v5763 = vsub.f32 %v4637, %v5762
      %v5764 = vand.u32 %v5763, 4294901760
      %5765 = vmatprep.subr.mxu0 %v5764
      %v5766 = vand.u32 %v4636, 4294901760
      %v5767 = vsub.f32 %v4636, %v5766
      %v5768 = vand.u32 %v5767, 4294901760
      %5769 = vmatpush1.msra.mxu0 %v5768
      %v5770 = vand.u32 %v4645, 4294901760
      %v5771 = vsub.f32 %v4645, %v5770
      %v5772 = vand.u32 %v5771, 4294901760
      %5773 = vmatprep.subr.mxu0 %v5772
      %v5774 = vand.u32 %v4644, 4294901760
      %v5775 = vsub.f32 %v4644, %v5774
      %v5776 = vand.u32 %v5775, 4294901760
      %5777 = vmatpush1.msra.mxu0 %v5776
      %v5778 = vand.u32 %v4653, 4294901760
      %v5779 = vsub.f32 %v4653, %v5778
      %v5780 = vand.u32 %v5779, 4294901760
      %5781 = vmatprep.subr.mxu0 %v5780
      %v5782 = vand.u32 %v4652, 4294901760
      %v5783 = vsub.f32 %v4652, %v5782
      %v5784 = vand.u32 %v5783, 4294901760
      %5785 = vmatpush1.msra.mxu0 %v5784
      %v5786 = vand.u32 %v4661, 4294901760
      %v5787 = vsub.f32 %v4661, %v5786
      %v5788 = vand.u32 %v5787, 4294901760
      %5789 = vmatprep.subr.mxu0 %v5788
      %v5790 = vand.u32 %v4660, 4294901760
      %v5791 = vsub.f32 %v4660, %v5790
      %v5792 = vand.u32 %v5791, 4294901760
      %5793 = vmatpush1.msra.mxu0 %v5792
      %v5794 = vand.u32 %v4690, 4294901760
      %v5795 = vsub.f32 %v4690, %v5794
      %v5796 = vand.u32 %v5795, 4294901760
      %5797 = vmatprep.subr.mxu0 %v5796
      %v5798 = vand.u32 %v4687, 4294901760
      %v5799 = vsub.f32 %v4687, %v5798
      %v5800 = vand.u32 %v5799, 4294901760
      %5801 = vmatpush1.msra.mxu0 %v5800
      %5802 = vmatprep.subr.mxu0 0.0
      %5803 = vmatpush1.msra.mxu0 0.0
      %5804 = vmatprep.subr.mxu0 0.0
      %5805 = vmatpush1.msra.mxu0 0.0
      %5806 = vmatprep.subr.mxu0 0.0
      %5807 = vmatpush1.msra.mxu0 0.0
      %5808 = vmatprep.subr.mxu0 0.0
      %5809 = vmatpush1.msra.mxu0 0.0
      %5810 = vmatprep.subr.mxu0 0.0
      %5811 = vmatpush1.msra.mxu0 0.0
      %5812 = vmatprep.subr.mxu0 0.0
      %5813 = vmatpush1.msra.mxu0 0.0
      %5814 = vmatprep.subr.mxu0 0.0
      %5815 = vmatpush1.msra.mxu0 0.0
      %5816 = vmatprep.subr.mxu0 0.0
      %5817 = vmatpush1.msra.mxu0 0.0
      %5818 = vmatprep.subr.mxu0 0.0
      %5819 = vmatpush1.msra.mxu0 0.0
      %5820 = vmatprep.subr.mxu0 0.0
      %5821 = vmatpush1.msra.mxu0 0.0
      %5822 = vmatprep.subr.mxu0 0.0
      %5823 = vmatpush1.msra.mxu0 0.0
      %5824 = vmatprep.subr.mxu0 0.0
      %5825 = vmatpush1.msra.mxu0 0.0
      %5826 = vmatprep.subr.mxu0 0.0
      %5827 = vmatpush1.msra.mxu0 0.0
      %5828 = vmatprep.subr.mxu0 0.0
      %5829 = vmatpush1.msra.mxu0 0.0
      %5830 = vmatprep.subr.mxu0 0.0
      %5831 = vmatpush1.msra.mxu0 0.0
      %5832 = vmatprep.subr.mxu0 0.0
      %5833 = vmatpush1.msra.mxu0 0.0
      %5834 = vmatprep.subr.mxu0 0.0
      %5835 = vmatpush1.msra.mxu0 0.0
      %5836 = vmatprep.subr.mxu0 0.0
      %5837 = vmatpush1.msra.mxu0 0.0
      %5838 = vmatprep.subr.mxu0 0.0
      %5839 = vmatpush1.msra.mxu0 0.0
      %5840 = vmatprep.subr.mxu0 0.0
      %5841 = vmatpush1.msra.mxu0 0.0
      %5842 = vmatprep.subr.mxu0 0.0
      %5843 = vmatpush1.msra.mxu0 0.0
      %5844 = vmatprep.subr.mxu0 0.0
      %5845 = vmatpush1.msra.mxu0 0.0
      %5846 = vmatprep.subr.mxu0 0.0
      %5847 = vmatpush1.msra.mxu0 0.0
      %5848 = vmatprep.subr.mxu0 0.0
      %5849 = vmatpush1.msra.mxu0 0.0
      %5850 = vmatprep.subr.mxu0 0.0
      %5851 = vmatpush1.msra.mxu0 0.0
      %5852 = vmatprep.mubr.f32.mxu0 0.0
      %v5853 = vand.u32 %v4678, 4294901760
      %5854 = vmatmul.mubr.f32.gmra.mrb[0].mxu0 %v5853
      %v5855 = vpop.f32.mrb[0].mxu0
      %v5856 = vadd.f32 %v5742, %v5855
      %v5857 = vpop.f32.mrb[0].mxu0
      %v5858 = vadd.f32 %v5744, %v5857
      %5859 = vdwg.mxu0
      %v5860 = vand.u32 %v4621, 4294901760
      %5861 = vmatprep.subr.mxu0 %v5860
      %v5862 = vand.u32 %v4620, 4294901760
      %5863 = vmatpush1.msra.mxu0 %v5862
      %v5864 = vand.u32 %v4629, 4294901760
      %5865 = vmatprep.subr.mxu0 %v5864
      %v5866 = vand.u32 %v4628, 4294901760
      %5867 = vmatpush1.msra.mxu0 %v5866
      %v5868 = vand.u32 %v4637, 4294901760
      %5869 = vmatprep.subr.mxu0 %v5868
      %v5870 = vand.u32 %v4636, 4294901760
      %5871 = vmatpush1.msra.mxu0 %v5870
      %v5872 = vand.u32 %v4645, 4294901760
      %5873 = vmatprep.subr.mxu0 %v5872
      %v5874 = vand.u32 %v4644, 4294901760
      %5875 = vmatpush1.msra.mxu0 %v5874
      %v5876 = vand.u32 %v4653, 4294901760
      %5877 = vmatprep.subr.mxu0 %v5876
      %v5878 = vand.u32 %v4652, 4294901760
      %5879 = vmatpush1.msra.mxu0 %v5878
      %v5880 = vand.u32 %v4661, 4294901760
      %5881 = vmatprep.subr.mxu0 %v5880
      %v5882 = vand.u32 %v4660, 4294901760
      %5883 = vmatpush1.msra.mxu0 %v5882
      %v5884 = vand.u32 %v4690, 4294901760
      %5885 = vmatprep.subr.mxu0 %v5884
      %v5886 = vand.u32 %v4687, 4294901760
      %5887 = vmatpush1.msra.mxu0 %v5886
      %5888 = vmatprep.subr.mxu0 0.0
      %5889 = vmatpush1.msra.mxu0 0.0
      %5890 = vmatprep.subr.mxu0 0.0
      %5891 = vmatpush1.msra.mxu0 0.0
      %5892 = vmatprep.subr.mxu0 0.0
      %5893 = vmatpush1.msra.mxu0 0.0
      %5894 = vmatprep.subr.mxu0 0.0
      %5895 = vmatpush1.msra.mxu0 0.0
      %5896 = vmatprep.subr.mxu0 0.0
      %5897 = vmatpush1.msra.mxu0 0.0
      %5898 = vmatprep.subr.mxu0 0.0
      %5899 = vmatpush1.msra.mxu0 0.0
      %5900 = vmatprep.subr.mxu0 0.0
      %5901 = vmatpush1.msra.mxu0 0.0
      %5902 = vmatprep.subr.mxu0 0.0
      %5903 = vmatpush1.msra.mxu0 0.0
      %5904 = vmatprep.subr.mxu0 0.0
      %5905 = vmatpush1.msra.mxu0 0.0
      %5906 = vmatprep.subr.mxu0 0.0
      %5907 = vmatpush1.msra.mxu0 0.0
      %5908 = vmatprep.subr.mxu0 0.0
      %5909 = vmatpush1.msra.mxu0 0.0
      %5910 = vmatprep.subr.mxu0 0.0
      %5911 = vmatpush1.msra.mxu0 0.0
      %5912 = vmatprep.subr.mxu0 0.0
      %5913 = vmatpush1.msra.mxu0 0.0
      %5914 = vmatprep.subr.mxu0 0.0
      %5915 = vmatpush1.msra.mxu0 0.0
      %5916 = vmatprep.subr.mxu0 0.0
      %5917 = vmatpush1.msra.mxu0 0.0
      %5918 = vmatprep.subr.mxu0 0.0
      %5919 = vmatpush1.msra.mxu0 0.0
      %5920 = vmatprep.subr.mxu0 0.0
      %5921 = vmatpush1.msra.mxu0 0.0
      %5922 = vmatprep.subr.mxu0 0.0
      %5923 = vmatpush1.msra.mxu0 0.0
      %5924 = vmatprep.subr.mxu0 0.0
      %5925 = vmatpush1.msra.mxu0 0.0
      %5926 = vmatprep.subr.mxu0 0.0
      %5927 = vmatpush1.msra.mxu0 0.0
      %5928 = vmatprep.subr.mxu0 0.0
      %5929 = vmatpush1.msra.mxu0 0.0
      %5930 = vmatprep.subr.mxu0 0.0
      %5931 = vmatpush1.msra.mxu0 0.0
      %5932 = vmatprep.subr.mxu0 0.0
      %5933 = vmatpush1.msra.mxu0 0.0
      %5934 = vmatprep.subr.mxu0 0.0
      %5935 = vmatpush1.msra.mxu0 0.0
      %5936 = vmatprep.subr.mxu0 0.0
      %5937 = vmatpush1.msra.mxu0 0.0
      %5938 = vmatprep.mubr.f32.mxu0 0.0
      %v5939 = vand.u32 %v4678, 4294901760
      %5940 = vmatmul.mubr.f32.gmra.mrb[0].mxu0 %v5939
      %v5941 = vpop.f32.mrb[0].mxu0
      %v5942 = vadd.f32 %v5856, %v5941
      %v5943 = vpop.f32.mrb[0].mxu0
      %v5944 = vadd.f32 %v5858, %v5943
      %5945 = vdwg.mxu0
      %v5946 = vand.u32 %v4623, 4294901760
      %5947 = vmatprep.subr.mxu0 %v5946
      %v5948 = vand.u32 %v4622, 4294901760
      %5949 = vmatpush1.msra.mxu0 %v5948
      %v5950 = vand.u32 %v4631, 4294901760
      %5951 = vmatprep.subr.mxu0 %v5950
      %v5952 = vand.u32 %v4630, 4294901760
      %5953 = vmatpush1.msra.mxu0 %v5952
      %v5954 = vand.u32 %v4639, 4294901760
      %5955 = vmatprep.subr.mxu0 %v5954
      %v5956 = vand.u32 %v4638, 4294901760
      %5957 = vmatpush1.msra.mxu0 %v5956
      %v5958 = vand.u32 %v4647, 4294901760
      %5959 = vmatprep.subr.mxu0 %v5958
      %v5960 = vand.u32 %v4646, 4294901760
      %5961 = vmatpush1.msra.mxu0 %v5960
      %v5962 = vand.u32 %v4655, 4294901760
      %5963 = vmatprep.subr.mxu0 %v5962
      %v5964 = vand.u32 %v4654, 4294901760
      %5965 = vmatpush1.msra.mxu0 %v5964
      %v5966 = vand.u32 %v4663, 4294901760
      %5967 = vmatprep.subr.mxu0 %v5966
      %v5968 = vand.u32 %v4662, 4294901760
      %5969 = vmatpush1.msra.mxu0 %v5968
      %v5970 = vand.u32 %v4696, 4294901760
      %5971 = vmatprep.subr.mxu0 %v5970
      %v5972 = vand.u32 %v4693, 4294901760
      %5973 = vmatpush1.msra.mxu0 %v5972
      %5974 = vmatprep.subr.mxu0 0.0
      %5975 = vmatpush1.msra.mxu0 0.0
      %5976 = vmatprep.subr.mxu0 0.0
      %5977 = vmatpush1.msra.mxu0 0.0
      %5978 = vmatprep.subr.mxu0 0.0
      %5979 = vmatpush1.msra.mxu0 0.0
      %5980 = vmatprep.subr.mxu0 0.0
      %5981 = vmatpush1.msra.mxu0 0.0
      %5982 = vmatprep.subr.mxu0 0.0
      %5983 = vmatpush1.msra.mxu0 0.0
      %5984 = vmatprep.subr.mxu0 0.0
      %5985 = vmatpush1.msra.mxu0 0.0
      %5986 = vmatprep.subr.mxu0 0.0
      %5987 = vmatpush1.msra.mxu0 0.0
      %5988 = vmatprep.subr.mxu0 0.0
      %5989 = vmatpush1.msra.mxu0 0.0
      %5990 = vmatprep.subr.mxu0 0.0
      %5991 = vmatpush1.msra.mxu0 0.0
      %5992 = vmatprep.subr.mxu0 0.0
      %5993 = vmatpush1.msra.mxu0 0.0
      %5994 = vmatprep.subr.mxu0 0.0
      %5995 = vmatpush1.msra.mxu0 0.0
      %5996 = vmatprep.subr.mxu0 0.0
      %5997 = vmatpush1.msra.mxu0 0.0
      %5998 = vmatprep.subr.mxu0 0.0
      %5999 = vmatpush1.msra.mxu0 0.0
      %6000 = vmatprep.subr.mxu0 0.0
      %6001 = vmatpush1.msra.mxu0 0.0
      %6002 = vmatprep.subr.mxu0 0.0
      %6003 = vmatpush1.msra.mxu0 0.0
      %6004 = vmatprep.subr.mxu0 0.0
      %6005 = vmatpush1.msra.mxu0 0.0
      %6006 = vmatprep.subr.mxu0 0.0
      %6007 = vmatpush1.msra.mxu0 0.0
      %6008 = vmatprep.subr.mxu0 0.0
      %6009 = vmatpush1.msra.mxu0 0.0
      %6010 = vmatprep.subr.mxu0 0.0
      %6011 = vmatpush1.msra.mxu0 0.0
      %6012 = vmatprep.subr.mxu0 0.0
      %6013 = vmatpush1.msra.mxu0 0.0
      %6014 = vmatprep.subr.mxu0 0.0
      %6015 = vmatpush1.msra.mxu0 0.0
      %6016 = vmatprep.subr.mxu0 0.0
      %6017 = vmatpush1.msra.mxu0 0.0
      %6018 = vmatprep.subr.mxu0 0.0
      %6019 = vmatpush1.msra.mxu0 0.0
      %6020 = vmatprep.subr.mxu0 0.0
      %6021 = vmatpush1.msra.mxu0 0.0
      %6022 = vmatprep.subr.mxu0 0.0
      %6023 = vmatpush1.msra.mxu0 0.0
      %6024 = vmatprep.mubr.f32.mxu0 0.0
      %v6025 = vand.u32 %v4678, 4294901760
      %v6026 = vsub.f32 %v4678, %v6025
      %v6027 = vand.u32 %v6026, 4294901760
      %v6028 = vsub.f32 %v6026, %v6027
      %v6029 = vand.u32 %v6028, 4294901760
      %6030 = vmatmul.mubr.f32.gmra.mrb[0].mxu0 %v6029
      %v6031 = vpop.f32.mrb[0].mxu0
      %v6032 = vadd.f32 %v4676, %v6031
      %v6033 = vpop.f32.mrb[0].mxu0
      %v6034 = vadd.f32 %v4676, %v6033
      %6035 = vdwg.mxu0
      %v6036 = vand.u32 %v4623, 4294901760
      %v6037 = vsub.f32 %v4623, %v6036
      %v6038 = vand.u32 %v6037, 4294901760
      %v6039 = vsub.f32 %v6037, %v6038
      %v6040 = vand.u32 %v6039, 4294901760
      %6041 = vmatprep.subr.mxu0 %v6040
      %v6042 = vand.u32 %v4622, 4294901760
      %v6043 = vsub.f32 %v4622, %v6042
      %v6044 = vand.u32 %v6043, 4294901760
      %v6045 = vsub.f32 %v6043, %v6044
      %v6046 = vand.u32 %v6045, 4294901760
      %6047 = vmatpush1.msra.mxu0 %v6046
      %v6048 = vand.u32 %v4631, 4294901760
      %v6049 = vsub.f32 %v4631, %v6048
      %v6050 = vand.u32 %v6049, 4294901760
      %v6051 = vsub.f32 %v6049, %v6050
      %v6052 = vand.u32 %v6051, 4294901760
      %6053 = vmatprep.subr.mxu0 %v6052
      %v6054 = vand.u32 %v4630, 4294901760
      %v6055 = vsub.f32 %v4630, %v6054
      %v6056 = vand.u32 %v6055, 4294901760
      %v6057 = vsub.f32 %v6055, %v6056
      %v6058 = vand.u32 %v6057, 4294901760
      %6059 = vmatpush1.msra.mxu0 %v6058
      %v6060 = vand.u32 %v4639, 4294901760
      %v6061 = vsub.f32 %v4639, %v6060
      %v6062 = vand.u32 %v6061, 4294901760
      %v6063 = vsub.f32 %v6061, %v6062
      %v6064 = vand.u32 %v6063, 4294901760
      %6065 = vmatprep.subr.mxu0 %v6064
      %v6066 = vand.u32 %v4638, 4294901760
      %v6067 = vsub.f32 %v4638, %v6066
      %v6068 = vand.u32 %v6067, 4294901760
      %v6069 = vsub.f32 %v6067, %v6068
      %v6070 = vand.u32 %v6069, 4294901760
      %6071 = vmatpush1.msra.mxu0 %v6070
      %v6072 = vand.u32 %v4647, 4294901760
      %v6073 = vsub.f32 %v4647, %v6072
      %v6074 = vand.u32 %v6073, 4294901760
      %v6075 = vsub.f32 %v6073, %v6074
      %v6076 = vand.u32 %v6075, 4294901760
      %6077 = vmatprep.subr.mxu0 %v6076
      %v6078 = vand.u32 %v4646, 4294901760
      %v6079 = vsub.f32 %v4646, %v6078
      %v6080 = vand.u32 %v6079, 4294901760
      %v6081 = vsub.f32 %v6079, %v6080
      %v6082 = vand.u32 %v6081, 4294901760
      %6083 = vmatpush1.msra.mxu0 %v6082
      %v6084 = vand.u32 %v4655, 4294901760
      %v6085 = vsub.f32 %v4655, %v6084
      %v6086 = vand.u32 %v6085, 4294901760
      %v6087 = vsub.f32 %v6085, %v6086
      %v6088 = vand.u32 %v6087, 4294901760
      %6089 = vmatprep.subr.mxu0 %v6088
      %v6090 = vand.u32 %v4654, 4294901760
      %v6091 = vsub.f32 %v4654, %v6090
      %v6092 = vand.u32 %v6091, 4294901760
      %v6093 = vsub.f32 %v6091, %v6092
      %v6094 = vand.u32 %v6093, 4294901760
      %6095 = vmatpush1.msra.mxu0 %v6094
      %v6096 = vand.u32 %v4663, 4294901760
      %v6097 = vsub.f32 %v4663, %v6096
      %v6098 = vand.u32 %v6097, 4294901760
      %v6099 = vsub.f32 %v6097, %v6098
      %v6100 = vand.u32 %v6099, 4294901760
      %6101 = vmatprep.subr.mxu0 %v6100
      %v6102 = vand.u32 %v4662, 4294901760
      %v6103 = vsub.f32 %v4662, %v6102
      %v6104 = vand.u32 %v6103, 4294901760
      %v6105 = vsub.f32 %v6103, %v6104
      %v6106 = vand.u32 %v6105, 4294901760
      %6107 = vmatpush1.msra.mxu0 %v6106
      %v6108 = vand.u32 %v4696, 4294901760
      %v6109 = vsub.f32 %v4696, %v6108
      %v6110 = vand.u32 %v6109, 4294901760
      %v6111 = vsub.f32 %v6109, %v6110
      %v6112 = vand.u32 %v6111, 4294901760
      %6113 = vmatprep.subr.mxu0 %v6112
      %v6114 = vand.u32 %v4693, 4294901760
      %v6115 = vsub.f32 %v4693, %v6114
      %v6116 = vand.u32 %v6115, 4294901760
      %v6117 = vsub.f32 %v6115, %v6116
      %v6118 = vand.u32 %v6117, 4294901760
      %6119 = vmatpush1.msra.mxu0 %v6118
      %6120 = vmatprep.subr.mxu0 0.0
      %6121 = vmatpush1.msra.mxu0 0.0
      %6122 = vmatprep.subr.mxu0 0.0
      %6123 = vmatpush1.msra.mxu0 0.0
      %6124 = vmatprep.subr.mxu0 0.0
      %6125 = vmatpush1.msra.mxu0 0.0
      %6126 = vmatprep.subr.mxu0 0.0
      %6127 = vmatpush1.msra.mxu0 0.0
      %6128 = vmatprep.subr.mxu0 0.0
      %6129 = vmatpush1.msra.mxu0 0.0
      %6130 = vmatprep.subr.mxu0 0.0
      %6131 = vmatpush1.msra.mxu0 0.0
      %6132 = vmatprep.subr.mxu0 0.0
      %6133 = vmatpush1.msra.mxu0 0.0
      %6134 = vmatprep.subr.mxu0 0.0
      %6135 = vmatpush1.msra.mxu0 0.0
      %6136 = vmatprep.subr.mxu0 0.0
      %6137 = vmatpush1.msra.mxu0 0.0
      %6138 = vmatprep.subr.mxu0 0.0
      %6139 = vmatpush1.msra.mxu0 0.0
      %6140 = vmatprep.subr.mxu0 0.0
      %6141 = vmatpush1.msra.mxu0 0.0
      %6142 = vmatprep.subr.mxu0 0.0
      %6143 = vmatpush1.msra.mxu0 0.0
      %6144 = vmatprep.subr.mxu0 0.0
      %6145 = vmatpush1.msra.mxu0 0.0
      %6146 = vmatprep.subr.mxu0 0.0
      %6147 = vmatpush1.msra.mxu0 0.0
      %6148 = vmatprep.subr.mxu0 0.0
      %6149 = vmatpush1.msra.mxu0 0.0
      %6150 = vmatprep.subr.mxu0 0.0
      %6151 = vmatpush1.msra.mxu0 0.0
      %6152 = vmatprep.subr.mxu0 0.0
      %6153 = vmatpush1.msra.mxu0 0.0
      %6154 = vmatprep.subr.mxu0 0.0
      %6155 = vmatpush1.msra.mxu0 0.0
      %6156 = vmatprep.subr.mxu0 0.0
      %6157 = vmatpush1.msra.mxu0 0.0
      %6158 = vmatprep.subr.mxu0 0.0
      %6159 = vmatpush1.msra.mxu0 0.0
      %6160 = vmatprep.subr.mxu0 0.0
      %6161 = vmatpush1.msra.mxu0 0.0
      %6162 = vmatprep.subr.mxu0 0.0
      %6163 = vmatpush1.msra.mxu0 0.0
      %6164 = vmatprep.subr.mxu0 0.0
      %6165 = vmatpush1.msra.mxu0 0.0
      %6166 = vmatprep.subr.mxu0 0.0
      %6167 = vmatpush1.msra.mxu0 0.0
      %6168 = vmatprep.subr.mxu0 0.0
      %6169 = vmatpush1.msra.mxu0 0.0
      %6170 = vmatprep.mubr.f32.mxu0 0.0
      %v6171 = vand.u32 %v4678, 4294901760
      %6172 = vmatmul.mubr.f32.gmra.mrb[0].mxu0 %v6171
      %v6173 = vpop.f32.mrb[0].mxu0
      %v6174 = vadd.f32 %v6032, %v6173
      %v6175 = vpop.f32.mrb[0].mxu0
      %v6176 = vadd.f32 %v6034, %v6175
      %6177 = vdwg.mxu0
      %v6178 = vand.u32 %v4623, 4294901760
      %v6179 = vsub.f32 %v4623, %v6178
      %6180 = vmatprep.subr.mxu0 %v6179
      %v6181 = vand.u32 %v4622, 4294901760
      %v6182 = vsub.f32 %v4622, %v6181
      %6183 = vmatpush1.msra.mxu0 %v6182
      %v6184 = vand.u32 %v4631, 4294901760
      %v6185 = vsub.f32 %v4631, %v6184
      %6186 = vmatprep.subr.mxu0 %v6185
      %v6187 = vand.u32 %v4630, 4294901760
      %v6188 = vsub.f32 %v4630, %v6187
      %6189 = vmatpush1.msra.mxu0 %v6188
      %v6190 = vand.u32 %v4639, 4294901760
      %v6191 = vsub.f32 %v4639, %v6190
      %6192 = vmatprep.subr.mxu0 %v6191
      %v6193 = vand.u32 %v4638, 4294901760
      %v6194 = vsub.f32 %v4638, %v6193
      %6195 = vmatpush1.msra.mxu0 %v6194
      %v6196 = vand.u32 %v4647, 4294901760
      %v6197 = vsub.f32 %v4647, %v6196
      %6198 = vmatprep.subr.mxu0 %v6197
      %v6199 = vand.u32 %v4646, 4294901760
      %v6200 = vsub.f32 %v4646, %v6199
      %6201 = vmatpush1.msra.mxu0 %v6200
      %v6202 = vand.u32 %v4655, 4294901760
      %v6203 = vsub.f32 %v4655, %v6202
      %6204 = vmatprep.subr.mxu0 %v6203
      %v6205 = vand.u32 %v4654, 4294901760
      %v6206 = vsub.f32 %v4654, %v6205
      %6207 = vmatpush1.msra.mxu0 %v6206
      %v6208 = vand.u32 %v4663, 4294901760
      %v6209 = vsub.f32 %v4663, %v6208
      %6210 = vmatprep.subr.mxu0 %v6209
      %v6211 = vand.u32 %v4662, 4294901760
      %v6212 = vsub.f32 %v4662, %v6211
      %6213 = vmatpush1.msra.mxu0 %v6212
      %v6214 = vand.u32 %v4696, 4294901760
      %v6215 = vsub.f32 %v4696, %v6214
      %6216 = vmatprep.subr.mxu0 %v6215
      %v6217 = vand.u32 %v4693, 4294901760
      %v6218 = vsub.f32 %v4693, %v6217
      %6219 = vmatpush1.msra.mxu0 %v6218
      %6220 = vmatprep.subr.mxu0 0.0
      %6221 = vmatpush1.msra.mxu0 0.0
      %6222 = vmatprep.subr.mxu0 0.0
      %6223 = vmatpush1.msra.mxu0 0.0
      %6224 = vmatprep.subr.mxu0 0.0
      %6225 = vmatpush1.msra.mxu0 0.0
      %6226 = vmatprep.subr.mxu0 0.0
      %6227 = vmatpush1.msra.mxu0 0.0
      %6228 = vmatprep.subr.mxu0 0.0
      %6229 = vmatpush1.msra.mxu0 0.0
      %6230 = vmatprep.subr.mxu0 0.0
      %6231 = vmatpush1.msra.mxu0 0.0
      %6232 = vmatprep.subr.mxu0 0.0
      %6233 = vmatpush1.msra.mxu0 0.0
      %6234 = vmatprep.subr.mxu0 0.0
      %6235 = vmatpush1.msra.mxu0 0.0
      %6236 = vmatprep.subr.mxu0 0.0
      %6237 = vmatpush1.msra.mxu0 0.0
      %6238 = vmatprep.subr.mxu0 0.0
      %6239 = vmatpush1.msra.mxu0 0.0
      %6240 = vmatprep.subr.mxu0 0.0
      %6241 = vmatpush1.msra.mxu0 0.0
      %6242 = vmatprep.subr.mxu0 0.0
      %6243 = vmatpush1.msra.mxu0 0.0
      %6244 = vmatprep.subr.mxu0 0.0
      %6245 = vmatpush1.msra.mxu0 0.0
      %6246 = vmatprep.subr.mxu0 0.0
      %6247 = vmatpush1.msra.mxu0 0.0
      %6248 = vmatprep.subr.mxu0 0.0
      %6249 = vmatpush1.msra.mxu0 0.0
      %6250 = vmatprep.subr.mxu0 0.0
      %6251 = vmatpush1.msra.mxu0 0.0
      %6252 = vmatprep.subr.mxu0 0.0
      %6253 = vmatpush1.msra.mxu0 0.0
      %6254 = vmatprep.subr.mxu0 0.0
      %6255 = vmatpush1.msra.mxu0 0.0
      %6256 = vmatprep.subr.mxu0 0.0
      %6257 = vmatpush1.msra.mxu0 0.0
      %6258 = vmatprep.subr.mxu0 0.0
      %6259 = vmatpush1.msra.mxu0 0.0
      %6260 = vmatprep.subr.mxu0 0.0
      %6261 = vmatpush1.msra.mxu0 0.0
      %6262 = vmatprep.subr.mxu0 0.0
      %6263 = vmatpush1.msra.mxu0 0.0
      %6264 = vmatprep.subr.mxu0 0.0
      %6265 = vmatpush1.msra.mxu0 0.0
      %6266 = vmatprep.subr.mxu0 0.0
      %6267 = vmatpush1.msra.mxu0 0.0
      %6268 = vmatprep.subr.mxu0 0.0
      %6269 = vmatpush1.msra.mxu0 0.0
      %6270 = vmatprep.mubr.f32.mxu0 0.0
      %v6271 = vand.u32 %v4678, 4294901760
      %v6272 = vsub.f32 %v4678, %v6271
      %6273 = vmatmul.mubr.f32.gmra.mrb[0].mxu0 %v6272
      %v6274 = vpop.f32.mrb[0].mxu0
      %v6275 = vadd.f32 %v6174, %v6274
      %v6276 = vpop.f32.mrb[0].mxu0
      %v6277 = vadd.f32 %v6176, %v6276
      %6278 = vdwg.mxu0
      %v6279 = vand.u32 %v4623, 4294901760
      %6280 = vmatprep.subr.mxu0 %v6279
      %v6281 = vand.u32 %v4622, 4294901760
      %6282 = vmatpush1.msra.mxu0 %v6281
      %v6283 = vand.u32 %v4631, 4294901760
      %6284 = vmatprep.subr.mxu0 %v6283
      %v6285 = vand.u32 %v4630, 4294901760
      %6286 = vmatpush1.msra.mxu0 %v6285
      %v6287 = vand.u32 %v4639, 4294901760
      %6288 = vmatprep.subr.mxu0 %v6287
      %v6289 = vand.u32 %v4638, 4294901760
      %6290 = vmatpush1.msra.mxu0 %v6289
      %v6291 = vand.u32 %v4647, 4294901760
      %6292 = vmatprep.subr.mxu0 %v6291
      %v6293 = vand.u32 %v4646, 4294901760
      %6294 = vmatpush1.msra.mxu0 %v6293
      %v6295 = vand.u32 %v4655, 4294901760
      %6296 = vmatprep.subr.mxu0 %v6295
      %v6297 = vand.u32 %v4654, 4294901760
      %6298 = vmatpush1.msra.mxu0 %v6297
      %v6299 = vand.u32 %v4663, 4294901760
      %6300 = vmatprep.subr.mxu0 %v6299
      %v6301 = vand.u32 %v4662, 4294901760
      %6302 = vmatpush1.msra.mxu0 %v6301
      %v6303 = vand.u32 %v4696, 4294901760
      %6304 = vmatprep.subr.mxu0 %v6303
      %v6305 = vand.u32 %v4693, 4294901760
      %6306 = vmatpush1.msra.mxu0 %v6305
      %6307 = vmatprep.subr.mxu0 0.0
      %6308 = vmatpush1.msra.mxu0 0.0
      %6309 = vmatprep.subr.mxu0 0.0
      %6310 = vmatpush1.msra.mxu0 0.0
      %6311 = vmatprep.subr.mxu0 0.0
      %6312 = vmatpush1.msra.mxu0 0.0
      %6313 = vmatprep.subr.mxu0 0.0
      %6314 = vmatpush1.msra.mxu0 0.0
      %6315 = vmatprep.subr.mxu0 0.0
      %6316 = vmatpush1.msra.mxu0 0.0
      %6317 = vmatprep.subr.mxu0 0.0
      %6318 = vmatpush1.msra.mxu0 0.0
      %6319 = vmatprep.subr.mxu0 0.0
      %6320 = vmatpush1.msra.mxu0 0.0
      %6321 = vmatprep.subr.mxu0 0.0
      %6322 = vmatpush1.msra.mxu0 0.0
      %6323 = vmatprep.subr.mxu0 0.0
      %6324 = vmatpush1.msra.mxu0 0.0
      %6325 = vmatprep.subr.mxu0 0.0
      %6326 = vmatpush1.msra.mxu0 0.0
      %6327 = vmatprep.subr.mxu0 0.0
      %6328 = vmatpush1.msra.mxu0 0.0
      %6329 = vmatprep.subr.mxu0 0.0
      %6330 = vmatpush1.msra.mxu0 0.0
      %6331 = vmatprep.subr.mxu0 0.0
      %6332 = vmatpush1.msra.mxu0 0.0
      %6333 = vmatprep.subr.mxu0 0.0
      %6334 = vmatpush1.msra.mxu0 0.0
      %6335 = vmatprep.subr.mxu0 0.0
      %6336 = vmatpush1.msra.mxu0 0.0
      %6337 = vmatprep.subr.mxu0 0.0
      %6338 = vmatpush1.msra.mxu0 0.0
      %6339 = vmatprep.subr.mxu0 0.0
      %6340 = vmatpush1.msra.mxu0 0.0
      %6341 = vmatprep.subr.mxu0 0.0
      %6342 = vmatpush1.msra.mxu0 0.0
      %6343 = vmatprep.subr.mxu0 0.0
      %6344 = vmatpush1.msra.mxu0 0.0
      %6345 = vmatprep.subr.mxu0 0.0
      %6346 = vmatpush1.msra.mxu0 0.0
      %6347 = vmatprep.subr.mxu0 0.0
      %6348 = vmatpush1.msra.mxu0 0.0
      %6349 = vmatprep.subr.mxu0 0.0
      %6350 = vmatpush1.msra.mxu0 0.0
      %6351 = vmatprep.subr.mxu0 0.0
      %6352 = vmatpush1.msra.mxu0 0.0
      %6353 = vmatprep.subr.mxu0 0.0
      %6354 = vmatpush1.msra.mxu0 0.0
      %6355 = vmatprep.subr.mxu0 0.0
      %6356 = vmatpush1.msra.mxu0 0.0
      %6357 = vmatprep.mubr.f32.mxu0 0.0
      %v6358 = vand.u32 %v4678, 4294901760
      %v6359 = vsub.f32 %v4678, %v6358
      %v6360 = vand.u32 %v6359, 4294901760
      %6361 = vmatmul.mubr.f32.gmra.mrb[0].mxu0 %v6360
      %v6362 = vpop.f32.mrb[0].mxu0
      %v6363 = vadd.f32 %v6275, %v6362
      %v6364 = vpop.f32.mrb[0].mxu0
      %v6365 = vadd.f32 %v6277, %v6364
      %6366 = vdwg.mxu0
      %v6367 = vand.u32 %v4623, 4294901760
      %v6368 = vsub.f32 %v4623, %v6367
      %v6369 = vand.u32 %v6368, 4294901760
      %6370 = vmatprep.subr.mxu0 %v6369
      %v6371 = vand.u32 %v4622, 4294901760
      %v6372 = vsub.f32 %v4622, %v6371
      %v6373 = vand.u32 %v6372, 4294901760
      %6374 = vmatpush1.msra.mxu0 %v6373
      %v6375 = vand.u32 %v4631, 4294901760
      %v6376 = vsub.f32 %v4631, %v6375
      %v6377 = vand.u32 %v6376, 4294901760
      %6378 = vmatprep.subr.mxu0 %v6377
      %v6379 = vand.u32 %v4630, 4294901760
      %v6380 = vsub.f32 %v4630, %v6379
      %v6381 = vand.u32 %v6380, 4294901760
      %6382 = vmatpush1.msra.mxu0 %v6381
      %v6383 = vand.u32 %v4639, 4294901760
      %v6384 = vsub.f32 %v4639, %v6383
      %v6385 = vand.u32 %v6384, 4294901760
      %6386 = vmatprep.subr.mxu0 %v6385
      %v6387 = vand.u32 %v4638, 4294901760
      %v6388 = vsub.f32 %v4638, %v6387
      %v6389 = vand.u32 %v6388, 4294901760
      %6390 = vmatpush1.msra.mxu0 %v6389
      %v6391 = vand.u32 %v4647, 4294901760
      %v6392 = vsub.f32 %v4647, %v6391
      %v6393 = vand.u32 %v6392, 4294901760
      %6394 = vmatprep.subr.mxu0 %v6393
      %v6395 = vand.u32 %v4646, 4294901760
      %v6396 = vsub.f32 %v4646, %v6395
      %v6397 = vand.u32 %v6396, 4294901760
      %6398 = vmatpush1.msra.mxu0 %v6397
      %v6399 = vand.u32 %v4655, 4294901760
      %v6400 = vsub.f32 %v4655, %v6399
      %v6401 = vand.u32 %v6400, 4294901760
      %6402 = vmatprep.subr.mxu0 %v6401
      %v6403 = vand.u32 %v4654, 4294901760
      %v6404 = vsub.f32 %v4654, %v6403
      %v6405 = vand.u32 %v6404, 4294901760
      %6406 = vmatpush1.msra.mxu0 %v6405
      %v6407 = vand.u32 %v4663, 4294901760
      %v6408 = vsub.f32 %v4663, %v6407
      %v6409 = vand.u32 %v6408, 4294901760
      %6410 = vmatprep.subr.mxu0 %v6409
      %v6411 = vand.u32 %v4662, 4294901760
      %v6412 = vsub.f32 %v4662, %v6411
      %v6413 = vand.u32 %v6412, 4294901760
      %6414 = vmatpush1.msra.mxu0 %v6413
      %v6415 = vand.u32 %v4696, 4294901760
      %v6416 = vsub.f32 %v4696, %v6415
      %v6417 = vand.u32 %v6416, 4294901760
      %6418 = vmatprep.subr.mxu0 %v6417
      %v6419 = vand.u32 %v4693, 4294901760
      %v6420 = vsub.f32 %v4693, %v6419
      %v6421 = vand.u32 %v6420, 4294901760
      %6422 = vmatpush1.msra.mxu0 %v6421
      %6423 = vmatprep.subr.mxu0 0.0
      %6424 = vmatpush1.msra.mxu0 0.0
      %6425 = vmatprep.subr.mxu0 0.0
      %6426 = vmatpush1.msra.mxu0 0.0
      %6427 = vmatprep.subr.mxu0 0.0
      %6428 = vmatpush1.msra.mxu0 0.0
      %6429 = vmatprep.subr.mxu0 0.0
      %6430 = vmatpush1.msra.mxu0 0.0
      %6431 = vmatprep.subr.mxu0 0.0
      %6432 = vmatpush1.msra.mxu0 0.0
      %6433 = vmatprep.subr.mxu0 0.0
      %6434 = vmatpush1.msra.mxu0 0.0
      %6435 = vmatprep.subr.mxu0 0.0
      %6436 = vmatpush1.msra.mxu0 0.0
      %6437 = vmatprep.subr.mxu0 0.0
      %6438 = vmatpush1.msra.mxu0 0.0
      %6439 = vmatprep.subr.mxu0 0.0
      %6440 = vmatpush1.msra.mxu0 0.0
      %6441 = vmatprep.subr.mxu0 0.0
      %6442 = vmatpush1.msra.mxu0 0.0
      %6443 = vmatprep.subr.mxu0 0.0
      %6444 = vmatpush1.msra.mxu0 0.0
      %6445 = vmatprep.subr.mxu0 0.0
      %6446 = vmatpush1.msra.mxu0 0.0
      %6447 = vmatprep.subr.mxu0 0.0
      %6448 = vmatpush1.msra.mxu0 0.0
      %6449 = vmatprep.subr.mxu0 0.0
      %6450 = vmatpush1.msra.mxu0 0.0
      %6451 = vmatprep.subr.mxu0 0.0
      %6452 = vmatpush1.msra.mxu0 0.0
      %6453 = vmatprep.subr.mxu0 0.0
      %6454 = vmatpush1.msra.mxu0 0.0
      %6455 = vmatprep.subr.mxu0 0.0
      %6456 = vmatpush1.msra.mxu0 0.0
      %6457 = vmatprep.subr.mxu0 0.0
      %6458 = vmatpush1.msra.mxu0 0.0
      %6459 = vmatprep.subr.mxu0 0.0
      %6460 = vmatpush1.msra.mxu0 0.0
      %6461 = vmatprep.subr.mxu0 0.0
      %6462 = vmatpush1.msra.mxu0 0.0
      %6463 = vmatprep.subr.mxu0 0.0
      %6464 = vmatpush1.msra.mxu0 0.0
      %6465 = vmatprep.subr.mxu0 0.0
      %6466 = vmatpush1.msra.mxu0 0.0
      %6467 = vmatprep.subr.mxu0 0.0
      %6468 = vmatpush1.msra.mxu0 0.0
      %6469 = vmatprep.subr.mxu0 0.0
      %6470 = vmatpush1.msra.mxu0 0.0
      %6471 = vmatprep.subr.mxu0 0.0
      %6472 = vmatpush1.msra.mxu0 0.0
      %6473 = vmatprep.mubr.f32.mxu0 0.0
      %v6474 = vand.u32 %v4678, 4294901760
      %6475 = vmatmul.mubr.f32.gmra.mrb[0].mxu0 %v6474
      %v6476 = vpop.f32.mrb[0].mxu0
      %v6477 = vadd.f32 %v6363, %v6476
      %v6478 = vpop.f32.mrb[0].mxu0
      %v6479 = vadd.f32 %v6365, %v6478
      %6480 = vdwg.mxu0
      %v6481 = vand.u32 %v4623, 4294901760
      %6482 = vmatprep.subr.mxu0 %v6481
      %v6483 = vand.u32 %v4622, 4294901760
      %6484 = vmatpush1.msra.mxu0 %v6483
      %v6485 = vand.u32 %v4631, 4294901760
      %6486 = vmatprep.subr.mxu0 %v6485
      %v6487 = vand.u32 %v4630, 4294901760
      %6488 = vmatpush1.msra.mxu0 %v6487
      %v6489 = vand.u32 %v4639, 4294901760
      %6490 = vmatprep.subr.mxu0 %v6489
      %v6491 = vand.u32 %v4638, 4294901760
      %6492 = vmatpush1.msra.mxu0 %v6491
      %v6493 = vand.u32 %v4647, 4294901760
      %6494 = vmatprep.subr.mxu0 %v6493
      %v6495 = vand.u32 %v4646, 4294901760
      %6496 = vmatpush1.msra.mxu0 %v6495
      %v6497 = vand.u32 %v4655, 4294901760
      %6498 = vmatprep.subr.mxu0 %v6497
      %v6499 = vand.u32 %v4654, 4294901760
      %6500 = vmatpush1.msra.mxu0 %v6499
      %v6501 = vand.u32 %v4663, 4294901760
      %6502 = vmatprep.subr.mxu0 %v6501
      %v6503 = vand.u32 %v4662, 4294901760
      %6504 = vmatpush1.msra.mxu0 %v6503
      %v6505 = vand.u32 %v4696, 4294901760
      %6506 = vmatprep.subr.mxu0 %v6505
      %v6507 = vand.u32 %v4693, 4294901760
      %6508 = vmatpush1.msra.mxu0 %v6507
      %6509 = vmatprep.subr.mxu0 0.0
      %6510 = vmatpush1.msra.mxu0 0.0
      %6511 = vmatprep.subr.mxu0 0.0
      %6512 = vmatpush1.msra.mxu0 0.0
      %6513 = vmatprep.subr.mxu0 0.0
      %6514 = vmatpush1.msra.mxu0 0.0
      %6515 = vmatprep.subr.mxu0 0.0
      %6516 = vmatpush1.msra.mxu0 0.0
      %6517 = vmatprep.subr.mxu0 0.0
      %6518 = vmatpush1.msra.mxu0 0.0
      %6519 = vmatprep.subr.mxu0 0.0
      %6520 = vmatpush1.msra.mxu0 0.0
      %6521 = vmatprep.subr.mxu0 0.0
      %6522 = vmatpush1.msra.mxu0 0.0
      %6523 = vmatprep.subr.mxu0 0.0
      %6524 = vmatpush1.msra.mxu0 0.0
      %6525 = vmatprep.subr.mxu0 0.0
      %6526 = vmatpush1.msra.mxu0 0.0
      %6527 = vmatprep.subr.mxu0 0.0
      %6528 = vmatpush1.msra.mxu0 0.0
      %6529 = vmatprep.subr.mxu0 0.0
      %6530 = vmatpush1.msra.mxu0 0.0
      %6531 = vmatprep.subr.mxu0 0.0
      %6532 = vmatpush1.msra.mxu0 0.0
      %6533 = vmatprep.subr.mxu0 0.0
      %6534 = vmatpush1.msra.mxu0 0.0
      %6535 = vmatprep.subr.mxu0 0.0
      %6536 = vmatpush1.msra.mxu0 0.0
      %6537 = vmatprep.subr.mxu0 0.0
      %6538 = vmatpush1.msra.mxu0 0.0
      %6539 = vmatprep.subr.mxu0 0.0
      %6540 = vmatpush1.msra.mxu0 0.0
      %6541 = vmatprep.subr.mxu0 0.0
      %6542 = vmatpush1.msra.mxu0 0.0
      %6543 = vmatprep.subr.mxu0 0.0
      %6544 = vmatpush1.msra.mxu0 0.0
      %6545 = vmatprep.subr.mxu0 0.0
      %6546 = vmatpush1.msra.mxu0 0.0
      %6547 = vmatprep.subr.mxu0 0.0
      %6548 = vmatpush1.msra.mxu0 0.0
      %6549 = vmatprep.subr.mxu0 0.0
      %6550 = vmatpush1.msra.mxu0 0.0
      %6551 = vmatprep.subr.mxu0 0.0
      %6552 = vmatpush1.msra.mxu0 0.0
      %6553 = vmatprep.subr.mxu0 0.0
      %6554 = vmatpush1.msra.mxu0 0.0
      %6555 = vmatprep.subr.mxu0 0.0
      %6556 = vmatpush1.msra.mxu0 0.0
      %6557 = vmatprep.subr.mxu0 0.0
      %6558 = vmatpush1.msra.mxu0 0.0
      %6559 = vmatprep.mubr.f32.mxu0 0.0
      %v6560 = vand.u32 %v4678, 4294901760
      %6561 = vmatmul.mubr.f32.gmra.mrb[0].mxu0 %v6560
      %v6562 = vpop.f32.mrb[0].mxu0
      %v6563 = vadd.f32 %v6477, %v6562
      %v6564 = vpop.f32.mrb[0].mxu0
      %v6565 = vadd.f32 %v6479, %v6564
      %6566 = vdwg.mxu0
      %v6567 = vand.u32 %v4625, 4294901760
      %6568 = vmatprep.subr.mxu0 %v6567
      %v6569 = vand.u32 %v4624, 4294901760
      %6570 = vmatpush1.msra.mxu0 %v6569
      %v6571 = vand.u32 %v4633, 4294901760
      %6572 = vmatprep.subr.mxu0 %v6571
      %v6573 = vand.u32 %v4632, 4294901760
      %6574 = vmatpush1.msra.mxu0 %v6573
      %v6575 = vand.u32 %v4641, 4294901760
      %6576 = vmatprep.subr.mxu0 %v6575
      %v6577 = vand.u32 %v4640, 4294901760
      %6578 = vmatpush1.msra.mxu0 %v6577
      %v6579 = vand.u32 %v4649, 4294901760
      %6580 = vmatprep.subr.mxu0 %v6579
      %v6581 = vand.u32 %v4648, 4294901760
      %6582 = vmatpush1.msra.mxu0 %v6581
      %v6583 = vand.u32 %v4657, 4294901760
      %6584 = vmatprep.subr.mxu0 %v6583
      %v6585 = vand.u32 %v4656, 4294901760
      %6586 = vmatpush1.msra.mxu0 %v6585
      %v6587 = vand.u32 %v4665, 4294901760
      %6588 = vmatprep.subr.mxu0 %v6587
      %v6589 = vand.u32 %v4664, 4294901760
      %6590 = vmatpush1.msra.mxu0 %v6589
      %v6591 = vand.u32 %v4702, 4294901760
      %6592 = vmatprep.subr.mxu0 %v6591
      %v6593 = vand.u32 %v4699, 4294901760
      %6594 = vmatpush1.msra.mxu0 %v6593
      %6595 = vmatprep.subr.mxu0 0.0
      %6596 = vmatpush1.msra.mxu0 0.0
      %6597 = vmatprep.subr.mxu0 0.0
      %6598 = vmatpush1.msra.mxu0 0.0
      %6599 = vmatprep.subr.mxu0 0.0
      %6600 = vmatpush1.msra.mxu0 0.0
      %6601 = vmatprep.subr.mxu0 0.0
      %6602 = vmatpush1.msra.mxu0 0.0
      %6603 = vmatprep.subr.mxu0 0.0
      %6604 = vmatpush1.msra.mxu0 0.0
      %6605 = vmatprep.subr.mxu0 0.0
      %6606 = vmatpush1.msra.mxu0 0.0
      %6607 = vmatprep.subr.mxu0 0.0
      %6608 = vmatpush1.msra.mxu0 0.0
      %6609 = vmatprep.subr.mxu0 0.0
      %6610 = vmatpush1.msra.mxu0 0.0
      %6611 = vmatprep.subr.mxu0 0.0
      %6612 = vmatpush1.msra.mxu0 0.0
      %6613 = vmatprep.subr.mxu0 0.0
      %6614 = vmatpush1.msra.mxu0 0.0
      %6615 = vmatprep.subr.mxu0 0.0
      %6616 = vmatpush1.msra.mxu0 0.0
      %6617 = vmatprep.subr.mxu0 0.0
      %6618 = vmatpush1.msra.mxu0 0.0
      %6619 = vmatprep.subr.mxu0 0.0
      %6620 = vmatpush1.msra.mxu0 0.0
      %6621 = vmatprep.subr.mxu0 0.0
      %6622 = vmatpush1.msra.mxu0 0.0
      %6623 = vmatprep.subr.mxu0 0.0
      %6624 = vmatpush1.msra.mxu0 0.0
      %6625 = vmatprep.subr.mxu0 0.0
      %6626 = vmatpush1.msra.mxu0 0.0
      %6627 = vmatprep.subr.mxu0 0.0
      %6628 = vmatpush1.msra.mxu0 0.0
      %6629 = vmatprep.subr.mxu0 0.0
      %6630 = vmatpush1.msra.mxu0 0.0
      %6631 = vmatprep.subr.mxu0 0.0
      %6632 = vmatpush1.msra.mxu0 0.0
      %6633 = vmatprep.subr.mxu0 0.0
      %6634 = vmatpush1.msra.mxu0 0.0
      %6635 = vmatprep.subr.mxu0 0.0
      %6636 = vmatpush1.msra.mxu0 0.0
      %6637 = vmatprep.subr.mxu0 0.0
      %6638 = vmatpush1.msra.mxu0 0.0
      %6639 = vmatprep.subr.mxu0 0.0
      %6640 = vmatpush1.msra.mxu0 0.0
      %6641 = vmatprep.subr.mxu0 0.0
      %6642 = vmatpush1.msra.mxu0 0.0
      %6643 = vmatprep.subr.mxu0 0.0
      %6644 = vmatpush1.msra.mxu0 0.0
      %6645 = vmatprep.mubr.f32.mxu0 0.0
      %v6646 = vand.u32 %v4678, 4294901760
      %v6647 = vsub.f32 %v4678, %v6646
      %v6648 = vand.u32 %v6647, 4294901760
      %v6649 = vsub.f32 %v6647, %v6648
      %v6650 = vand.u32 %v6649, 4294901760
      %6651 = vmatmul.mubr.f32.gmra.mrb[0].mxu0 %v6650
      %v6652 = vpop.f32.mrb[0].mxu0
      %v6653 = vadd.f32 %v4676, %v6652
      %v6654 = vpop.f32.mrb[0].mxu0
      %v6655 = vadd.f32 %v4676, %v6654
      %6656 = vdwg.mxu0
      %v6657 = vand.u32 %v4625, 4294901760
      %v6658 = vsub.f32 %v4625, %v6657
      %v6659 = vand.u32 %v6658, 4294901760
      %v6660 = vsub.f32 %v6658, %v6659
      %v6661 = vand.u32 %v6660, 4294901760
      %6662 = vmatprep.subr.mxu0 %v6661
      %v6663 = vand.u32 %v4624, 4294901760
      %v6664 = vsub.f32 %v4624, %v6663
      %v6665 = vand.u32 %v6664, 4294901760
      %v6666 = vsub.f32 %v6664, %v6665
      %v6667 = vand.u32 %v6666, 4294901760
      %6668 = vmatpush1.msra.mxu0 %v6667
      %v6669 = vand.u32 %v4633, 4294901760
      %v6670 = vsub.f32 %v4633, %v6669
      %v6671 = vand.u32 %v6670, 4294901760
      %v6672 = vsub.f32 %v6670, %v6671
      %v6673 = vand.u32 %v6672, 4294901760
      %6674 = vmatprep.subr.mxu0 %v6673
      %v6675 = vand.u32 %v4632, 4294901760
      %v6676 = vsub.f32 %v4632, %v6675
      %v6677 = vand.u32 %v6676, 4294901760
      %v6678 = vsub.f32 %v6676, %v6677
      %v6679 = vand.u32 %v6678, 4294901760
      %6680 = vmatpush1.msra.mxu0 %v6679
      %v6681 = vand.u32 %v4641, 4294901760
      %v6682 = vsub.f32 %v4641, %v6681
      %v6683 = vand.u32 %v6682, 4294901760
      %v6684 = vsub.f32 %v6682, %v6683
      %v6685 = vand.u32 %v6684, 4294901760
      %6686 = vmatprep.subr.mxu0 %v6685
      %v6687 = vand.u32 %v4640, 4294901760
      %v6688 = vsub.f32 %v4640, %v6687
      %v6689 = vand.u32 %v6688, 4294901760
      %v6690 = vsub.f32 %v6688, %v6689
      %v6691 = vand.u32 %v6690, 4294901760
      %6692 = vmatpush1.msra.mxu0 %v6691
      %v6693 = vand.u32 %v4649, 4294901760
      %v6694 = vsub.f32 %v4649, %v6693
      %v6695 = vand.u32 %v6694, 4294901760
      %v6696 = vsub.f32 %v6694, %v6695
      %v6697 = vand.u32 %v6696, 4294901760
      %6698 = vmatprep.subr.mxu0 %v6697
      %v6699 = vand.u32 %v4648, 4294901760
      %v6700 = vsub.f32 %v4648, %v6699
      %v6701 = vand.u32 %v6700, 4294901760
      %v6702 = vsub.f32 %v6700, %v6701
      %v6703 = vand.u32 %v6702, 4294901760
      %6704 = vmatpush1.msra.mxu0 %v6703
      %v6705 = vand.u32 %v4657, 4294901760
      %v6706 = vsub.f32 %v4657, %v6705
      %v6707 = vand.u32 %v6706, 4294901760
      %v6708 = vsub.f32 %v6706, %v6707
      %v6709 = vand.u32 %v6708, 4294901760
      %6710 = vmatprep.subr.mxu0 %v6709
      %v6711 = vand.u32 %v4656, 4294901760
      %v6712 = vsub.f32 %v4656, %v6711
      %v6713 = vand.u32 %v6712, 4294901760
      %v6714 = vsub.f32 %v6712, %v6713
      %v6715 = vand.u32 %v6714, 4294901760
      %6716 = vmatpush1.msra.mxu0 %v6715
      %v6717 = vand.u32 %v4665, 4294901760
      %v6718 = vsub.f32 %v4665, %v6717
      %v6719 = vand.u32 %v6718, 4294901760
      %v6720 = vsub.f32 %v6718, %v6719
      %v6721 = vand.u32 %v6720, 4294901760
      %6722 = vmatprep.subr.mxu0 %v6721
      %v6723 = vand.u32 %v4664, 4294901760
      %v6724 = vsub.f32 %v4664, %v6723
      %v6725 = vand.u32 %v6724, 4294901760
      %v6726 = vsub.f32 %v6724, %v6725
      %v6727 = vand.u32 %v6726, 4294901760
      %6728 = vmatpush1.msra.mxu0 %v6727
      %v6729 = vand.u32 %v4702, 4294901760
      %v6730 = vsub.f32 %v4702, %v6729
      %v6731 = vand.u32 %v6730, 4294901760
      %v6732 = vsub.f32 %v6730, %v6731
      %v6733 = vand.u32 %v6732, 4294901760
      %6734 = vmatprep.subr.mxu0 %v6733
      %v6735 = vand.u32 %v4699, 4294901760
      %v6736 = vsub.f32 %v4699, %v6735
      %v6737 = vand.u32 %v6736, 4294901760
      %v6738 = vsub.f32 %v6736, %v6737
      %v6739 = vand.u32 %v6738, 4294901760
      %6740 = vmatpush1.msra.mxu0 %v6739
      %6741 = vmatprep.subr.mxu0 0.0
      %6742 = vmatpush1.msra.mxu0 0.0
      %6743 = vmatprep.subr.mxu0 0.0
      %6744 = vmatpush1.msra.mxu0 0.0
      %6745 = vmatprep.subr.mxu0 0.0
      %6746 = vmatpush1.msra.mxu0 0.0
      %6747 = vmatprep.subr.mxu0 0.0
      %6748 = vmatpush1.msra.mxu0 0.0
      %6749 = vmatprep.subr.mxu0 0.0
      %6750 = vmatpush1.msra.mxu0 0.0
      %6751 = vmatprep.subr.mxu0 0.0
      %6752 = vmatpush1.msra.mxu0 0.0
      %6753 = vmatprep.subr.mxu0 0.0
      %6754 = vmatpush1.msra.mxu0 0.0
      %6755 = vmatprep.subr.mxu0 0.0
      %6756 = vmatpush1.msra.mxu0 0.0
      %6757 = vmatprep.subr.mxu0 0.0
      %6758 = vmatpush1.msra.mxu0 0.0
      %6759 = vmatprep.subr.mxu0 0.0
      %6760 = vmatpush1.msra.mxu0 0.0
      %6761 = vmatprep.subr.mxu0 0.0
      %6762 = vmatpush1.msra.mxu0 0.0
      %6763 = vmatprep.subr.mxu0 0.0
      %6764 = vmatpush1.msra.mxu0 0.0
      %6765 = vmatprep.subr.mxu0 0.0
      %6766 = vmatpush1.msra.mxu0 0.0
      %6767 = vmatprep.subr.mxu0 0.0
      %6768 = vmatpush1.msra.mxu0 0.0
      %6769 = vmatprep.subr.mxu0 0.0
      %6770 = vmatpush1.msra.mxu0 0.0
      %6771 = vmatprep.subr.mxu0 0.0
      %6772 = vmatpush1.msra.mxu0 0.0
      %6773 = vmatprep.subr.mxu0 0.0
      %6774 = vmatpush1.msra.mxu0 0.0
      %6775 = vmatprep.subr.mxu0 0.0
      %6776 = vmatpush1.msra.mxu0 0.0
      %6777 = vmatprep.subr.mxu0 0.0
      %6778 = vmatpush1.msra.mxu0 0.0
      %6779 = vmatprep.subr.mxu0 0.0
      %6780 = vmatpush1.msra.mxu0 0.0
      %6781 = vmatprep.subr.mxu0 0.0
      %6782 = vmatpush1.msra.mxu0 0.0
      %6783 = vmatprep.subr.mxu0 0.0
      %6784 = vmatpush1.msra.mxu0 0.0
      %6785 = vmatprep.subr.mxu0 0.0
      %6786 = vmatpush1.msra.mxu0 0.0
      %6787 = vmatprep.subr.mxu0 0.0
      %6788 = vmatpush1.msra.mxu0 0.0
      %6789 = vmatprep.subr.mxu0 0.0
      %6790 = vmatpush1.msra.mxu0 0.0
      %6791 = vmatprep.mubr.f32.mxu0 0.0
      %v6792 = vand.u32 %v4678, 4294901760
      %6793 = vmatmul.mubr.f32.gmra.mrb[0].mxu0 %v6792
      %v6794 = vpop.f32.mrb[0].mxu0
      %v6795 = vadd.f32 %v6653, %v6794
      %v6796 = vpop.f32.mrb[0].mxu0
      %v6797 = vadd.f32 %v6655, %v6796
      %6798 = vdwg.mxu0
      %v6799 = vand.u32 %v4625, 4294901760
      %v6800 = vsub.f32 %v4625, %v6799
      %6801 = vmatprep.subr.mxu0 %v6800
      %v6802 = vand.u32 %v4624, 4294901760
      %v6803 = vsub.f32 %v4624, %v6802
      %6804 = vmatpush1.msra.mxu0 %v6803
      %v6805 = vand.u32 %v4633, 4294901760
      %v6806 = vsub.f32 %v4633, %v6805
      %6807 = vmatprep.subr.mxu0 %v6806
      %v6808 = vand.u32 %v4632, 4294901760
      %v6809 = vsub.f32 %v4632, %v6808
      %6810 = vmatpush1.msra.mxu0 %v6809
      %v6811 = vand.u32 %v4641, 4294901760
      %v6812 = vsub.f32 %v4641, %v6811
      %6813 = vmatprep.subr.mxu0 %v6812
      %v6814 = vand.u32 %v4640, 4294901760
      %v6815 = vsub.f32 %v4640, %v6814
      %6816 = vmatpush1.msra.mxu0 %v6815
      %v6817 = vand.u32 %v4649, 4294901760
      %v6818 = vsub.f32 %v4649, %v6817
      %6819 = vmatprep.subr.mxu0 %v6818
      %v6820 = vand.u32 %v4648, 4294901760
      %v6821 = vsub.f32 %v4648, %v6820
      %6822 = vmatpush1.msra.mxu0 %v6821
      %v6823 = vand.u32 %v4657, 4294901760
      %v6824 = vsub.f32 %v4657, %v6823
      %6825 = vmatprep.subr.mxu0 %v6824
      %v6826 = vand.u32 %v4656, 4294901760
      %v6827 = vsub.f32 %v4656, %v6826
      %6828 = vmatpush1.msra.mxu0 %v6827
      %v6829 = vand.u32 %v4665, 4294901760
      %v6830 = vsub.f32 %v4665, %v6829
      %6831 = vmatprep.subr.mxu0 %v6830
      %v6832 = vand.u32 %v4664, 4294901760
      %v6833 = vsub.f32 %v4664, %v6832
      %6834 = vmatpush1.msra.mxu0 %v6833
      %v6835 = vand.u32 %v4702, 4294901760
      %v6836 = vsub.f32 %v4702, %v6835
      %6837 = vmatprep.subr.mxu0 %v6836
      %v6838 = vand.u32 %v4699, 4294901760
      %v6839 = vsub.f32 %v4699, %v6838
      %6840 = vmatpush1.msra.mxu0 %v6839
      %6841 = vmatprep.subr.mxu0 0.0
      %6842 = vmatpush1.msra.mxu0 0.0
      %6843 = vmatprep.subr.mxu0 0.0
      %6844 = vmatpush1.msra.mxu0 0.0
      %6845 = vmatprep.subr.mxu0 0.0
      %6846 = vmatpush1.msra.mxu0 0.0
      %6847 = vmatprep.subr.mxu0 0.0
      %6848 = vmatpush1.msra.mxu0 0.0
      %6849 = vmatprep.subr.mxu0 0.0
      %6850 = vmatpush1.msra.mxu0 0.0
      %6851 = vmatprep.subr.mxu0 0.0
      %6852 = vmatpush1.msra.mxu0 0.0
      %6853 = vmatprep.subr.mxu0 0.0
      %6854 = vmatpush1.msra.mxu0 0.0
      %6855 = vmatprep.subr.mxu0 0.0
      %6856 = vmatpush1.msra.mxu0 0.0
      %6857 = vmatprep.subr.mxu0 0.0
      %6858 = vmatpush1.msra.mxu0 0.0
      %6859 = vmatprep.subr.mxu0 0.0
      %6860 = vmatpush1.msra.mxu0 0.0
      %6861 = vmatprep.subr.mxu0 0.0
      %6862 = vmatpush1.msra.mxu0 0.0
      %6863 = vmatprep.subr.mxu0 0.0
      %6864 = vmatpush1.msra.mxu0 0.0
      %6865 = vmatprep.subr.mxu0 0.0
      %6866 = vmatpush1.msra.mxu0 0.0
      %6867 = vmatprep.subr.mxu0 0.0
      %6868 = vmatpush1.msra.mxu0 0.0
      %6869 = vmatprep.subr.mxu0 0.0
      %6870 = vmatpush1.msra.mxu0 0.0
      %6871 = vmatprep.subr.mxu0 0.0
      %6872 = vmatpush1.msra.mxu0 0.0
      %6873 = vmatprep.subr.mxu0 0.0
      %6874 = vmatpush1.msra.mxu0 0.0
      %6875 = vmatprep.subr.mxu0 0.0
      %6876 = vmatpush1.msra.mxu0 0.0
      %6877 = vmatprep.subr.mxu0 0.0
      %6878 = vmatpush1.msra.mxu0 0.0
      %6879 = vmatprep.subr.mxu0 0.0
      %6880 = vmatpush1.msra.mxu0 0.0
      %6881 = vmatprep.subr.mxu0 0.0
      %6882 = vmatpush1.msra.mxu0 0.0
      %6883 = vmatprep.subr.mxu0 0.0
      %6884 = vmatpush1.msra.mxu0 0.0
      %6885 = vmatprep.subr.mxu0 0.0
      %6886 = vmatpush1.msra.mxu0 0.0
      %6887 = vmatprep.subr.mxu0 0.0
      %6888 = vmatpush1.msra.mxu0 0.0
      %6889 = vmatprep.subr.mxu0 0.0
      %6890 = vmatpush1.msra.mxu0 0.0
      %6891 = vmatprep.mubr.f32.mxu0 0.0
      %v6892 = vand.u32 %v4678, 4294901760
      %v6893 = vsub.f32 %v4678, %v6892
      %6894 = vmatmul.mubr.f32.gmra.mrb[0].mxu0 %v6893
      %v6895 = vpop.f32.mrb[0].mxu0
      %v6896 = vadd.f32 %v6795, %v6895
      %v6897 = vpop.f32.mrb[0].mxu0
      %v6898 = vadd.f32 %v6797, %v6897
      %6899 = vdwg.mxu0
      %v6900 = vand.u32 %v4625, 4294901760
      %6901 = vmatprep.subr.mxu0 %v6900
      %v6902 = vand.u32 %v4624, 4294901760
      %6903 = vmatpush1.msra.mxu0 %v6902
      %v6904 = vand.u32 %v4633, 4294901760
      %6905 = vmatprep.subr.mxu0 %v6904
      %v6906 = vand.u32 %v4632, 4294901760
      %6907 = vmatpush1.msra.mxu0 %v6906
      %v6908 = vand.u32 %v4641, 4294901760
      %6909 = vmatprep.subr.mxu0 %v6908
      %v6910 = vand.u32 %v4640, 4294901760
      %6911 = vmatpush1.msra.mxu0 %v6910
      %v6912 = vand.u32 %v4649, 4294901760
      %6913 = vmatprep.subr.mxu0 %v6912
      %v6914 = vand.u32 %v4648, 4294901760
      %6915 = vmatpush1.msra.mxu0 %v6914
      %v6916 = vand.u32 %v4657, 4294901760
      %6917 = vmatprep.subr.mxu0 %v6916
      %v6918 = vand.u32 %v4656, 4294901760
      %6919 = vmatpush1.msra.mxu0 %v6918
      %v6920 = vand.u32 %v4665, 4294901760
      %6921 = vmatprep.subr.mxu0 %v6920
      %v6922 = vand.u32 %v4664, 4294901760
      %6923 = vmatpush1.msra.mxu0 %v6922
      %v6924 = vand.u32 %v4702, 4294901760
      %6925 = vmatprep.subr.mxu0 %v6924
      %v6926 = vand.u32 %v4699, 4294901760
      %6927 = vmatpush1.msra.mxu0 %v6926
      %6928 = vmatprep.subr.mxu0 0.0
      %6929 = vmatpush1.msra.mxu0 0.0
      %6930 = vmatprep.subr.mxu0 0.0
      %6931 = vmatpush1.msra.mxu0 0.0
      %6932 = vmatprep.subr.mxu0 0.0
      %6933 = vmatpush1.msra.mxu0 0.0
      %6934 = vmatprep.subr.mxu0 0.0
      %6935 = vmatpush1.msra.mxu0 0.0
      %6936 = vmatprep.subr.mxu0 0.0
      %6937 = vmatpush1.msra.mxu0 0.0
      %6938 = vmatprep.subr.mxu0 0.0
      %6939 = vmatpush1.msra.mxu0 0.0
      %6940 = vmatprep.subr.mxu0 0.0
      %6941 = vmatpush1.msra.mxu0 0.0
      %6942 = vmatprep.subr.mxu0 0.0
      %6943 = vmatpush1.msra.mxu0 0.0
      %6944 = vmatprep.subr.mxu0 0.0
      %6945 = vmatpush1.msra.mxu0 0.0
      %6946 = vmatprep.subr.mxu0 0.0
      %6947 = vmatpush1.msra.mxu0 0.0
      %6948 = vmatprep.subr.mxu0 0.0
      %6949 = vmatpush1.msra.mxu0 0.0
      %6950 = vmatprep.subr.mxu0 0.0
      %6951 = vmatpush1.msra.mxu0 0.0
      %6952 = vmatprep.subr.mxu0 0.0
      %6953 = vmatpush1.msra.mxu0 0.0
      %6954 = vmatprep.subr.mxu0 0.0
      %6955 = vmatpush1.msra.mxu0 0.0
      %6956 = vmatprep.subr.mxu0 0.0
      %6957 = vmatpush1.msra.mxu0 0.0
      %6958 = vmatprep.subr.mxu0 0.0
      %6959 = vmatpush1.msra.mxu0 0.0
      %6960 = vmatprep.subr.mxu0 0.0
      %6961 = vmatpush1.msra.mxu0 0.0
      %6962 = vmatprep.subr.mxu0 0.0
      %6963 = vmatpush1.msra.mxu0 0.0
      %6964 = vmatprep.subr.mxu0 0.0
      %6965 = vmatpush1.msra.mxu0 0.0
      %6966 = vmatprep.subr.mxu0 0.0
      %6967 = vmatpush1.msra.mxu0 0.0
      %6968 = vmatprep.subr.mxu0 0.0
      %6969 = vmatpush1.msra.mxu0 0.0
      %6970 = vmatprep.subr.mxu0 0.0
      %6971 = vmatpush1.msra.mxu0 0.0
      %6972 = vmatprep.subr.mxu0 0.0
      %6973 = vmatpush1.msra.mxu0 0.0
      %6974 = vmatprep.subr.mxu0 0.0
      %6975 = vmatpush1.msra.mxu0 0.0
      %6976 = vmatprep.subr.mxu0 0.0
      %6977 = vmatpush1.msra.mxu0 0.0
      %6978 = vmatprep.mubr.f32.mxu0 0.0
      %v6979 = vand.u32 %v4678, 4294901760
      %v6980 = vsub.f32 %v4678, %v6979
      %v6981 = vand.u32 %v6980, 4294901760
      %6982 = vmatmul.mubr.f32.gmra.mrb[0].mxu0 %v6981
      %v6983 = vpop.f32.mrb[0].mxu0
      %v6984 = vadd.f32 %v6896, %v6983
      %v6985 = vpop.f32.mrb[0].mxu0
      %v6986 = vadd.f32 %v6898, %v6985
      %6987 = vdwg.mxu0
      %v6988 = vand.u32 %v4625, 4294901760
      %v6989 = vsub.f32 %v4625, %v6988
      %v6990 = vand.u32 %v6989, 4294901760
      %6991 = vmatprep.subr.mxu0 %v6990
      %v6992 = vand.u32 %v4624, 4294901760
      %v6993 = vsub.f32 %v4624, %v6992
      %v6994 = vand.u32 %v6993, 4294901760
      %6995 = vmatpush1.msra.mxu0 %v6994
      %v6996 = vand.u32 %v4633, 4294901760
      %v6997 = vsub.f32 %v4633, %v6996
      %v6998 = vand.u32 %v6997, 4294901760
      %6999 = vmatprep.subr.mxu0 %v6998
      %v7000 = vand.u32 %v4632, 4294901760
      %v7001 = vsub.f32 %v4632, %v7000
      %v7002 = vand.u32 %v7001, 4294901760
      %7003 = vmatpush1.msra.mxu0 %v7002
      %v7004 = vand.u32 %v4641, 4294901760
      %v7005 = vsub.f32 %v4641, %v7004
      %v7006 = vand.u32 %v7005, 4294901760
      %7007 = vmatprep.subr.mxu0 %v7006
      %v7008 = vand.u32 %v4640, 4294901760
      %v7009 = vsub.f32 %v4640, %v7008
      %v7010 = vand.u32 %v7009, 4294901760
      %7011 = vmatpush1.msra.mxu0 %v7010
      %v7012 = vand.u32 %v4649, 4294901760
      %v7013 = vsub.f32 %v4649, %v7012
      %v7014 = vand.u32 %v7013, 4294901760
      %7015 = vmatprep.subr.mxu0 %v7014
      %v7016 = vand.u32 %v4648, 4294901760
      %v7017 = vsub.f32 %v4648, %v7016
      %v7018 = vand.u32 %v7017, 4294901760
      %7019 = vmatpush1.msra.mxu0 %v7018
      %v7020 = vand.u32 %v4657, 4294901760
      %v7021 = vsub.f32 %v4657, %v7020
      %v7022 = vand.u32 %v7021, 4294901760
      %7023 = vmatprep.subr.mxu0 %v7022
      %v7024 = vand.u32 %v4656, 4294901760
      %v7025 = vsub.f32 %v4656, %v7024
      %v7026 = vand.u32 %v7025, 4294901760
      %7027 = vmatpush1.msra.mxu0 %v7026
      %v7028 = vand.u32 %v4665, 4294901760
      %v7029 = vsub.f32 %v4665, %v7028
      %v7030 = vand.u32 %v7029, 4294901760
      %7031 = vmatprep.subr.mxu0 %v7030
      %v7032 = vand.u32 %v4664, 4294901760
      %v7033 = vsub.f32 %v4664, %v7032
      %v7034 = vand.u32 %v7033, 4294901760
      %7035 = vmatpush1.msra.mxu0 %v7034
      %v7036 = vand.u32 %v4702, 4294901760
      %v7037 = vsub.f32 %v4702, %v7036
      %v7038 = vand.u32 %v7037, 4294901760
      %7039 = vmatprep.subr.mxu0 %v7038
      %v7040 = vand.u32 %v4699, 4294901760
      %v7041 = vsub.f32 %v4699, %v7040
      %v7042 = vand.u32 %v7041, 4294901760
      %7043 = vmatpush1.msra.mxu0 %v7042
      %7044 = vmatprep.subr.mxu0 0.0
      %7045 = vmatpush1.msra.mxu0 0.0
      %7046 = vmatprep.subr.mxu0 0.0
      %7047 = vmatpush1.msra.mxu0 0.0
      %7048 = vmatprep.subr.mxu0 0.0
      %7049 = vmatpush1.msra.mxu0 0.0
      %7050 = vmatprep.subr.mxu0 0.0
      %7051 = vmatpush1.msra.mxu0 0.0
      %7052 = vmatprep.subr.mxu0 0.0
      %7053 = vmatpush1.msra.mxu0 0.0
      %7054 = vmatprep.subr.mxu0 0.0
      %7055 = vmatpush1.msra.mxu0 0.0
      %7056 = vmatprep.subr.mxu0 0.0
      %7057 = vmatpush1.msra.mxu0 0.0
      %7058 = vmatprep.subr.mxu0 0.0
      %7059 = vmatpush1.msra.mxu0 0.0
      %7060 = vmatprep.subr.mxu0 0.0
      %7061 = vmatpush1.msra.mxu0 0.0
      %7062 = vmatprep.subr.mxu0 0.0
      %7063 = vmatpush1.msra.mxu0 0.0
      %7064 = vmatprep.subr.mxu0 0.0
      %7065 = vmatpush1.msra.mxu0 0.0
      %7066 = vmatprep.subr.mxu0 0.0
      %7067 = vmatpush1.msra.mxu0 0.0
      %7068 = vmatprep.subr.mxu0 0.0
      %7069 = vmatpush1.msra.mxu0 0.0
      %7070 = vmatprep.subr.mxu0 0.0
      %7071 = vmatpush1.msra.mxu0 0.0
      %7072 = vmatprep.subr.mxu0 0.0
      %7073 = vmatpush1.msra.mxu0 0.0
      %7074 = vmatprep.subr.mxu0 0.0
      %7075 = vmatpush1.msra.mxu0 0.0
      %7076 = vmatprep.subr.mxu0 0.0
      %7077 = vmatpush1.msra.mxu0 0.0
      %7078 = vmatprep.subr.mxu0 0.0
      %7079 = vmatpush1.msra.mxu0 0.0
      %7080 = vmatprep.subr.mxu0 0.0
      %7081 = vmatpush1.msra.mxu0 0.0
      %7082 = vmatprep.subr.mxu0 0.0
      %7083 = vmatpush1.msra.mxu0 0.0
      %7084 = vmatprep.subr.mxu0 0.0
      %7085 = vmatpush1.msra.mxu0 0.0
      %7086 = vmatprep.subr.mxu0 0.0
      %7087 = vmatpush1.msra.mxu0 0.0
      %7088 = vmatprep.subr.mxu0 0.0
      %7089 = vmatpush1.msra.mxu0 0.0
      %7090 = vmatprep.subr.mxu0 0.0
      %7091 = vmatpush1.msra.mxu0 0.0
      %7092 = vmatprep.subr.mxu0 0.0
      %7093 = vmatpush1.msra.mxu0 0.0
      %7094 = vmatprep.mubr.f32.mxu0 0.0
      %v7095 = vand.u32 %v4678, 4294901760
      %7096 = vmatmul.mubr.f32.gmra.mrb[0].mxu0 %v7095
      %v7097 = vpop.f32.mrb[0].mxu0
      %v7098 = vadd.f32 %v6984, %v7097
      %v7099 = vpop.f32.mrb[0].mxu0
      %v7100 = vadd.f32 %v6986, %v7099
      %7101 = vdwg.mxu0
      %v7102 = vand.u32 %v4625, 4294901760
      %7103 = vmatprep.subr.mxu0 %v7102
      %v7104 = vand.u32 %v4624, 4294901760
      %7105 = vmatpush1.msra.mxu0 %v7104
      %v7106 = vand.u32 %v4633, 4294901760
      %7107 = vmatprep.subr.mxu0 %v7106
      %v7108 = vand.u32 %v4632, 4294901760
      %7109 = vmatpush1.msra.mxu0 %v7108
      %v7110 = vand.u32 %v4641, 4294901760
      %7111 = vmatprep.subr.mxu0 %v7110
      %v7112 = vand.u32 %v4640, 4294901760
      %7113 = vmatpush1.msra.mxu0 %v7112
      %v7114 = vand.u32 %v4649, 4294901760
      %7115 = vmatprep.subr.mxu0 %v7114
      %v7116 = vand.u32 %v4648, 4294901760
      %7117 = vmatpush1.msra.mxu0 %v7116
      %v7118 = vand.u32 %v4657, 4294901760
      %7119 = vmatprep.subr.mxu0 %v7118
      %v7120 = vand.u32 %v4656, 4294901760
      %7121 = vmatpush1.msra.mxu0 %v7120
      %v7122 = vand.u32 %v4665, 4294901760
      %7123 = vmatprep.subr.mxu0 %v7122
      %v7124 = vand.u32 %v4664, 4294901760
      %7125 = vmatpush1.msra.mxu0 %v7124
      %v7126 = vand.u32 %v4702, 4294901760
      %7127 = vmatprep.subr.mxu0 %v7126
      %v7128 = vand.u32 %v4699, 4294901760
      %7129 = vmatpush1.msra.mxu0 %v7128
      %7130 = vmatprep.subr.mxu0 0.0
      %7131 = vmatpush1.msra.mxu0 0.0
      %7132 = vmatprep.subr.mxu0 0.0
      %7133 = vmatpush1.msra.mxu0 0.0
      %7134 = vmatprep.subr.mxu0 0.0
      %7135 = vmatpush1.msra.mxu0 0.0
      %7136 = vmatprep.subr.mxu0 0.0
      %7137 = vmatpush1.msra.mxu0 0.0
      %7138 = vmatprep.subr.mxu0 0.0
      %7139 = vmatpush1.msra.mxu0 0.0
      %7140 = vmatprep.subr.mxu0 0.0
      %7141 = vmatpush1.msra.mxu0 0.0
      %7142 = vmatprep.subr.mxu0 0.0
      %7143 = vmatpush1.msra.mxu0 0.0
      %7144 = vmatprep.subr.mxu0 0.0
      %7145 = vmatpush1.msra.mxu0 0.0
      %7146 = vmatprep.subr.mxu0 0.0
      %7147 = vmatpush1.msra.mxu0 0.0
      %7148 = vmatprep.subr.mxu0 0.0
      %7149 = vmatpush1.msra.mxu0 0.0
      %7150 = vmatprep.subr.mxu0 0.0
      %7151 = vmatpush1.msra.mxu0 0.0
      %7152 = vmatprep.subr.mxu0 0.0
      %7153 = vmatpush1.msra.mxu0 0.0
      %7154 = vmatprep.subr.mxu0 0.0
      %7155 = vmatpush1.msra.mxu0 0.0
      %7156 = vmatprep.subr.mxu0 0.0
      %7157 = vmatpush1.msra.mxu0 0.0
      %7158 = vmatprep.subr.mxu0 0.0
      %7159 = vmatpush1.msra.mxu0 0.0
      %7160 = vmatprep.subr.mxu0 0.0
      %7161 = vmatpush1.msra.mxu0 0.0
      %7162 = vmatprep.subr.mxu0 0.0
      %7163 = vmatpush1.msra.mxu0 0.0
      %7164 = vmatprep.subr.mxu0 0.0
      %7165 = vmatpush1.msra.mxu0 0.0
      %7166 = vmatprep.subr.mxu0 0.0
      %7167 = vmatpush1.msra.mxu0 0.0
      %7168 = vmatprep.subr.mxu0 0.0
      %7169 = vmatpush1.msra.mxu0 0.0
      %7170 = vmatprep.subr.mxu0 0.0
      %7171 = vmatpush1.msra.mxu0 0.0
      %7172 = vmatprep.subr.mxu0 0.0
      %7173 = vmatpush1.msra.mxu0 0.0
      %7174 = vmatprep.subr.mxu0 0.0
      %7175 = vmatpush1.msra.mxu0 0.0
      %7176 = vmatprep.subr.mxu0 0.0
      %7177 = vmatpush1.msra.mxu0 0.0
      %7178 = vmatprep.subr.mxu0 0.0
      %7179 = vmatpush1.msra.mxu0 0.0
      %7180 = vmatprep.mubr.f32.mxu0 0.0
      %v7181 = vand.u32 %v4678, 4294901760
      %7182 = vmatmul.mubr.f32.gmra.mrb[0].mxu0 %v7181
      %v7183 = vpop.f32.mrb[0].mxu0
      %v7184 = vadd.f32 %v7098, %v7183
      %v7185 = vpop.f32.mrb[0].mxu0
      %v7186 = vadd.f32 %v7100, %v7185
      %7187 = vdwg.mxu0
      %v7196 = vcombine.low %v5321, %v5323
      %v7197 = vcombine.low %v5942, %v5944
      %v7198 = vcombine.low %v6563, %v6565
      %v7199 = vcombine.low %v7184, %v7186
      %v7201 = vunpack.c.l.s4 1966171168
      %v7202 = vunpack.c.0.s8 %v7201
      %v7203 = vlaneseq
      %v7204 = vshrl.u32 %v7203, 7
      %v7205 = vsub.s32 %v7202, %v7204
      %v7206 = vrot.slane %v7196, %v7205
      %v7208 = vunpack.c.l.s4 1966171168
      %v7209 = vunpack.c.0.s8 %v7208
      %v7210 = vlaneseq
      %v7211 = vshrl.u32 %v7210, 7
      %v7212 = vsub.s32 %v7209, %v7211
      %v7213 = vrot.slane %v7197, %v7212
      %v7215 = vunpack.c.l.s4 1966171168
      %v7216 = vunpack.c.0.s8 %v7215
      %v7217 = vlaneseq
      %v7218 = vshrl.u32 %v7217, 7
      %v7219 = vsub.s32 %v7216, %v7218
      %v7220 = vrot.slane %v7198, %v7219
      %v7222 = vunpack.c.l.s4 1966171168
      %v7223 = vunpack.c.0.s8 %v7222
      %v7224 = vlaneseq
      %v7225 = vshrl.u32 %v7224, 7
      %v7226 = vsub.s32 %v7223, %v7225
      %v7227 = vrot.slane %v7199, %v7226
      %v7228 = vcombine.low %v7206, %v7213
      %v7229 = vcombine.low %v7220, %v7227
      %v7231 = vunpack.c.l.s4 1966171168
      %v7232 = vunpack.c.0.s8 %v7231
      %v7233 = vlaneseq
      %v7234 = vshrl.u32 %v7233, 7
      %v7235 = vsub.s32 %v7232, %v7234
      %v7236 = vrot.slane %v7228, %v7235
      %v7238 = vunpack.c.l.s4 1966171168
      %v7239 = vunpack.c.0.s8 %v7238
      %v7240 = vlaneseq
      %v7241 = vshrl.u32 %v7240, 7
      %v7242 = vsub.s32 %v7239, %v7241
      %v7243 = vrot.slane %v7229, %v7242
      %v7244 = vcombine.low %v7236, %v7243
      %7246 = vst [vmem:[%s306] sm:$0xff] %v7244
      %s7247 = smul.u32 8, %s20
      %p7248 = scmp.lt.s32.totalorder %s7247, 15
      %s7249 = scalar_select %p7248, %s7247, 15
      %s7250 = scalar_lea.vmem %s8, %s7249
      // Predicated region
      $region53: #{helmholtz_pinn_forward.1} parent=51 // pred_check
        %p7251 = pneg %p211
      $region54: #{helmholtz_pinn_forward.1} parent=51 // pred_check_branch
        %7253 = sbr.rel (%p7251) target = $region56
      $region55: #{helmholtz_pinn_forward.1} parent=51 // pred_region
        %s7254 = smul.u32 8, %s20
      $region56: #{helmholtz_pinn_forward.1} parent=51 // pred_fallthru
        _
    $region52: #{helmholtz_pinn_forward.1} parent=5 // pred_fallthru
      _
    %p7255 = scmp.le.s32.totalorder 2, %s15
    // Predicated region
    $region57: #{helmholtz_pinn_forward.1} parent=5 // pred_check
      %p7256 = pneg %p7255
    $region58: #{helmholtz_pinn_forward.1} parent=5 // pred_check_branch
      %7258 = sbr.rel (%p7256) target = $region60
    $region59: #{helmholtz_pinn_forward.1} parent=5 // pred_region
      %s7259 = ssub.s32 %s15, 2
      // Predicated region
      $region61: #{helmholtz_pinn_forward.1} parent=59 // pred_check
        %p7260 = pneg %p217
      $region62: #{helmholtz_pinn_forward.1} parent=59 // pred_check_branch
        %7262 = sbr.rel (%p7260) target = $region64
      $region63: #{helmholtz_pinn_forward.1} parent=59 // pred_region
        %s7263 = smul.u32 8, %s21
        %p7264 = scmp.lt.s32.totalorder %s7263, 15
        %s7265 = scalar_select %p7264, %s7263, 15
        %s7266 = scalar_lea.vmem %s8, %s7265
      $region64: #{helmholtz_pinn_forward.1} parent=59 // pred_fallthru
        _
    $region60: #{helmholtz_pinn_forward.1} parent=5 // pred_fallthru
      _
  $region6: #{helmholtz_pinn_forward.1} parent=0 // loop_footer
    %s19 = sadd.s32 1, %s15
  $region7: #{helmholtz_pinn_forward.1} parent=0 // loop_footer_branch
    %14 = sbr.rel target = $region3
  $region8: #{helmholtz_pinn_forward.1} parent=0 // loop_exit
    _

</llo_original>
